<compile_context>
chip_gen: v6e
topology: v6e:2x2x1
jax: 0.10.0
libtpu: 0.0.40
codegen_flags: <defaults>
</compile_context>

<pallas_src>
import jax
import jax.numpy as jnp
from jax.experimental import pallas as pl
from jax.experimental.pallas import tpu as pltpu

ACTION_NUM = 3
HIDDEN_SIZE = 300
BN_EPS = 1e-5
CONV_SPECS = ((3, 2), (4, 2), (5, 2))   # (kernel, stride) for conv1..conv3
TM = 2048                               # row tile for the conv matmuls
TM_MLP = 256                            # row tile for the fused MLP
VMEM_LIMIT = 32 * 1024 * 1024


def _round_up(x, m):
    return (x + m - 1) // m * m


def _cdiv(a, b):
    return -(-a // b)


def _choose_tile(m, max_tile):
    """Row tile: multiple of 8, >=2 grid steps when possible, near-even split."""
    if m <= 16:                       # tiny M: single full-array block
        return m
    blocks = max(2, _cdiv(m, max_tile))
    tm = _round_up(_cdiv(m, blocks), 8)
    return min(tm, _round_up(m, 8))


# ----------------------------- Pallas kernels -------------------------------

def matmul_bias_relu_kernel(x_ref, w_ref, b_ref, o_ref):
    """o = relu(x @ w + b); bf16 operands on the MXU, f32 accumulate/epilogue."""
    y = jnp.dot(x_ref[...], w_ref[...], preferred_element_type=jnp.float32)
    o_ref[...] = jnp.maximum(y + b_ref[...], 0.0).astype(o_ref.dtype)


def mlp_fused_kernel(x_ref, w1_ref, b1_ref, w2_ref, b2_ref, o_ref):
    """Fused hid1+head: h = relu(x@W1+b1) kept on-chip, o = h@W2+b2 (f32)."""
    h = jnp.dot(x_ref[...], w1_ref[...], preferred_element_type=jnp.float32)
    h = jnp.maximum(h + b1_ref[...], 0.0)
    y = jnp.dot(h.astype(jnp.bfloat16), w2_ref[...],
                preferred_element_type=jnp.float32)
    o_ref[...] = (y + b2_ref[...]).astype(o_ref.dtype)


# ----------------------------- conv matmul ----------------------------------

def conv_matmul(patches, w_packed, b_packed, w_plain, b_plain, r, cout):
    """Gridded fused matmul+bias+ReLU with lane-dense row packing when M % r == 0.

    Packing view: (M, K) -> (M//r, r*K) is a contiguous reshape; the packed
    output (M//r, r*cout=128) reshapes contiguously back to (M, cout).
    """
    M, K = patches.shape
    if r > 1 and M % r == 0:
        x = patches.reshape(M // r, r * K)
        w, b = w_packed, b_packed
    else:                              # e.g. conv2 when batch % 4 != 0
        x, w, b = patches, w_plain, b_plain
    Mp, Kp = x.shape
    N = w.shape[1]
    tm = _choose_tile(Mp, TM)
    grid_m = _cdiv(Mp, tm)
    out = pl.pallas_call(
        matmul_bias_relu_kernel,
        out_shape=jax.ShapeDtypeStruct((Mp, N), jnp.bfloat16),
        grid=(grid_m,),
        in_specs=[
            pl.BlockSpec((tm, Kp), lambda i: (i, 0)),
            pl.BlockSpec((Kp, N), lambda i: (0, 0)),   # weight stays resident
            pl.BlockSpec((1, N), lambda i: (0, 0)),    # bias stays resident
        ],
        out_specs=pl.BlockSpec((tm, N), lambda i: (i, 0)),
        compiler_params=pltpu.CompilerParams(
            dimension_semantics=("parallel",),
            vmem_limit_bytes=VMEM_LIMIT),
    )(x, w, b)
    return out.reshape(M, cout)


# ----------------------------- fused MLP -------------------------------------

def mlp_fused(x, w1, b1, w2, b2):
    M, K = x.shape
    Hp = w1.shape[1]
    Ap = w2.shape[1]
    tm = _choose_tile(M, TM_MLP)
    grid_m = _cdiv(M, tm)
    y = pl.pallas_call(
        mlp_fused_kernel,
        out_shape=jax.ShapeDtypeStruct((M, Ap), jnp.float32),
        grid=(grid_m,),
        in_specs=[
            pl.BlockSpec((tm, K), lambda i: (i, 0)),
            pl.BlockSpec((K, Hp), lambda i: (0, 0)),
            pl.BlockSpec((1, Hp), lambda i: (0, 0)),
            pl.BlockSpec((Hp, Ap), lambda i: (0, 0)),
            pl.BlockSpec((1, Ap), lambda i: (0, 0)),
        ],
        out_specs=pl.BlockSpec((tm, Ap), lambda i: (i, 0)),
        compiler_params=pltpu.CompilerParams(
            dimension_semantics=("parallel",),
            vmem_limit_bytes=VMEM_LIMIT),
    )(x, w1, b1, w2, b2)
    return y[:, :ACTION_NUM]           # drop the lane padding of the head


# ----------------------------- conv plumbing --------------------------------

def im2col_nhwc(x, kh, kw, stride):
    """NHWC -> (N*OH*OW, KH*KW*C) patches; K ordered (kh, kw, cin), bf16."""
    n, h, w, c = x.shape
    oh = (h - kh) // stride + 1
    ow = (w - kw) // stride + 1
    cols = []
    for i in range(kh):
        for j in range(kw):
            cols.append(x[:, i:i + stride * oh:stride,
                          j:j + stride * ow:stride, :])
    p = jnp.concatenate(cols, axis=-1)            # (N, OH, OW, KH*KW*C)
    return p.reshape(n * oh * ow, kh * kw * c), oh, ow


# ----------------------------- parameter prep -------------------------------

def prepare_params(params):
    """One-time fold of BN into conv weights, row-packed block-diagonal weights,
    NHWC permute of hid1, lane padding, bf16 casts."""
    prep = {}
    for idx, (k, _s) in enumerate(CONV_SPECS, start=1):
        w, b = params[f"conv{idx}"]
        gamma, beta, rmean, rvar = params[f"bn{idx}"]
        cout, cin, kh, kw = w.shape
        inv_std = gamma / jnp.sqrt(rvar + BN_EPS)
        wmat = w.transpose(2, 3, 1, 0).reshape(kh * kw * cin, cout)  # (kh,kw,cin) rows
        wmat = wmat * inv_std[None, :]                               # fold BN scale
        shift = (b - rmean) * inv_std + beta                         # fused bias
        r = max(1, 128 // cout)                                      # rows packed per matmul row
        prep[f"conv{idx}_w"] = wmat.astype(jnp.bfloat16)                       # (K, cout)
        prep[f"conv{idx}_b"] = shift.reshape(1, cout).astype(jnp.float32)
        prep[f"conv{idx}_wp"] = jnp.kron(jnp.eye(r, dtype=jnp.float32),
                                         wmat).astype(jnp.bfloat16)            # (r*K, 128) block-diag
        prep[f"conv{idx}_bp"] = jnp.tile(shift, r).reshape(1, r * cout).astype(jnp.float32)

    # hid1 / head: permute hid1 rows from PyTorch's (C,H,W) flatten to our NHWC
    # (H,W,C) flatten; pad hidden to 384 lanes and head to 128 lanes; cast bf16.
    w1, b1 = params["hid1"]          # (300, 3200), (300,)
    w2, b2 = params["head"]          # (3, 300),   (3,)
    C, H, W = 64, 5, 10
    w1_hwc = w1.reshape(HIDDEN_SIZE, C, H, W).transpose(0, 2, 3, 1)
    w1_mat = w1_hwc.reshape(HIDDEN_SIZE, C * H * W).T                # (3200, 300)
    Hp = _round_up(HIDDEN_SIZE, 128)                                 # 384
    Ap = _round_up(ACTION_NUM, 128)                                  # 128
    prep["w1"] = (jnp.zeros((C * H * W, Hp), jnp.bfloat16)
                  .at[:, :HIDDEN_SIZE].set(w1_mat.astype(jnp.bfloat16)))
    prep["b1"] = (jnp.zeros((1, Hp), jnp.float32)
                  .at[0, :HIDDEN_SIZE].set(b1.astype(jnp.float32)))
    prep["w2"] = (jnp.zeros((Hp, Ap), jnp.bfloat16)
                  .at[:HIDDEN_SIZE, :ACTION_NUM].set(w2.T.astype(jnp.bfloat16)))
    prep["b2"] = (jnp.zeros((1, Ap), jnp.float32)
                  .at[0, :ACTION_NUM].set(b2.astype(jnp.float32)))
    return prep


# ----------------------------- model ----------------------------------------

@jax.jit
def dqn_forward(x_nchw, prep):
    x = jnp.transpose(x_nchw, (0, 2, 3, 1)).astype(jnp.bfloat16)   # NHWC, bf16
    for idx, (k, s) in enumerate(CONV_SPECS, start=1):
        cout = prep[f"conv{idx}_b"].shape[1]
        r = max(1, 128 // cout)
        patches, oh, ow = im2col_nhwc(x, k, k, s)
        y = conv_matmul(patches,
                        prep[f"conv{idx}_wp"], prep[f"conv{idx}_bp"],
                        prep[f"conv{idx}_w"], prep[f"conv{idx}_b"],
                        r, cout)                               # (N*OH*OW, cout) bf16
        x = y.reshape(x.shape[0], oh, ow, cout)                # NHWC, no transpose
    flat = x.reshape(x.shape[0], -1)                           # (N, H*W*C), bf16
    return mlp_fused(flat, prep["w1"], prep["b1"], prep["w2"], prep["b2"])


# ----------------------------- deterministic init ---------------------------

def init_params(key):
    ks = jax.random.split(key, 8)

    def conv_p(k, cout, cin, kh, kw):
        k1, k2 = jax.random.split(k)
        bound = 1.0 / jnp.sqrt(cin * kh * kw)
        w = jax.random.uniform(k1, (cout, cin, kh, kw), jnp.float32, -bound, bound)
        b = jax.random.uniform(k2, (cout,), jnp.float32, -bound, bound)
        return (w, b)

    def bn_p(k, c):
        k1, k2, k3, k4 = jax.random.split(k, 4)
        gamma = jax.random.uniform(k1, (c,), jnp.float32, 0.5, 1.5)
        beta = 0.1 * jax.random.normal(k2, (c,), jnp.float32)
        rmean = 0.1 * jax.random.normal(k3, (c,), jnp.float32)
        rvar = jax.random.uniform(k4, (c,), jnp.float32, 0.5, 1.5)
        return (gamma, beta, rmean, rvar)

    def lin_p(k, out_f, in_f):
        k1, k2 = jax.random.split(k)
        bound = 1.0 / jnp.sqrt(in_f)
        w = jax.random.uniform(k1, (out_f, in_f), jnp.float32, -bound, bound)
        b = jax.random.uniform(k2, (out_f,), jnp.float32, -bound, bound)
        return (w, b)

    return {
        "conv1": conv_p(ks[0], 16, 8, 3, 3),
        "bn1": bn_p(ks[1], 16),
        "conv2": conv_p(ks[2], 32, 16, 4, 4),
        "bn2": bn_p(ks[3], 32),
        "conv3": conv_p(ks[4], 64, 32, 5, 5),
        "bn3": bn_p(ks[5], 64),
        "hid1": lin_p(ks[6], HIDDEN_SIZE, 3200),
        "head": lin_p(ks[7], ACTION_NUM, HIDDEN_SIZE),
    }


# ----------------------------- main ------------------------------------------

if __name__ == "__main__":
    key = jax.random.PRNGKey(0)
    pkey, xkey = jax.random.split(key)

    params = init_params(pkey)
    prep = prepare_params(params)

    # (57, 97) -> conv1 (28, 48) -> conv2 (13, 23) -> conv3 (5, 10); 64*5*10 = 3200.
    x = jax.random.normal(xkey, (2, 8, 57, 97), jnp.float32)

    out = dqn_forward(x, prep)
    out = jax.block_until_ready(out)

    assert out.shape == (2, ACTION_NUM), out.shape
    assert out.dtype == jnp.float32
    assert bool(jnp.all(jnp.isfinite(out)))
    print("KERNEL_OK")
</pallas_src>

<mosaic_0001>
module attributes {stable_mosaic.version = 11 : i64} {
  func.func @matmul_bias_relu_kernel(%arg0: i32, %arg1: memref<168x576xbf16, #tpu.memory_space<vmem>>, %arg2: memref<576x128xbf16, #tpu.memory_space<vmem>>, %arg3: memref<1x128xf32, #tpu.memory_space<vmem>>, %arg4: memref<168x128xbf16, #tpu.memory_space<vmem>>) attributes {dimension_semantics = [#tpu.dimension_semantics<parallel>], iteration_bounds = array<i64: 2>, scalar_prefetch = 0 : i64, scratch_operands = 0 : i64, tpu.core_type = #tpu.core_type<tc>, window_params = [{transform_indices = @transform_0, window_bounds = array<i64: 168, 576>}, {pipeline_mode = #tpu.pipeline_mode<synchronous>, transform_indices = @transform_1, window_bounds = array<i64: 576, 128>}, {pipeline_mode = #tpu.pipeline_mode<synchronous>, transform_indices = @transform_2, window_bounds = array<i64: 1, 128>}, {transform_indices = @transform_3, window_bounds = array<i64: 168, 128>}]} {
    %c0 = arith.constant 0 : index
    %c0_0 = arith.constant 0 : index
    %0 = vector.load %arg1[%c0, %c0_0] : memref<168x576xbf16, #tpu.memory_space<vmem>>, vector<168x576xbf16>
    %c0_1 = arith.constant 0 : index
    %c0_2 = arith.constant 0 : index
    %1 = vector.load %arg2[%c0_1, %c0_2] : memref<576x128xbf16, #tpu.memory_space<vmem>>, vector<576x128xbf16>
    %cst = arith.constant dense<0.000000e+00> : vector<168x128xf32>
    %2 = tpu.matmul %0, %1, %cst {dimension_numbers = #tpu.dot_dimension_numbers<[1], [0], [0], [1], [0, 0, 1, 1], [], []>} : vector<168x576xbf16>, vector<576x128xbf16>, vector<168x128xf32> -> vector<168x128xf32>
    %c0_3 = arith.constant 0 : index
    %c0_4 = arith.constant 0 : index
    %3 = vector.load %arg3[%c0_3, %c0_4] : memref<1x128xf32, #tpu.memory_space<vmem>>, vector<1x128xf32>
    %4 = vector.broadcast %3 : vector<1x128xf32> to vector<168x128xf32>
    %5 = arith.addf %2, %4 : vector<168x128xf32>
    %cst_5 = arith.constant 0.000000e+00 : f32
    %6 = vector.broadcast %cst_5 : f32 to vector<168x128xf32>
    %7 = arith.maximumf %5, %6 : vector<168x128xf32>
    %8 = arith.truncf %7 : vector<168x128xf32> to vector<168x128xbf16>
    %c0_6 = arith.constant 0 : index
    %c0_7 = arith.constant 0 : index
    %9 = vector.load %arg4[%c0_6, %c0_7] : memref<168x128xbf16, #tpu.memory_space<vmem>>, vector<168x128xbf16>
    tpu.vector_store %arg4[%c0_6, %c0_7], %8 {strides = array<i32>} : memref<168x128xbf16, #tpu.memory_space<vmem>>, vector<168x128xbf16>,
    return
  }
  func.func @transform_0(%arg0: i32) -> (i32, i32) {
    %c0_i32 = arith.constant 0 : i32
    %c0_i32_0 = arith.constant 0 : i32
    return %arg0, %c0_i32 : i32, i32
  }
  func.func @transform_1(%arg0: i32) -> (i32, i32) {
    %c0_i32 = arith.constant 0 : i32
    %c0_i32_0 = arith.constant 0 : i32
    %c0_i32_1 = arith.constant 0 : i32
    return %c0_i32, %c0_i32_0 : i32, i32
  }
  func.func @transform_2(%arg0: i32) -> (i32, i32) {
    %c0_i32 = arith.constant 0 : i32
    %c0_i32_0 = arith.constant 0 : i32
    %c0_i32_1 = arith.constant 0 : i32
    return %c0_i32, %c0_i32_0 : i32, i32
  }
  func.func @transform_3(%arg0: i32) -> (i32, i32) {
    %c0_i32 = arith.constant 0 : i32
    %c0_i32_0 = arith.constant 0 : i32
    return %arg0, %c0_i32 : i32, i32
  }
}

module attributes {stable_mosaic.version = 11 : i64} {
  func.func @matmul_bias_relu_kernel(%arg0: i32, %arg1: memref<304x256xbf16, #tpu.memory_space<vmem>>, %arg2: memref<256x32xbf16, #tpu.memory_space<vmem>>, %arg3: memref<1x32xf32, #tpu.memory_space<vmem>>, %arg4: memref<304x32xbf16, #tpu.memory_space<vmem>>) attributes {dimension_semantics = [#tpu.dimension_semantics<parallel>], iteration_bounds = array<i64: 2>, scalar_prefetch = 0 : i64, scratch_operands = 0 : i64, tpu.core_type = #tpu.core_type<tc>, window_params = [{transform_indices = @transform_0, window_bounds = array<i64: 304, 256>}, {pipeline_mode = #tpu.pipeline_mode<synchronous>, transform_indices = @transform_1, window_bounds = array<i64: 256, 32>}, {pipeline_mode = #tpu.pipeline_mode<synchronous>, transform_indices = @transform_2, window_bounds = array<i64: 1, 32>}, {transform_indices = @transform_3, window_bounds = array<i64: 304, 32>}]} {
    %c0 = arith.constant 0 : index
    %c0_0 = arith.constant 0 : index
    %0 = vector.load %arg1[%c0, %c0_0] : memref<304x256xbf16, #tpu.memory_space<vmem>>, vector<304x256xbf16>
    %c0_1 = arith.constant 0 : index
    %c0_2 = arith.constant 0 : index
    %1 = vector.load %arg2[%c0_1, %c0_2] : memref<256x32xbf16, #tpu.memory_space<vmem>>, vector<256x32xbf16>
    %cst = arith.constant dense<0.000000e+00> : vector<304x32xf32>
    %2 = tpu.matmul %0, %1, %cst {dimension_numbers = #tpu.dot_dimension_numbers<[1], [0], [0], [1], [0, 0, 1, 1], [], []>} : vector<304x256xbf16>, vector<256x32xbf16>, vector<304x32xf32> -> vector<304x32xf32>
    %c0_3 = arith.constant 0 : index
    %c0_4 = arith.constant 0 : index
    %3 = vector.load %arg3[%c0_3, %c0_4] : memref<1x32xf32, #tpu.memory_space<vmem>>, vector<1x32xf32>
    %4 = vector.broadcast %3 : vector<1x32xf32> to vector<304x32xf32>
    %5 = arith.addf %2, %4 : vector<304x32xf32>
    %cst_5 = arith.constant 0.000000e+00 : f32
    %6 = vector.broadcast %cst_5 : f32 to vector<304x32xf32>
    %7 = arith.maximumf %5, %6 : vector<304x32xf32>
    %8 = arith.truncf %7 : vector<304x32xf32> to vector<304x32xbf16>
    %c0_6 = arith.constant 0 : index
    %c0_7 = arith.constant 0 : index
    %9 = vector.load %arg4[%c0_6, %c0_7] : memref<304x32xbf16, #tpu.memory_space<vmem>>, vector<304x32xbf16>
    tpu.vector_store %arg4[%c0_6, %c0_7], %8 {strides = array<i32>} : memref<304x32xbf16, #tpu.memory_space<vmem>>, vector<304x32xbf16>,
    return
  }
  func.func @transform_0(%arg0: i32) -> (i32, i32) {
    %c0_i32 = arith.constant 0 : i32
    %c0_i32_0 = arith.constant 0 : i32
    return %arg0, %c0_i32 : i32, i32
  }
  func.func @transform_1(%arg0: i32) -> (i32, i32) {
    %c0_i32 = arith.constant 0 : i32
    %c0_i32_0 = arith.constant 0 : i32
    %c0_i32_1 = arith.constant 0 : i32
    return %c0_i32, %c0_i32_0 : i32, i32
  }
  func.func @transform_2(%arg0: i32) -> (i32, i32) {
    %c0_i32 = arith.constant 0 : i32
    %c0_i32_0 = arith.constant 0 : i32
    %c0_i32_1 = arith.constant 0 : i32
    return %c0_i32, %c0_i32_0 : i32, i32
  }
  func.func @transform_3(%arg0: i32) -> (i32, i32) {
    %c0_i32 = arith.constant 0 : i32
    %c0_i32_0 = arith.constant 0 : i32
    return %arg0, %c0_i32 : i32, i32
  }
}

module attributes {stable_mosaic.version = 11 : i64} {
  func.func @matmul_bias_relu_kernel(%arg0: i32, %arg1: memref<32x1600xbf16, #tpu.memory_space<vmem>>, %arg2: memref<1600x128xbf16, #tpu.memory_space<vmem>>, %arg3: memref<1x128xf32, #tpu.memory_space<vmem>>, %arg4: memref<32x128xbf16, #tpu.memory_space<vmem>>) attributes {dimension_semantics = [#tpu.dimension_semantics<parallel>], iteration_bounds = array<i64: 2>, scalar_prefetch = 0 : i64, scratch_operands = 0 : i64, tpu.core_type = #tpu.core_type<tc>, window_params = [{transform_indices = @transform_0, window_bounds = array<i64: 32, 1600>}, {pipeline_mode = #tpu.pipeline_mode<synchronous>, transform_indices = @transform_1, window_bounds = array<i64: 1600, 128>}, {pipeline_mode = #tpu.pipeline_mode<synchronous>, transform_indices = @transform_2, window_bounds = array<i64: 1, 128>}, {transform_indices = @transform_3, window_bounds = array<i64: 32, 128>}]} {
    %c0 = arith.constant 0 : index
    %c0_0 = arith.constant 0 : index
    %0 = vector.load %arg1[%c0, %c0_0] : memref<32x1600xbf16, #tpu.memory_space<vmem>>, vector<32x1600xbf16>
    %c0_1 = arith.constant 0 : index
    %c0_2 = arith.constant 0 : index
    %1 = vector.load %arg2[%c0_1, %c0_2] : memref<1600x128xbf16, #tpu.memory_space<vmem>>, vector<1600x128xbf16>
    %cst = arith.constant dense<0.000000e+00> : vector<32x128xf32>
    %2 = tpu.matmul %0, %1, %cst {dimension_numbers = #tpu.dot_dimension_numbers<[1], [0], [0], [1], [0, 0, 1, 1], [], []>} : vector<32x1600xbf16>, vector<1600x128xbf16>, vector<32x128xf32> -> vector<32x128xf32>
    %c0_3 = arith.constant 0 : index
    %c0_4 = arith.constant 0 : index
    %3 = vector.load %arg3[%c0_3, %c0_4] : memref<1x128xf32, #tpu.memory_space<vmem>>, vector<1x128xf32>
    %4 = vector.broadcast %3 : vector<1x128xf32> to vector<32x128xf32>
    %5 = arith.addf %2, %4 : vector<32x128xf32>
    %cst_5 = arith.constant 0.000000e+00 : f32
    %6 = vector.broadcast %cst_5 : f32 to vector<32x128xf32>
    %7 = arith.maximumf %5, %6 : vector<32x128xf32>
    %8 = arith.truncf %7 : vector<32x128xf32> to vector<32x128xbf16>
    %c0_6 = arith.constant 0 : index
    %c0_7 = arith.constant 0 : index
    %9 = vector.load %arg4[%c0_6, %c0_7] : memref<32x128xbf16, #tpu.memory_space<vmem>>, vector<32x128xbf16>
    tpu.vector_store %arg4[%c0_6, %c0_7], %8 {strides = array<i32>} : memref<32x128xbf16, #tpu.memory_space<vmem>>, vector<32x128xbf16>,
    return
  }
  func.func @transform_0(%arg0: i32) -> (i32, i32) {
    %c0_i32 = arith.constant 0 : i32
    %c0_i32_0 = arith.constant 0 : i32
    return %arg0, %c0_i32 : i32, i32
  }
  func.func @transform_1(%arg0: i32) -> (i32, i32) {
    %c0_i32 = arith.constant 0 : i32
    %c0_i32_0 = arith.constant 0 : i32
    %c0_i32_1 = arith.constant 0 : i32
    return %c0_i32, %c0_i32_0 : i32, i32
  }
  func.func @transform_2(%arg0: i32) -> (i32, i32) {
    %c0_i32 = arith.constant 0 : i32
    %c0_i32_0 = arith.constant 0 : i32
    %c0_i32_1 = arith.constant 0 : i32
    return %c0_i32, %c0_i32_0 : i32, i32
  }
  func.func @transform_3(%arg0: i32) -> (i32, i32) {
    %c0_i32 = arith.constant 0 : i32
    %c0_i32_0 = arith.constant 0 : i32
    return %arg0, %c0_i32 : i32, i32
  }
}

module attributes {stable_mosaic.version = 11 : i64} {
  func.func @mlp_fused_kernel(%arg0: i32, %arg1: memref<2x3200xbf16, #tpu.memory_space<vmem>>, %arg2: memref<3200x384xbf16, #tpu.memory_space<vmem>>, %arg3: memref<1x384xf32, #tpu.memory_space<vmem>>, %arg4: memref<384x128xbf16, #tpu.memory_space<vmem>>, %arg5: memref<1x128xf32, #tpu.memory_space<vmem>>, %arg6: memref<2x128xf32, #tpu.memory_space<vmem>>) attributes {dimension_semantics = [#tpu.dimension_semantics<parallel>], iteration_bounds = array<i64: 1>, scalar_prefetch = 0 : i64, scratch_operands = 0 : i64, tpu.core_type = #tpu.core_type<tc>, window_params = [{transform_indices = @transform_0, window_bounds = array<i64: 2, 3200>}, {pipeline_mode = #tpu.pipeline_mode<synchronous>, transform_indices = @transform_1, window_bounds = array<i64: 3200, 384>}, {pipeline_mode = #tpu.pipeline_mode<synchronous>, transform_indices = @transform_2, window_bounds = array<i64: 1, 384>}, {pipeline_mode = #tpu.pipeline_mode<synchronous>, transform_indices = @transform_3, window_bounds = array<i64: 384, 128>}, {pipeline_mode = #tpu.pipeline_mode<synchronous>, transform_indices = @transform_4, window_bounds = array<i64: 1, 128>}, {transform_indices = @transform_5, window_bounds = array<i64: 2, 128>}]} {
    %c0 = arith.constant 0 : index
    %c0_0 = arith.constant 0 : index
    %0 = vector.load %arg1[%c0, %c0_0] : memref<2x3200xbf16, #tpu.memory_space<vmem>>, vector<2x3200xbf16>
    %c0_1 = arith.constant 0 : index
    %c0_2 = arith.constant 0 : index
    %1 = vector.load %arg2[%c0_1, %c0_2] : memref<3200x384xbf16, #tpu.memory_space<vmem>>, vector<3200x384xbf16>
    %cst = arith.constant dense<0.000000e+00> : vector<2x384xf32>
    %2 = tpu.matmul %0, %1, %cst {dimension_numbers = #tpu.dot_dimension_numbers<[1], [0], [0], [1], [0, 0, 1, 1], [], []>} : vector<2x3200xbf16>, vector<3200x384xbf16>, vector<2x384xf32> -> vector<2x384xf32>
    %c0_3 = arith.constant 0 : index
    %c0_4 = arith.constant 0 : index
    %3 = vector.load %arg3[%c0_3, %c0_4] : memref<1x384xf32, #tpu.memory_space<vmem>>, vector<1x384xf32>
    %4 = vector.broadcast %3 : vector<1x384xf32> to vector<2x384xf32>
    %5 = arith.addf %2, %4 : vector<2x384xf32>
    %cst_5 = arith.constant 0.000000e+00 : f32
    %6 = vector.broadcast %cst_5 : f32 to vector<2x384xf32>
    %7 = arith.maximumf %5, %6 : vector<2x384xf32>
    %8 = arith.truncf %7 : vector<2x384xf32> to vector<2x384xbf16>
    %c0_6 = arith.constant 0 : index
    %c0_7 = arith.constant 0 : index
    %9 = vector.load %arg4[%c0_6, %c0_7] : memref<384x128xbf16, #tpu.memory_space<vmem>>, vector<384x128xbf16>
    %cst_8 = arith.constant dense<0.000000e+00> : vector<2x128xf32>
    %10 = tpu.matmul %8, %9, %cst_8 {dimension_numbers = #tpu.dot_dimension_numbers<[1], [0], [0], [1], [0, 0, 1, 1], [], []>} : vector<2x384xbf16>, vector<384x128xbf16>, vector<2x128xf32> -> vector<2x128xf32>
    %c0_9 = arith.constant 0 : index
    %c0_10 = arith.constant 0 : index
    %11 = vector.load %arg5[%c0_9, %c0_10] : memref<1x128xf32, #tpu.memory_space<vmem>>, vector<1x128xf32>
    %12 = vector.broadcast %11 : vector<1x128xf32> to vector<2x128xf32>
    %13 = arith.addf %10, %12 : vector<2x128xf32>
    %c0_11 = arith.constant 0 : index
    %c0_12 = arith.constant 0 : index
    %14 = vector.load %arg6[%c0_11, %c0_12] : memref<2x128xf32, #tpu.memory_space<vmem>>, vector<2x128xf32>
    tpu.vector_store %arg6[%c0_11, %c0_12], %13 {strides = array<i32>} : memref<2x128xf32, #tpu.memory_space<vmem>>, vector<2x128xf32>,
    return
  }
  func.func @transform_0(%arg0: i32) -> (i32, i32) {
    %c0_i32 = arith.constant 0 : i32
    %c0_i32_0 = arith.constant 0 : i32
    return %arg0, %c0_i32 : i32, i32
  }
  func.func @transform_1(%arg0: i32) -> (i32, i32) {
    %c0_i32 = arith.constant 0 : i32
    %c0_i32_0 = arith.constant 0 : i32
    %c0_i32_1 = arith.constant 0 : i32
    return %c0_i32, %c0_i32_0 : i32, i32
  }
  func.func @transform_2(%arg0: i32) -> (i32, i32) {
    %c0_i32 = arith.constant 0 : i32
    %c0_i32_0 = arith.constant 0 : i32
    %c0_i32_1 = arith.constant 0 : i32
    return %c0_i32, %c0_i32_0 : i32, i32
  }
  func.func @transform_3(%arg0: i32) -> (i32, i32) {
    %c0_i32 = arith.constant 0 : i32
    %c0_i32_0 = arith.constant 0 : i32
    %c0_i32_1 = arith.constant 0 : i32
    return %c0_i32, %c0_i32_0 : i32, i32
  }
  func.func @transform_4(%arg0: i32) -> (i32, i32) {
    %c0_i32 = arith.constant 0 : i32
    %c0_i32_0 = arith.constant 0 : i32
    %c0_i32_1 = arith.constant 0 : i32
    return %c0_i32, %c0_i32_0 : i32, i32
  }
  func.func @transform_5(%arg0: i32) -> (i32, i32) {
    %c0_i32 = arith.constant 0 : i32
    %c0_i32_0 = arith.constant 0 : i32
    return %arg0, %c0_i32 : i32, i32
  }
}

</mosaic_0001>

<llo_original>
// kernel: dqn_forward.4
$region0: #{dqn_forward.4}
  #allocation0 [shape = 'u32[]', space=smem, size = 0x4, offset = 0x4, fixed_abs, tag = 'smem constant byte address 0x4 - core index']
  #allocation1 [shape = 'u32[144,128]{1,0:T(1,128)}', space=vmem, size = 0x12000, scoped, tag = 'internal scratch']
  %s0 = inlined_call_operand.vmem [shape: bf16[336,576], index: 0, kind: input, shape index: {}]
  %s1 = inlined_call_operand.vmem [shape: bf16[576,128], index: 1, kind: input, shape index: {}]
  %s2 = inlined_call_operand.vmem [shape: f32[1,128], index: 2, kind: input, shape index: {}]
  %s3 = inlined_call_operand.vmem [shape: bf16[336,128], index: 3, kind: output, shape index: {}]
  %s4 = sld [smem:[#allocation0]]
  $region45: #{dqn_forward.4} parent=0
    _
  %s6 = ssub.s32 1, %s4
  %s7 = scalar_select 0, %s6, %s4
  loop: start=0, step=1, limit=4
  $region2: #{dqn_forward.4} parent=0 // loop_pre_header
    _
  $region3: #{dqn_forward.4} parent=0 // loop_header
    %s9 = sphi 0, %s13
    %p10 = scmp.ge.s32.totalorder %s9, 4
    %s19 = sphi 0, %s21
    %s22 = sphi 0, %s19
    %s23 = sphi 0, %s22
    %s39 = sphi 0, %s23
    %s43 = sphi 0, %s43
    %s45 = sphi 0, %s43
    %s46 = sphi 0, %s45
    %s60 = sphi 0, %s46
    %s64 = sphi 0, %s64
    %s66 = sphi 0, %s64
    %s67 = sphi 0, %s66
    %s81 = sphi 0, %s67
    %s87 = sphi 0, %s89
    %s90 = sphi 0, %s87
    %s91 = sphi 0, %s90
    %s107 = sphi 0, %s91
  $region4: #{dqn_forward.4} parent=0 // loop_header_branch
    %12 = sbr.rel (%p10) target = $region8
  $region5: #{dqn_forward.4} parent=0 // loop_body
    %s14 = ssub.s32 %s9, 1
    %s15 = ssub.s32 %s9, 2
    %s16 = sadd.s32 %s9, 1
    %s17 = ssub.s32 %s9, %s16
    %p18 = scmp.eq.s32.totalorder %s17, 0
    %s20 = sadd.s32 %s19, 1
    %s21 = scalar_select %p18, %s19, %s20
    %p24 = pneg %p18
    %p25 = scmp.eq.s32.totalorder %s9, 1
    %p26 = por %p24, %p25
    %p27 = scmp.ne.s32.totalorder %s19, %s22
    %p28 = scmp.eq.s32.totalorder %s9, 0
    %p29 = por %p27, %p28
    %p30 = scmp.ne.s32.totalorder %s19, %s22
    %p31 = scmp.eq.s32.totalorder %s14, 1
    %p32 = por %p30, %p31
    %p33 = scmp.ne.s32.totalorder %s22, %s23
    %p34 = scmp.eq.s32.totalorder %s14, 0
    %p35 = por %p33, %p34
    %p36 = scmp.ne.s32.totalorder %s22, %s23
    %p37 = scmp.eq.s32.totalorder %s15, 1
    %p38 = por %p36, %p37
    %p40 = scmp.ne.s32.totalorder %s23, %s39
    %p41 = scmp.eq.s32.totalorder %s15, 0
    %p42 = por %p40, %p41
    %s44 = sadd.s32 %s43, 1
    %p47 = scmp.eq.s32.totalorder %s9, 1
    %p48 = scmp.ne.s32.totalorder %s43, %s45
    %p49 = scmp.eq.s32.totalorder %s9, 0
    %p50 = por %p48, %p49
    %p51 = scmp.ne.s32.totalorder %s43, %s45
    %p52 = scmp.eq.s32.totalorder %s14, 1
    %p53 = por %p51, %p52
    %p54 = scmp.ne.s32.totalorder %s45, %s46
    %p55 = scmp.eq.s32.totalorder %s14, 0
    %p56 = por %p54, %p55
    %p57 = scmp.ne.s32.totalorder %s45, %s46
    %p58 = scmp.eq.s32.totalorder %s15, 1
    %p59 = por %p57, %p58
    %p61 = scmp.ne.s32.totalorder %s46, %s60
    %p62 = scmp.eq.s32.totalorder %s15, 0
    %p63 = por %p61, %p62
    %s65 = sadd.s32 %s64, 1
    %p68 = scmp.eq.s32.totalorder %s9, 1
    %p69 = scmp.ne.s32.totalorder %s64, %s66
    %p70 = scmp.eq.s32.totalorder %s9, 0
    %p71 = por %p69, %p70
    %p72 = scmp.ne.s32.totalorder %s64, %s66
    %p73 = scmp.eq.s32.totalorder %s14, 1
    %p74 = por %p72, %p73
    %p75 = scmp.ne.s32.totalorder %s66, %s67
    %p76 = scmp.eq.s32.totalorder %s14, 0
    %p77 = por %p75, %p76
    %p78 = scmp.ne.s32.totalorder %s66, %s67
    %p79 = scmp.eq.s32.totalorder %s15, 1
    %p80 = por %p78, %p79
    %p82 = scmp.ne.s32.totalorder %s67, %s81
    %p83 = scmp.eq.s32.totalorder %s15, 0
    %p84 = por %p82, %p83
    %s85 = ssub.s32 %s9, %s16
    %p86 = scmp.eq.s32.totalorder %s85, 0
    %s88 = sadd.s32 %s87, 1
    %s89 = scalar_select %p86, %s87, %s88
    %p92 = pneg %p86
    %p93 = scmp.eq.s32.totalorder %s9, 1
    %p94 = por %p92, %p93
    %p95 = scmp.ne.s32.totalorder %s87, %s90
    %p96 = scmp.eq.s32.totalorder %s9, 0
    %p97 = por %p95, %p96
    %p98 = scmp.ne.s32.totalorder %s87, %s90
    %p99 = scmp.eq.s32.totalorder %s14, 1
    %p100 = por %p98, %p99
    %p101 = scmp.ne.s32.totalorder %s90, %s91
    %p102 = scmp.eq.s32.totalorder %s14, 0
    %p103 = por %p101, %p102
    %p104 = scmp.ne.s32.totalorder %s90, %s91
    %p105 = scmp.eq.s32.totalorder %s15, 1
    %p106 = por %p104, %p105
    %p108 = scmp.ne.s32.totalorder %s91, %s107
    %p109 = scmp.eq.s32.totalorder %s15, 0
    %p110 = por %p108, %p109
    %p111 = scmp.le.s32.totalorder 1, %s9
    %p112 = scmp.lt.s32.totalorder %s9, 3
    %p113 = pnand %p111, %p112
    %p114 = pneg %p113
    // Predicated region
    $region9: #{dqn_forward.4} parent=5 // pred_check
      _
    $region10: #{dqn_forward.4} parent=5 // pred_check_branch
      %116 = sbr.rel (%p113) target = $region12
    $region11: #{dqn_forward.4} parent=5 // pred_region
      %s117 = ssub.s32 %s9, 1
      // Predicated region
      $region13: #{dqn_forward.4} parent=11 // pred_check
        %p118 = pneg %p56
      $region14: #{dqn_forward.4} parent=11 // pred_check_branch
        %120 = sbr.rel (%p118) target = $region16
      $region15: #{dqn_forward.4} parent=11 // pred_region
        _
      $region16: #{dqn_forward.4} parent=11 // pred_fallthru
        _
      // Predicated region
      $region17: #{dqn_forward.4} parent=11 // pred_check
        %p121 = pneg %p77
      $region18: #{dqn_forward.4} parent=11 // pred_check_branch
        %123 = sbr.rel (%p121) target = $region20
      $region19: #{dqn_forward.4} parent=11 // pred_region
        _
      $region20: #{dqn_forward.4} parent=11 // pred_fallthru
        _
    $region12: #{dqn_forward.4} parent=5 // pred_fallthru
      _
    %p124 = scmp.lt.s32.totalorder %s9, 2
    // Predicated region
    $region21: #{dqn_forward.4} parent=5 // pred_check
      %p125 = pneg %p124
    $region22: #{dqn_forward.4} parent=5 // pred_check_branch
      %127 = sbr.rel (%p125) target = $region24
    $region23: #{dqn_forward.4} parent=5 // pred_region
      // Predicated region
      $region25: #{dqn_forward.4} parent=23 // pred_check
        %p128 = pneg %p29
      $region26: #{dqn_forward.4} parent=23 // pred_check_branch
        %130 = sbr.rel (%p128) target = $region28
      $region27: #{dqn_forward.4} parent=23 // pred_region
        %s131 = smul.u32 21, %s9
        %p132 = scmp.lt.s32.totalorder %s131, 41
        %s133 = scalar_select %p132, %s131, 41
        %s134 = smul.addr %s133, 5
        %s135 = smul.addr %s134, 4
        %s136 = scalar_lea.vmem %s0, %s135
        %s137 = smul.u32 21, %s9
      $region28: #{dqn_forward.4} parent=23 // pred_fallthru
        _
    $region24: #{dqn_forward.4} parent=5 // pred_fallthru
      _
    %p138 = scmp.le.s32.totalorder 1, %s9
    %p139 = scmp.lt.s32.totalorder %s9, 3
    %p140 = pnand %p138, %p139
    %p141 = pneg %p140
    // Predicated region
    $region29: #{dqn_forward.4} parent=5 // pred_check
      _
    $region30: #{dqn_forward.4} parent=5 // pred_check_branch
      %143 = sbr.rel (%p140) target = $region32
    $region31: #{dqn_forward.4} parent=5 // pred_region
      %s144 = ssub.s32 %s9, 1
      %s145 = smul.u32 21, %s14
      %p146 = scmp.lt.s32.totalorder %s145, 41
      %s147 = scalar_select %p146, %s145, 41
      %s148 = smul.addr %s147, 5
      %s149 = smul.addr %s148, 4
      %s150 = scalar_lea.vmem %s0, %s149
      %p151 = pneg %p35
      %p152 = pneg %p32
      %p153 = pneg %p56
      %p154 = pneg %p53
      %p155 = pneg %p77
      %p156 = pneg %p74
      %p157 = pneg %p103
      %p158 = pneg %p100
      %s159 = smul.u32 21, %s14
      %p160 = scmp.lt.s32.totalorder %s159, 41
      %s161 = scalar_select %p160, %s159, 41
      %s162 = smul.addr %s161, 4
      %s163 = scalar_lea.vmem %s3, %s162
      %s164 = smul.u32 21, %s14
      %p165 = scmp.lt.s32.totalorder %s164, 41
      %s166 = scalar_select %p165, %s164, 41
      %s167 = smul.addr %s166, 5
      %s168 = smul.addr %s167, 4
      %s169 = scalar_lea.vmem %s0, %s168
      %s170 = smul.u32 21, %s14
      %s171 = smul.u32 21, %s14
      %p172 = scmp.lt.s32.totalorder %s171, 41
      %s173 = scalar_select %p172, %s171, 41
      %s174 = smul.addr %s173, 4
      %s175 = scalar_lea.vmem %s3, %s174
      %s176 = smul.u32 21, %s14
      %v178 = vld [vmem:[%s169] sm:$0xff]
      %v179 = vld [vmem:[%s169 + $0x8] sm:$0xff]
      %v180 = vld [vmem:[%s169 + $0x10] sm:$0xf]
      %v181 = vld [vmem:[%s169 + $0x14] sm:$0xff]
      %v182 = vld [vmem:[%s169 + $0x1c] sm:$0xff]
      %v183 = vld [vmem:[%s169 + $0x24] sm:$0xf]
      %v184 = vld [vmem:[%s169 + $0x28] sm:$0xff]
      %v185 = vld [vmem:[%s169 + $0x30] sm:$0xff]
      %v186 = vld [vmem:[%s169 + $0x38] sm:$0xf]
      %v187 = vld [vmem:[%s169 + $0x3c] sm:$0xff]
      %v188 = vld [vmem:[%s169 + $0x44] sm:$0xff]
      %v189 = vld [vmem:[%s169 + $0x4c] sm:$0xf]
      %v190 = vld [vmem:[%s169 + $0x50] sm:$0xff]
      %v191 = vld [vmem:[%s169 + $0x58] sm:$0xff]
      %v192 = vld [vmem:[%s169 + $0x60] sm:$0xf]
      %v193 = vld [vmem:[%s169 + $0x64] sm:$0xff]
      %v194 = vld [vmem:[%s169 + $0x6c] sm:$0xff]
      %v195 = vld [vmem:[%s169 + $0x74] sm:$0xf]
      %v196 = vld [vmem:[%s169 + $0x78] sm:$0xff]
      %v197 = vld [vmem:[%s169 + $0x80] sm:$0xff]
      %v198 = vld [vmem:[%s169 + $0x88] sm:$0xf]
      %v199 = vld [vmem:[%s169 + $0x8c] sm:$0xff]
      %v200 = vld [vmem:[%s169 + $0x94] sm:$0xff]
      %v201 = vld [vmem:[%s169 + $0x9c] sm:$0xf]
      %v202 = vld [vmem:[%s169 + $0xa0] sm:$0xff]
      %v203 = vld [vmem:[%s169 + $0xa8] sm:$0xff]
      %v204 = vld [vmem:[%s169 + $0xb0] sm:$0xf]
      %v205 = vld [vmem:[%s169 + $0xb4] sm:$0xff]
      %v206 = vld [vmem:[%s169 + $0xbc] sm:$0xff]
      %v207 = vld [vmem:[%s169 + $0xc4] sm:$0xf]
      %v208 = vld [vmem:[%s169 + $0xc8] sm:$0xff]
      %v209 = vld [vmem:[%s169 + $0xd0] sm:$0xff]
      %v210 = vld [vmem:[%s169 + $0xd8] sm:$0xf]
      %v211 = vld [vmem:[%s169 + $0xdc] sm:$0xff]
      %v212 = vld [vmem:[%s169 + $0xe4] sm:$0xff]
      %v213 = vld [vmem:[%s169 + $0xec] sm:$0xf]
      %v214 = vld [vmem:[%s169 + $0xf0] sm:$0xff]
      %v215 = vld [vmem:[%s169 + $0xf8] sm:$0xff]
      %v216 = vld [vmem:[%s169 + $0x100] sm:$0xf]
      %v217 = vld [vmem:[%s169 + $0x104] sm:$0xff]
      %v218 = vld [vmem:[%s169 + $0x10c] sm:$0xff]
      %v219 = vld [vmem:[%s169 + $0x114] sm:$0xf]
      %v220 = vld [vmem:[%s169 + $0x118] sm:$0xff]
      %v221 = vld [vmem:[%s169 + $0x120] sm:$0xff]
      %v222 = vld [vmem:[%s169 + $0x128] sm:$0xf]
      %v223 = vld [vmem:[%s169 + $0x12c] sm:$0xff]
      %v224 = vld [vmem:[%s169 + $0x134] sm:$0xff]
      %v225 = vld [vmem:[%s169 + $0x13c] sm:$0xf]
      %v226 = vld [vmem:[%s169 + $0x140] sm:$0xff]
      %v227 = vld [vmem:[%s169 + $0x148] sm:$0xff]
      %v228 = vld [vmem:[%s169 + $0x150] sm:$0xf]
      %v229 = vld [vmem:[%s169 + $0x154] sm:$0xff]
      %v230 = vld [vmem:[%s169 + $0x15c] sm:$0xff]
      %v231 = vld [vmem:[%s169 + $0x164] sm:$0xf]
      %v232 = vld [vmem:[%s169 + $0x168] sm:$0xff]
      %v233 = vld [vmem:[%s169 + $0x170] sm:$0xff]
      %v234 = vld [vmem:[%s169 + $0x178] sm:$0xf]
      %v235 = vld [vmem:[%s169 + $0x17c] sm:$0xff]
      %v236 = vld [vmem:[%s169 + $0x184] sm:$0xff]
      %v237 = vld [vmem:[%s169 + $0x18c] sm:$0xf]
      %v238 = vld [vmem:[%s169 + $0x190] sm:$0xff]
      %v239 = vld [vmem:[%s169 + $0x198] sm:$0xff]
      %v240 = vld [vmem:[%s169 + $0x1a0] sm:$0xf]
      %v241 = vld [vmem:[%s1] sm:$0xf]
      %v242 = vld [vmem:[%s1 + $0x4] sm:$0xf]
      %v243 = vld [vmem:[%s1 + $0x8] sm:$0xf]
      %v244 = vld [vmem:[%s1 + $0xc] sm:$0xf]
      %v245 = vld [vmem:[%s1 + $0x10] sm:$0xf]
      %v246 = vld [vmem:[%s1 + $0x14] sm:$0xf]
      %v247 = vld [vmem:[%s1 + $0x18] sm:$0xf]
      %v248 = vld [vmem:[%s1 + $0x1c] sm:$0xf]
      %v249 = vld [vmem:[%s1 + $0x20] sm:$0xf]
      %v250 = vld [vmem:[%s1 + $0x24] sm:$0xf]
      %v251 = vld [vmem:[%s1 + $0x28] sm:$0xf]
      %v252 = vld [vmem:[%s1 + $0x2c] sm:$0xf]
      %v253 = vld [vmem:[%s1 + $0x30] sm:$0xf]
      %v254 = vld [vmem:[%s1 + $0x34] sm:$0xf]
      %v255 = vld [vmem:[%s1 + $0x38] sm:$0xf]
      %v256 = vld [vmem:[%s1 + $0x3c] sm:$0xf]
      %v257 = vld [vmem:[%s1 + $0x40] sm:$0xf]
      %v258 = vld [vmem:[%s1 + $0x44] sm:$0xf]
      %v259 = vld [vmem:[%s1 + $0x48] sm:$0xf]
      %v260 = vld [vmem:[%s1 + $0x4c] sm:$0xf]
      %v261 = vld [vmem:[%s1 + $0x50] sm:$0xf]
      %v262 = vld [vmem:[%s1 + $0x54] sm:$0xf]
      %v263 = vld [vmem:[%s1 + $0x58] sm:$0xf]
      %v264 = vld [vmem:[%s1 + $0x5c] sm:$0xf]
      %v265 = vld [vmem:[%s1 + $0x60] sm:$0xf]
      %v266 = vld [vmem:[%s1 + $0x64] sm:$0xf]
      %v267 = vld [vmem:[%s1 + $0x68] sm:$0xf]
      %v268 = vld [vmem:[%s1 + $0x6c] sm:$0xf]
      %v269 = vld [vmem:[%s1 + $0x70] sm:$0xf]
      %v270 = vld [vmem:[%s1 + $0x74] sm:$0xf]
      %v271 = vld [vmem:[%s1 + $0x78] sm:$0xf]
      %v272 = vld [vmem:[%s1 + $0x7c] sm:$0xf]
      %v273 = vld [vmem:[%s1 + $0x80] sm:$0xf]
      %v274 = vld [vmem:[%s1 + $0x84] sm:$0xf]
      %v275 = vld [vmem:[%s1 + $0x88] sm:$0xf]
      %v276 = vld [vmem:[%s1 + $0x8c] sm:$0xf]
      %v277 = vld [vmem:[%s1 + $0x90] sm:$0xf]
      %v278 = vld [vmem:[%s1 + $0x94] sm:$0xf]
      %v279 = vld [vmem:[%s1 + $0x98] sm:$0xf]
      %v280 = vld [vmem:[%s1 + $0x9c] sm:$0xf]
      %v281 = vld [vmem:[%s1 + $0xa0] sm:$0xf]
      %v282 = vld [vmem:[%s1 + $0xa4] sm:$0xf]
      %v283 = vld [vmem:[%s1 + $0xa8] sm:$0xf]
      %v284 = vld [vmem:[%s1 + $0xac] sm:$0xf]
      %v285 = vld [vmem:[%s1 + $0xb0] sm:$0xf]
      %v286 = vld [vmem:[%s1 + $0xb4] sm:$0xf]
      %v287 = vld [vmem:[%s1 + $0xb8] sm:$0xf]
      %v288 = vld [vmem:[%s1 + $0xbc] sm:$0xf]
      %v289 = vld [vmem:[%s1 + $0xc0] sm:$0xf]
      %v290 = vld [vmem:[%s1 + $0xc4] sm:$0xf]
      %v291 = vld [vmem:[%s1 + $0xc8] sm:$0xf]
      %v292 = vld [vmem:[%s1 + $0xcc] sm:$0xf]
      %v293 = vld [vmem:[%s1 + $0xd0] sm:$0xf]
      %v294 = vld [vmem:[%s1 + $0xd4] sm:$0xf]
      %v295 = vld [vmem:[%s1 + $0xd8] sm:$0xf]
      %v296 = vld [vmem:[%s1 + $0xdc] sm:$0xf]
      %v297 = vld [vmem:[%s1 + $0xe0] sm:$0xf]
      %v298 = vld [vmem:[%s1 + $0xe4] sm:$0xf]
      %v299 = vld [vmem:[%s1 + $0xe8] sm:$0xf]
      %v300 = vld [vmem:[%s1 + $0xec] sm:$0xf]
      %v301 = vld [vmem:[%s1 + $0xf0] sm:$0xf]
      %v302 = vld [vmem:[%s1 + $0xf4] sm:$0xf]
      %v303 = vld [vmem:[%s1 + $0xf8] sm:$0xf]
      %v304 = vld [vmem:[%s1 + $0xfc] sm:$0xf]
      %v305 = vld [vmem:[%s1 + $0x100] sm:$0xf]
      %v306 = vld [vmem:[%s1 + $0x104] sm:$0xf]
      %v307 = vld [vmem:[%s1 + $0x108] sm:$0xf]
      %v308 = vld [vmem:[%s1 + $0x10c] sm:$0xf]
      %v309 = vld [vmem:[%s1 + $0x110] sm:$0xf]
      %v310 = vld [vmem:[%s1 + $0x114] sm:$0xf]
      %v311 = vld [vmem:[%s1 + $0x118] sm:$0xf]
      %v312 = vld [vmem:[%s1 + $0x11c] sm:$0xf]
      %v313 = vld [vmem:[%s2] sm:$0x1]
      %v315 = vlaneseq
      %v316 = vshrl.u32 %v315, 7
      %v317 = vsub.s32 0, %v316
      %v318 = vrot.slane %v313, %v317
      %v383 = vunpack.c.l.b16 %v178
      %v384 = vunpack.c.h.b16 %v178
      %v385 = vunpack.c.l.b16 %v179
      %v386 = vunpack.c.h.b16 %v179
      %v387 = vunpack.c.l.b16 %v180
      %v388 = vunpack.c.l.b16 %v181
      %v389 = vunpack.c.h.b16 %v181
      %v390 = vunpack.c.l.b16 %v182
      %v391 = vunpack.c.h.b16 %v182
      %v392 = vunpack.c.l.b16 %v183
      %v393 = vunpack.c.l.b16 %v184
      %v394 = vunpack.c.h.b16 %v184
      %v395 = vunpack.c.l.b16 %v185
      %v396 = vunpack.c.h.b16 %v185
      %v397 = vunpack.c.l.b16 %v186
      %v398 = vunpack.c.l.b16 %v187
      %v399 = vunpack.c.h.b16 %v187
      %v400 = vunpack.c.l.b16 %v188
      %v401 = vunpack.c.h.b16 %v188
      %v402 = vunpack.c.l.b16 %v189
      %v403 = vunpack.c.l.b16 %v190
      %v404 = vunpack.c.h.b16 %v190
      %v405 = vunpack.c.l.b16 %v191
      %v406 = vunpack.c.h.b16 %v191
      %v407 = vunpack.c.l.b16 %v192
      %v408 = vunpack.c.l.b16 %v193
      %v409 = vunpack.c.h.b16 %v193
      %v410 = vunpack.c.l.b16 %v194
      %v411 = vunpack.c.h.b16 %v194
      %v412 = vunpack.c.l.b16 %v195
      %v413 = vunpack.c.l.b16 %v196
      %v414 = vunpack.c.h.b16 %v196
      %v415 = vunpack.c.l.b16 %v197
      %v416 = vunpack.c.h.b16 %v197
      %v417 = vunpack.c.l.b16 %v198
      %v418 = vunpack.c.l.b16 %v199
      %v419 = vunpack.c.h.b16 %v199
      %v420 = vunpack.c.l.b16 %v200
      %v421 = vunpack.c.h.b16 %v200
      %v422 = vunpack.c.l.b16 %v201
      %v423 = vunpack.c.l.b16 %v202
      %v424 = vunpack.c.h.b16 %v202
      %v425 = vunpack.c.l.b16 %v203
      %v426 = vunpack.c.h.b16 %v203
      %v427 = vunpack.c.l.b16 %v204
      %v428 = vunpack.c.l.b16 %v205
      %v429 = vunpack.c.h.b16 %v205
      %v430 = vunpack.c.l.b16 %v206
      %v431 = vunpack.c.h.b16 %v206
      %v432 = vunpack.c.l.b16 %v207
      %v433 = vunpack.c.l.b16 %v208
      %v434 = vunpack.c.h.b16 %v208
      %v435 = vunpack.c.l.b16 %v209
      %v436 = vunpack.c.h.b16 %v209
      %v437 = vunpack.c.l.b16 %v210
      %v438 = vunpack.c.l.b16 %v211
      %v439 = vunpack.c.h.b16 %v211
      %v440 = vunpack.c.l.b16 %v212
      %v441 = vunpack.c.h.b16 %v212
      %v442 = vunpack.c.l.b16 %v213
      %v443 = vunpack.c.l.b16 %v214
      %v444 = vunpack.c.h.b16 %v214
      %v445 = vunpack.c.l.b16 %v215
      %v446 = vunpack.c.h.b16 %v215
      %v447 = vunpack.c.l.b16 %v216
      %v448 = vunpack.c.l.b16 %v217
      %v449 = vunpack.c.h.b16 %v217
      %v450 = vunpack.c.l.b16 %v218
      %v451 = vunpack.c.h.b16 %v218
      %v452 = vunpack.c.l.b16 %v219
      %v453 = vunpack.c.l.b16 %v220
      %v454 = vunpack.c.h.b16 %v220
      %v455 = vunpack.c.l.b16 %v221
      %v456 = vunpack.c.h.b16 %v221
      %v457 = vunpack.c.l.b16 %v222
      %v458 = vunpack.c.l.b16 %v223
      %v459 = vunpack.c.h.b16 %v223
      %v460 = vunpack.c.l.b16 %v224
      %v461 = vunpack.c.h.b16 %v224
      %v462 = vunpack.c.l.b16 %v225
      %v463 = vunpack.c.l.b16 %v226
      %v464 = vunpack.c.h.b16 %v226
      %v465 = vunpack.c.l.b16 %v227
      %v466 = vunpack.c.h.b16 %v227
      %v467 = vunpack.c.l.b16 %v228
      %v468 = vunpack.c.l.b16 %v229
      %v469 = vunpack.c.h.b16 %v229
      %v470 = vunpack.c.l.b16 %v230
      %v471 = vunpack.c.h.b16 %v230
      %v472 = vunpack.c.l.b16 %v231
      %v473 = vunpack.c.l.b16 %v232
      %v474 = vunpack.c.h.b16 %v232
      %v475 = vunpack.c.l.b16 %v233
      %v476 = vunpack.c.h.b16 %v233
      %v477 = vunpack.c.l.b16 %v234
      %v478 = vunpack.c.l.b16 %v235
      %v479 = vunpack.c.h.b16 %v235
      %v480 = vunpack.c.l.b16 %v236
      %v481 = vunpack.c.h.b16 %v236
      %v482 = vunpack.c.l.b16 %v237
      %v483 = vunpack.c.l.b16 %v238
      %v484 = vunpack.c.h.b16 %v238
      %v485 = vunpack.c.l.b16 %v239
      %v486 = vunpack.c.h.b16 %v239
      %v487 = vunpack.c.l.b16 %v240
      %v488 = vpack.c.b16 %v388, %v383
      %v489 = vpack.c.b16 %v389, %v384
      %v490 = vpack.c.b16 %v390, %v385
      %v491 = vpack.c.b16 %v391, %v386
      %v492 = vpack.c.b16 %v392, %v387
      %v493 = vpack.c.b16 %v398, %v393
      %v494 = vpack.c.b16 %v399, %v394
      %v495 = vpack.c.b16 %v400, %v395
      %v496 = vpack.c.b16 %v401, %v396
      %v497 = vpack.c.b16 %v402, %v397
      %v498 = vpack.c.b16 %v408, %v403
      %v499 = vpack.c.b16 %v409, %v404
      %v500 = vpack.c.b16 %v410, %v405
      %v501 = vpack.c.b16 %v411, %v406
      %v502 = vpack.c.b16 %v412, %v407
      %v503 = vpack.c.b16 %v418, %v413
      %v504 = vpack.c.b16 %v419, %v414
      %v505 = vpack.c.b16 %v420, %v415
      %v506 = vpack.c.b16 %v421, %v416
      %v507 = vpack.c.b16 %v422, %v417
      %v508 = vpack.c.b16 %v428, %v423
      %v509 = vpack.c.b16 %v429, %v424
      %v510 = vpack.c.b16 %v430, %v425
      %v511 = vpack.c.b16 %v431, %v426
      %v512 = vpack.c.b16 %v432, %v427
      %v513 = vpack.c.b16 %v438, %v433
      %v514 = vpack.c.b16 %v439, %v434
      %v515 = vpack.c.b16 %v440, %v435
      %v516 = vpack.c.b16 %v441, %v436
      %v517 = vpack.c.b16 %v442, %v437
      %v518 = vpack.c.b16 %v448, %v443
      %v519 = vpack.c.b16 %v449, %v444
      %v520 = vpack.c.b16 %v450, %v445
      %v521 = vpack.c.b16 %v451, %v446
      %v522 = vpack.c.b16 %v452, %v447
      %v523 = vpack.c.b16 %v458, %v453
      %v524 = vpack.c.b16 %v459, %v454
      %v525 = vpack.c.b16 %v460, %v455
      %v526 = vpack.c.b16 %v461, %v456
      %v527 = vpack.c.b16 %v462, %v457
      %v528 = vpack.c.b16 %v468, %v463
      %v529 = vpack.c.b16 %v469, %v464
      %v530 = vpack.c.b16 %v470, %v465
      %v531 = vpack.c.b16 %v471, %v466
      %v532 = vpack.c.b16 %v472, %v467
      %v533 = vpack.c.b16 %v478, %v473
      %v534 = vpack.c.b16 %v479, %v474
      %v535 = vpack.c.b16 %v480, %v475
      %v536 = vpack.c.b16 %v481, %v476
      %v537 = vpack.c.b16 %v482, %v477
      %v538 = vpack.c.b16 %v483, %v483
      %v539 = vpack.c.b16 %v484, %v484
      %v540 = vpack.c.b16 %v485, %v485
      %v541 = vpack.c.b16 %v486, %v486
      %v542 = vpack.c.b16 %v487, %v487
      %v659 = vunpack.c.l.b16 %v241
      %v660 = vunpack.c.l.b16 %v242
      %v661 = vunpack.c.l.b16 %v243
      %v662 = vunpack.c.l.b16 %v244
      %v663 = vunpack.c.l.b16 %v245
      %v664 = vunpack.c.l.b16 %v246
      %v665 = vunpack.c.l.b16 %v247
      %v666 = vunpack.c.l.b16 %v248
      %v667 = vunpack.c.l.b16 %v249
      %v668 = vunpack.c.l.b16 %v250
      %v669 = vunpack.c.l.b16 %v251
      %v670 = vunpack.c.l.b16 %v252
      %v671 = vunpack.c.l.b16 %v253
      %v672 = vunpack.c.l.b16 %v254
      %v673 = vunpack.c.l.b16 %v255
      %v674 = vunpack.c.l.b16 %v256
      %v675 = vunpack.c.l.b16 %v257
      %v676 = vunpack.c.l.b16 %v258
      %v677 = vunpack.c.l.b16 %v259
      %v678 = vunpack.c.l.b16 %v260
      %v679 = vunpack.c.l.b16 %v261
      %v680 = vunpack.c.l.b16 %v262
      %v681 = vunpack.c.l.b16 %v263
      %v682 = vunpack.c.l.b16 %v264
      %v683 = vunpack.c.l.b16 %v265
      %v684 = vunpack.c.l.b16 %v266
      %v685 = vunpack.c.l.b16 %v267
      %v686 = vunpack.c.l.b16 %v268
      %v687 = vunpack.c.l.b16 %v269
      %v688 = vunpack.c.l.b16 %v270
      %v689 = vunpack.c.l.b16 %v271
      %v690 = vunpack.c.l.b16 %v272
      %v691 = vunpack.c.l.b16 %v273
      %v692 = vunpack.c.l.b16 %v274
      %v693 = vunpack.c.l.b16 %v275
      %v694 = vunpack.c.l.b16 %v276
      %v695 = vunpack.c.l.b16 %v277
      %v696 = vunpack.c.l.b16 %v278
      %v697 = vunpack.c.l.b16 %v279
      %v698 = vunpack.c.l.b16 %v280
      %v699 = vunpack.c.l.b16 %v281
      %v700 = vunpack.c.l.b16 %v282
      %v701 = vunpack.c.l.b16 %v283
      %v702 = vunpack.c.l.b16 %v284
      %v703 = vunpack.c.l.b16 %v285
      %v704 = vunpack.c.l.b16 %v286
      %v705 = vunpack.c.l.b16 %v287
      %v706 = vunpack.c.l.b16 %v288
      %v707 = vunpack.c.l.b16 %v289
      %v708 = vunpack.c.l.b16 %v290
      %v709 = vunpack.c.l.b16 %v291
      %v710 = vunpack.c.l.b16 %v292
      %v711 = vunpack.c.l.b16 %v293
      %v712 = vunpack.c.l.b16 %v294
      %v713 = vunpack.c.l.b16 %v295
      %v714 = vunpack.c.l.b16 %v296
      %v715 = vunpack.c.l.b16 %v297
      %v716 = vunpack.c.l.b16 %v298
      %v717 = vunpack.c.l.b16 %v299
      %v718 = vunpack.c.l.b16 %v300
      %v719 = vunpack.c.l.b16 %v301
      %v720 = vunpack.c.l.b16 %v302
      %v721 = vunpack.c.l.b16 %v303
      %v722 = vunpack.c.l.b16 %v304
      %v723 = vunpack.c.l.b16 %v305
      %v724 = vunpack.c.l.b16 %v306
      %v725 = vunpack.c.l.b16 %v307
      %v726 = vunpack.c.l.b16 %v308
      %v727 = vunpack.c.l.b16 %v309
      %v728 = vunpack.c.l.b16 %v310
      %v729 = vunpack.c.l.b16 %v311
      %v730 = vunpack.c.l.b16 %v312
      %v731 = vpack.c.b16 %v660, %v659
      %v732 = vpack.c.b16 %v662, %v661
      %v733 = vpack.c.b16 %v664, %v663
      %v734 = vpack.c.b16 %v666, %v665
      %v735 = vpack.c.b16 %v668, %v667
      %v736 = vpack.c.b16 %v670, %v669
      %v737 = vpack.c.b16 %v672, %v671
      %v738 = vpack.c.b16 %v674, %v673
      %v739 = vpack.c.b16 %v676, %v675
      %v740 = vpack.c.b16 %v678, %v677
      %v741 = vpack.c.b16 %v680, %v679
      %v742 = vpack.c.b16 %v682, %v681
      %v743 = vpack.c.b16 %v684, %v683
      %v744 = vpack.c.b16 %v686, %v685
      %v745 = vpack.c.b16 %v688, %v687
      %v746 = vpack.c.b16 %v690, %v689
      %v747 = vpack.c.b16 %v692, %v691
      %v748 = vpack.c.b16 %v694, %v693
      %v749 = vpack.c.b16 %v696, %v695
      %v750 = vpack.c.b16 %v698, %v697
      %v751 = vpack.c.b16 %v700, %v699
      %v752 = vpack.c.b16 %v702, %v701
      %v753 = vpack.c.b16 %v704, %v703
      %v754 = vpack.c.b16 %v706, %v705
      %v755 = vpack.c.b16 %v708, %v707
      %v756 = vpack.c.b16 %v710, %v709
      %v757 = vpack.c.b16 %v712, %v711
      %v758 = vpack.c.b16 %v714, %v713
      %v759 = vpack.c.b16 %v716, %v715
      %v760 = vpack.c.b16 %v718, %v717
      %v761 = vpack.c.b16 %v720, %v719
      %v762 = vpack.c.b16 %v722, %v721
      %v763 = vpack.c.b16 %v724, %v723
      %v764 = vpack.c.b16 %v726, %v725
      %v765 = vpack.c.b16 %v728, %v727
      %v766 = vpack.c.b16 %v730, %v729
      %vm803 = vcmask 523264
      %v805 = vsel %vm803, %v492, 0
      %v808 = vsel %vm803, %v497, 0
      %v811 = vsel %vm803, %v502, 0
      %v814 = vsel %vm803, %v507, 0
      %v817 = vsel %vm803, %v512, 0
      %v820 = vsel %vm803, %v517, 0
      %v823 = vsel %vm803, %v522, 0
      %v826 = vsel %vm803, %v527, 0
      %v829 = vsel %vm803, %v532, 0
      %v832 = vsel %vm803, %v537, 0
      %v835 = vsel %vm803, %v542, 0
      %837 = vmatprep.subr.bf16.mxu0 0
      %838 = vmatpush1.bf16.msra.mxu0 %v738
      %839 = vmatprep.subr.bf16.mxu0 0
      %840 = vmatpush1.bf16.msra.mxu0 %v737
      %841 = vmatprep.subr.bf16.mxu0 0
      %842 = vmatpush1.bf16.msra.mxu0 %v736
      %843 = vmatprep.subr.bf16.mxu0 0
      %844 = vmatpush1.bf16.msra.mxu0 %v735
      %845 = vmatprep.subr.bf16.mxu0 0
      %846 = vmatpush1.bf16.msra.mxu0 %v734
      %847 = vmatprep.subr.bf16.mxu0 0
      %848 = vmatpush1.bf16.msra.mxu0 %v733
      %849 = vmatprep.subr.bf16.mxu0 0
      %850 = vmatpush1.bf16.msra.mxu0 %v732
      %851 = vmatprep.subr.bf16.mxu0 0
      %852 = vmatpush1.bf16.msra.mxu0 %v731
      %853 = vmatprep.subr.bf16.mxu0 0
      %854 = vmatpush2.bf16.msra.mxu0 %v746
      %855 = vmatprep.subr.bf16.mxu0 0
      %856 = vmatpush2.bf16.msra.mxu0 %v745
      %857 = vmatprep.subr.bf16.mxu0 0
      %858 = vmatpush2.bf16.msra.mxu0 %v744
      %859 = vmatprep.subr.bf16.mxu0 0
      %860 = vmatpush2.bf16.msra.mxu0 %v743
      %861 = vmatprep.subr.bf16.mxu0 0
      %862 = vmatpush2.bf16.msra.mxu0 %v742
      %863 = vmatprep.subr.bf16.mxu0 0
      %864 = vmatpush2.bf16.msra.mxu0 %v741
      %865 = vmatprep.subr.bf16.mxu0 0
      %866 = vmatpush2.bf16.msra.mxu0 %v740
      %867 = vmatprep.subr.bf16.mxu0 0
      %868 = vmatpush2.bf16.msra.mxu0 %v739
      %869 = vmatprep.mubr.bf16.mxu0 %v489
      %870 = vmatmul.mubr.bf16.gmra.mxu0 %v488
      %v871 = vpop.f32.mrf.mxu0
      %v872 = vadd.f32 %v318, %v871
      %v873 = vpop.f32.mrf.mxu0
      %v874 = vpop.f32.mrf.mxu0
      %v875 = vadd.f32 %v318, %v874
      %v876 = vpop.f32.mrf.mxu0
      %877 = vmatprep.mubr.bf16.mxu0 %v494
      %878 = vmatmul.mubr.bf16.gmra.mxu0 %v493
      %v879 = vpop.f32.mrf.mxu0
      %v880 = vadd.f32 %v318, %v879
      %v881 = vpop.f32.mrf.mxu0
      %v882 = vpop.f32.mrf.mxu0
      %v883 = vadd.f32 %v318, %v882
      %v884 = vpop.f32.mrf.mxu0
      %885 = vmatprep.mubr.bf16.mxu0 %v499
      %886 = vmatmul.mubr.bf16.gmra.mxu0 %v498
      %v887 = vpop.f32.mrf.mxu0
      %v888 = vadd.f32 %v318, %v887
      %v889 = vpop.f32.mrf.mxu0
      %v890 = vpop.f32.mrf.mxu0
      %v891 = vadd.f32 %v318, %v890
      %v892 = vpop.f32.mrf.mxu0
      %893 = vmatprep.mubr.bf16.mxu0 %v504
      %894 = vmatmul.mubr.bf16.gmra.mxu0 %v503
      %v895 = vpop.f32.mrf.mxu0
      %v896 = vadd.f32 %v318, %v895
      %v897 = vpop.f32.mrf.mxu0
      %v898 = vpop.f32.mrf.mxu0
      %v899 = vadd.f32 %v318, %v898
      %v900 = vpop.f32.mrf.mxu0
      %901 = vmatprep.mubr.bf16.mxu0 %v509
      %902 = vmatmul.mubr.bf16.gmra.mxu0 %v508
      %v903 = vpop.f32.mrf.mxu0
      %v904 = vadd.f32 %v318, %v903
      %v905 = vpop.f32.mrf.mxu0
      %v906 = vpop.f32.mrf.mxu0
      %v907 = vadd.f32 %v318, %v906
      %v908 = vpop.f32.mrf.mxu0
      %909 = vmatprep.mubr.bf16.mxu0 %v514
      %910 = vmatmul.mubr.bf16.gmra.mxu0 %v513
      %v911 = vpop.f32.mrf.mxu0
      %v912 = vadd.f32 %v318, %v911
      %v913 = vpop.f32.mrf.mxu0
      %v914 = vpop.f32.mrf.mxu0
      %v915 = vadd.f32 %v318, %v914
      %v916 = vpop.f32.mrf.mxu0
      %917 = vmatprep.mubr.bf16.mxu0 %v519
      %918 = vmatmul.mubr.bf16.gmra.mxu0 %v518
      %v919 = vpop.f32.mrf.mxu0
      %v920 = vadd.f32 %v318, %v919
      %v921 = vpop.f32.mrf.mxu0
      %v922 = vpop.f32.mrf.mxu0
      %v923 = vadd.f32 %v318, %v922
      %v924 = vpop.f32.mrf.mxu0
      %925 = vmatprep.mubr.bf16.mxu0 %v524
      %926 = vmatmul.mubr.bf16.gmra.mxu0 %v523
      %v927 = vpop.f32.mrf.mxu0
      %v928 = vadd.f32 %v318, %v927
      %v929 = vpop.f32.mrf.mxu0
      %v930 = vpop.f32.mrf.mxu0
      %v931 = vadd.f32 %v318, %v930
      %v932 = vpop.f32.mrf.mxu0
      %933 = vmatprep.mubr.bf16.mxu0 %v529
      %934 = vmatmul.mubr.bf16.gmra.mxu0 %v528
      %v935 = vpop.f32.mrf.mxu0
      %v936 = vadd.f32 %v318, %v935
      %v937 = vpop.f32.mrf.mxu0
      %v938 = vpop.f32.mrf.mxu0
      %v939 = vadd.f32 %v318, %v938
      %v940 = vpop.f32.mrf.mxu0
      %941 = vmatprep.mubr.bf16.mxu0 %v534
      %942 = vmatmul.mubr.bf16.gmra.mxu0 %v533
      %v943 = vpop.f32.mrf.mxu0
      %v944 = vadd.f32 %v318, %v943
      %v945 = vpop.f32.mrf.mxu0
      %v946 = vpop.f32.mrf.mxu0
      %v947 = vadd.f32 %v318, %v946
      %v948 = vpop.f32.mrf.mxu0
      %949 = vmatprep.mubr.bf16.mxu0 %v539
      %950 = vmatmul.mubr.bf16.gmra.mxu0 %v538
      %v951 = vpop.f32.mrf.mxu0
      %v952 = vadd.f32 %v318, %v951
      %v953 = vpop.f32.mrf.mxu0
      %v954 = vpop.f32.mrf.mxu0
      %v955 = vpop.f32.mrf.mxu0
      %956 = vdwg.mxu0
      %957 = vmatprep.subr.bf16.mxu0 0
      %958 = vmatpush1.bf16.msra.mxu0 %v754
      %959 = vmatprep.subr.bf16.mxu0 0
      %960 = vmatpush1.bf16.msra.mxu0 %v753
      %961 = vmatprep.subr.bf16.mxu0 0
      %962 = vmatpush1.bf16.msra.mxu0 %v752
      %963 = vmatprep.subr.bf16.mxu0 0
      %964 = vmatpush1.bf16.msra.mxu0 %v751
      %965 = vmatprep.subr.bf16.mxu0 0
      %966 = vmatpush1.bf16.msra.mxu0 %v750
      %967 = vmatprep.subr.bf16.mxu0 0
      %968 = vmatpush1.bf16.msra.mxu0 %v749
      %969 = vmatprep.subr.bf16.mxu0 0
      %970 = vmatpush1.bf16.msra.mxu0 %v748
      %971 = vmatprep.subr.bf16.mxu0 0
      %972 = vmatpush1.bf16.msra.mxu0 %v747
      %973 = vmatprep.subr.bf16.mxu0 0
      %974 = vmatpush2.bf16.msra.mxu0 %v762
      %975 = vmatprep.subr.bf16.mxu0 0
      %976 = vmatpush2.bf16.msra.mxu0 %v761
      %977 = vmatprep.subr.bf16.mxu0 0
      %978 = vmatpush2.bf16.msra.mxu0 %v760
      %979 = vmatprep.subr.bf16.mxu0 0
      %980 = vmatpush2.bf16.msra.mxu0 %v759
      %981 = vmatprep.subr.bf16.mxu0 0
      %982 = vmatpush2.bf16.msra.mxu0 %v758
      %983 = vmatprep.subr.bf16.mxu0 0
      %984 = vmatpush2.bf16.msra.mxu0 %v757
      %985 = vmatprep.subr.bf16.mxu0 0
      %986 = vmatpush2.bf16.msra.mxu0 %v756
      %987 = vmatprep.subr.bf16.mxu0 0
      %988 = vmatpush2.bf16.msra.mxu0 %v755
      %989 = vmatprep.mubr.bf16.mxu0 %v491
      %990 = vmatmul.mubr.bf16.gmra.mxu0 %v490
      %v991 = vpop.f32.mrf.mxu0
      %v992 = vadd.f32 %v872, %v991
      %v993 = vpop.f32.mrf.mxu0
      %v994 = vpop.f32.mrf.mxu0
      %v995 = vadd.f32 %v875, %v994
      %v996 = vpop.f32.mrf.mxu0
      %997 = vmatprep.mubr.bf16.mxu0 %v496
      %998 = vmatmul.mubr.bf16.gmra.mxu0 %v495
      %v999 = vpop.f32.mrf.mxu0
      %v1000 = vadd.f32 %v880, %v999
      %v1001 = vpop.f32.mrf.mxu0
      %v1002 = vpop.f32.mrf.mxu0
      %v1003 = vadd.f32 %v883, %v1002
      %v1004 = vpop.f32.mrf.mxu0
      %1005 = vmatprep.mubr.bf16.mxu0 %v501
      %1006 = vmatmul.mubr.bf16.gmra.mxu0 %v500
      %v1007 = vpop.f32.mrf.mxu0
      %v1008 = vadd.f32 %v888, %v1007
      %v1009 = vpop.f32.mrf.mxu0
      %v1010 = vpop.f32.mrf.mxu0
      %v1011 = vadd.f32 %v891, %v1010
      %v1012 = vpop.f32.mrf.mxu0
      %1013 = vmatprep.mubr.bf16.mxu0 %v506
      %1014 = vmatmul.mubr.bf16.gmra.mxu0 %v505
      %v1015 = vpop.f32.mrf.mxu0
      %v1016 = vadd.f32 %v896, %v1015
      %v1017 = vpop.f32.mrf.mxu0
      %v1018 = vpop.f32.mrf.mxu0
      %v1019 = vadd.f32 %v899, %v1018
      %v1020 = vpop.f32.mrf.mxu0
      %1021 = vmatprep.mubr.bf16.mxu0 %v511
      %1022 = vmatmul.mubr.bf16.gmra.mxu0 %v510
      %v1023 = vpop.f32.mrf.mxu0
      %v1024 = vadd.f32 %v904, %v1023
      %v1025 = vpop.f32.mrf.mxu0
      %v1026 = vpop.f32.mrf.mxu0
      %v1027 = vadd.f32 %v907, %v1026
      %v1028 = vpop.f32.mrf.mxu0
      %1029 = vmatprep.mubr.bf16.mxu0 %v516
      %1030 = vmatmul.mubr.bf16.gmra.mxu0 %v515
      %v1031 = vpop.f32.mrf.mxu0
      %v1032 = vadd.f32 %v912, %v1031
      %v1033 = vpop.f32.mrf.mxu0
      %v1034 = vpop.f32.mrf.mxu0
      %v1035 = vadd.f32 %v915, %v1034
      %v1036 = vpop.f32.mrf.mxu0
      %1037 = vmatprep.mubr.bf16.mxu0 %v521
      %1038 = vmatmul.mubr.bf16.gmra.mxu0 %v520
      %v1039 = vpop.f32.mrf.mxu0
      %v1040 = vadd.f32 %v920, %v1039
      %v1041 = vpop.f32.mrf.mxu0
      %v1042 = vpop.f32.mrf.mxu0
      %v1043 = vadd.f32 %v923, %v1042
      %v1044 = vpop.f32.mrf.mxu0
      %1045 = vmatprep.mubr.bf16.mxu0 %v526
      %1046 = vmatmul.mubr.bf16.gmra.mxu0 %v525
      %v1047 = vpop.f32.mrf.mxu0
      %v1048 = vadd.f32 %v928, %v1047
      %v1049 = vpop.f32.mrf.mxu0
      %v1050 = vpop.f32.mrf.mxu0
      %v1051 = vadd.f32 %v931, %v1050
      %v1052 = vpop.f32.mrf.mxu0
      %1053 = vmatprep.mubr.bf16.mxu0 %v531
      %1054 = vmatmul.mubr.bf16.gmra.mxu0 %v530
      %v1055 = vpop.f32.mrf.mxu0
      %v1056 = vadd.f32 %v936, %v1055
      %v1057 = vpop.f32.mrf.mxu0
      %v1058 = vpop.f32.mrf.mxu0
      %v1059 = vadd.f32 %v939, %v1058
      %v1060 = vpop.f32.mrf.mxu0
      %1061 = vmatprep.mubr.bf16.mxu0 %v536
      %1062 = vmatmul.mubr.bf16.gmra.mxu0 %v535
      %v1063 = vpop.f32.mrf.mxu0
      %v1064 = vadd.f32 %v944, %v1063
      %v1065 = vpop.f32.mrf.mxu0
      %v1066 = vpop.f32.mrf.mxu0
      %v1067 = vadd.f32 %v947, %v1066
      %v1068 = vpop.f32.mrf.mxu0
      %1069 = vmatprep.mubr.bf16.mxu0 %v541
      %1070 = vmatmul.mubr.bf16.gmra.mxu0 %v540
      %v1071 = vpop.f32.mrf.mxu0
      %v1072 = vadd.f32 %v952, %v1071
      %v1073 = vpop.f32.mrf.mxu0
      %v1074 = vpop.f32.mrf.mxu0
      %v1075 = vpop.f32.mrf.mxu0
      %1076 = vdwg.mxu0
      %1077 = vmatprep.subr.bf16.mxu0 0
      %1078 = vmatpush1.bf16.msra.mxu0 0
      %1079 = vmatprep.subr.bf16.mxu0 0
      %1080 = vmatpush1.bf16.msra.mxu0 0
      %1081 = vmatprep.subr.bf16.mxu0 0
      %1082 = vmatpush1.bf16.msra.mxu0 0
      %1083 = vmatprep.subr.bf16.mxu0 0
      %1084 = vmatpush1.bf16.msra.mxu0 0
      %1085 = vmatprep.subr.bf16.mxu0 0
      %1086 = vmatpush1.bf16.msra.mxu0 %v766
      %1087 = vmatprep.subr.bf16.mxu0 0
      %1088 = vmatpush1.bf16.msra.mxu0 %v765
      %1089 = vmatprep.subr.bf16.mxu0 0
      %1090 = vmatpush1.bf16.msra.mxu0 %v764
      %1091 = vmatprep.subr.bf16.mxu0 0
      %1092 = vmatpush1.bf16.msra.mxu0 %v763
      %1093 = vmatprep.subr.bf16.mxu0 0
      %1094 = vmatpush2.bf16.msra.mxu0 0
      %1095 = vmatprep.subr.bf16.mxu0 0
      %1096 = vmatpush2.bf16.msra.mxu0 0
      %1097 = vmatprep.subr.bf16.mxu0 0
      %1098 = vmatpush2.bf16.msra.mxu0 0
      %1099 = vmatprep.subr.bf16.mxu0 0
      %1100 = vmatpush2.bf16.msra.mxu0 0
      %1101 = vmatprep.subr.bf16.mxu0 0
      %1102 = vmatpush2.bf16.msra.mxu0 0
      %1103 = vmatprep.subr.bf16.mxu0 0
      %1104 = vmatpush2.bf16.msra.mxu0 0
      %1105 = vmatprep.subr.bf16.mxu0 0
      %1106 = vmatpush2.bf16.msra.mxu0 0
      %1107 = vmatprep.subr.bf16.mxu0 0
      %1108 = vmatpush2.bf16.msra.mxu0 0
      %1109 = vmatprep.mubr.bf16.mxu0 0
      %1110 = vmatmul.mubr.bf16.gmra.mxu0 %v805
      %v1111 = vpop.f32.mrf.mxu0
      %v1112 = vadd.f32 %v992, %v1111
      %v1113 = vpop.f32.mrf.mxu0
      %v1114 = vpop.f32.mrf.mxu0
      %v1115 = vadd.f32 %v995, %v1114
      %v1116 = vpop.f32.mrf.mxu0
      %1117 = vmatprep.mubr.bf16.mxu0 0
      %1118 = vmatmul.mubr.bf16.gmra.mxu0 %v808
      %v1119 = vpop.f32.mrf.mxu0
      %v1120 = vadd.f32 %v1000, %v1119
      %v1121 = vpop.f32.mrf.mxu0
      %v1122 = vpop.f32.mrf.mxu0
      %v1123 = vadd.f32 %v1003, %v1122
      %v1124 = vpop.f32.mrf.mxu0
      %1125 = vmatprep.mubr.bf16.mxu0 0
      %1126 = vmatmul.mubr.bf16.gmra.mxu0 %v811
      %v1127 = vpop.f32.mrf.mxu0
      %v1128 = vadd.f32 %v1008, %v1127
      %v1129 = vpop.f32.mrf.mxu0
      %v1130 = vpop.f32.mrf.mxu0
      %v1131 = vadd.f32 %v1011, %v1130
      %v1132 = vpop.f32.mrf.mxu0
      %1133 = vmatprep.mubr.bf16.mxu0 0
      %1134 = vmatmul.mubr.bf16.gmra.mxu0 %v814
      %v1135 = vpop.f32.mrf.mxu0
      %v1136 = vadd.f32 %v1016, %v1135
      %v1137 = vpop.f32.mrf.mxu0
      %v1138 = vpop.f32.mrf.mxu0
      %v1139 = vadd.f32 %v1019, %v1138
      %v1140 = vpop.f32.mrf.mxu0
      %1141 = vmatprep.mubr.bf16.mxu0 0
      %1142 = vmatmul.mubr.bf16.gmra.mxu0 %v817
      %v1143 = vpop.f32.mrf.mxu0
      %v1144 = vadd.f32 %v1024, %v1143
      %v1145 = vpop.f32.mrf.mxu0
      %v1146 = vpop.f32.mrf.mxu0
      %v1147 = vadd.f32 %v1027, %v1146
      %v1148 = vpop.f32.mrf.mxu0
      %1149 = vmatprep.mubr.bf16.mxu0 0
      %1150 = vmatmul.mubr.bf16.gmra.mxu0 %v820
      %v1151 = vpop.f32.mrf.mxu0
      %v1152 = vadd.f32 %v1032, %v1151
      %v1153 = vpop.f32.mrf.mxu0
      %v1154 = vpop.f32.mrf.mxu0
      %v1155 = vadd.f32 %v1035, %v1154
      %v1156 = vpop.f32.mrf.mxu0
      %1157 = vmatprep.mubr.bf16.mxu0 0
      %1158 = vmatmul.mubr.bf16.gmra.mxu0 %v823
      %v1159 = vpop.f32.mrf.mxu0
      %v1160 = vadd.f32 %v1040, %v1159
      %v1161 = vpop.f32.mrf.mxu0
      %v1162 = vpop.f32.mrf.mxu0
      %v1163 = vadd.f32 %v1043, %v1162
      %v1164 = vpop.f32.mrf.mxu0
      %1165 = vmatprep.mubr.bf16.mxu0 0
      %1166 = vmatmul.mubr.bf16.gmra.mxu0 %v826
      %v1167 = vpop.f32.mrf.mxu0
      %v1168 = vadd.f32 %v1048, %v1167
      %v1169 = vpop.f32.mrf.mxu0
      %v1170 = vpop.f32.mrf.mxu0
      %v1171 = vadd.f32 %v1051, %v1170
      %v1172 = vpop.f32.mrf.mxu0
      %1173 = vmatprep.mubr.bf16.mxu0 0
      %1174 = vmatmul.mubr.bf16.gmra.mxu0 %v829
      %v1175 = vpop.f32.mrf.mxu0
      %v1176 = vadd.f32 %v1056, %v1175
      %v1177 = vpop.f32.mrf.mxu0
      %v1178 = vpop.f32.mrf.mxu0
      %v1179 = vadd.f32 %v1059, %v1178
      %v1180 = vpop.f32.mrf.mxu0
      %1181 = vmatprep.mubr.bf16.mxu0 0
      %1182 = vmatmul.mubr.bf16.gmra.mxu0 %v832
      %v1183 = vpop.f32.mrf.mxu0
      %v1184 = vadd.f32 %v1064, %v1183
      %v1185 = vpop.f32.mrf.mxu0
      %v1186 = vpop.f32.mrf.mxu0
      %v1187 = vadd.f32 %v1067, %v1186
      %v1188 = vpop.f32.mrf.mxu0
      %1189 = vmatprep.mubr.bf16.mxu0 0
      %1190 = vmatmul.mubr.bf16.gmra.mxu0 %v835
      %v1191 = vpop.f32.mrf.mxu0
      %v1192 = vadd.f32 %v1072, %v1191
      %v1193 = vpop.f32.mrf.mxu0
      %v1194 = vpop.f32.mrf.mxu0
      %v1195 = vpop.f32.mrf.mxu0
      %1196 = vdwg.mxu0
      %v1197 = vmax.f32 %v1112, 0.0
      %v1198 = vmax.f32 %v1115, 0.0
      %v1199 = vmax.f32 %v1120, 0.0
      %v1200 = vmax.f32 %v1123, 0.0
      %v1201 = vmax.f32 %v1128, 0.0
      %v1202 = vmax.f32 %v1131, 0.0
      %v1203 = vmax.f32 %v1136, 0.0
      %v1204 = vmax.f32 %v1139, 0.0
      %v1205 = vmax.f32 %v1144, 0.0
      %v1206 = vmax.f32 %v1147, 0.0
      %v1207 = vmax.f32 %v1152, 0.0
      %v1208 = vmax.f32 %v1155, 0.0
      %v1209 = vmax.f32 %v1160, 0.0
      %v1210 = vmax.f32 %v1163, 0.0
      %v1211 = vmax.f32 %v1168, 0.0
      %v1212 = vmax.f32 %v1171, 0.0
      %v1213 = vmax.f32 %v1176, 0.0
      %v1214 = vmax.f32 %v1179, 0.0
      %v1215 = vmax.f32 %v1184, 0.0
      %v1216 = vmax.f32 %v1187, 0.0
      %v1217 = vmax.f32 %v1192, 0.0
      %v1218 = vpack.c.bf16 %v1198, %v1197
      %v1219 = vpack.c.bf16 %v1200, %v1199
      %v1220 = vpack.c.bf16 %v1202, %v1201
      %v1221 = vpack.c.bf16 %v1204, %v1203
      %v1222 = vpack.c.bf16 %v1206, %v1205
      %v1223 = vpack.c.bf16 %v1208, %v1207
      %v1224 = vpack.c.bf16 %v1210, %v1209
      %v1225 = vpack.c.bf16 %v1212, %v1211
      %v1226 = vpack.c.bf16 %v1214, %v1213
      %v1227 = vpack.c.bf16 %v1216, %v1215
      %v1228 = vpack.c.bf16 %v1217, %v1217
      %v1240 = vunpack.c.l.b16 %v1218
      %v1241 = vunpack.c.h.b16 %v1218
      %v1242 = vunpack.c.l.b16 %v1219
      %v1243 = vunpack.c.h.b16 %v1219
      %v1244 = vunpack.c.l.b16 %v1220
      %v1245 = vunpack.c.h.b16 %v1220
      %v1246 = vunpack.c.l.b16 %v1221
      %v1247 = vunpack.c.h.b16 %v1221
      %v1248 = vunpack.c.l.b16 %v1222
      %v1249 = vunpack.c.h.b16 %v1222
      %v1250 = vunpack.c.l.b16 %v1223
      %v1251 = vunpack.c.h.b16 %v1223
      %v1252 = vunpack.c.l.b16 %v1224
      %v1253 = vunpack.c.h.b16 %v1224
      %v1254 = vunpack.c.l.b16 %v1225
      %v1255 = vunpack.c.h.b16 %v1225
      %v1256 = vunpack.c.l.b16 %v1226
      %v1257 = vunpack.c.h.b16 %v1226
      %v1258 = vunpack.c.l.b16 %v1227
      %v1259 = vunpack.c.h.b16 %v1227
      %v1260 = vunpack.c.l.b16 %v1228
      %v1261 = vpack.c.b16 %v1240, %v1240
      %v1262 = vpack.c.b16 %v1241, %v1241
      %v1263 = vpack.c.b16 %v1242, %v1242
      %v1264 = vpack.c.b16 %v1243, %v1243
      %v1265 = vpack.c.b16 %v1244, %v1244
      %v1266 = vpack.c.b16 %v1245, %v1245
      %v1267 = vpack.c.b16 %v1246, %v1246
      %v1268 = vpack.c.b16 %v1247, %v1247
      %v1269 = vpack.c.b16 %v1248, %v1248
      %v1270 = vpack.c.b16 %v1249, %v1249
      %v1271 = vpack.c.b16 %v1250, %v1250
      %v1272 = vpack.c.b16 %v1251, %v1251
      %v1273 = vpack.c.b16 %v1252, %v1252
      %v1274 = vpack.c.b16 %v1253, %v1253
      %v1275 = vpack.c.b16 %v1254, %v1254
      %v1276 = vpack.c.b16 %v1255, %v1255
      %v1277 = vpack.c.b16 %v1256, %v1256
      %v1278 = vpack.c.b16 %v1257, %v1257
      %v1279 = vpack.c.b16 %v1258, %v1258
      %v1280 = vpack.c.b16 %v1259, %v1259
      %v1281 = vpack.c.b16 %v1260, %v1260
      %1303 = vst [vmem:[%s175] sm:$0xf] %v1261
      %1304 = vst [vmem:[%s175 + $0x4] sm:$0xf] %v1262
      %1305 = vst [vmem:[%s175 + $0x8] sm:$0xf] %v1263
      %1306 = vst [vmem:[%s175 + $0xc] sm:$0xf] %v1264
      %1307 = vst [vmem:[%s175 + $0x10] sm:$0xf] %v1265
      %1308 = vst [vmem:[%s175 + $0x14] sm:$0xf] %v1266
      %1309 = vst [vmem:[%s175 + $0x18] sm:$0xf] %v1267
      %1310 = vst [vmem:[%s175 + $0x1c] sm:$0xf] %v1268
      %1311 = vst [vmem:[%s175 + $0x20] sm:$0xf] %v1269
      %1312 = vst [vmem:[%s175 + $0x24] sm:$0xf] %v1270
      %1313 = vst [vmem:[%s175 + $0x28] sm:$0xf] %v1271
      %1314 = vst [vmem:[%s175 + $0x2c] sm:$0xf] %v1272
      %1315 = vst [vmem:[%s175 + $0x30] sm:$0xf] %v1273
      %1316 = vst [vmem:[%s175 + $0x34] sm:$0xf] %v1274
      %1317 = vst [vmem:[%s175 + $0x38] sm:$0xf] %v1275
      %1318 = vst [vmem:[%s175 + $0x3c] sm:$0xf] %v1276
      %1319 = vst [vmem:[%s175 + $0x40] sm:$0xf] %v1277
      %1320 = vst [vmem:[%s175 + $0x44] sm:$0xf] %v1278
      %1321 = vst [vmem:[%s175 + $0x48] sm:$0xf] %v1279
      %1322 = vst [vmem:[%s175 + $0x4c] sm:$0xf] %v1280
      %1323 = vst [vmem:[%s175 + $0x50] sm:$0xf] %v1281
      %s1324 = smul.u32 21, %s14
      %p1325 = scmp.lt.s32.totalorder %s1324, 41
      %s1326 = scalar_select %p1325, %s1324, 41
      %s1327 = smul.addr %s1326, 4
      %s1328 = scalar_lea.vmem %s3, %s1327
      // Predicated region
      $region33: #{dqn_forward.4} parent=31 // pred_check
        %p1329 = pneg %p100
      $region34: #{dqn_forward.4} parent=31 // pred_check_branch
        %1331 = sbr.rel (%p1329) target = $region36
      $region35: #{dqn_forward.4} parent=31 // pred_region
        %s1332 = smul.u32 21, %s14
      $region36: #{dqn_forward.4} parent=31 // pred_fallthru
        _
    $region32: #{dqn_forward.4} parent=5 // pred_fallthru
      _
    %p1333 = scmp.le.s32.totalorder 2, %s9
    // Predicated region
    $region37: #{dqn_forward.4} parent=5 // pred_check
      %p1334 = pneg %p1333
    $region38: #{dqn_forward.4} parent=5 // pred_check_branch
      %1336 = sbr.rel (%p1334) target = $region40
    $region39: #{dqn_forward.4} parent=5 // pred_region
      %s1337 = ssub.s32 %s9, 2
      // Predicated region
      $region41: #{dqn_forward.4} parent=39 // pred_check
        %p1338 = pneg %p106
      $region42: #{dqn_forward.4} parent=39 // pred_check_branch
        %1340 = sbr.rel (%p1338) target = $region44
      $region43: #{dqn_forward.4} parent=39 // pred_region
        %s1341 = smul.u32 21, %s15
        %p1342 = scmp.lt.s32.totalorder %s1341, 41
        %s1343 = scalar_select %p1342, %s1341, 41
        %s1344 = smul.addr %s1343, 4
        %s1345 = scalar_lea.vmem %s3, %s1344
      $region44: #{dqn_forward.4} parent=39 // pred_fallthru
        _
    $region40: #{dqn_forward.4} parent=5 // pred_fallthru
      _
  $region6: #{dqn_forward.4} parent=0 // loop_footer
    %s13 = sadd.s32 1, %s9
  $region7: #{dqn_forward.4} parent=0 // loop_footer_branch
    %8 = sbr.rel target = $region3
  $region8: #{dqn_forward.4} parent=0 // loop_exit
    _

// kernel: dqn_forward.5
$region0: #{dqn_forward.5}
  #allocation0 [shape = 'u32[]', space=smem, size = 0x4, offset = 0x4, fixed_abs, tag = 'smem constant byte address 0x4 - core index']
  #allocation1 [shape = 'u32[144,128]{1,0:T(1,128)}', space=vmem, size = 0x12000, scoped, tag = 'internal scratch']
  %s0 = inlined_call_operand.vmem [shape: bf16[598,256], index: 0, kind: input, shape index: {}]
  %s1 = inlined_call_operand.vmem [shape: bf16[256,32], index: 1, kind: input, shape index: {}]
  %s2 = inlined_call_operand.vmem [shape: f32[1,32], index: 2, kind: input, shape index: {}]
  %s3 = inlined_call_operand.vmem [shape: bf16[598,32], index: 3, kind: output, shape index: {}]
  %s4 = sld [smem:[#allocation0]]
  $region89: #{dqn_forward.5} parent=0
    _
  %s6 = ssub.s32 1, %s4
  %s7 = scalar_select 0, %s6, %s4
  $region1: #{dqn_forward.5} parent=0
    #allocation2 [shape = 'u8[155648]{0}', space=vmem, size = 0x26000, scoped, tag = 'output window, operand 0']
    loop: start=0, step=1, limit=4
    $region2: #{dqn_forward.5} parent=1 // loop_pre_header
      _
    $region3: #{dqn_forward.5} parent=1 // loop_header
      %s9 = sphi 0, %s13
      %p10 = scmp.ge.s32.totalorder %s9, 4
      %s19 = sphi 0, %s21
      %s22 = sphi 0, %s19
      %s23 = sphi 0, %s22
      %s39 = sphi 0, %s23
      %s43 = sphi 0, %s43
      %s45 = sphi 0, %s43
      %s46 = sphi 0, %s45
      %s60 = sphi 0, %s46
      %s64 = sphi 0, %s64
      %s66 = sphi 0, %s64
      %s67 = sphi 0, %s66
      %s81 = sphi 0, %s67
      %s87 = sphi 0, %s89
      %s90 = sphi 0, %s87
      %s91 = sphi 0, %s90
      %s107 = sphi 0, %s91
    $region4: #{dqn_forward.5} parent=1 // loop_header_branch
      %12 = sbr.rel (%p10) target = $region8
    $region5: #{dqn_forward.5} parent=1 // loop_body
      %s14 = ssub.s32 %s9, 1
      %s15 = ssub.s32 %s9, 2
      %s16 = sadd.s32 %s9, 1
      %s17 = ssub.s32 %s9, %s16
      %p18 = scmp.eq.s32.totalorder %s17, 0
      %s20 = sadd.s32 %s19, 1
      %s21 = scalar_select %p18, %s19, %s20
      %p24 = pneg %p18
      %p25 = scmp.eq.s32.totalorder %s9, 1
      %p26 = por %p24, %p25
      %p27 = scmp.ne.s32.totalorder %s19, %s22
      %p28 = scmp.eq.s32.totalorder %s9, 0
      %p29 = por %p27, %p28
      %p30 = scmp.ne.s32.totalorder %s19, %s22
      %p31 = scmp.eq.s32.totalorder %s14, 1
      %p32 = por %p30, %p31
      %p33 = scmp.ne.s32.totalorder %s22, %s23
      %p34 = scmp.eq.s32.totalorder %s14, 0
      %p35 = por %p33, %p34
      %p36 = scmp.ne.s32.totalorder %s22, %s23
      %p37 = scmp.eq.s32.totalorder %s15, 1
      %p38 = por %p36, %p37
      %p40 = scmp.ne.s32.totalorder %s23, %s39
      %p41 = scmp.eq.s32.totalorder %s15, 0
      %p42 = por %p40, %p41
      %s44 = sadd.s32 %s43, 1
      %p47 = scmp.eq.s32.totalorder %s9, 1
      %p48 = scmp.ne.s32.totalorder %s43, %s45
      %p49 = scmp.eq.s32.totalorder %s9, 0
      %p50 = por %p48, %p49
      %p51 = scmp.ne.s32.totalorder %s43, %s45
      %p52 = scmp.eq.s32.totalorder %s14, 1
      %p53 = por %p51, %p52
      %p54 = scmp.ne.s32.totalorder %s45, %s46
      %p55 = scmp.eq.s32.totalorder %s14, 0
      %p56 = por %p54, %p55
      %p57 = scmp.ne.s32.totalorder %s45, %s46
      %p58 = scmp.eq.s32.totalorder %s15, 1
      %p59 = por %p57, %p58
      %p61 = scmp.ne.s32.totalorder %s46, %s60
      %p62 = scmp.eq.s32.totalorder %s15, 0
      %p63 = por %p61, %p62
      %s65 = sadd.s32 %s64, 1
      %p68 = scmp.eq.s32.totalorder %s9, 1
      %p69 = scmp.ne.s32.totalorder %s64, %s66
      %p70 = scmp.eq.s32.totalorder %s9, 0
      %p71 = por %p69, %p70
      %p72 = scmp.ne.s32.totalorder %s64, %s66
      %p73 = scmp.eq.s32.totalorder %s14, 1
      %p74 = por %p72, %p73
      %p75 = scmp.ne.s32.totalorder %s66, %s67
      %p76 = scmp.eq.s32.totalorder %s14, 0
      %p77 = por %p75, %p76
      %p78 = scmp.ne.s32.totalorder %s66, %s67
      %p79 = scmp.eq.s32.totalorder %s15, 1
      %p80 = por %p78, %p79
      %p82 = scmp.ne.s32.totalorder %s67, %s81
      %p83 = scmp.eq.s32.totalorder %s15, 0
      %p84 = por %p82, %p83
      %s85 = ssub.s32 %s9, %s16
      %p86 = scmp.eq.s32.totalorder %s85, 0
      %s88 = sadd.s32 %s87, 1
      %s89 = scalar_select %p86, %s87, %s88
      %p92 = pneg %p86
      %p93 = scmp.eq.s32.totalorder %s9, 1
      %p94 = por %p92, %p93
      %p95 = scmp.ne.s32.totalorder %s87, %s90
      %p96 = scmp.eq.s32.totalorder %s9, 0
      %p97 = por %p95, %p96
      %p98 = scmp.ne.s32.totalorder %s87, %s90
      %p99 = scmp.eq.s32.totalorder %s14, 1
      %p100 = por %p98, %p99
      %p101 = scmp.ne.s32.totalorder %s90, %s91
      %p102 = scmp.eq.s32.totalorder %s14, 0
      %p103 = por %p101, %p102
      %p104 = scmp.ne.s32.totalorder %s90, %s91
      %p105 = scmp.eq.s32.totalorder %s15, 1
      %p106 = por %p104, %p105
      %p108 = scmp.ne.s32.totalorder %s91, %s107
      %p109 = scmp.eq.s32.totalorder %s15, 0
      %p110 = por %p108, %p109
      %p111 = scmp.le.s32.totalorder 1, %s9
      %p112 = scmp.lt.s32.totalorder %s9, 3
      %p113 = pnand %p111, %p112
      %p114 = pneg %p113
      // Predicated region
      $region9: #{dqn_forward.5} parent=5 // pred_check
        _
      $region10: #{dqn_forward.5} parent=5 // pred_check_branch
        %116 = sbr.rel (%p113) target = $region12
      $region11: #{dqn_forward.5} parent=5 // pred_region
        %s117 = ssub.s32 %s9, 1
        // Predicated region
        $region13: #{dqn_forward.5} parent=11 // pred_check
          %p118 = pneg %p56
        $region14: #{dqn_forward.5} parent=11 // pred_check_branch
          %120 = sbr.rel (%p118) target = $region16
        $region15: #{dqn_forward.5} parent=11 // pred_region
          _
        $region16: #{dqn_forward.5} parent=11 // pred_fallthru
          _
        // Predicated region
        $region17: #{dqn_forward.5} parent=11 // pred_check
          %p121 = pneg %p77
        $region18: #{dqn_forward.5} parent=11 // pred_check_branch
          %123 = sbr.rel (%p121) target = $region20
        $region19: #{dqn_forward.5} parent=11 // pred_region
          _
        $region20: #{dqn_forward.5} parent=11 // pred_fallthru
          _
      $region12: #{dqn_forward.5} parent=5 // pred_fallthru
        _
      %p124 = scmp.lt.s32.totalorder %s9, 2
      // Predicated region
      $region21: #{dqn_forward.5} parent=5 // pred_check
        %p125 = pneg %p124
      $region22: #{dqn_forward.5} parent=5 // pred_check_branch
        %127 = sbr.rel (%p125) target = $region24
      $region23: #{dqn_forward.5} parent=5 // pred_region
        // Predicated region
        $region25: #{dqn_forward.5} parent=23 // pred_check
          %p128 = pneg %p29
        $region26: #{dqn_forward.5} parent=23 // pred_check_branch
          %130 = sbr.rel (%p128) target = $region28
        $region27: #{dqn_forward.5} parent=23 // pred_region
          %s131 = smul.u32 38, %s9
          %s132 = ssub.s32 75, %s131
          %p133 = scmp.lt.s32.totalorder %s132, 38
          %s134 = scalar_select %p133, %s132, 38
          %s135 = smul.u32 64, %s134
          %s136 = smul.u32 %s135, 2
          %p137 = scmp.lt.s32.totalorder %s131, 74
          %s138 = scalar_select %p137, %s131, 74
          %s139 = smul.addr %s138, 2
          %s140 = smul.addr %s139, 4
          %s141 = scalar_lea.vmem %s0, %s140
          %s142 = smul.u32 38, %s9
          %s143 = ssub.s32 75, %s142
          %p144 = scmp.lt.s32.totalorder %s143, 38
          %s145 = scalar_select %p144, %s143, 38
          %s146 = smul.u32 64, %s145
          %s147 = smul.u32 %s146, 2
        $region28: #{dqn_forward.5} parent=23 // pred_fallthru
          _
      $region24: #{dqn_forward.5} parent=5 // pred_fallthru
        _
      %p148 = scmp.le.s32.totalorder 1, %s9
      %p149 = scmp.lt.s32.totalorder %s9, 3
      %p150 = pnand %p148, %p149
      %p151 = pneg %p150
      // Predicated region
      $region29: #{dqn_forward.5} parent=5 // pred_check
        _
      $region30: #{dqn_forward.5} parent=5 // pred_check_branch
        %153 = sbr.rel (%p150) target = $region32
      $region31: #{dqn_forward.5} parent=5 // pred_region
        %s154 = ssub.s32 %s9, 1
        %s155 = smul.u32 38, %s14
        %s156 = ssub.s32 75, %s155
        %p157 = scmp.lt.s32.totalorder %s156, 38
        %s158 = scalar_select %p157, %s156, 38
        %s159 = smul.u32 64, %s158
        %s160 = smul.u32 %s159, 2
        %p161 = scmp.lt.s32.totalorder %s155, 74
        %s162 = scalar_select %p161, %s155, 74
        %s163 = smul.addr %s162, 2
        %s164 = smul.addr %s163, 4
        %s165 = scalar_lea.vmem %s0, %s164
        %p166 = pneg %p35
        %p167 = pneg %p32
        %p168 = pneg %p56
        %p169 = pneg %p53
        %p170 = pneg %p77
        %p171 = pneg %p74
        %p172 = pneg %p103
        %p173 = pneg %p100
        %s174 = sand.u32 %s90, 1
        %s175 = sand.u32 %s90, 1
        %s176 = smul.addr %s175, 152
        %s177 = scalar_lea.vmem [#allocation2], %s176
        %s178 = smul.u32 38, %s14
        %s179 = ssub.s32 75, %s178
        %p180 = scmp.lt.s32.totalorder %s179, 38
        %s181 = scalar_select %p180, %s179, 38
        %s182 = smul.u32 64, %s181
        %s183 = smul.u32 %s182, 2
        %p184 = scmp.lt.s32.totalorder %s178, 74
        %s185 = scalar_select %p184, %s178, 74
        %s186 = smul.addr %s185, 2
        %s187 = smul.addr %s186, 4
        %s188 = scalar_lea.vmem %s0, %s187
        %s189 = smul.u32 38, %s14
        %s190 = ssub.s32 75, %s189
        %p191 = scmp.lt.s32.totalorder %s190, 38
        %s192 = scalar_select %p191, %s190, 38
        %s193 = smul.u32 64, %s192
        %s194 = smul.u32 %s193, 2
        %s195 = smul.u32 38, %s14
        %s196 = ssub.s32 75, %s195
        %p197 = scmp.lt.s32.totalorder %s196, 38
        %s198 = scalar_select %p197, %s196, 38
        %s199 = smul.u32 64, %s198
        %v201 = vld [vmem:[%s188] sm:$0xff]
        %v202 = vld [vmem:[%s188 + $0x8] sm:$0xff]
        %v203 = vld [vmem:[%s188 + $0x10] sm:$0xff]
        %v204 = vld [vmem:[%s188 + $0x18] sm:$0xff]
        %v205 = vld [vmem:[%s188 + $0x20] sm:$0xff]
        %v206 = vld [vmem:[%s188 + $0x28] sm:$0xff]
        %v207 = vld [vmem:[%s188 + $0x30] sm:$0xff]
        %v208 = vld [vmem:[%s188 + $0x38] sm:$0xff]
        %v209 = vld [vmem:[%s188 + $0x40] sm:$0xff]
        %v210 = vld [vmem:[%s188 + $0x48] sm:$0xff]
        %v211 = vld [vmem:[%s188 + $0x50] sm:$0xff]
        %v212 = vld [vmem:[%s188 + $0x58] sm:$0xff]
        %v213 = vld [vmem:[%s188 + $0x60] sm:$0xff]
        %v214 = vld [vmem:[%s188 + $0x68] sm:$0xff]
        %v215 = vld [vmem:[%s188 + $0x70] sm:$0xff]
        %v216 = vld [vmem:[%s188 + $0x78] sm:$0xff]
        %v217 = vld [vmem:[%s188 + $0x80] sm:$0xff]
        %v218 = vld [vmem:[%s188 + $0x88] sm:$0xff]
        %v219 = vld [vmem:[%s188 + $0x90] sm:$0xff]
        %v220 = vld [vmem:[%s188 + $0x98] sm:$0xff]
        %v221 = vld [vmem:[%s188 + $0xa0] sm:$0xff]
        %v222 = vld [vmem:[%s188 + $0xa8] sm:$0xff]
        %v223 = vld [vmem:[%s188 + $0xb0] sm:$0xff]
        %v224 = vld [vmem:[%s188 + $0xb8] sm:$0xff]
        %v225 = vld [vmem:[%s188 + $0xc0] sm:$0xff]
        %v226 = vld [vmem:[%s188 + $0xc8] sm:$0xff]
        %v227 = vld [vmem:[%s188 + $0xd0] sm:$0xff]
        %v228 = vld [vmem:[%s188 + $0xd8] sm:$0xff]
        %v229 = vld [vmem:[%s188 + $0xe0] sm:$0xff]
        %v230 = vld [vmem:[%s188 + $0xe8] sm:$0xff]
        %v231 = vld [vmem:[%s188 + $0xf0] sm:$0xff]
        %v232 = vld [vmem:[%s188 + $0xf8] sm:$0xff]
        %v233 = vld [vmem:[%s188 + $0x100] sm:$0xff]
        %v234 = vld [vmem:[%s188 + $0x108] sm:$0xff]
        %v235 = vld [vmem:[%s188 + $0x110] sm:$0xff]
        %v236 = vld [vmem:[%s188 + $0x118] sm:$0xff]
        %v237 = vld [vmem:[%s188 + $0x120] sm:$0xff]
        %v238 = vld [vmem:[%s188 + $0x128] sm:$0xff]
        %v239 = vld [vmem:[%s1] sm:$0xf]
        %v240 = vld [vmem:[%s1 + $0x4] sm:$0xf]
        %v241 = vld [vmem:[%s1 + $0x8] sm:$0xf]
        %v242 = vld [vmem:[%s1 + $0xc] sm:$0xf]
        %v243 = vld [vmem:[%s1 + $0x10] sm:$0xf]
        %v244 = vld [vmem:[%s1 + $0x14] sm:$0xf]
        %v245 = vld [vmem:[%s1 + $0x18] sm:$0xf]
        %v246 = vld [vmem:[%s1 + $0x1c] sm:$0xf]
        %v247 = vld [vmem:[%s1 + $0x20] sm:$0xf]
        %v248 = vld [vmem:[%s1 + $0x24] sm:$0xf]
        %v249 = vld [vmem:[%s1 + $0x28] sm:$0xf]
        %v250 = vld [vmem:[%s1 + $0x2c] sm:$0xf]
        %v251 = vld [vmem:[%s1 + $0x30] sm:$0xf]
        %v252 = vld [vmem:[%s1 + $0x34] sm:$0xf]
        %v253 = vld [vmem:[%s1 + $0x38] sm:$0xf]
        %v254 = vld [vmem:[%s1 + $0x3c] sm:$0xf]
        %v255 = vld [vmem:[%s1 + $0x40] sm:$0xf]
        %v256 = vld [vmem:[%s1 + $0x44] sm:$0xf]
        %v257 = vld [vmem:[%s1 + $0x48] sm:$0xf]
        %v258 = vld [vmem:[%s1 + $0x4c] sm:$0xf]
        %v259 = vld [vmem:[%s1 + $0x50] sm:$0xf]
        %v260 = vld [vmem:[%s1 + $0x54] sm:$0xf]
        %v261 = vld [vmem:[%s1 + $0x58] sm:$0xf]
        %v262 = vld [vmem:[%s1 + $0x5c] sm:$0xf]
        %v263 = vld [vmem:[%s1 + $0x60] sm:$0xf]
        %v264 = vld [vmem:[%s1 + $0x64] sm:$0xf]
        %v265 = vld [vmem:[%s1 + $0x68] sm:$0xf]
        %v266 = vld [vmem:[%s1 + $0x6c] sm:$0xf]
        %v267 = vld [vmem:[%s1 + $0x70] sm:$0xf]
        %v268 = vld [vmem:[%s1 + $0x74] sm:$0xf]
        %v269 = vld [vmem:[%s1 + $0x78] sm:$0xf]
        %v270 = vld [vmem:[%s1 + $0x7c] sm:$0xf]
        %v271 = vld [vmem:[%s2] sm:$0x1]
        %v273 = vlaneseq
        %v274 = vshrl.u32 %v273, 7
        %v275 = vsub.s32 0, %v274
        %v276 = vrot.slane %v271, %v275
        %v316 = vunpack.c.l.b16 %v201
        %v317 = vunpack.c.h.b16 %v201
        %v318 = vunpack.c.l.b16 %v202
        %v319 = vunpack.c.h.b16 %v202
        %v320 = vunpack.c.l.b16 %v203
        %v321 = vunpack.c.h.b16 %v203
        %v322 = vunpack.c.l.b16 %v204
        %v323 = vunpack.c.h.b16 %v204
        %v324 = vunpack.c.l.b16 %v205
        %v325 = vunpack.c.h.b16 %v205
        %v326 = vunpack.c.l.b16 %v206
        %v327 = vunpack.c.h.b16 %v206
        %v328 = vunpack.c.l.b16 %v207
        %v329 = vunpack.c.h.b16 %v207
        %v330 = vunpack.c.l.b16 %v208
        %v331 = vunpack.c.h.b16 %v208
        %v332 = vunpack.c.l.b16 %v209
        %v333 = vunpack.c.h.b16 %v209
        %v334 = vunpack.c.l.b16 %v210
        %v335 = vunpack.c.h.b16 %v210
        %v336 = vunpack.c.l.b16 %v211
        %v337 = vunpack.c.h.b16 %v211
        %v338 = vunpack.c.l.b16 %v212
        %v339 = vunpack.c.h.b16 %v212
        %v340 = vunpack.c.l.b16 %v213
        %v341 = vunpack.c.h.b16 %v213
        %v342 = vunpack.c.l.b16 %v214
        %v343 = vunpack.c.h.b16 %v214
        %v344 = vunpack.c.l.b16 %v215
        %v345 = vunpack.c.h.b16 %v215
        %v346 = vunpack.c.l.b16 %v216
        %v347 = vunpack.c.h.b16 %v216
        %v348 = vunpack.c.l.b16 %v217
        %v349 = vunpack.c.h.b16 %v217
        %v350 = vunpack.c.l.b16 %v218
        %v351 = vunpack.c.h.b16 %v218
        %v352 = vunpack.c.l.b16 %v219
        %v353 = vunpack.c.h.b16 %v219
        %v354 = vunpack.c.l.b16 %v220
        %v355 = vunpack.c.h.b16 %v220
        %v356 = vunpack.c.l.b16 %v221
        %v357 = vunpack.c.h.b16 %v221
        %v358 = vunpack.c.l.b16 %v222
        %v359 = vunpack.c.h.b16 %v222
        %v360 = vunpack.c.l.b16 %v223
        %v361 = vunpack.c.h.b16 %v223
        %v362 = vunpack.c.l.b16 %v224
        %v363 = vunpack.c.h.b16 %v224
        %v364 = vunpack.c.l.b16 %v225
        %v365 = vunpack.c.h.b16 %v225
        %v366 = vunpack.c.l.b16 %v226
        %v367 = vunpack.c.h.b16 %v226
        %v368 = vunpack.c.l.b16 %v227
        %v369 = vunpack.c.h.b16 %v227
        %v370 = vunpack.c.l.b16 %v228
        %v371 = vunpack.c.h.b16 %v228
        %v372 = vunpack.c.l.b16 %v229
        %v373 = vunpack.c.h.b16 %v229
        %v374 = vunpack.c.l.b16 %v230
        %v375 = vunpack.c.h.b16 %v230
        %v376 = vunpack.c.l.b16 %v231
        %v377 = vunpack.c.h.b16 %v231
        %v378 = vunpack.c.l.b16 %v232
        %v379 = vunpack.c.h.b16 %v232
        %v380 = vunpack.c.l.b16 %v233
        %v381 = vunpack.c.h.b16 %v233
        %v382 = vunpack.c.l.b16 %v234
        %v383 = vunpack.c.h.b16 %v234
        %v384 = vunpack.c.l.b16 %v235
        %v385 = vunpack.c.h.b16 %v235
        %v386 = vunpack.c.l.b16 %v236
        %v387 = vunpack.c.h.b16 %v236
        %v388 = vunpack.c.l.b16 %v237
        %v389 = vunpack.c.h.b16 %v237
        %v390 = vunpack.c.l.b16 %v238
        %v391 = vunpack.c.h.b16 %v238
        %v392 = vpack.c.b16 %v318, %v316
        %v393 = vpack.c.b16 %v319, %v317
        %v394 = vpack.c.b16 %v322, %v320
        %v395 = vpack.c.b16 %v323, %v321
        %v396 = vpack.c.b16 %v326, %v324
        %v397 = vpack.c.b16 %v327, %v325
        %v398 = vpack.c.b16 %v330, %v328
        %v399 = vpack.c.b16 %v331, %v329
        %v400 = vpack.c.b16 %v334, %v332
        %v401 = vpack.c.b16 %v335, %v333
        %v402 = vpack.c.b16 %v338, %v336
        %v403 = vpack.c.b16 %v339, %v337
        %v404 = vpack.c.b16 %v342, %v340
        %v405 = vpack.c.b16 %v343, %v341
        %v406 = vpack.c.b16 %v346, %v344
        %v407 = vpack.c.b16 %v347, %v345
        %v408 = vpack.c.b16 %v350, %v348
        %v409 = vpack.c.b16 %v351, %v349
        %v410 = vpack.c.b16 %v354, %v352
        %v411 = vpack.c.b16 %v355, %v353
        %v412 = vpack.c.b16 %v358, %v356
        %v413 = vpack.c.b16 %v359, %v357
        %v414 = vpack.c.b16 %v362, %v360
        %v415 = vpack.c.b16 %v363, %v361
        %v416 = vpack.c.b16 %v366, %v364
        %v417 = vpack.c.b16 %v367, %v365
        %v418 = vpack.c.b16 %v370, %v368
        %v419 = vpack.c.b16 %v371, %v369
        %v420 = vpack.c.b16 %v374, %v372
        %v421 = vpack.c.b16 %v375, %v373
        %v422 = vpack.c.b16 %v378, %v376
        %v423 = vpack.c.b16 %v379, %v377
        %v424 = vpack.c.b16 %v382, %v380
        %v425 = vpack.c.b16 %v383, %v381
        %v426 = vpack.c.b16 %v386, %v384
        %v427 = vpack.c.b16 %v387, %v385
        %v428 = vpack.c.b16 %v390, %v388
        %v429 = vpack.c.b16 %v391, %v389
        %v500 = vunpack.c.l.b16 %v239
        %v501 = vunpack.c.l.b16 %v240
        %v502 = vunpack.c.l.b16 %v241
        %v503 = vunpack.c.l.b16 %v242
        %v504 = vunpack.c.l.b16 %v243
        %v505 = vunpack.c.l.b16 %v244
        %v506 = vunpack.c.l.b16 %v245
        %v507 = vunpack.c.l.b16 %v246
        %v508 = vunpack.c.l.b16 %v247
        %v509 = vunpack.c.l.b16 %v248
        %v510 = vunpack.c.l.b16 %v249
        %v511 = vunpack.c.l.b16 %v250
        %v512 = vunpack.c.l.b16 %v251
        %v513 = vunpack.c.l.b16 %v252
        %v514 = vunpack.c.l.b16 %v253
        %v515 = vunpack.c.l.b16 %v254
        %v516 = vunpack.c.l.b16 %v255
        %v517 = vunpack.c.l.b16 %v256
        %v518 = vunpack.c.l.b16 %v257
        %v519 = vunpack.c.l.b16 %v258
        %v520 = vunpack.c.l.b16 %v259
        %v521 = vunpack.c.l.b16 %v260
        %v522 = vunpack.c.l.b16 %v261
        %v523 = vunpack.c.l.b16 %v262
        %v524 = vunpack.c.l.b16 %v263
        %v525 = vunpack.c.l.b16 %v264
        %v526 = vunpack.c.l.b16 %v265
        %v527 = vunpack.c.l.b16 %v266
        %v528 = vunpack.c.l.b16 %v267
        %v529 = vunpack.c.l.b16 %v268
        %v530 = vunpack.c.l.b16 %v269
        %v531 = vunpack.c.l.b16 %v270
        %v532 = vpack.c.b16 %v501, %v500
        %v533 = vpack.c.b16 %v503, %v502
        %v534 = vpack.c.b16 %v505, %v504
        %v535 = vpack.c.b16 %v507, %v506
        %v536 = vpack.c.b16 %v509, %v508
        %v537 = vpack.c.b16 %v511, %v510
        %v538 = vpack.c.b16 %v513, %v512
        %v539 = vpack.c.b16 %v515, %v514
        %v540 = vpack.c.b16 %v517, %v516
        %v541 = vpack.c.b16 %v519, %v518
        %v542 = vpack.c.b16 %v521, %v520
        %v543 = vpack.c.b16 %v523, %v522
        %v544 = vpack.c.b16 %v525, %v524
        %v545 = vpack.c.b16 %v527, %v526
        %v546 = vpack.c.b16 %v529, %v528
        %v547 = vpack.c.b16 %v531, %v530
        %564 = vmatprep.subr.bf16.mxu0 0
        %565 = vmatpush1.bf16.msra.mxu0 %v539
        %566 = vmatprep.subr.bf16.mxu0 0
        %567 = vmatpush1.bf16.msra.mxu0 %v538
        %568 = vmatprep.subr.bf16.mxu0 0
        %569 = vmatpush1.bf16.msra.mxu0 %v537
        %570 = vmatprep.subr.bf16.mxu0 0
        %571 = vmatpush1.bf16.msra.mxu0 %v536
        %572 = vmatprep.subr.bf16.mxu0 0
        %573 = vmatpush1.bf16.msra.mxu0 %v535
        %574 = vmatprep.subr.bf16.mxu0 0
        %575 = vmatpush1.bf16.msra.mxu0 %v534
        %576 = vmatprep.subr.bf16.mxu0 0
        %577 = vmatpush1.bf16.msra.mxu0 %v533
        %578 = vmatprep.subr.bf16.mxu0 0
        %579 = vmatpush1.bf16.msra.mxu0 %v532
        %580 = vmatprep.subr.bf16.mxu0 0
        %581 = vmatpush2.bf16.msra.mxu0 %v547
        %582 = vmatprep.subr.bf16.mxu0 0
        %583 = vmatpush2.bf16.msra.mxu0 %v546
        %584 = vmatprep.subr.bf16.mxu0 0
        %585 = vmatpush2.bf16.msra.mxu0 %v545
        %586 = vmatprep.subr.bf16.mxu0 0
        %587 = vmatpush2.bf16.msra.mxu0 %v544
        %588 = vmatprep.subr.bf16.mxu0 0
        %589 = vmatpush2.bf16.msra.mxu0 %v543
        %590 = vmatprep.subr.bf16.mxu0 0
        %591 = vmatpush2.bf16.msra.mxu0 %v542
        %592 = vmatprep.subr.bf16.mxu0 0
        %593 = vmatpush2.bf16.msra.mxu0 %v541
        %594 = vmatprep.subr.bf16.mxu0 0
        %595 = vmatpush2.bf16.msra.mxu0 %v540
        %596 = vmatprep.mubr.bf16.mxu0 %v393
        %597 = vmatmul.mubr.bf16.gmra.mxu0 %v392
        %v598 = vpop.f32.mrf.mxu0
        %v599 = vadd.f32 %v276, %v598
        %v600 = vpop.f32.mrf.mxu0
        %v601 = vpop.f32.mrf.mxu0
        %v602 = vadd.f32 %v276, %v601
        %v603 = vpop.f32.mrf.mxu0
        %604 = vmatprep.mubr.bf16.mxu0 %v395
        %605 = vmatmul.mubr.bf16.gmra.mxu0 %v394
        %v606 = vpop.f32.mrf.mxu0
        %v607 = vadd.f32 %v276, %v606
        %v608 = vpop.f32.mrf.mxu0
        %v609 = vpop.f32.mrf.mxu0
        %v610 = vadd.f32 %v276, %v609
        %v611 = vpop.f32.mrf.mxu0
        %612 = vmatprep.mubr.bf16.mxu0 %v397
        %613 = vmatmul.mubr.bf16.gmra.mxu0 %v396
        %v614 = vpop.f32.mrf.mxu0
        %v615 = vadd.f32 %v276, %v614
        %v616 = vpop.f32.mrf.mxu0
        %v617 = vpop.f32.mrf.mxu0
        %v618 = vadd.f32 %v276, %v617
        %v619 = vpop.f32.mrf.mxu0
        %620 = vmatprep.mubr.bf16.mxu0 %v399
        %621 = vmatmul.mubr.bf16.gmra.mxu0 %v398
        %v622 = vpop.f32.mrf.mxu0
        %v623 = vadd.f32 %v276, %v622
        %v624 = vpop.f32.mrf.mxu0
        %v625 = vpop.f32.mrf.mxu0
        %v626 = vadd.f32 %v276, %v625
        %v627 = vpop.f32.mrf.mxu0
        %628 = vmatprep.mubr.bf16.mxu0 %v401
        %629 = vmatmul.mubr.bf16.gmra.mxu0 %v400
        %v630 = vpop.f32.mrf.mxu0
        %v631 = vadd.f32 %v276, %v630
        %v632 = vpop.f32.mrf.mxu0
        %v633 = vpop.f32.mrf.mxu0
        %v634 = vadd.f32 %v276, %v633
        %v635 = vpop.f32.mrf.mxu0
        %636 = vmatprep.mubr.bf16.mxu0 %v403
        %637 = vmatmul.mubr.bf16.gmra.mxu0 %v402
        %v638 = vpop.f32.mrf.mxu0
        %v639 = vadd.f32 %v276, %v638
        %v640 = vpop.f32.mrf.mxu0
        %v641 = vpop.f32.mrf.mxu0
        %v642 = vadd.f32 %v276, %v641
        %v643 = vpop.f32.mrf.mxu0
        %644 = vmatprep.mubr.bf16.mxu0 %v405
        %645 = vmatmul.mubr.bf16.gmra.mxu0 %v404
        %v646 = vpop.f32.mrf.mxu0
        %v647 = vadd.f32 %v276, %v646
        %v648 = vpop.f32.mrf.mxu0
        %v649 = vpop.f32.mrf.mxu0
        %v650 = vadd.f32 %v276, %v649
        %v651 = vpop.f32.mrf.mxu0
        %652 = vmatprep.mubr.bf16.mxu0 %v407
        %653 = vmatmul.mubr.bf16.gmra.mxu0 %v406
        %v654 = vpop.f32.mrf.mxu0
        %v655 = vadd.f32 %v276, %v654
        %v656 = vpop.f32.mrf.mxu0
        %v657 = vpop.f32.mrf.mxu0
        %v658 = vadd.f32 %v276, %v657
        %v659 = vpop.f32.mrf.mxu0
        %660 = vmatprep.mubr.bf16.mxu0 %v409
        %661 = vmatmul.mubr.bf16.gmra.mxu0 %v408
        %v662 = vpop.f32.mrf.mxu0
        %v663 = vadd.f32 %v276, %v662
        %v664 = vpop.f32.mrf.mxu0
        %v665 = vpop.f32.mrf.mxu0
        %v666 = vadd.f32 %v276, %v665
        %v667 = vpop.f32.mrf.mxu0
        %668 = vmatprep.mubr.bf16.mxu0 %v411
        %669 = vmatmul.mubr.bf16.gmra.mxu0 %v410
        %v670 = vpop.f32.mrf.mxu0
        %v671 = vadd.f32 %v276, %v670
        %v672 = vpop.f32.mrf.mxu0
        %v673 = vpop.f32.mrf.mxu0
        %v674 = vadd.f32 %v276, %v673
        %v675 = vpop.f32.mrf.mxu0
        %676 = vmatprep.mubr.bf16.mxu0 %v413
        %677 = vmatmul.mubr.bf16.gmra.mxu0 %v412
        %v678 = vpop.f32.mrf.mxu0
        %v679 = vadd.f32 %v276, %v678
        %v680 = vpop.f32.mrf.mxu0
        %v681 = vpop.f32.mrf.mxu0
        %v682 = vadd.f32 %v276, %v681
        %v683 = vpop.f32.mrf.mxu0
        %684 = vmatprep.mubr.bf16.mxu0 %v415
        %685 = vmatmul.mubr.bf16.gmra.mxu0 %v414
        %v686 = vpop.f32.mrf.mxu0
        %v687 = vadd.f32 %v276, %v686
        %v688 = vpop.f32.mrf.mxu0
        %v689 = vpop.f32.mrf.mxu0
        %v690 = vadd.f32 %v276, %v689
        %v691 = vpop.f32.mrf.mxu0
        %692 = vmatprep.mubr.bf16.mxu0 %v417
        %693 = vmatmul.mubr.bf16.gmra.mxu0 %v416
        %v694 = vpop.f32.mrf.mxu0
        %v695 = vadd.f32 %v276, %v694
        %v696 = vpop.f32.mrf.mxu0
        %v697 = vpop.f32.mrf.mxu0
        %v698 = vadd.f32 %v276, %v697
        %v699 = vpop.f32.mrf.mxu0
        %700 = vmatprep.mubr.bf16.mxu0 %v419
        %701 = vmatmul.mubr.bf16.gmra.mxu0 %v418
        %v702 = vpop.f32.mrf.mxu0
        %v703 = vadd.f32 %v276, %v702
        %v704 = vpop.f32.mrf.mxu0
        %v705 = vpop.f32.mrf.mxu0
        %v706 = vadd.f32 %v276, %v705
        %v707 = vpop.f32.mrf.mxu0
        %708 = vmatprep.mubr.bf16.mxu0 %v421
        %709 = vmatmul.mubr.bf16.gmra.mxu0 %v420
        %v710 = vpop.f32.mrf.mxu0
        %v711 = vadd.f32 %v276, %v710
        %v712 = vpop.f32.mrf.mxu0
        %v713 = vpop.f32.mrf.mxu0
        %v714 = vadd.f32 %v276, %v713
        %v715 = vpop.f32.mrf.mxu0
        %716 = vmatprep.mubr.bf16.mxu0 %v423
        %717 = vmatmul.mubr.bf16.gmra.mxu0 %v422
        %v718 = vpop.f32.mrf.mxu0
        %v719 = vadd.f32 %v276, %v718
        %v720 = vpop.f32.mrf.mxu0
        %v721 = vpop.f32.mrf.mxu0
        %v722 = vadd.f32 %v276, %v721
        %v723 = vpop.f32.mrf.mxu0
        %724 = vmatprep.mubr.bf16.mxu0 %v425
        %725 = vmatmul.mubr.bf16.gmra.mxu0 %v424
        %v726 = vpop.f32.mrf.mxu0
        %v727 = vadd.f32 %v276, %v726
        %v728 = vpop.f32.mrf.mxu0
        %v729 = vpop.f32.mrf.mxu0
        %v730 = vadd.f32 %v276, %v729
        %v731 = vpop.f32.mrf.mxu0
        %732 = vmatprep.mubr.bf16.mxu0 %v427
        %733 = vmatmul.mubr.bf16.gmra.mxu0 %v426
        %v734 = vpop.f32.mrf.mxu0
        %v735 = vadd.f32 %v276, %v734
        %v736 = vpop.f32.mrf.mxu0
        %v737 = vpop.f32.mrf.mxu0
        %v738 = vadd.f32 %v276, %v737
        %v739 = vpop.f32.mrf.mxu0
        %740 = vmatprep.mubr.bf16.mxu0 %v429
        %741 = vmatmul.mubr.bf16.gmra.mxu0 %v428
        %v742 = vpop.f32.mrf.mxu0
        %v743 = vadd.f32 %v276, %v742
        %v744 = vpop.f32.mrf.mxu0
        %v745 = vpop.f32.mrf.mxu0
        %v746 = vadd.f32 %v276, %v745
        %v747 = vpop.f32.mrf.mxu0
        %748 = vdwg.mxu0
        %v749 = vmax.f32 %v599, 0.0
        %v750 = vmax.f32 %v602, 0.0
        %v751 = vmax.f32 %v607, 0.0
        %v752 = vmax.f32 %v610, 0.0
        %v753 = vmax.f32 %v615, 0.0
        %v754 = vmax.f32 %v618, 0.0
        %v755 = vmax.f32 %v623, 0.0
        %v756 = vmax.f32 %v626, 0.0
        %v757 = vmax.f32 %v631, 0.0
        %v758 = vmax.f32 %v634, 0.0
        %v759 = vmax.f32 %v639, 0.0
        %v760 = vmax.f32 %v642, 0.0
        %v761 = vmax.f32 %v647, 0.0
        %v762 = vmax.f32 %v650, 0.0
        %v763 = vmax.f32 %v655, 0.0
        %v764 = vmax.f32 %v658, 0.0
        %v765 = vmax.f32 %v663, 0.0
        %v766 = vmax.f32 %v666, 0.0
        %v767 = vmax.f32 %v671, 0.0
        %v768 = vmax.f32 %v674, 0.0
        %v769 = vmax.f32 %v679, 0.0
        %v770 = vmax.f32 %v682, 0.0
        %v771 = vmax.f32 %v687, 0.0
        %v772 = vmax.f32 %v690, 0.0
        %v773 = vmax.f32 %v695, 0.0
        %v774 = vmax.f32 %v698, 0.0
        %v775 = vmax.f32 %v703, 0.0
        %v776 = vmax.f32 %v706, 0.0
        %v777 = vmax.f32 %v711, 0.0
        %v778 = vmax.f32 %v714, 0.0
        %v779 = vmax.f32 %v719, 0.0
        %v780 = vmax.f32 %v722, 0.0
        %v781 = vmax.f32 %v727, 0.0
        %v782 = vmax.f32 %v730, 0.0
        %v783 = vmax.f32 %v735, 0.0
        %v784 = vmax.f32 %v738, 0.0
        %v785 = vmax.f32 %v743, 0.0
        %v786 = vmax.f32 %v746, 0.0
        %v787 = vpack.c.bf16 %v750, %v749
        %v788 = vpack.c.bf16 %v752, %v751
        %v789 = vpack.c.bf16 %v754, %v753
        %v790 = vpack.c.bf16 %v756, %v755
        %v791 = vpack.c.bf16 %v758, %v757
        %v792 = vpack.c.bf16 %v760, %v759
        %v793 = vpack.c.bf16 %v762, %v761
        %v794 = vpack.c.bf16 %v764, %v763
        %v795 = vpack.c.bf16 %v766, %v765
        %v796 = vpack.c.bf16 %v768, %v767
        %v797 = vpack.c.bf16 %v770, %v769
        %v798 = vpack.c.bf16 %v772, %v771
        %v799 = vpack.c.bf16 %v774, %v773
        %v800 = vpack.c.bf16 %v776, %v775
        %v801 = vpack.c.bf16 %v778, %v777
        %v802 = vpack.c.bf16 %v780, %v779
        %v803 = vpack.c.bf16 %v782, %v781
        %v804 = vpack.c.bf16 %v784, %v783
        %v805 = vpack.c.bf16 %v786, %v785
        %v825 = vunpack.c.l.b16 %v787
        %v826 = vunpack.c.h.b16 %v787
        %v827 = vunpack.c.l.b16 %v788
        %v828 = vunpack.c.h.b16 %v788
        %v829 = vunpack.c.l.b16 %v789
        %v830 = vunpack.c.h.b16 %v789
        %v831 = vunpack.c.l.b16 %v790
        %v832 = vunpack.c.h.b16 %v790
        %v833 = vunpack.c.l.b16 %v791
        %v834 = vunpack.c.h.b16 %v791
        %v835 = vunpack.c.l.b16 %v792
        %v836 = vunpack.c.h.b16 %v792
        %v837 = vunpack.c.l.b16 %v793
        %v838 = vunpack.c.h.b16 %v793
        %v839 = vunpack.c.l.b16 %v794
        %v840 = vunpack.c.h.b16 %v794
        %v841 = vunpack.c.l.b16 %v795
        %v842 = vunpack.c.h.b16 %v795
        %v843 = vunpack.c.l.b16 %v796
        %v844 = vunpack.c.h.b16 %v796
        %v845 = vunpack.c.l.b16 %v797
        %v846 = vunpack.c.h.b16 %v797
        %v847 = vunpack.c.l.b16 %v798
        %v848 = vunpack.c.h.b16 %v798
        %v849 = vunpack.c.l.b16 %v799
        %v850 = vunpack.c.h.b16 %v799
        %v851 = vunpack.c.l.b16 %v800
        %v852 = vunpack.c.h.b16 %v800
        %v853 = vunpack.c.l.b16 %v801
        %v854 = vunpack.c.h.b16 %v801
        %v855 = vunpack.c.l.b16 %v802
        %v856 = vunpack.c.h.b16 %v802
        %v857 = vunpack.c.l.b16 %v803
        %v858 = vunpack.c.h.b16 %v803
        %v859 = vunpack.c.l.b16 %v804
        %v860 = vunpack.c.h.b16 %v804
        %v861 = vunpack.c.l.b16 %v805
        %v862 = vunpack.c.h.b16 %v805
        %v863 = vpack.c.b16 %v825, %v825
        %v864 = vpack.c.b16 %v826, %v826
        %v865 = vpack.c.b16 %v827, %v827
        %v866 = vpack.c.b16 %v828, %v828
        %v867 = vpack.c.b16 %v829, %v829
        %v868 = vpack.c.b16 %v830, %v830
        %v869 = vpack.c.b16 %v831, %v831
        %v870 = vpack.c.b16 %v832, %v832
        %v871 = vpack.c.b16 %v833, %v833
        %v872 = vpack.c.b16 %v834, %v834
        %v873 = vpack.c.b16 %v835, %v835
        %v874 = vpack.c.b16 %v836, %v836
        %v875 = vpack.c.b16 %v837, %v837
        %v876 = vpack.c.b16 %v838, %v838
        %v877 = vpack.c.b16 %v839, %v839
        %v878 = vpack.c.b16 %v840, %v840
        %v879 = vpack.c.b16 %v841, %v841
        %v880 = vpack.c.b16 %v842, %v842
        %v881 = vpack.c.b16 %v843, %v843
        %v882 = vpack.c.b16 %v844, %v844
        %v883 = vpack.c.b16 %v845, %v845
        %v884 = vpack.c.b16 %v846, %v846
        %v885 = vpack.c.b16 %v847, %v847
        %v886 = vpack.c.b16 %v848, %v848
        %v887 = vpack.c.b16 %v849, %v849
        %v888 = vpack.c.b16 %v850, %v850
        %v889 = vpack.c.b16 %v851, %v851
        %v890 = vpack.c.b16 %v852, %v852
        %v891 = vpack.c.b16 %v853, %v853
        %v892 = vpack.c.b16 %v854, %v854
        %v893 = vpack.c.b16 %v855, %v855
        %v894 = vpack.c.b16 %v856, %v856
        %v895 = vpack.c.b16 %v857, %v857
        %v896 = vpack.c.b16 %v858, %v858
        %v897 = vpack.c.b16 %v859, %v859
        %v898 = vpack.c.b16 %v860, %v860
        %v899 = vpack.c.b16 %v861, %v861
        %v900 = vpack.c.b16 %v862, %v862
        %vm939 = vcmask 257024
        %940 = vst.msk [vmem:[%s177] sm:$0xf] %vm939, %v863
        %941 = vst.msk [vmem:[%s177 + $0x4] sm:$0xf] %vm939, %v864
        %942 = vst.msk [vmem:[%s177 + $0x8] sm:$0xf] %vm939, %v865
        %943 = vst.msk [vmem:[%s177 + $0xc] sm:$0xf] %vm939, %v866
        %944 = vst.msk [vmem:[%s177 + $0x10] sm:$0xf] %vm939, %v867
        %945 = vst.msk [vmem:[%s177 + $0x14] sm:$0xf] %vm939, %v868
        %946 = vst.msk [vmem:[%s177 + $0x18] sm:$0xf] %vm939, %v869
        %947 = vst.msk [vmem:[%s177 + $0x1c] sm:$0xf] %vm939, %v870
        %948 = vst.msk [vmem:[%s177 + $0x20] sm:$0xf] %vm939, %v871
        %949 = vst.msk [vmem:[%s177 + $0x24] sm:$0xf] %vm939, %v872
        %950 = vst.msk [vmem:[%s177 + $0x28] sm:$0xf] %vm939, %v873
        %951 = vst.msk [vmem:[%s177 + $0x2c] sm:$0xf] %vm939, %v874
        %952 = vst.msk [vmem:[%s177 + $0x30] sm:$0xf] %vm939, %v875
        %953 = vst.msk [vmem:[%s177 + $0x34] sm:$0xf] %vm939, %v876
        %954 = vst.msk [vmem:[%s177 + $0x38] sm:$0xf] %vm939, %v877
        %955 = vst.msk [vmem:[%s177 + $0x3c] sm:$0xf] %vm939, %v878
        %956 = vst.msk [vmem:[%s177 + $0x40] sm:$0xf] %vm939, %v879
        %957 = vst.msk [vmem:[%s177 + $0x44] sm:$0xf] %vm939, %v880
        %958 = vst.msk [vmem:[%s177 + $0x48] sm:$0xf] %vm939, %v881
        %959 = vst.msk [vmem:[%s177 + $0x4c] sm:$0xf] %vm939, %v882
        %960 = vst.msk [vmem:[%s177 + $0x50] sm:$0xf] %vm939, %v883
        %961 = vst.msk [vmem:[%s177 + $0x54] sm:$0xf] %vm939, %v884
        %962 = vst.msk [vmem:[%s177 + $0x58] sm:$0xf] %vm939, %v885
        %963 = vst.msk [vmem:[%s177 + $0x5c] sm:$0xf] %vm939, %v886
        %964 = vst.msk [vmem:[%s177 + $0x60] sm:$0xf] %vm939, %v887
        %965 = vst.msk [vmem:[%s177 + $0x64] sm:$0xf] %vm939, %v888
        %966 = vst.msk [vmem:[%s177 + $0x68] sm:$0xf] %vm939, %v889
        %967 = vst.msk [vmem:[%s177 + $0x6c] sm:$0xf] %vm939, %v890
        %968 = vst.msk [vmem:[%s177 + $0x70] sm:$0xf] %vm939, %v891
        %969 = vst.msk [vmem:[%s177 + $0x74] sm:$0xf] %vm939, %v892
        %970 = vst.msk [vmem:[%s177 + $0x78] sm:$0xf] %vm939, %v893
        %971 = vst.msk [vmem:[%s177 + $0x7c] sm:$0xf] %vm939, %v894
        %972 = vst.msk [vmem:[%s177 + $0x80] sm:$0xf] %vm939, %v895
        %973 = vst.msk [vmem:[%s177 + $0x84] sm:$0xf] %vm939, %v896
        %974 = vst.msk [vmem:[%s177 + $0x88] sm:$0xf] %vm939, %v897
        %975 = vst.msk [vmem:[%s177 + $0x8c] sm:$0xf] %vm939, %v898
        %976 = vst.msk [vmem:[%s177 + $0x90] sm:$0xf] %vm939, %v899
        %977 = vst.msk [vmem:[%s177 + $0x94] sm:$0xf] %vm939, %v900
        %s978 = sand.u32 %s90, 1
        %s979 = sand.u32 %s90, 1
        %s980 = smul.addr %s979, 152
        %s981 = scalar_lea.vmem [#allocation2], %s980
        // Predicated region
        $region33: #{dqn_forward.5} parent=31 // pred_check
          %p982 = pneg %p100
        $region34: #{dqn_forward.5} parent=31 // pred_check_branch
          %984 = sbr.rel (%p982) target = $region36
        $region35: #{dqn_forward.5} parent=31 // pred_region
          %s985 = smul.u32 38, %s14
          %s986 = ssub.s32 75, %s985
          %p987 = scmp.lt.s32.totalorder %s986, 38
          %s988 = scalar_select %p987, %s986, 38
          %s989 = smul.u32 64, %s988
          %p990 = scmp.ne.s32.totalorder 0, %s989
          %s991 = smul.addr %s985, 4
          %s992 = scalar_lea.vmem %s3, %s991
          // Predicated region
          $region37: #{dqn_forward.5} parent=35 // pred_check
            %p993 = pneg %p990
          $region38: #{dqn_forward.5} parent=35 // pred_check_branch
            %995 = sbr.rel (%p993) target = $region40
          $region39: #{dqn_forward.5} parent=35 // pred_region
            // Predicated region
            $region41: #{dqn_forward.5} parent=39 // pred_check
              _
            $region42: #{dqn_forward.5} parent=39 // pred_check_branch
              %997 = sbr.rel target = $region44
            $region43: #{dqn_forward.5} parent=39 // pred_region
              // Predicated region
              $region63: #{dqn_forward.5} parent=43 // pred_check
                _
              $region64: #{dqn_forward.5} parent=43 // pred_check_branch
                %1122 = sbr.rel (0) target = $region66
              $region65: #{dqn_forward.5} parent=43 // pred_region
                %s1124 = ssub.s32 16, 1
                %s1125 = sdiv.u32.pop %s988, 38
                %s1126 = srem.u32.pop %s988, 38
                // While loop
                $region67: #{dqn_forward.5} parent=65 // loop_pre_header
                  _
                $region68: #{dqn_forward.5} parent=65 // loop_header
                  %s1128 = sphi 0, %s1130
                  %p1129 = scmp.ge.s32.totalorder %s1128, %s1125
                  %s1133 = sphi 0, %s1214
                  %s1134 = sphi %s981, %s1217
                  %s1135 = sphi %s992, %s1218
                $region69: #{dqn_forward.5} parent=65 // loop_header_branch
                  %1132 = sbr.rel (%p1129) target = $region73
                $region70: #{dqn_forward.5} parent=65 // loop_body
                  %v1136 = vld [vmem:[%s1134] sm:%s1124]
                  %1137 = vst [vmem:[%s1135] sm:%s1124] %v1136
                  %v1138 = vld [vmem:[%s1134 + $0x4] sm:%s1124]
                  %1139 = vst [vmem:[%s1135 + $0x4] sm:%s1124] %v1138
                  %v1140 = vld [vmem:[%s1134 + $0x8] sm:%s1124]
                  %1141 = vst [vmem:[%s1135 + $0x8] sm:%s1124] %v1140
                  %v1142 = vld [vmem:[%s1134 + $0xc] sm:%s1124]
                  %1143 = vst [vmem:[%s1135 + $0xc] sm:%s1124] %v1142
                  %v1144 = vld [vmem:[%s1134 + $0x10] sm:%s1124]
                  %1145 = vst [vmem:[%s1135 + $0x10] sm:%s1124] %v1144
                  %v1146 = vld [vmem:[%s1134 + $0x14] sm:%s1124]
                  %1147 = vst [vmem:[%s1135 + $0x14] sm:%s1124] %v1146
                  %v1148 = vld [vmem:[%s1134 + $0x18] sm:%s1124]
                  %1149 = vst [vmem:[%s1135 + $0x18] sm:%s1124] %v1148
                  %v1150 = vld [vmem:[%s1134 + $0x1c] sm:%s1124]
                  %1151 = vst [vmem:[%s1135 + $0x1c] sm:%s1124] %v1150
                  %v1152 = vld [vmem:[%s1134 + $0x20] sm:%s1124]
                  %1153 = vst [vmem:[%s1135 + $0x20] sm:%s1124] %v1152
                  %v1154 = vld [vmem:[%s1134 + $0x24] sm:%s1124]
                  %1155 = vst [vmem:[%s1135 + $0x24] sm:%s1124] %v1154
                  %v1156 = vld [vmem:[%s1134 + $0x28] sm:%s1124]
                  %1157 = vst [vmem:[%s1135 + $0x28] sm:%s1124] %v1156
                  %v1158 = vld [vmem:[%s1134 + $0x2c] sm:%s1124]
                  %1159 = vst [vmem:[%s1135 + $0x2c] sm:%s1124] %v1158
                  %v1160 = vld [vmem:[%s1134 + $0x30] sm:%s1124]
                  %1161 = vst [vmem:[%s1135 + $0x30] sm:%s1124] %v1160
                  %v1162 = vld [vmem:[%s1134 + $0x34] sm:%s1124]
                  %1163 = vst [vmem:[%s1135 + $0x34] sm:%s1124] %v1162
                  %v1164 = vld [vmem:[%s1134 + $0x38] sm:%s1124]
                  %1165 = vst [vmem:[%s1135 + $0x38] sm:%s1124] %v1164
                  %v1166 = vld [vmem:[%s1134 + $0x3c] sm:%s1124]
                  %1167 = vst [vmem:[%s1135 + $0x3c] sm:%s1124] %v1166
                  %v1168 = vld [vmem:[%s1134 + $0x40] sm:%s1124]
                  %1169 = vst [vmem:[%s1135 + $0x40] sm:%s1124] %v1168
                  %v1170 = vld [vmem:[%s1134 + $0x44] sm:%s1124]
                  %1171 = vst [vmem:[%s1135 + $0x44] sm:%s1124] %v1170
                  %v1172 = vld [vmem:[%s1134 + $0x48] sm:%s1124]
                  %1173 = vst [vmem:[%s1135 + $0x48] sm:%s1124] %v1172
                  %v1174 = vld [vmem:[%s1134 + $0x4c] sm:%s1124]
                  %1175 = vst [vmem:[%s1135 + $0x4c] sm:%s1124] %v1174
                  %v1176 = vld [vmem:[%s1134 + $0x50] sm:%s1124]
                  %1177 = vst [vmem:[%s1135 + $0x50] sm:%s1124] %v1176
                  %v1178 = vld [vmem:[%s1134 + $0x54] sm:%s1124]
                  %1179 = vst [vmem:[%s1135 + $0x54] sm:%s1124] %v1178
                  %v1180 = vld [vmem:[%s1134 + $0x58] sm:%s1124]
                  %1181 = vst [vmem:[%s1135 + $0x58] sm:%s1124] %v1180
                  %v1182 = vld [vmem:[%s1134 + $0x5c] sm:%s1124]
                  %1183 = vst [vmem:[%s1135 + $0x5c] sm:%s1124] %v1182
                  %v1184 = vld [vmem:[%s1134 + $0x60] sm:%s1124]
                  %1185 = vst [vmem:[%s1135 + $0x60] sm:%s1124] %v1184
                  %v1186 = vld [vmem:[%s1134 + $0x64] sm:%s1124]
                  %1187 = vst [vmem:[%s1135 + $0x64] sm:%s1124] %v1186
                  %v1188 = vld [vmem:[%s1134 + $0x68] sm:%s1124]
                  %1189 = vst [vmem:[%s1135 + $0x68] sm:%s1124] %v1188
                  %v1190 = vld [vmem:[%s1134 + $0x6c] sm:%s1124]
                  %1191 = vst [vmem:[%s1135 + $0x6c] sm:%s1124] %v1190
                  %v1192 = vld [vmem:[%s1134 + $0x70] sm:%s1124]
                  %1193 = vst [vmem:[%s1135 + $0x70] sm:%s1124] %v1192
                  %v1194 = vld [vmem:[%s1134 + $0x74] sm:%s1124]
                  %1195 = vst [vmem:[%s1135 + $0x74] sm:%s1124] %v1194
                  %v1196 = vld [vmem:[%s1134 + $0x78] sm:%s1124]
                  %1197 = vst [vmem:[%s1135 + $0x78] sm:%s1124] %v1196
                  %v1198 = vld [vmem:[%s1134 + $0x7c] sm:%s1124]
                  %1199 = vst [vmem:[%s1135 + $0x7c] sm:%s1124] %v1198
                  %v1200 = vld [vmem:[%s1134 + $0x80] sm:%s1124]
                  %1201 = vst [vmem:[%s1135 + $0x80] sm:%s1124] %v1200
                  %v1202 = vld [vmem:[%s1134 + $0x84] sm:%s1124]
                  %1203 = vst [vmem:[%s1135 + $0x84] sm:%s1124] %v1202
                  %v1204 = vld [vmem:[%s1134 + $0x88] sm:%s1124]
                  %1205 = vst [vmem:[%s1135 + $0x88] sm:%s1124] %v1204
                  %v1206 = vld [vmem:[%s1134 + $0x8c] sm:%s1124]
                  %1207 = vst [vmem:[%s1135 + $0x8c] sm:%s1124] %v1206
                  %v1208 = vld [vmem:[%s1134 + $0x90] sm:%s1124]
                  %1209 = vst [vmem:[%s1135 + $0x90] sm:%s1124] %v1208
                  %v1210 = vld [vmem:[%s1134 + $0x94] sm:%s1124]
                  %1211 = vst [vmem:[%s1135 + $0x94] sm:%s1124] %v1210
                  %s1212 = sadd.s32 1, %s1133
                  %p1213 = scmp.ge.s32.totalorder %s1212, %s1125
                  %s1214 = scalar_select %p1213, 0, %s1212
                  %s1215 = smul.u32 %s1214, 152
                  %s1216 = smul.u32 %s1214, 152
                  %s1217 = scalar_lea.vmem %s981, %s1215 [#allocation2]
                  %s1218 = scalar_lea.vmem %s992, %s1216
                $region71: #{dqn_forward.5} parent=65 // loop_footer
                  %s1130 = sadd.s32 %s1128, 1
                $region72: #{dqn_forward.5} parent=65 // loop_footer_branch
                  %1127 = sbr.rel target = $region68
                $region73: #{dqn_forward.5} parent=65 // loop_exit
                  _
                %s1219 = sdiv.u32.pop %s988, 38
                %s1220 = srem.u32.pop %s988, 38
                %s1221 = smul.u32 %s1219, 38
                %s1222 = smul.u32 4, %s1221
                %s1223 = scalar_lea.vmem %s981, %s1222 [#allocation2]
                %s1224 = smul.u32 4, %s1221
                %s1225 = scalar_lea.vmem %s992, %s1224
                // While loop
                $region74: #{dqn_forward.5} parent=65 // loop_pre_header
                  _
                $region75: #{dqn_forward.5} parent=65 // loop_header
                  %s1227 = sphi 0, %s1229
                  %p1228 = scmp.ge.s32.totalorder %s1227, %s1220
                  %s1232 = sphi 0, %s1239
                  %s1233 = sphi %s1223, %s1242
                  %s1234 = sphi %s1225, %s1243
                $region76: #{dqn_forward.5} parent=65 // loop_header_branch
                  %1231 = sbr.rel (%p1228) target = $region80
                $region77: #{dqn_forward.5} parent=65 // loop_body
                  %v1235 = vld [vmem:[%s1233] sm:%s1124]
                  %1236 = vst [vmem:[%s1234] sm:%s1124] %v1235
                  %s1237 = sadd.s32 1, %s1232
                  %p1238 = scmp.ge.s32.totalorder %s1237, %s1220
                  %s1239 = scalar_select %p1238, 0, %s1237
                  %s1240 = smul.u32 %s1239, 4
                  %s1241 = smul.u32 %s1239, 4
                  %s1242 = scalar_lea.vmem %s1223, %s1240 [#allocation2]
                  %s1243 = scalar_lea.vmem %s1225, %s1241
                $region78: #{dqn_forward.5} parent=65 // loop_footer
                  %s1229 = sadd.s32 %s1227, 1
                $region79: #{dqn_forward.5} parent=65 // loop_footer_branch
                  %1226 = sbr.rel target = $region75
                $region80: #{dqn_forward.5} parent=65 // loop_exit
                  _
              $region66: #{dqn_forward.5} parent=43 // pred_fallthru
                _
            $region44: #{dqn_forward.5} parent=39 // pred_fallthru
              _
            // Predicated region
            $region45: #{dqn_forward.5} parent=39 // pred_check
              _
            $region46: #{dqn_forward.5} parent=39 // pred_check_branch
              %999 = sbr.rel (0) target = $region48
            $region47: #{dqn_forward.5} parent=39 // pred_region
              %s1001 = ssub.s32 16, 1
              %s1002 = sdiv.u32.pop %s988, 38
              %s1003 = srem.u32.pop %s988, 38
              // While loop
              $region49: #{dqn_forward.5} parent=47 // loop_pre_header
                _
              $region50: #{dqn_forward.5} parent=47 // loop_header
                %s1005 = sphi 0, %s1007
                %p1006 = scmp.ge.s32.totalorder %s1005, %s1002
                %s1010 = sphi 0, %s1091
                %s1011 = sphi %s981, %s1094
                %s1012 = sphi %s992, %s1095
              $region51: #{dqn_forward.5} parent=47 // loop_header_branch
                %1009 = sbr.rel (%p1006) target = $region55
              $region52: #{dqn_forward.5} parent=47 // loop_body
                %v1013 = vld [vmem:[%s1011] sm:%s1001]
                %1014 = vst [vmem:[%s1012] sm:%s1001] %v1013
                %v1015 = vld [vmem:[%s1011 + $0x4] sm:%s1001]
                %1016 = vst [vmem:[%s1012 + $0x4] sm:%s1001] %v1015
                %v1017 = vld [vmem:[%s1011 + $0x8] sm:%s1001]
                %1018 = vst [vmem:[%s1012 + $0x8] sm:%s1001] %v1017
                %v1019 = vld [vmem:[%s1011 + $0xc] sm:%s1001]
                %1020 = vst [vmem:[%s1012 + $0xc] sm:%s1001] %v1019
                %v1021 = vld [vmem:[%s1011 + $0x10] sm:%s1001]
                %1022 = vst [vmem:[%s1012 + $0x10] sm:%s1001] %v1021
                %v1023 = vld [vmem:[%s1011 + $0x14] sm:%s1001]
                %1024 = vst [vmem:[%s1012 + $0x14] sm:%s1001] %v1023
                %v1025 = vld [vmem:[%s1011 + $0x18] sm:%s1001]
                %1026 = vst [vmem:[%s1012 + $0x18] sm:%s1001] %v1025
                %v1027 = vld [vmem:[%s1011 + $0x1c] sm:%s1001]
                %1028 = vst [vmem:[%s1012 + $0x1c] sm:%s1001] %v1027
                %v1029 = vld [vmem:[%s1011 + $0x20] sm:%s1001]
                %1030 = vst [vmem:[%s1012 + $0x20] sm:%s1001] %v1029
                %v1031 = vld [vmem:[%s1011 + $0x24] sm:%s1001]
                %1032 = vst [vmem:[%s1012 + $0x24] sm:%s1001] %v1031
                %v1033 = vld [vmem:[%s1011 + $0x28] sm:%s1001]
                %1034 = vst [vmem:[%s1012 + $0x28] sm:%s1001] %v1033
                %v1035 = vld [vmem:[%s1011 + $0x2c] sm:%s1001]
                %1036 = vst [vmem:[%s1012 + $0x2c] sm:%s1001] %v1035
                %v1037 = vld [vmem:[%s1011 + $0x30] sm:%s1001]
                %1038 = vst [vmem:[%s1012 + $0x30] sm:%s1001] %v1037
                %v1039 = vld [vmem:[%s1011 + $0x34] sm:%s1001]
                %1040 = vst [vmem:[%s1012 + $0x34] sm:%s1001] %v1039
                %v1041 = vld [vmem:[%s1011 + $0x38] sm:%s1001]
                %1042 = vst [vmem:[%s1012 + $0x38] sm:%s1001] %v1041
                %v1043 = vld [vmem:[%s1011 + $0x3c] sm:%s1001]
                %1044 = vst [vmem:[%s1012 + $0x3c] sm:%s1001] %v1043
                %v1045 = vld [vmem:[%s1011 + $0x40] sm:%s1001]
                %1046 = vst [vmem:[%s1012 + $0x40] sm:%s1001] %v1045
                %v1047 = vld [vmem:[%s1011 + $0x44] sm:%s1001]
                %1048 = vst [vmem:[%s1012 + $0x44] sm:%s1001] %v1047
                %v1049 = vld [vmem:[%s1011 + $0x48] sm:%s1001]
                %1050 = vst [vmem:[%s1012 + $0x48] sm:%s1001] %v1049
                %v1051 = vld [vmem:[%s1011 + $0x4c] sm:%s1001]
                %1052 = vst [vmem:[%s1012 + $0x4c] sm:%s1001] %v1051
                %v1053 = vld [vmem:[%s1011 + $0x50] sm:%s1001]
                %1054 = vst [vmem:[%s1012 + $0x50] sm:%s1001] %v1053
                %v1055 = vld [vmem:[%s1011 + $0x54] sm:%s1001]
                %1056 = vst [vmem:[%s1012 + $0x54] sm:%s1001] %v1055
                %v1057 = vld [vmem:[%s1011 + $0x58] sm:%s1001]
                %1058 = vst [vmem:[%s1012 + $0x58] sm:%s1001] %v1057
                %v1059 = vld [vmem:[%s1011 + $0x5c] sm:%s1001]
                %1060 = vst [vmem:[%s1012 + $0x5c] sm:%s1001] %v1059
                %v1061 = vld [vmem:[%s1011 + $0x60] sm:%s1001]
                %1062 = vst [vmem:[%s1012 + $0x60] sm:%s1001] %v1061
                %v1063 = vld [vmem:[%s1011 + $0x64] sm:%s1001]
                %1064 = vst [vmem:[%s1012 + $0x64] sm:%s1001] %v1063
                %v1065 = vld [vmem:[%s1011 + $0x68] sm:%s1001]
                %1066 = vst [vmem:[%s1012 + $0x68] sm:%s1001] %v1065
                %v1067 = vld [vmem:[%s1011 + $0x6c] sm:%s1001]
                %1068 = vst [vmem:[%s1012 + $0x6c] sm:%s1001] %v1067
                %v1069 = vld [vmem:[%s1011 + $0x70] sm:%s1001]
                %1070 = vst [vmem:[%s1012 + $0x70] sm:%s1001] %v1069
                %v1071 = vld [vmem:[%s1011 + $0x74] sm:%s1001]
                %1072 = vst [vmem:[%s1012 + $0x74] sm:%s1001] %v1071
                %v1073 = vld [vmem:[%s1011 + $0x78] sm:%s1001]
                %1074 = vst [vmem:[%s1012 + $0x78] sm:%s1001] %v1073
                %v1075 = vld [vmem:[%s1011 + $0x7c] sm:%s1001]
                %1076 = vst [vmem:[%s1012 + $0x7c] sm:%s1001] %v1075
                %v1077 = vld [vmem:[%s1011 + $0x80] sm:%s1001]
                %1078 = vst [vmem:[%s1012 + $0x80] sm:%s1001] %v1077
                %v1079 = vld [vmem:[%s1011 + $0x84] sm:%s1001]
                %1080 = vst [vmem:[%s1012 + $0x84] sm:%s1001] %v1079
                %v1081 = vld [vmem:[%s1011 + $0x88] sm:%s1001]
                %1082 = vst [vmem:[%s1012 + $0x88] sm:%s1001] %v1081
                %v1083 = vld [vmem:[%s1011 + $0x8c] sm:%s1001]
                %1084 = vst [vmem:[%s1012 + $0x8c] sm:%s1001] %v1083
                %v1085 = vld [vmem:[%s1011 + $0x90] sm:%s1001]
                %1086 = vst [vmem:[%s1012 + $0x90] sm:%s1001] %v1085
                %v1087 = vld [vmem:[%s1011 + $0x94] sm:%s1001]
                %1088 = vst [vmem:[%s1012 + $0x94] sm:%s1001] %v1087
                %s1089 = sadd.s32 1, %s1010
                %p1090 = scmp.ge.s32.totalorder %s1089, %s1002
                %s1091 = scalar_select %p1090, 0, %s1089
                %s1092 = smul.u32 %s1091, 152
                %s1093 = smul.u32 %s1091, 152
                %s1094 = scalar_lea.vmem %s981, %s1092 [#allocation2]
                %s1095 = scalar_lea.vmem %s992, %s1093
              $region53: #{dqn_forward.5} parent=47 // loop_footer
                %s1007 = sadd.s32 %s1005, 1
              $region54: #{dqn_forward.5} parent=47 // loop_footer_branch
                %1004 = sbr.rel target = $region50
              $region55: #{dqn_forward.5} parent=47 // loop_exit
                _
              %s1096 = sdiv.u32.pop %s988, 38
              %s1097 = srem.u32.pop %s988, 38
              %s1098 = smul.u32 %s1096, 38
              %s1099 = smul.u32 4, %s1098
              %s1100 = scalar_lea.vmem %s981, %s1099 [#allocation2]
              %s1101 = smul.u32 4, %s1098
              %s1102 = scalar_lea.vmem %s992, %s1101
              // While loop
              $region56: #{dqn_forward.5} parent=47 // loop_pre_header
                _
              $region57: #{dqn_forward.5} parent=47 // loop_header
                %s1104 = sphi 0, %s1106
                %p1105 = scmp.ge.s32.totalorder %s1104, %s1097
                %s1109 = sphi 0, %s1116
                %s1110 = sphi %s1100, %s1119
                %s1111 = sphi %s1102, %s1120
              $region58: #{dqn_forward.5} parent=47 // loop_header_branch
                %1108 = sbr.rel (%p1105) target = $region62
              $region59: #{dqn_forward.5} parent=47 // loop_body
                %v1112 = vld [vmem:[%s1110] sm:%s1001]
                %1113 = vst [vmem:[%s1111] sm:%s1001] %v1112
                %s1114 = sadd.s32 1, %s1109
                %p1115 = scmp.ge.s32.totalorder %s1114, %s1097
                %s1116 = scalar_select %p1115, 0, %s1114
                %s1117 = smul.u32 %s1116, 4
                %s1118 = smul.u32 %s1116, 4
                %s1119 = scalar_lea.vmem %s1100, %s1117 [#allocation2]
                %s1120 = scalar_lea.vmem %s1102, %s1118
              $region60: #{dqn_forward.5} parent=47 // loop_footer
                %s1106 = sadd.s32 %s1104, 1
              $region61: #{dqn_forward.5} parent=47 // loop_footer_branch
                %1103 = sbr.rel target = $region57
              $region62: #{dqn_forward.5} parent=47 // loop_exit
                _
            $region48: #{dqn_forward.5} parent=39 // pred_fallthru
              _
          $region40: #{dqn_forward.5} parent=35 // pred_fallthru
            _
          %1244 = vnop
        $region36: #{dqn_forward.5} parent=31 // pred_fallthru
          _
      $region32: #{dqn_forward.5} parent=5 // pred_fallthru
        _
      %p1245 = scmp.le.s32.totalorder 2, %s9
      // Predicated region
      $region81: #{dqn_forward.5} parent=5 // pred_check
        %p1246 = pneg %p1245
      $region82: #{dqn_forward.5} parent=5 // pred_check_branch
        %1248 = sbr.rel (%p1246) target = $region84
      $region83: #{dqn_forward.5} parent=5 // pred_region
        %s1249 = ssub.s32 %s9, 2
        // Predicated region
        $region85: #{dqn_forward.5} parent=83 // pred_check
          %p1250 = pneg %p106
        $region86: #{dqn_forward.5} parent=83 // pred_check_branch
          %1252 = sbr.rel (%p1250) target = $region88
        $region87: #{dqn_forward.5} parent=83 // pred_region
          %s1253 = sand.u32 %s91, 1
          %s1254 = sand.u32 %s91, 1
          %s1255 = smul.addr %s1254, 152
          %s1256 = scalar_lea.vmem [#allocation2], %s1255
        $region88: #{dqn_forward.5} parent=83 // pred_fallthru
          _
      $region84: #{dqn_forward.5} parent=5 // pred_fallthru
        _
    $region6: #{dqn_forward.5} parent=1 // loop_footer
      %s13 = sadd.s32 1, %s9
    $region7: #{dqn_forward.5} parent=1 // loop_footer_branch
      %8 = sbr.rel target = $region3
    $region8: #{dqn_forward.5} parent=1 // loop_exit
      _

// kernel: dqn_forward.6
$region0: #{dqn_forward.6}
  #allocation0 [shape = 'u32[]', space=smem, size = 0x4, offset = 0x4, fixed_abs, tag = 'smem constant byte address 0x4 - core index']
  #allocation1 [shape = 'u32[144,128]{1,0:T(1,128)}', space=vmem, size = 0x12000, scoped, tag = 'internal scratch']
  %s0 = inlined_call_operand.vmem [shape: bf16[50,1600], index: 0, kind: input, shape index: {}]
  %s1 = inlined_call_operand.vmem [shape: bf16[1600,128], index: 1, kind: input, shape index: {}]
  %s2 = inlined_call_operand.vmem [shape: f32[1,128], index: 2, kind: input, shape index: {}]
  %s3 = inlined_call_operand.vmem [shape: bf16[50,128], index: 3, kind: output, shape index: {}]
  %s4 = sld [smem:[#allocation0]]
  $region89: #{dqn_forward.6} parent=0
    _
  %s6 = ssub.s32 1, %s4
  %s7 = scalar_select 0, %s6, %s4
  $region1: #{dqn_forward.6} parent=0
    #allocation2 [shape = 'u8[16384]{0}', space=vmem, size = 0x4000, scoped, tag = 'output window, operand 0']
    loop: start=0, step=1, limit=4
    $region2: #{dqn_forward.6} parent=1 // loop_pre_header
      _
    $region3: #{dqn_forward.6} parent=1 // loop_header
      %s9 = sphi 0, %s13
      %p10 = scmp.ge.s32.totalorder %s9, 4
      %s19 = sphi 0, %s21
      %s22 = sphi 0, %s19
      %s23 = sphi 0, %s22
      %s39 = sphi 0, %s23
      %s43 = sphi 0, %s43
      %s45 = sphi 0, %s43
      %s46 = sphi 0, %s45
      %s60 = sphi 0, %s46
      %s64 = sphi 0, %s64
      %s66 = sphi 0, %s64
      %s67 = sphi 0, %s66
      %s81 = sphi 0, %s67
      %s87 = sphi 0, %s89
      %s90 = sphi 0, %s87
      %s91 = sphi 0, %s90
      %s107 = sphi 0, %s91
    $region4: #{dqn_forward.6} parent=1 // loop_header_branch
      %12 = sbr.rel (%p10) target = $region8
    $region5: #{dqn_forward.6} parent=1 // loop_body
      %s14 = ssub.s32 %s9, 1
      %s15 = ssub.s32 %s9, 2
      %s16 = sadd.s32 %s9, 1
      %s17 = ssub.s32 %s9, %s16
      %p18 = scmp.eq.s32.totalorder %s17, 0
      %s20 = sadd.s32 %s19, 1
      %s21 = scalar_select %p18, %s19, %s20
      %p24 = pneg %p18
      %p25 = scmp.eq.s32.totalorder %s9, 1
      %p26 = por %p24, %p25
      %p27 = scmp.ne.s32.totalorder %s19, %s22
      %p28 = scmp.eq.s32.totalorder %s9, 0
      %p29 = por %p27, %p28
      %p30 = scmp.ne.s32.totalorder %s19, %s22
      %p31 = scmp.eq.s32.totalorder %s14, 1
      %p32 = por %p30, %p31
      %p33 = scmp.ne.s32.totalorder %s22, %s23
      %p34 = scmp.eq.s32.totalorder %s14, 0
      %p35 = por %p33, %p34
      %p36 = scmp.ne.s32.totalorder %s22, %s23
      %p37 = scmp.eq.s32.totalorder %s15, 1
      %p38 = por %p36, %p37
      %p40 = scmp.ne.s32.totalorder %s23, %s39
      %p41 = scmp.eq.s32.totalorder %s15, 0
      %p42 = por %p40, %p41
      %s44 = sadd.s32 %s43, 1
      %p47 = scmp.eq.s32.totalorder %s9, 1
      %p48 = scmp.ne.s32.totalorder %s43, %s45
      %p49 = scmp.eq.s32.totalorder %s9, 0
      %p50 = por %p48, %p49
      %p51 = scmp.ne.s32.totalorder %s43, %s45
      %p52 = scmp.eq.s32.totalorder %s14, 1
      %p53 = por %p51, %p52
      %p54 = scmp.ne.s32.totalorder %s45, %s46
      %p55 = scmp.eq.s32.totalorder %s14, 0
      %p56 = por %p54, %p55
      %p57 = scmp.ne.s32.totalorder %s45, %s46
      %p58 = scmp.eq.s32.totalorder %s15, 1
      %p59 = por %p57, %p58
      %p61 = scmp.ne.s32.totalorder %s46, %s60
      %p62 = scmp.eq.s32.totalorder %s15, 0
      %p63 = por %p61, %p62
      %s65 = sadd.s32 %s64, 1
      %p68 = scmp.eq.s32.totalorder %s9, 1
      %p69 = scmp.ne.s32.totalorder %s64, %s66
      %p70 = scmp.eq.s32.totalorder %s9, 0
      %p71 = por %p69, %p70
      %p72 = scmp.ne.s32.totalorder %s64, %s66
      %p73 = scmp.eq.s32.totalorder %s14, 1
      %p74 = por %p72, %p73
      %p75 = scmp.ne.s32.totalorder %s66, %s67
      %p76 = scmp.eq.s32.totalorder %s14, 0
      %p77 = por %p75, %p76
      %p78 = scmp.ne.s32.totalorder %s66, %s67
      %p79 = scmp.eq.s32.totalorder %s15, 1
      %p80 = por %p78, %p79
      %p82 = scmp.ne.s32.totalorder %s67, %s81
      %p83 = scmp.eq.s32.totalorder %s15, 0
      %p84 = por %p82, %p83
      %s85 = ssub.s32 %s9, %s16
      %p86 = scmp.eq.s32.totalorder %s85, 0
      %s88 = sadd.s32 %s87, 1
      %s89 = scalar_select %p86, %s87, %s88
      %p92 = pneg %p86
      %p93 = scmp.eq.s32.totalorder %s9, 1
      %p94 = por %p92, %p93
      %p95 = scmp.ne.s32.totalorder %s87, %s90
      %p96 = scmp.eq.s32.totalorder %s9, 0
      %p97 = por %p95, %p96
      %p98 = scmp.ne.s32.totalorder %s87, %s90
      %p99 = scmp.eq.s32.totalorder %s14, 1
      %p100 = por %p98, %p99
      %p101 = scmp.ne.s32.totalorder %s90, %s91
      %p102 = scmp.eq.s32.totalorder %s14, 0
      %p103 = por %p101, %p102
      %p104 = scmp.ne.s32.totalorder %s90, %s91
      %p105 = scmp.eq.s32.totalorder %s15, 1
      %p106 = por %p104, %p105
      %p108 = scmp.ne.s32.totalorder %s91, %s107
      %p109 = scmp.eq.s32.totalorder %s15, 0
      %p110 = por %p108, %p109
      %p111 = scmp.le.s32.totalorder 1, %s9
      %p112 = scmp.lt.s32.totalorder %s9, 3
      %p113 = pnand %p111, %p112
      %p114 = pneg %p113
      // Predicated region
      $region9: #{dqn_forward.6} parent=5 // pred_check
        _
      $region10: #{dqn_forward.6} parent=5 // pred_check_branch
        %116 = sbr.rel (%p113) target = $region12
      $region11: #{dqn_forward.6} parent=5 // pred_region
        %s117 = ssub.s32 %s9, 1
        // Predicated region
        $region13: #{dqn_forward.6} parent=11 // pred_check
          %p118 = pneg %p56
        $region14: #{dqn_forward.6} parent=11 // pred_check_branch
          %120 = sbr.rel (%p118) target = $region16
        $region15: #{dqn_forward.6} parent=11 // pred_region
          _
        $region16: #{dqn_forward.6} parent=11 // pred_fallthru
          _
        // Predicated region
        $region17: #{dqn_forward.6} parent=11 // pred_check
          %p121 = pneg %p77
        $region18: #{dqn_forward.6} parent=11 // pred_check_branch
          %123 = sbr.rel (%p121) target = $region20
        $region19: #{dqn_forward.6} parent=11 // pred_region
          _
        $region20: #{dqn_forward.6} parent=11 // pred_fallthru
          _
      $region12: #{dqn_forward.6} parent=5 // pred_fallthru
        _
      %p124 = scmp.lt.s32.totalorder %s9, 2
      // Predicated region
      $region21: #{dqn_forward.6} parent=5 // pred_check
        %p125 = pneg %p124
      $region22: #{dqn_forward.6} parent=5 // pred_check_branch
        %127 = sbr.rel (%p125) target = $region24
      $region23: #{dqn_forward.6} parent=5 // pred_region
        // Predicated region
        $region25: #{dqn_forward.6} parent=23 // pred_check
          %p128 = pneg %p29
        $region26: #{dqn_forward.6} parent=23 // pred_check_branch
          %130 = sbr.rel (%p128) target = $region28
        $region27: #{dqn_forward.6} parent=23 // pred_region
          %s131 = smul.u32 4, %s9
          %s132 = ssub.s32 7, %s131
          %p133 = scmp.lt.s32.totalorder %s132, 4
          %s134 = scalar_select %p133, %s132, 4
          %s135 = smul.u32 64, %s134
          %s136 = smul.u32 %s135, 13
          %p137 = scmp.lt.s32.totalorder %s131, 6
          %s138 = scalar_select %p137, %s131, 6
          %s139 = smul.addr %s138, 13
          %s140 = smul.addr %s139, 4
          %s141 = scalar_lea.vmem %s0, %s140
          %s142 = smul.u32 4, %s9
          %s143 = ssub.s32 7, %s142
          %p144 = scmp.lt.s32.totalorder %s143, 4
          %s145 = scalar_select %p144, %s143, 4
          %s146 = smul.u32 64, %s145
          %s147 = smul.u32 %s146, 13
        $region28: #{dqn_forward.6} parent=23 // pred_fallthru
          _
      $region24: #{dqn_forward.6} parent=5 // pred_fallthru
        _
      %p148 = scmp.le.s32.totalorder 1, %s9
      %p149 = scmp.lt.s32.totalorder %s9, 3
      %p150 = pnand %p148, %p149
      %p151 = pneg %p150
      // Predicated region
      $region29: #{dqn_forward.6} parent=5 // pred_check
        _
      $region30: #{dqn_forward.6} parent=5 // pred_check_branch
        %153 = sbr.rel (%p150) target = $region32
      $region31: #{dqn_forward.6} parent=5 // pred_region
        %s154 = ssub.s32 %s9, 1
        %s155 = smul.u32 4, %s14
        %s156 = ssub.s32 7, %s155
        %p157 = scmp.lt.s32.totalorder %s156, 4
        %s158 = scalar_select %p157, %s156, 4
        %s159 = smul.u32 64, %s158
        %s160 = smul.u32 %s159, 13
        %p161 = scmp.lt.s32.totalorder %s155, 6
        %s162 = scalar_select %p161, %s155, 6
        %s163 = smul.addr %s162, 13
        %s164 = smul.addr %s163, 4
        %s165 = scalar_lea.vmem %s0, %s164
        %p166 = pneg %p35
        %p167 = pneg %p32
        %p168 = pneg %p56
        %p169 = pneg %p53
        %p170 = pneg %p77
        %p171 = pneg %p74
        %p172 = pneg %p103
        %p173 = pneg %p100
        %s174 = sand.u32 %s90, 1
        %s175 = sand.u32 %s90, 1
        %s176 = smul.addr %s175, 16
        %s177 = scalar_lea.vmem [#allocation2], %s176
        %s178 = smul.u32 4, %s14
        %s179 = ssub.s32 7, %s178
        %p180 = scmp.lt.s32.totalorder %s179, 4
        %s181 = scalar_select %p180, %s179, 4
        %s182 = smul.u32 64, %s181
        %s183 = smul.u32 %s182, 13
        %p184 = scmp.lt.s32.totalorder %s178, 6
        %s185 = scalar_select %p184, %s178, 6
        %s186 = smul.addr %s185, 13
        %s187 = smul.addr %s186, 4
        %s188 = scalar_lea.vmem %s0, %s187
        %s189 = smul.u32 4, %s14
        %s190 = ssub.s32 7, %s189
        %p191 = scmp.lt.s32.totalorder %s190, 4
        %s192 = scalar_select %p191, %s190, 4
        %s193 = smul.u32 64, %s192
        %s194 = smul.u32 %s193, 13
        %s195 = smul.u32 4, %s14
        %s196 = ssub.s32 7, %s195
        %p197 = scmp.lt.s32.totalorder %s196, 4
        %s198 = scalar_select %p197, %s196, 4
        %s199 = smul.u32 64, %s198
        %v201 = vld [vmem:[%s188] sm:$0xff]
        %v202 = vld [vmem:[%s188 + $0x8] sm:$0xff]
        %v203 = vld [vmem:[%s188 + $0x10] sm:$0xff]
        %v204 = vld [vmem:[%s188 + $0x18] sm:$0xff]
        %v205 = vld [vmem:[%s188 + $0x20] sm:$0xff]
        %v206 = vld [vmem:[%s188 + $0x28] sm:$0xff]
        %v207 = vld [vmem:[%s188 + $0x30] sm:$0xf]
        %v208 = vld [vmem:[%s188 + $0x34] sm:$0xff]
        %v209 = vld [vmem:[%s188 + $0x3c] sm:$0xff]
        %v210 = vld [vmem:[%s188 + $0x44] sm:$0xff]
        %v211 = vld [vmem:[%s188 + $0x4c] sm:$0xff]
        %v212 = vld [vmem:[%s188 + $0x54] sm:$0xff]
        %v213 = vld [vmem:[%s188 + $0x5c] sm:$0xff]
        %v214 = vld [vmem:[%s188 + $0x64] sm:$0xf]
        %v215 = vld [vmem:[%s188 + $0x68] sm:$0xff]
        %v216 = vld [vmem:[%s188 + $0x70] sm:$0xff]
        %v217 = vld [vmem:[%s188 + $0x78] sm:$0xff]
        %v218 = vld [vmem:[%s188 + $0x80] sm:$0xff]
        %v219 = vld [vmem:[%s188 + $0x88] sm:$0xff]
        %v220 = vld [vmem:[%s188 + $0x90] sm:$0xff]
        %v221 = vld [vmem:[%s188 + $0x98] sm:$0xf]
        %v222 = vld [vmem:[%s188 + $0x9c] sm:$0xff]
        %v223 = vld [vmem:[%s188 + $0xa4] sm:$0xff]
        %v224 = vld [vmem:[%s188 + $0xac] sm:$0xff]
        %v225 = vld [vmem:[%s188 + $0xb4] sm:$0xff]
        %v226 = vld [vmem:[%s188 + $0xbc] sm:$0xff]
        %v227 = vld [vmem:[%s188 + $0xc4] sm:$0xff]
        %v228 = vld [vmem:[%s188 + $0xcc] sm:$0xf]
        %v229 = vld [vmem:[%s1] sm:$0xf]
        %v230 = vld [vmem:[%s1 + $0x4] sm:$0xf]
        %v231 = vld [vmem:[%s1 + $0x8] sm:$0xf]
        %v232 = vld [vmem:[%s1 + $0xc] sm:$0xf]
        %v233 = vld [vmem:[%s1 + $0x10] sm:$0xf]
        %v234 = vld [vmem:[%s1 + $0x14] sm:$0xf]
        %v235 = vld [vmem:[%s1 + $0x18] sm:$0xf]
        %v236 = vld [vmem:[%s1 + $0x1c] sm:$0xf]
        %v237 = vld [vmem:[%s1 + $0x20] sm:$0xf]
        %v238 = vld [vmem:[%s1 + $0x24] sm:$0xf]
        %v239 = vld [vmem:[%s1 + $0x28] sm:$0xf]
        %v240 = vld [vmem:[%s1 + $0x2c] sm:$0xf]
        %v241 = vld [vmem:[%s1 + $0x30] sm:$0xf]
        %v242 = vld [vmem:[%s1 + $0x34] sm:$0xf]
        %v243 = vld [vmem:[%s1 + $0x38] sm:$0xf]
        %v244 = vld [vmem:[%s1 + $0x3c] sm:$0xf]
        %v245 = vld [vmem:[%s1 + $0x40] sm:$0xf]
        %v246 = vld [vmem:[%s1 + $0x44] sm:$0xf]
        %v247 = vld [vmem:[%s1 + $0x48] sm:$0xf]
        %v248 = vld [vmem:[%s1 + $0x4c] sm:$0xf]
        %v249 = vld [vmem:[%s1 + $0x50] sm:$0xf]
        %v250 = vld [vmem:[%s1 + $0x54] sm:$0xf]
        %v251 = vld [vmem:[%s1 + $0x58] sm:$0xf]
        %v252 = vld [vmem:[%s1 + $0x5c] sm:$0xf]
        %v253 = vld [vmem:[%s1 + $0x60] sm:$0xf]
        %v254 = vld [vmem:[%s1 + $0x64] sm:$0xf]
        %v255 = vld [vmem:[%s1 + $0x68] sm:$0xf]
        %v256 = vld [vmem:[%s1 + $0x6c] sm:$0xf]
        %v257 = vld [vmem:[%s1 + $0x70] sm:$0xf]
        %v258 = vld [vmem:[%s1 + $0x74] sm:$0xf]
        %v259 = vld [vmem:[%s1 + $0x78] sm:$0xf]
        %v260 = vld [vmem:[%s1 + $0x7c] sm:$0xf]
        %v261 = vld [vmem:[%s1 + $0x80] sm:$0xf]
        %v262 = vld [vmem:[%s1 + $0x84] sm:$0xf]
        %v263 = vld [vmem:[%s1 + $0x88] sm:$0xf]
        %v264 = vld [vmem:[%s1 + $0x8c] sm:$0xf]
        %v265 = vld [vmem:[%s1 + $0x90] sm:$0xf]
        %v266 = vld [vmem:[%s1 + $0x94] sm:$0xf]
        %v267 = vld [vmem:[%s1 + $0x98] sm:$0xf]
        %v268 = vld [vmem:[%s1 + $0x9c] sm:$0xf]
        %v269 = vld [vmem:[%s1 + $0xa0] sm:$0xf]
        %v270 = vld [vmem:[%s1 + $0xa4] sm:$0xf]
        %v271 = vld [vmem:[%s1 + $0xa8] sm:$0xf]
        %v272 = vld [vmem:[%s1 + $0xac] sm:$0xf]
        %v273 = vld [vmem:[%s1 + $0xb0] sm:$0xf]
        %v274 = vld [vmem:[%s1 + $0xb4] sm:$0xf]
        %v275 = vld [vmem:[%s1 + $0xb8] sm:$0xf]
        %v276 = vld [vmem:[%s1 + $0xbc] sm:$0xf]
        %v277 = vld [vmem:[%s1 + $0xc0] sm:$0xf]
        %v278 = vld [vmem:[%s1 + $0xc4] sm:$0xf]
        %v279 = vld [vmem:[%s1 + $0xc8] sm:$0xf]
        %v280 = vld [vmem:[%s1 + $0xcc] sm:$0xf]
        %v281 = vld [vmem:[%s1 + $0xd0] sm:$0xf]
        %v282 = vld [vmem:[%s1 + $0xd4] sm:$0xf]
        %v283 = vld [vmem:[%s1 + $0xd8] sm:$0xf]
        %v284 = vld [vmem:[%s1 + $0xdc] sm:$0xf]
        %v285 = vld [vmem:[%s1 + $0xe0] sm:$0xf]
        %v286 = vld [vmem:[%s1 + $0xe4] sm:$0xf]
        %v287 = vld [vmem:[%s1 + $0xe8] sm:$0xf]
        %v288 = vld [vmem:[%s1 + $0xec] sm:$0xf]
        %v289 = vld [vmem:[%s1 + $0xf0] sm:$0xf]
        %v290 = vld [vmem:[%s1 + $0xf4] sm:$0xf]
        %v291 = vld [vmem:[%s1 + $0xf8] sm:$0xf]
        %v292 = vld [vmem:[%s1 + $0xfc] sm:$0xf]
        %v293 = vld [vmem:[%s1 + $0x100] sm:$0xf]
        %v294 = vld [vmem:[%s1 + $0x104] sm:$0xf]
        %v295 = vld [vmem:[%s1 + $0x108] sm:$0xf]
        %v296 = vld [vmem:[%s1 + $0x10c] sm:$0xf]
        %v297 = vld [vmem:[%s1 + $0x110] sm:$0xf]
        %v298 = vld [vmem:[%s1 + $0x114] sm:$0xf]
        %v299 = vld [vmem:[%s1 + $0x118] sm:$0xf]
        %v300 = vld [vmem:[%s1 + $0x11c] sm:$0xf]
        %v301 = vld [vmem:[%s1 + $0x120] sm:$0xf]
        %v302 = vld [vmem:[%s1 + $0x124] sm:$0xf]
        %v303 = vld [vmem:[%s1 + $0x128] sm:$0xf]
        %v304 = vld [vmem:[%s1 + $0x12c] sm:$0xf]
        %v305 = vld [vmem:[%s1 + $0x130] sm:$0xf]
        %v306 = vld [vmem:[%s1 + $0x134] sm:$0xf]
        %v307 = vld [vmem:[%s1 + $0x138] sm:$0xf]
        %v308 = vld [vmem:[%s1 + $0x13c] sm:$0xf]
        %v309 = vld [vmem:[%s1 + $0x140] sm:$0xf]
        %v310 = vld [vmem:[%s1 + $0x144] sm:$0xf]
        %v311 = vld [vmem:[%s1 + $0x148] sm:$0xf]
        %v312 = vld [vmem:[%s1 + $0x14c] sm:$0xf]
        %v313 = vld [vmem:[%s1 + $0x150] sm:$0xf]
        %v314 = vld [vmem:[%s1 + $0x154] sm:$0xf]
        %v315 = vld [vmem:[%s1 + $0x158] sm:$0xf]
        %v316 = vld [vmem:[%s1 + $0x15c] sm:$0xf]
        %v317 = vld [vmem:[%s1 + $0x160] sm:$0xf]
        %v318 = vld [vmem:[%s1 + $0x164] sm:$0xf]
        %v319 = vld [vmem:[%s1 + $0x168] sm:$0xf]
        %v320 = vld [vmem:[%s1 + $0x16c] sm:$0xf]
        %v321 = vld [vmem:[%s1 + $0x170] sm:$0xf]
        %v322 = vld [vmem:[%s1 + $0x174] sm:$0xf]
        %v323 = vld [vmem:[%s1 + $0x178] sm:$0xf]
        %v324 = vld [vmem:[%s1 + $0x17c] sm:$0xf]
        %v325 = vld [vmem:[%s1 + $0x180] sm:$0xf]
        %v326 = vld [vmem:[%s1 + $0x184] sm:$0xf]
        %v327 = vld [vmem:[%s1 + $0x188] sm:$0xf]
        %v328 = vld [vmem:[%s1 + $0x18c] sm:$0xf]
        %v329 = vld [vmem:[%s1 + $0x190] sm:$0xf]
        %v330 = vld [vmem:[%s1 + $0x194] sm:$0xf]
        %v331 = vld [vmem:[%s1 + $0x198] sm:$0xf]
        %v332 = vld [vmem:[%s1 + $0x19c] sm:$0xf]
        %v333 = vld [vmem:[%s1 + $0x1a0] sm:$0xf]
        %v334 = vld [vmem:[%s1 + $0x1a4] sm:$0xf]
        %v335 = vld [vmem:[%s1 + $0x1a8] sm:$0xf]
        %v336 = vld [vmem:[%s1 + $0x1ac] sm:$0xf]
        %v337 = vld [vmem:[%s1 + $0x1b0] sm:$0xf]
        %v338 = vld [vmem:[%s1 + $0x1b4] sm:$0xf]
        %v339 = vld [vmem:[%s1 + $0x1b8] sm:$0xf]
        %v340 = vld [vmem:[%s1 + $0x1bc] sm:$0xf]
        %v341 = vld [vmem:[%s1 + $0x1c0] sm:$0xf]
        %v342 = vld [vmem:[%s1 + $0x1c4] sm:$0xf]
        %v343 = vld [vmem:[%s1 + $0x1c8] sm:$0xf]
        %v344 = vld [vmem:[%s1 + $0x1cc] sm:$0xf]
        %v345 = vld [vmem:[%s1 + $0x1d0] sm:$0xf]
        %v346 = vld [vmem:[%s1 + $0x1d4] sm:$0xf]
        %v347 = vld [vmem:[%s1 + $0x1d8] sm:$0xf]
        %v348 = vld [vmem:[%s1 + $0x1dc] sm:$0xf]
        %v349 = vld [vmem:[%s1 + $0x1e0] sm:$0xf]
        %v350 = vld [vmem:[%s1 + $0x1e4] sm:$0xf]
        %v351 = vld [vmem:[%s1 + $0x1e8] sm:$0xf]
        %v352 = vld [vmem:[%s1 + $0x1ec] sm:$0xf]
        %v353 = vld [vmem:[%s1 + $0x1f0] sm:$0xf]
        %v354 = vld [vmem:[%s1 + $0x1f4] sm:$0xf]
        %v355 = vld [vmem:[%s1 + $0x1f8] sm:$0xf]
        %v356 = vld [vmem:[%s1 + $0x1fc] sm:$0xf]
        %v357 = vld [vmem:[%s1 + $0x200] sm:$0xf]
        %v358 = vld [vmem:[%s1 + $0x204] sm:$0xf]
        %v359 = vld [vmem:[%s1 + $0x208] sm:$0xf]
        %v360 = vld [vmem:[%s1 + $0x20c] sm:$0xf]
        %v361 = vld [vmem:[%s1 + $0x210] sm:$0xf]
        %v362 = vld [vmem:[%s1 + $0x214] sm:$0xf]
        %v363 = vld [vmem:[%s1 + $0x218] sm:$0xf]
        %v364 = vld [vmem:[%s1 + $0x21c] sm:$0xf]
        %v365 = vld [vmem:[%s1 + $0x220] sm:$0xf]
        %v366 = vld [vmem:[%s1 + $0x224] sm:$0xf]
        %v367 = vld [vmem:[%s1 + $0x228] sm:$0xf]
        %v368 = vld [vmem:[%s1 + $0x22c] sm:$0xf]
        %v369 = vld [vmem:[%s1 + $0x230] sm:$0xf]
        %v370 = vld [vmem:[%s1 + $0x234] sm:$0xf]
        %v371 = vld [vmem:[%s1 + $0x238] sm:$0xf]
        %v372 = vld [vmem:[%s1 + $0x23c] sm:$0xf]
        %v373 = vld [vmem:[%s1 + $0x240] sm:$0xf]
        %v374 = vld [vmem:[%s1 + $0x244] sm:$0xf]
        %v375 = vld [vmem:[%s1 + $0x248] sm:$0xf]
        %v376 = vld [vmem:[%s1 + $0x24c] sm:$0xf]
        %v377 = vld [vmem:[%s1 + $0x250] sm:$0xf]
        %v378 = vld [vmem:[%s1 + $0x254] sm:$0xf]
        %v379 = vld [vmem:[%s1 + $0x258] sm:$0xf]
        %v380 = vld [vmem:[%s1 + $0x25c] sm:$0xf]
        %v381 = vld [vmem:[%s1 + $0x260] sm:$0xf]
        %v382 = vld [vmem:[%s1 + $0x264] sm:$0xf]
        %v383 = vld [vmem:[%s1 + $0x268] sm:$0xf]
        %v384 = vld [vmem:[%s1 + $0x26c] sm:$0xf]
        %v385 = vld [vmem:[%s1 + $0x270] sm:$0xf]
        %v386 = vld [vmem:[%s1 + $0x274] sm:$0xf]
        %v387 = vld [vmem:[%s1 + $0x278] sm:$0xf]
        %v388 = vld [vmem:[%s1 + $0x27c] sm:$0xf]
        %v389 = vld [vmem:[%s1 + $0x280] sm:$0xf]
        %v390 = vld [vmem:[%s1 + $0x284] sm:$0xf]
        %v391 = vld [vmem:[%s1 + $0x288] sm:$0xf]
        %v392 = vld [vmem:[%s1 + $0x28c] sm:$0xf]
        %v393 = vld [vmem:[%s1 + $0x290] sm:$0xf]
        %v394 = vld [vmem:[%s1 + $0x294] sm:$0xf]
        %v395 = vld [vmem:[%s1 + $0x298] sm:$0xf]
        %v396 = vld [vmem:[%s1 + $0x29c] sm:$0xf]
        %v397 = vld [vmem:[%s1 + $0x2a0] sm:$0xf]
        %v398 = vld [vmem:[%s1 + $0x2a4] sm:$0xf]
        %v399 = vld [vmem:[%s1 + $0x2a8] sm:$0xf]
        %v400 = vld [vmem:[%s1 + $0x2ac] sm:$0xf]
        %v401 = vld [vmem:[%s1 + $0x2b0] sm:$0xf]
        %v402 = vld [vmem:[%s1 + $0x2b4] sm:$0xf]
        %v403 = vld [vmem:[%s1 + $0x2b8] sm:$0xf]
        %v404 = vld [vmem:[%s1 + $0x2bc] sm:$0xf]
        %v405 = vld [vmem:[%s1 + $0x2c0] sm:$0xf]
        %v406 = vld [vmem:[%s1 + $0x2c4] sm:$0xf]
        %v407 = vld [vmem:[%s1 + $0x2c8] sm:$0xf]
        %v408 = vld [vmem:[%s1 + $0x2cc] sm:$0xf]
        %v409 = vld [vmem:[%s1 + $0x2d0] sm:$0xf]
        %v410 = vld [vmem:[%s1 + $0x2d4] sm:$0xf]
        %v411 = vld [vmem:[%s1 + $0x2d8] sm:$0xf]
        %v412 = vld [vmem:[%s1 + $0x2dc] sm:$0xf]
        %v413 = vld [vmem:[%s1 + $0x2e0] sm:$0xf]
        %v414 = vld [vmem:[%s1 + $0x2e4] sm:$0xf]
        %v415 = vld [vmem:[%s1 + $0x2e8] sm:$0xf]
        %v416 = vld [vmem:[%s1 + $0x2ec] sm:$0xf]
        %v417 = vld [vmem:[%s1 + $0x2f0] sm:$0xf]
        %v418 = vld [vmem:[%s1 + $0x2f4] sm:$0xf]
        %v419 = vld [vmem:[%s1 + $0x2f8] sm:$0xf]
        %v420 = vld [vmem:[%s1 + $0x2fc] sm:$0xf]
        %v421 = vld [vmem:[%s1 + $0x300] sm:$0xf]
        %v422 = vld [vmem:[%s1 + $0x304] sm:$0xf]
        %v423 = vld [vmem:[%s1 + $0x308] sm:$0xf]
        %v424 = vld [vmem:[%s1 + $0x30c] sm:$0xf]
        %v425 = vld [vmem:[%s1 + $0x310] sm:$0xf]
        %v426 = vld [vmem:[%s1 + $0x314] sm:$0xf]
        %v427 = vld [vmem:[%s1 + $0x318] sm:$0xf]
        %v428 = vld [vmem:[%s1 + $0x31c] sm:$0xf]
        %v429 = vld [vmem:[%s2] sm:$0x1]
        %v431 = vlaneseq
        %v432 = vshrl.u32 %v431, 7
        %v433 = vsub.s32 0, %v432
        %v434 = vrot.slane %v429, %v433
        %v464 = vunpack.c.l.b16 %v201
        %v465 = vunpack.c.h.b16 %v201
        %v466 = vunpack.c.l.b16 %v202
        %v467 = vunpack.c.h.b16 %v202
        %v468 = vunpack.c.l.b16 %v203
        %v469 = vunpack.c.h.b16 %v203
        %v470 = vunpack.c.l.b16 %v204
        %v471 = vunpack.c.h.b16 %v204
        %v472 = vunpack.c.l.b16 %v205
        %v473 = vunpack.c.h.b16 %v205
        %v474 = vunpack.c.l.b16 %v206
        %v475 = vunpack.c.h.b16 %v206
        %v476 = vunpack.c.l.b16 %v207
        %v477 = vunpack.c.l.b16 %v208
        %v478 = vunpack.c.h.b16 %v208
        %v479 = vunpack.c.l.b16 %v209
        %v480 = vunpack.c.h.b16 %v209
        %v481 = vunpack.c.l.b16 %v210
        %v482 = vunpack.c.h.b16 %v210
        %v483 = vunpack.c.l.b16 %v211
        %v484 = vunpack.c.h.b16 %v211
        %v485 = vunpack.c.l.b16 %v212
        %v486 = vunpack.c.h.b16 %v212
        %v487 = vunpack.c.l.b16 %v213
        %v488 = vunpack.c.h.b16 %v213
        %v489 = vunpack.c.l.b16 %v214
        %v490 = vunpack.c.l.b16 %v215
        %v491 = vunpack.c.h.b16 %v215
        %v492 = vunpack.c.l.b16 %v216
        %v493 = vunpack.c.h.b16 %v216
        %v494 = vunpack.c.l.b16 %v217
        %v495 = vunpack.c.h.b16 %v217
        %v496 = vunpack.c.l.b16 %v218
        %v497 = vunpack.c.h.b16 %v218
        %v498 = vunpack.c.l.b16 %v219
        %v499 = vunpack.c.h.b16 %v219
        %v500 = vunpack.c.l.b16 %v220
        %v501 = vunpack.c.h.b16 %v220
        %v502 = vunpack.c.l.b16 %v221
        %v503 = vunpack.c.l.b16 %v222
        %v504 = vunpack.c.h.b16 %v222
        %v505 = vunpack.c.l.b16 %v223
        %v506 = vunpack.c.h.b16 %v223
        %v507 = vunpack.c.l.b16 %v224
        %v508 = vunpack.c.h.b16 %v224
        %v509 = vunpack.c.l.b16 %v225
        %v510 = vunpack.c.h.b16 %v225
        %v511 = vunpack.c.l.b16 %v226
        %v512 = vunpack.c.h.b16 %v226
        %v513 = vunpack.c.l.b16 %v227
        %v514 = vunpack.c.h.b16 %v227
        %v515 = vunpack.c.l.b16 %v228
        %v516 = vpack.c.b16 %v477, %v464
        %v517 = vpack.c.b16 %v478, %v465
        %v518 = vpack.c.b16 %v479, %v466
        %v519 = vpack.c.b16 %v480, %v467
        %v520 = vpack.c.b16 %v481, %v468
        %v521 = vpack.c.b16 %v482, %v469
        %v522 = vpack.c.b16 %v483, %v470
        %v523 = vpack.c.b16 %v484, %v471
        %v524 = vpack.c.b16 %v485, %v472
        %v525 = vpack.c.b16 %v486, %v473
        %v526 = vpack.c.b16 %v487, %v474
        %v527 = vpack.c.b16 %v488, %v475
        %v528 = vpack.c.b16 %v489, %v476
        %v529 = vpack.c.b16 %v503, %v490
        %v530 = vpack.c.b16 %v504, %v491
        %v531 = vpack.c.b16 %v505, %v492
        %v532 = vpack.c.b16 %v506, %v493
        %v533 = vpack.c.b16 %v507, %v494
        %v534 = vpack.c.b16 %v508, %v495
        %v535 = vpack.c.b16 %v509, %v496
        %v536 = vpack.c.b16 %v510, %v497
        %v537 = vpack.c.b16 %v511, %v498
        %v538 = vpack.c.b16 %v512, %v499
        %v539 = vpack.c.b16 %v513, %v500
        %v540 = vpack.c.b16 %v514, %v501
        %v541 = vpack.c.b16 %v515, %v502
        %v766 = vunpack.c.l.b16 %v229
        %v767 = vunpack.c.l.b16 %v230
        %v768 = vunpack.c.l.b16 %v231
        %v769 = vunpack.c.l.b16 %v232
        %v770 = vunpack.c.l.b16 %v233
        %v771 = vunpack.c.l.b16 %v234
        %v772 = vunpack.c.l.b16 %v235
        %v773 = vunpack.c.l.b16 %v236
        %v774 = vunpack.c.l.b16 %v237
        %v775 = vunpack.c.l.b16 %v238
        %v776 = vunpack.c.l.b16 %v239
        %v777 = vunpack.c.l.b16 %v240
        %v778 = vunpack.c.l.b16 %v241
        %v779 = vunpack.c.l.b16 %v242
        %v780 = vunpack.c.l.b16 %v243
        %v781 = vunpack.c.l.b16 %v244
        %v782 = vunpack.c.l.b16 %v245
        %v783 = vunpack.c.l.b16 %v246
        %v784 = vunpack.c.l.b16 %v247
        %v785 = vunpack.c.l.b16 %v248
        %v786 = vunpack.c.l.b16 %v249
        %v787 = vunpack.c.l.b16 %v250
        %v788 = vunpack.c.l.b16 %v251
        %v789 = vunpack.c.l.b16 %v252
        %v790 = vunpack.c.l.b16 %v253
        %v791 = vunpack.c.l.b16 %v254
        %v792 = vunpack.c.l.b16 %v255
        %v793 = vunpack.c.l.b16 %v256
        %v794 = vunpack.c.l.b16 %v257
        %v795 = vunpack.c.l.b16 %v258
        %v796 = vunpack.c.l.b16 %v259
        %v797 = vunpack.c.l.b16 %v260
        %v798 = vunpack.c.l.b16 %v261
        %v799 = vunpack.c.l.b16 %v262
        %v800 = vunpack.c.l.b16 %v263
        %v801 = vunpack.c.l.b16 %v264
        %v802 = vunpack.c.l.b16 %v265
        %v803 = vunpack.c.l.b16 %v266
        %v804 = vunpack.c.l.b16 %v267
        %v805 = vunpack.c.l.b16 %v268
        %v806 = vunpack.c.l.b16 %v269
        %v807 = vunpack.c.l.b16 %v270
        %v808 = vunpack.c.l.b16 %v271
        %v809 = vunpack.c.l.b16 %v272
        %v810 = vunpack.c.l.b16 %v273
        %v811 = vunpack.c.l.b16 %v274
        %v812 = vunpack.c.l.b16 %v275
        %v813 = vunpack.c.l.b16 %v276
        %v814 = vunpack.c.l.b16 %v277
        %v815 = vunpack.c.l.b16 %v278
        %v816 = vunpack.c.l.b16 %v279
        %v817 = vunpack.c.l.b16 %v280
        %v818 = vunpack.c.l.b16 %v281
        %v819 = vunpack.c.l.b16 %v282
        %v820 = vunpack.c.l.b16 %v283
        %v821 = vunpack.c.l.b16 %v284
        %v822 = vunpack.c.l.b16 %v285
        %v823 = vunpack.c.l.b16 %v286
        %v824 = vunpack.c.l.b16 %v287
        %v825 = vunpack.c.l.b16 %v288
        %v826 = vunpack.c.l.b16 %v289
        %v827 = vunpack.c.l.b16 %v290
        %v828 = vunpack.c.l.b16 %v291
        %v829 = vunpack.c.l.b16 %v292
        %v830 = vunpack.c.l.b16 %v293
        %v831 = vunpack.c.l.b16 %v294
        %v832 = vunpack.c.l.b16 %v295
        %v833 = vunpack.c.l.b16 %v296
        %v834 = vunpack.c.l.b16 %v297
        %v835 = vunpack.c.l.b16 %v298
        %v836 = vunpack.c.l.b16 %v299
        %v837 = vunpack.c.l.b16 %v300
        %v838 = vunpack.c.l.b16 %v301
        %v839 = vunpack.c.l.b16 %v302
        %v840 = vunpack.c.l.b16 %v303
        %v841 = vunpack.c.l.b16 %v304
        %v842 = vunpack.c.l.b16 %v305
        %v843 = vunpack.c.l.b16 %v306
        %v844 = vunpack.c.l.b16 %v307
        %v845 = vunpack.c.l.b16 %v308
        %v846 = vunpack.c.l.b16 %v309
        %v847 = vunpack.c.l.b16 %v310
        %v848 = vunpack.c.l.b16 %v311
        %v849 = vunpack.c.l.b16 %v312
        %v850 = vunpack.c.l.b16 %v313
        %v851 = vunpack.c.l.b16 %v314
        %v852 = vunpack.c.l.b16 %v315
        %v853 = vunpack.c.l.b16 %v316
        %v854 = vunpack.c.l.b16 %v317
        %v855 = vunpack.c.l.b16 %v318
        %v856 = vunpack.c.l.b16 %v319
        %v857 = vunpack.c.l.b16 %v320
        %v858 = vunpack.c.l.b16 %v321
        %v859 = vunpack.c.l.b16 %v322
        %v860 = vunpack.c.l.b16 %v323
        %v861 = vunpack.c.l.b16 %v324
        %v862 = vunpack.c.l.b16 %v325
        %v863 = vunpack.c.l.b16 %v326
        %v864 = vunpack.c.l.b16 %v327
        %v865 = vunpack.c.l.b16 %v328
        %v866 = vunpack.c.l.b16 %v329
        %v867 = vunpack.c.l.b16 %v330
        %v868 = vunpack.c.l.b16 %v331
        %v869 = vunpack.c.l.b16 %v332
        %v870 = vunpack.c.l.b16 %v333
        %v871 = vunpack.c.l.b16 %v334
        %v872 = vunpack.c.l.b16 %v335
        %v873 = vunpack.c.l.b16 %v336
        %v874 = vunpack.c.l.b16 %v337
        %v875 = vunpack.c.l.b16 %v338
        %v876 = vunpack.c.l.b16 %v339
        %v877 = vunpack.c.l.b16 %v340
        %v878 = vunpack.c.l.b16 %v341
        %v879 = vunpack.c.l.b16 %v342
        %v880 = vunpack.c.l.b16 %v343
        %v881 = vunpack.c.l.b16 %v344
        %v882 = vunpack.c.l.b16 %v345
        %v883 = vunpack.c.l.b16 %v346
        %v884 = vunpack.c.l.b16 %v347
        %v885 = vunpack.c.l.b16 %v348
        %v886 = vunpack.c.l.b16 %v349
        %v887 = vunpack.c.l.b16 %v350
        %v888 = vunpack.c.l.b16 %v351
        %v889 = vunpack.c.l.b16 %v352
        %v890 = vunpack.c.l.b16 %v353
        %v891 = vunpack.c.l.b16 %v354
        %v892 = vunpack.c.l.b16 %v355
        %v893 = vunpack.c.l.b16 %v356
        %v894 = vunpack.c.l.b16 %v357
        %v895 = vunpack.c.l.b16 %v358
        %v896 = vunpack.c.l.b16 %v359
        %v897 = vunpack.c.l.b16 %v360
        %v898 = vunpack.c.l.b16 %v361
        %v899 = vunpack.c.l.b16 %v362
        %v900 = vunpack.c.l.b16 %v363
        %v901 = vunpack.c.l.b16 %v364
        %v902 = vunpack.c.l.b16 %v365
        %v903 = vunpack.c.l.b16 %v366
        %v904 = vunpack.c.l.b16 %v367
        %v905 = vunpack.c.l.b16 %v368
        %v906 = vunpack.c.l.b16 %v369
        %v907 = vunpack.c.l.b16 %v370
        %v908 = vunpack.c.l.b16 %v371
        %v909 = vunpack.c.l.b16 %v372
        %v910 = vunpack.c.l.b16 %v373
        %v911 = vunpack.c.l.b16 %v374
        %v912 = vunpack.c.l.b16 %v375
        %v913 = vunpack.c.l.b16 %v376
        %v914 = vunpack.c.l.b16 %v377
        %v915 = vunpack.c.l.b16 %v378
        %v916 = vunpack.c.l.b16 %v379
        %v917 = vunpack.c.l.b16 %v380
        %v918 = vunpack.c.l.b16 %v381
        %v919 = vunpack.c.l.b16 %v382
        %v920 = vunpack.c.l.b16 %v383
        %v921 = vunpack.c.l.b16 %v384
        %v922 = vunpack.c.l.b16 %v385
        %v923 = vunpack.c.l.b16 %v386
        %v924 = vunpack.c.l.b16 %v387
        %v925 = vunpack.c.l.b16 %v388
        %v926 = vunpack.c.l.b16 %v389
        %v927 = vunpack.c.l.b16 %v390
        %v928 = vunpack.c.l.b16 %v391
        %v929 = vunpack.c.l.b16 %v392
        %v930 = vunpack.c.l.b16 %v393
        %v931 = vunpack.c.l.b16 %v394
        %v932 = vunpack.c.l.b16 %v395
        %v933 = vunpack.c.l.b16 %v396
        %v934 = vunpack.c.l.b16 %v397
        %v935 = vunpack.c.l.b16 %v398
        %v936 = vunpack.c.l.b16 %v399
        %v937 = vunpack.c.l.b16 %v400
        %v938 = vunpack.c.l.b16 %v401
        %v939 = vunpack.c.l.b16 %v402
        %v940 = vunpack.c.l.b16 %v403
        %v941 = vunpack.c.l.b16 %v404
        %v942 = vunpack.c.l.b16 %v405
        %v943 = vunpack.c.l.b16 %v406
        %v944 = vunpack.c.l.b16 %v407
        %v945 = vunpack.c.l.b16 %v408
        %v946 = vunpack.c.l.b16 %v409
        %v947 = vunpack.c.l.b16 %v410
        %v948 = vunpack.c.l.b16 %v411
        %v949 = vunpack.c.l.b16 %v412
        %v950 = vunpack.c.l.b16 %v413
        %v951 = vunpack.c.l.b16 %v414
        %v952 = vunpack.c.l.b16 %v415
        %v953 = vunpack.c.l.b16 %v416
        %v954 = vunpack.c.l.b16 %v417
        %v955 = vunpack.c.l.b16 %v418
        %v956 = vunpack.c.l.b16 %v419
        %v957 = vunpack.c.l.b16 %v420
        %v958 = vunpack.c.l.b16 %v421
        %v959 = vunpack.c.l.b16 %v422
        %v960 = vunpack.c.l.b16 %v423
        %v961 = vunpack.c.l.b16 %v424
        %v962 = vunpack.c.l.b16 %v425
        %v963 = vunpack.c.l.b16 %v426
        %v964 = vunpack.c.l.b16 %v427
        %v965 = vunpack.c.l.b16 %v428
        %v966 = vpack.c.b16 %v767, %v766
        %v967 = vpack.c.b16 %v769, %v768
        %v968 = vpack.c.b16 %v771, %v770
        %v969 = vpack.c.b16 %v773, %v772
        %v970 = vpack.c.b16 %v775, %v774
        %v971 = vpack.c.b16 %v777, %v776
        %v972 = vpack.c.b16 %v779, %v778
        %v973 = vpack.c.b16 %v781, %v780
        %v974 = vpack.c.b16 %v783, %v782
        %v975 = vpack.c.b16 %v785, %v784
        %v976 = vpack.c.b16 %v787, %v786
        %v977 = vpack.c.b16 %v789, %v788
        %v978 = vpack.c.b16 %v791, %v790
        %v979 = vpack.c.b16 %v793, %v792
        %v980 = vpack.c.b16 %v795, %v794
        %v981 = vpack.c.b16 %v797, %v796
        %v982 = vpack.c.b16 %v799, %v798
        %v983 = vpack.c.b16 %v801, %v800
        %v984 = vpack.c.b16 %v803, %v802
        %v985 = vpack.c.b16 %v805, %v804
        %v986 = vpack.c.b16 %v807, %v806
        %v987 = vpack.c.b16 %v809, %v808
        %v988 = vpack.c.b16 %v811, %v810
        %v989 = vpack.c.b16 %v813, %v812
        %v990 = vpack.c.b16 %v815, %v814
        %v991 = vpack.c.b16 %v817, %v816
        %v992 = vpack.c.b16 %v819, %v818
        %v993 = vpack.c.b16 %v821, %v820
        %v994 = vpack.c.b16 %v823, %v822
        %v995 = vpack.c.b16 %v825, %v824
        %v996 = vpack.c.b16 %v827, %v826
        %v997 = vpack.c.b16 %v829, %v828
        %v998 = vpack.c.b16 %v831, %v830
        %v999 = vpack.c.b16 %v833, %v832
        %v1000 = vpack.c.b16 %v835, %v834
        %v1001 = vpack.c.b16 %v837, %v836
        %v1002 = vpack.c.b16 %v839, %v838
        %v1003 = vpack.c.b16 %v841, %v840
        %v1004 = vpack.c.b16 %v843, %v842
        %v1005 = vpack.c.b16 %v845, %v844
        %v1006 = vpack.c.b16 %v847, %v846
        %v1007 = vpack.c.b16 %v849, %v848
        %v1008 = vpack.c.b16 %v851, %v850
        %v1009 = vpack.c.b16 %v853, %v852
        %v1010 = vpack.c.b16 %v855, %v854
        %v1011 = vpack.c.b16 %v857, %v856
        %v1012 = vpack.c.b16 %v859, %v858
        %v1013 = vpack.c.b16 %v861, %v860
        %v1014 = vpack.c.b16 %v863, %v862
        %v1015 = vpack.c.b16 %v865, %v864
        %v1016 = vpack.c.b16 %v867, %v866
        %v1017 = vpack.c.b16 %v869, %v868
        %v1018 = vpack.c.b16 %v871, %v870
        %v1019 = vpack.c.b16 %v873, %v872
        %v1020 = vpack.c.b16 %v875, %v874
        %v1021 = vpack.c.b16 %v877, %v876
        %v1022 = vpack.c.b16 %v879, %v878
        %v1023 = vpack.c.b16 %v881, %v880
        %v1024 = vpack.c.b16 %v883, %v882
        %v1025 = vpack.c.b16 %v885, %v884
        %v1026 = vpack.c.b16 %v887, %v886
        %v1027 = vpack.c.b16 %v889, %v888
        %v1028 = vpack.c.b16 %v891, %v890
        %v1029 = vpack.c.b16 %v893, %v892
        %v1030 = vpack.c.b16 %v895, %v894
        %v1031 = vpack.c.b16 %v897, %v896
        %v1032 = vpack.c.b16 %v899, %v898
        %v1033 = vpack.c.b16 %v901, %v900
        %v1034 = vpack.c.b16 %v903, %v902
        %v1035 = vpack.c.b16 %v905, %v904
        %v1036 = vpack.c.b16 %v907, %v906
        %v1037 = vpack.c.b16 %v909, %v908
        %v1038 = vpack.c.b16 %v911, %v910
        %v1039 = vpack.c.b16 %v913, %v912
        %v1040 = vpack.c.b16 %v915, %v914
        %v1041 = vpack.c.b16 %v917, %v916
        %v1042 = vpack.c.b16 %v919, %v918
        %v1043 = vpack.c.b16 %v921, %v920
        %v1044 = vpack.c.b16 %v923, %v922
        %v1045 = vpack.c.b16 %v925, %v924
        %v1046 = vpack.c.b16 %v927, %v926
        %v1047 = vpack.c.b16 %v929, %v928
        %v1048 = vpack.c.b16 %v931, %v930
        %v1049 = vpack.c.b16 %v933, %v932
        %v1050 = vpack.c.b16 %v935, %v934
        %v1051 = vpack.c.b16 %v937, %v936
        %v1052 = vpack.c.b16 %v939, %v938
        %v1053 = vpack.c.b16 %v941, %v940
        %v1054 = vpack.c.b16 %v943, %v942
        %v1055 = vpack.c.b16 %v945, %v944
        %v1056 = vpack.c.b16 %v947, %v946
        %v1057 = vpack.c.b16 %v949, %v948
        %v1058 = vpack.c.b16 %v951, %v950
        %v1059 = vpack.c.b16 %v953, %v952
        %v1060 = vpack.c.b16 %v955, %v954
        %v1061 = vpack.c.b16 %v957, %v956
        %v1062 = vpack.c.b16 %v959, %v958
        %v1063 = vpack.c.b16 %v961, %v960
        %v1064 = vpack.c.b16 %v963, %v962
        %v1065 = vpack.c.b16 %v965, %v964
        %vm1166 = vcmask 523264
        %v1168 = vsel %vm1166, %v528, 0
        %v1171 = vsel %vm1166, %v541, 0
        %1173 = vmatprep.subr.bf16.mxu0 0
        %1174 = vmatpush1.bf16.msra.mxu0 %v973
        %1175 = vmatprep.subr.bf16.mxu0 0
        %1176 = vmatpush1.bf16.msra.mxu0 %v972
        %1177 = vmatprep.subr.bf16.mxu0 0
        %1178 = vmatpush1.bf16.msra.mxu0 %v971
        %1179 = vmatprep.subr.bf16.mxu0 0
        %1180 = vmatpush1.bf16.msra.mxu0 %v970
        %1181 = vmatprep.subr.bf16.mxu0 0
        %1182 = vmatpush1.bf16.msra.mxu0 %v969
        %1183 = vmatprep.subr.bf16.mxu0 0
        %1184 = vmatpush1.bf16.msra.mxu0 %v968
        %1185 = vmatprep.subr.bf16.mxu0 0
        %1186 = vmatpush1.bf16.msra.mxu0 %v967
        %1187 = vmatprep.subr.bf16.mxu0 0
        %1188 = vmatpush1.bf16.msra.mxu0 %v966
        %1189 = vmatprep.subr.bf16.mxu0 0
        %1190 = vmatpush2.bf16.msra.mxu0 %v981
        %1191 = vmatprep.subr.bf16.mxu0 0
        %1192 = vmatpush2.bf16.msra.mxu0 %v980
        %1193 = vmatprep.subr.bf16.mxu0 0
        %1194 = vmatpush2.bf16.msra.mxu0 %v979
        %1195 = vmatprep.subr.bf16.mxu0 0
        %1196 = vmatpush2.bf16.msra.mxu0 %v978
        %1197 = vmatprep.subr.bf16.mxu0 0
        %1198 = vmatpush2.bf16.msra.mxu0 %v977
        %1199 = vmatprep.subr.bf16.mxu0 0
        %1200 = vmatpush2.bf16.msra.mxu0 %v976
        %1201 = vmatprep.subr.bf16.mxu0 0
        %1202 = vmatpush2.bf16.msra.mxu0 %v975
        %1203 = vmatprep.subr.bf16.mxu0 0
        %1204 = vmatpush2.bf16.msra.mxu0 %v974
        %1205 = vmatprep.mubr.bf16.mxu0 %v517
        %1206 = vmatmul.mubr.bf16.gmra.mxu0 %v516
        %v1207 = vpop.f32.mrf.mxu0
        %v1208 = vadd.f32 %v434, %v1207
        %v1209 = vpop.f32.mrf.mxu0
        %v1210 = vpop.f32.mrf.mxu0
        %v1211 = vadd.f32 %v434, %v1210
        %v1212 = vpop.f32.mrf.mxu0
        %1213 = vmatprep.mubr.bf16.mxu0 %v530
        %1214 = vmatmul.mubr.bf16.gmra.mxu0 %v529
        %v1215 = vpop.f32.mrf.mxu0
        %v1216 = vadd.f32 %v434, %v1215
        %v1217 = vpop.f32.mrf.mxu0
        %v1218 = vpop.f32.mrf.mxu0
        %v1219 = vadd.f32 %v434, %v1218
        %v1220 = vpop.f32.mrf.mxu0
        %1221 = vdwg.mxu0
        %1222 = vmatprep.subr.bf16.mxu0 0
        %1223 = vmatpush1.bf16.msra.mxu0 %v989
        %1224 = vmatprep.subr.bf16.mxu0 0
        %1225 = vmatpush1.bf16.msra.mxu0 %v988
        %1226 = vmatprep.subr.bf16.mxu0 0
        %1227 = vmatpush1.bf16.msra.mxu0 %v987
        %1228 = vmatprep.subr.bf16.mxu0 0
        %1229 = vmatpush1.bf16.msra.mxu0 %v986
        %1230 = vmatprep.subr.bf16.mxu0 0
        %1231 = vmatpush1.bf16.msra.mxu0 %v985
        %1232 = vmatprep.subr.bf16.mxu0 0
        %1233 = vmatpush1.bf16.msra.mxu0 %v984
        %1234 = vmatprep.subr.bf16.mxu0 0
        %1235 = vmatpush1.bf16.msra.mxu0 %v983
        %1236 = vmatprep.subr.bf16.mxu0 0
        %1237 = vmatpush1.bf16.msra.mxu0 %v982
        %1238 = vmatprep.subr.bf16.mxu0 0
        %1239 = vmatpush2.bf16.msra.mxu0 %v997
        %1240 = vmatprep.subr.bf16.mxu0 0
        %1241 = vmatpush2.bf16.msra.mxu0 %v996
        %1242 = vmatprep.subr.bf16.mxu0 0
        %1243 = vmatpush2.bf16.msra.mxu0 %v995
        %1244 = vmatprep.subr.bf16.mxu0 0
        %1245 = vmatpush2.bf16.msra.mxu0 %v994
        %1246 = vmatprep.subr.bf16.mxu0 0
        %1247 = vmatpush2.bf16.msra.mxu0 %v993
        %1248 = vmatprep.subr.bf16.mxu0 0
        %1249 = vmatpush2.bf16.msra.mxu0 %v992
        %1250 = vmatprep.subr.bf16.mxu0 0
        %1251 = vmatpush2.bf16.msra.mxu0 %v991
        %1252 = vmatprep.subr.bf16.mxu0 0
        %1253 = vmatpush2.bf16.msra.mxu0 %v990
        %1254 = vmatprep.mubr.bf16.mxu0 %v519
        %1255 = vmatmul.mubr.bf16.gmra.mxu0 %v518
        %v1256 = vpop.f32.mrf.mxu0
        %v1257 = vadd.f32 %v1208, %v1256
        %v1258 = vpop.f32.mrf.mxu0
        %v1259 = vpop.f32.mrf.mxu0
        %v1260 = vadd.f32 %v1211, %v1259
        %v1261 = vpop.f32.mrf.mxu0
        %1262 = vmatprep.mubr.bf16.mxu0 %v532
        %1263 = vmatmul.mubr.bf16.gmra.mxu0 %v531
        %v1264 = vpop.f32.mrf.mxu0
        %v1265 = vadd.f32 %v1216, %v1264
        %v1266 = vpop.f32.mrf.mxu0
        %v1267 = vpop.f32.mrf.mxu0
        %v1268 = vadd.f32 %v1219, %v1267
        %v1269 = vpop.f32.mrf.mxu0
        %1270 = vdwg.mxu0
        %1271 = vmatprep.subr.bf16.mxu0 0
        %1272 = vmatpush1.bf16.msra.mxu0 %v1005
        %1273 = vmatprep.subr.bf16.mxu0 0
        %1274 = vmatpush1.bf16.msra.mxu0 %v1004
        %1275 = vmatprep.subr.bf16.mxu0 0
        %1276 = vmatpush1.bf16.msra.mxu0 %v1003
        %1277 = vmatprep.subr.bf16.mxu0 0
        %1278 = vmatpush1.bf16.msra.mxu0 %v1002
        %1279 = vmatprep.subr.bf16.mxu0 0
        %1280 = vmatpush1.bf16.msra.mxu0 %v1001
        %1281 = vmatprep.subr.bf16.mxu0 0
        %1282 = vmatpush1.bf16.msra.mxu0 %v1000
        %1283 = vmatprep.subr.bf16.mxu0 0
        %1284 = vmatpush1.bf16.msra.mxu0 %v999
        %1285 = vmatprep.subr.bf16.mxu0 0
        %1286 = vmatpush1.bf16.msra.mxu0 %v998
        %1287 = vmatprep.subr.bf16.mxu0 0
        %1288 = vmatpush2.bf16.msra.mxu0 %v1013
        %1289 = vmatprep.subr.bf16.mxu0 0
        %1290 = vmatpush2.bf16.msra.mxu0 %v1012
        %1291 = vmatprep.subr.bf16.mxu0 0
        %1292 = vmatpush2.bf16.msra.mxu0 %v1011
        %1293 = vmatprep.subr.bf16.mxu0 0
        %1294 = vmatpush2.bf16.msra.mxu0 %v1010
        %1295 = vmatprep.subr.bf16.mxu0 0
        %1296 = vmatpush2.bf16.msra.mxu0 %v1009
        %1297 = vmatprep.subr.bf16.mxu0 0
        %1298 = vmatpush2.bf16.msra.mxu0 %v1008
        %1299 = vmatprep.subr.bf16.mxu0 0
        %1300 = vmatpush2.bf16.msra.mxu0 %v1007
        %1301 = vmatprep.subr.bf16.mxu0 0
        %1302 = vmatpush2.bf16.msra.mxu0 %v1006
        %1303 = vmatprep.mubr.bf16.mxu0 %v521
        %1304 = vmatmul.mubr.bf16.gmra.mxu0 %v520
        %v1305 = vpop.f32.mrf.mxu0
        %v1306 = vadd.f32 %v1257, %v1305
        %v1307 = vpop.f32.mrf.mxu0
        %v1308 = vpop.f32.mrf.mxu0
        %v1309 = vadd.f32 %v1260, %v1308
        %v1310 = vpop.f32.mrf.mxu0
        %1311 = vmatprep.mubr.bf16.mxu0 %v534
        %1312 = vmatmul.mubr.bf16.gmra.mxu0 %v533
        %v1313 = vpop.f32.mrf.mxu0
        %v1314 = vadd.f32 %v1265, %v1313
        %v1315 = vpop.f32.mrf.mxu0
        %v1316 = vpop.f32.mrf.mxu0
        %v1317 = vadd.f32 %v1268, %v1316
        %v1318 = vpop.f32.mrf.mxu0
        %1319 = vdwg.mxu0
        %1320 = vmatprep.subr.bf16.mxu0 0
        %1321 = vmatpush1.bf16.msra.mxu0 %v1021
        %1322 = vmatprep.subr.bf16.mxu0 0
        %1323 = vmatpush1.bf16.msra.mxu0 %v1020
        %1324 = vmatprep.subr.bf16.mxu0 0
        %1325 = vmatpush1.bf16.msra.mxu0 %v1019
        %1326 = vmatprep.subr.bf16.mxu0 0
        %1327 = vmatpush1.bf16.msra.mxu0 %v1018
        %1328 = vmatprep.subr.bf16.mxu0 0
        %1329 = vmatpush1.bf16.msra.mxu0 %v1017
        %1330 = vmatprep.subr.bf16.mxu0 0
        %1331 = vmatpush1.bf16.msra.mxu0 %v1016
        %1332 = vmatprep.subr.bf16.mxu0 0
        %1333 = vmatpush1.bf16.msra.mxu0 %v1015
        %1334 = vmatprep.subr.bf16.mxu0 0
        %1335 = vmatpush1.bf16.msra.mxu0 %v1014
        %1336 = vmatprep.subr.bf16.mxu0 0
        %1337 = vmatpush2.bf16.msra.mxu0 %v1029
        %1338 = vmatprep.subr.bf16.mxu0 0
        %1339 = vmatpush2.bf16.msra.mxu0 %v1028
        %1340 = vmatprep.subr.bf16.mxu0 0
        %1341 = vmatpush2.bf16.msra.mxu0 %v1027
        %1342 = vmatprep.subr.bf16.mxu0 0
        %1343 = vmatpush2.bf16.msra.mxu0 %v1026
        %1344 = vmatprep.subr.bf16.mxu0 0
        %1345 = vmatpush2.bf16.msra.mxu0 %v1025
        %1346 = vmatprep.subr.bf16.mxu0 0
        %1347 = vmatpush2.bf16.msra.mxu0 %v1024
        %1348 = vmatprep.subr.bf16.mxu0 0
        %1349 = vmatpush2.bf16.msra.mxu0 %v1023
        %1350 = vmatprep.subr.bf16.mxu0 0
        %1351 = vmatpush2.bf16.msra.mxu0 %v1022
        %1352 = vmatprep.mubr.bf16.mxu0 %v523
        %1353 = vmatmul.mubr.bf16.gmra.mxu0 %v522
        %v1354 = vpop.f32.mrf.mxu0
        %v1355 = vadd.f32 %v1306, %v1354
        %v1356 = vpop.f32.mrf.mxu0
        %v1357 = vpop.f32.mrf.mxu0
        %v1358 = vadd.f32 %v1309, %v1357
        %v1359 = vpop.f32.mrf.mxu0
        %1360 = vmatprep.mubr.bf16.mxu0 %v536
        %1361 = vmatmul.mubr.bf16.gmra.mxu0 %v535
        %v1362 = vpop.f32.mrf.mxu0
        %v1363 = vadd.f32 %v1314, %v1362
        %v1364 = vpop.f32.mrf.mxu0
        %v1365 = vpop.f32.mrf.mxu0
        %v1366 = vadd.f32 %v1317, %v1365
        %v1367 = vpop.f32.mrf.mxu0
        %1368 = vdwg.mxu0
        %1369 = vmatprep.subr.bf16.mxu0 0
        %1370 = vmatpush1.bf16.msra.mxu0 %v1037
        %1371 = vmatprep.subr.bf16.mxu0 0
        %1372 = vmatpush1.bf16.msra.mxu0 %v1036
        %1373 = vmatprep.subr.bf16.mxu0 0
        %1374 = vmatpush1.bf16.msra.mxu0 %v1035
        %1375 = vmatprep.subr.bf16.mxu0 0
        %1376 = vmatpush1.bf16.msra.mxu0 %v1034
        %1377 = vmatprep.subr.bf16.mxu0 0
        %1378 = vmatpush1.bf16.msra.mxu0 %v1033
        %1379 = vmatprep.subr.bf16.mxu0 0
        %1380 = vmatpush1.bf16.msra.mxu0 %v1032
        %1381 = vmatprep.subr.bf16.mxu0 0
        %1382 = vmatpush1.bf16.msra.mxu0 %v1031
        %1383 = vmatprep.subr.bf16.mxu0 0
        %1384 = vmatpush1.bf16.msra.mxu0 %v1030
        %1385 = vmatprep.subr.bf16.mxu0 0
        %1386 = vmatpush2.bf16.msra.mxu0 %v1045
        %1387 = vmatprep.subr.bf16.mxu0 0
        %1388 = vmatpush2.bf16.msra.mxu0 %v1044
        %1389 = vmatprep.subr.bf16.mxu0 0
        %1390 = vmatpush2.bf16.msra.mxu0 %v1043
        %1391 = vmatprep.subr.bf16.mxu0 0
        %1392 = vmatpush2.bf16.msra.mxu0 %v1042
        %1393 = vmatprep.subr.bf16.mxu0 0
        %1394 = vmatpush2.bf16.msra.mxu0 %v1041
        %1395 = vmatprep.subr.bf16.mxu0 0
        %1396 = vmatpush2.bf16.msra.mxu0 %v1040
        %1397 = vmatprep.subr.bf16.mxu0 0
        %1398 = vmatpush2.bf16.msra.mxu0 %v1039
        %1399 = vmatprep.subr.bf16.mxu0 0
        %1400 = vmatpush2.bf16.msra.mxu0 %v1038
        %1401 = vmatprep.mubr.bf16.mxu0 %v525
        %1402 = vmatmul.mubr.bf16.gmra.mxu0 %v524
        %v1403 = vpop.f32.mrf.mxu0
        %v1404 = vadd.f32 %v1355, %v1403
        %v1405 = vpop.f32.mrf.mxu0
        %v1406 = vpop.f32.mrf.mxu0
        %v1407 = vadd.f32 %v1358, %v1406
        %v1408 = vpop.f32.mrf.mxu0
        %1409 = vmatprep.mubr.bf16.mxu0 %v538
        %1410 = vmatmul.mubr.bf16.gmra.mxu0 %v537
        %v1411 = vpop.f32.mrf.mxu0
        %v1412 = vadd.f32 %v1363, %v1411
        %v1413 = vpop.f32.mrf.mxu0
        %v1414 = vpop.f32.mrf.mxu0
        %v1415 = vadd.f32 %v1366, %v1414
        %v1416 = vpop.f32.mrf.mxu0
        %1417 = vdwg.mxu0
        %1418 = vmatprep.subr.bf16.mxu0 0
        %1419 = vmatpush1.bf16.msra.mxu0 %v1053
        %1420 = vmatprep.subr.bf16.mxu0 0
        %1421 = vmatpush1.bf16.msra.mxu0 %v1052
        %1422 = vmatprep.subr.bf16.mxu0 0
        %1423 = vmatpush1.bf16.msra.mxu0 %v1051
        %1424 = vmatprep.subr.bf16.mxu0 0
        %1425 = vmatpush1.bf16.msra.mxu0 %v1050
        %1426 = vmatprep.subr.bf16.mxu0 0
        %1427 = vmatpush1.bf16.msra.mxu0 %v1049
        %1428 = vmatprep.subr.bf16.mxu0 0
        %1429 = vmatpush1.bf16.msra.mxu0 %v1048
        %1430 = vmatprep.subr.bf16.mxu0 0
        %1431 = vmatpush1.bf16.msra.mxu0 %v1047
        %1432 = vmatprep.subr.bf16.mxu0 0
        %1433 = vmatpush1.bf16.msra.mxu0 %v1046
        %1434 = vmatprep.subr.bf16.mxu0 0
        %1435 = vmatpush2.bf16.msra.mxu0 %v1061
        %1436 = vmatprep.subr.bf16.mxu0 0
        %1437 = vmatpush2.bf16.msra.mxu0 %v1060
        %1438 = vmatprep.subr.bf16.mxu0 0
        %1439 = vmatpush2.bf16.msra.mxu0 %v1059
        %1440 = vmatprep.subr.bf16.mxu0 0
        %1441 = vmatpush2.bf16.msra.mxu0 %v1058
        %1442 = vmatprep.subr.bf16.mxu0 0
        %1443 = vmatpush2.bf16.msra.mxu0 %v1057
        %1444 = vmatprep.subr.bf16.mxu0 0
        %1445 = vmatpush2.bf16.msra.mxu0 %v1056
        %1446 = vmatprep.subr.bf16.mxu0 0
        %1447 = vmatpush2.bf16.msra.mxu0 %v1055
        %1448 = vmatprep.subr.bf16.mxu0 0
        %1449 = vmatpush2.bf16.msra.mxu0 %v1054
        %1450 = vmatprep.mubr.bf16.mxu0 %v527
        %1451 = vmatmul.mubr.bf16.gmra.mxu0 %v526
        %v1452 = vpop.f32.mrf.mxu0
        %v1453 = vadd.f32 %v1404, %v1452
        %v1454 = vpop.f32.mrf.mxu0
        %v1455 = vpop.f32.mrf.mxu0
        %v1456 = vadd.f32 %v1407, %v1455
        %v1457 = vpop.f32.mrf.mxu0
        %1458 = vmatprep.mubr.bf16.mxu0 %v540
        %1459 = vmatmul.mubr.bf16.gmra.mxu0 %v539
        %v1460 = vpop.f32.mrf.mxu0
        %v1461 = vadd.f32 %v1412, %v1460
        %v1462 = vpop.f32.mrf.mxu0
        %v1463 = vpop.f32.mrf.mxu0
        %v1464 = vadd.f32 %v1415, %v1463
        %v1465 = vpop.f32.mrf.mxu0
        %1466 = vdwg.mxu0
        %1467 = vmatprep.subr.bf16.mxu0 0
        %1468 = vmatpush1.bf16.msra.mxu0 0
        %1469 = vmatprep.subr.bf16.mxu0 0
        %1470 = vmatpush1.bf16.msra.mxu0 0
        %1471 = vmatprep.subr.bf16.mxu0 0
        %1472 = vmatpush1.bf16.msra.mxu0 0
        %1473 = vmatprep.subr.bf16.mxu0 0
        %1474 = vmatpush1.bf16.msra.mxu0 0
        %1475 = vmatprep.subr.bf16.mxu0 0
        %1476 = vmatpush1.bf16.msra.mxu0 %v1065
        %1477 = vmatprep.subr.bf16.mxu0 0
        %1478 = vmatpush1.bf16.msra.mxu0 %v1064
        %1479 = vmatprep.subr.bf16.mxu0 0
        %1480 = vmatpush1.bf16.msra.mxu0 %v1063
        %1481 = vmatprep.subr.bf16.mxu0 0
        %1482 = vmatpush1.bf16.msra.mxu0 %v1062
        %1483 = vmatprep.subr.bf16.mxu0 0
        %1484 = vmatpush2.bf16.msra.mxu0 0
        %1485 = vmatprep.subr.bf16.mxu0 0
        %1486 = vmatpush2.bf16.msra.mxu0 0
        %1487 = vmatprep.subr.bf16.mxu0 0
        %1488 = vmatpush2.bf16.msra.mxu0 0
        %1489 = vmatprep.subr.bf16.mxu0 0
        %1490 = vmatpush2.bf16.msra.mxu0 0
        %1491 = vmatprep.subr.bf16.mxu0 0
        %1492 = vmatpush2.bf16.msra.mxu0 0
        %1493 = vmatprep.subr.bf16.mxu0 0
        %1494 = vmatpush2.bf16.msra.mxu0 0
        %1495 = vmatprep.subr.bf16.mxu0 0
        %1496 = vmatpush2.bf16.msra.mxu0 0
        %1497 = vmatprep.subr.bf16.mxu0 0
        %1498 = vmatpush2.bf16.msra.mxu0 0
        %1499 = vmatprep.mubr.bf16.mxu0 0
        %1500 = vmatmul.mubr.bf16.gmra.mxu0 %v1168
        %v1501 = vpop.f32.mrf.mxu0
        %v1502 = vadd.f32 %v1453, %v1501
        %v1503 = vpop.f32.mrf.mxu0
        %v1504 = vpop.f32.mrf.mxu0
        %v1505 = vadd.f32 %v1456, %v1504
        %v1506 = vpop.f32.mrf.mxu0
        %1507 = vmatprep.mubr.bf16.mxu0 0
        %1508 = vmatmul.mubr.bf16.gmra.mxu0 %v1171
        %v1509 = vpop.f32.mrf.mxu0
        %v1510 = vadd.f32 %v1461, %v1509
        %v1511 = vpop.f32.mrf.mxu0
        %v1512 = vpop.f32.mrf.mxu0
        %v1513 = vadd.f32 %v1464, %v1512
        %v1514 = vpop.f32.mrf.mxu0
        %1515 = vdwg.mxu0
        %v1516 = vmax.f32 %v1502, 0.0
        %v1517 = vmax.f32 %v1505, 0.0
        %v1518 = vmax.f32 %v1510, 0.0
        %v1519 = vmax.f32 %v1513, 0.0
        %v1520 = vpack.c.bf16 %v1517, %v1516
        %v1521 = vpack.c.bf16 %v1519, %v1518
        %v1524 = vunpack.c.l.b16 %v1520
        %v1525 = vunpack.c.h.b16 %v1520
        %v1526 = vunpack.c.l.b16 %v1521
        %v1527 = vunpack.c.h.b16 %v1521
        %v1528 = vpack.c.b16 %v1524, %v1524
        %v1529 = vpack.c.b16 %v1525, %v1525
        %v1530 = vpack.c.b16 %v1526, %v1526
        %v1531 = vpack.c.b16 %v1527, %v1527
        %1536 = vst [vmem:[%s177] sm:$0xf] %v1528
        %1537 = vst [vmem:[%s177 + $0x4] sm:$0xf] %v1529
        %1538 = vst [vmem:[%s177 + $0x8] sm:$0xf] %v1530
        %1539 = vst [vmem:[%s177 + $0xc] sm:$0xf] %v1531
        %s1540 = sand.u32 %s90, 1
        %s1541 = sand.u32 %s90, 1
        %s1542 = smul.addr %s1541, 16
        %s1543 = scalar_lea.vmem [#allocation2], %s1542
        // Predicated region
        $region33: #{dqn_forward.6} parent=31 // pred_check
          %p1544 = pneg %p100
        $region34: #{dqn_forward.6} parent=31 // pred_check_branch
          %1546 = sbr.rel (%p1544) target = $region36
        $region35: #{dqn_forward.6} parent=31 // pred_region
          %s1547 = smul.u32 4, %s14
          %s1548 = ssub.s32 7, %s1547
          %p1549 = scmp.lt.s32.totalorder %s1548, 4
          %s1550 = scalar_select %p1549, %s1548, 4
          %s1551 = smul.u32 64, %s1550
          %p1552 = scmp.ne.s32.totalorder 0, %s1551
          %s1553 = smul.addr %s1547, 4
          %s1554 = scalar_lea.vmem %s3, %s1553
          // Predicated region
          $region37: #{dqn_forward.6} parent=35 // pred_check
            %p1555 = pneg %p1552
          $region38: #{dqn_forward.6} parent=35 // pred_check_branch
            %1557 = sbr.rel (%p1555) target = $region40
          $region39: #{dqn_forward.6} parent=35 // pred_region
            // Predicated region
            $region41: #{dqn_forward.6} parent=39 // pred_check
              _
            $region42: #{dqn_forward.6} parent=39 // pred_check_branch
              %1559 = sbr.rel target = $region44
            $region43: #{dqn_forward.6} parent=39 // pred_region
              // Predicated region
              $region63: #{dqn_forward.6} parent=43 // pred_check
                _
              $region64: #{dqn_forward.6} parent=43 // pred_check_branch
                %1615 = sbr.rel (0) target = $region66
              $region65: #{dqn_forward.6} parent=43 // pred_region
                %s1617 = ssub.s32 16, 1
                %s1618 = sshrl.u32 %s1550, 2
                // While loop
                $region67: #{dqn_forward.6} parent=65 // loop_pre_header
                  _
                $region68: #{dqn_forward.6} parent=65 // loop_header
                  %s1620 = sphi 0, %s1622
                  %p1621 = scmp.ge.s32.totalorder %s1620, %s1618
                  %s1625 = sphi 0, %s1638
                  %s1626 = sphi %s1543, %s1641
                  %s1627 = sphi %s1554, %s1642
                $region69: #{dqn_forward.6} parent=65 // loop_header_branch
                  %1624 = sbr.rel (%p1621) target = $region73
                $region70: #{dqn_forward.6} parent=65 // loop_body
                  %v1628 = vld [vmem:[%s1626] sm:%s1617]
                  %1629 = vst [vmem:[%s1627] sm:%s1617] %v1628
                  %v1630 = vld [vmem:[%s1626 + $0x4] sm:%s1617]
                  %1631 = vst [vmem:[%s1627 + $0x4] sm:%s1617] %v1630
                  %v1632 = vld [vmem:[%s1626 + $0x8] sm:%s1617]
                  %1633 = vst [vmem:[%s1627 + $0x8] sm:%s1617] %v1632
                  %v1634 = vld [vmem:[%s1626 + $0xc] sm:%s1617]
                  %1635 = vst [vmem:[%s1627 + $0xc] sm:%s1617] %v1634
                  %s1636 = sadd.s32 1, %s1625
                  %p1637 = scmp.ge.s32.totalorder %s1636, %s1618
                  %s1638 = scalar_select %p1637, 0, %s1636
                  %s1639 = smul.u32 %s1638, 16
                  %s1640 = smul.u32 %s1638, 16
                  %s1641 = scalar_lea.vmem %s1543, %s1639 [#allocation2]
                  %s1642 = scalar_lea.vmem %s1554, %s1640
                $region71: #{dqn_forward.6} parent=65 // loop_footer
                  %s1622 = sadd.s32 %s1620, 1
                $region72: #{dqn_forward.6} parent=65 // loop_footer_branch
                  %1619 = sbr.rel target = $region68
                $region73: #{dqn_forward.6} parent=65 // loop_exit
                  _
                %s1643 = sshrl.u32 %s1550, 2
                %s1644 = sand.u32 %s1550, 3
                %s1645 = smul.u32 %s1643, 4
                %s1646 = smul.u32 4, %s1645
                %s1647 = scalar_lea.vmem %s1543, %s1646 [#allocation2]
                %s1648 = smul.u32 4, %s1645
                %s1649 = scalar_lea.vmem %s1554, %s1648
                // While loop
                $region74: #{dqn_forward.6} parent=65 // loop_pre_header
                  _
                $region75: #{dqn_forward.6} parent=65 // loop_header
                  %s1651 = sphi 0, %s1653
                  %p1652 = scmp.ge.s32.totalorder %s1651, %s1644
                  %s1656 = sphi 0, %s1663
                  %s1657 = sphi %s1647, %s1666
                  %s1658 = sphi %s1649, %s1667
                $region76: #{dqn_forward.6} parent=65 // loop_header_branch
                  %1655 = sbr.rel (%p1652) target = $region80
                $region77: #{dqn_forward.6} parent=65 // loop_body
                  %v1659 = vld [vmem:[%s1657] sm:%s1617]
                  %1660 = vst [vmem:[%s1658] sm:%s1617] %v1659
                  %s1661 = sadd.s32 1, %s1656
                  %p1662 = scmp.ge.s32.totalorder %s1661, %s1644
                  %s1663 = scalar_select %p1662, 0, %s1661
                  %s1664 = smul.u32 %s1663, 4
                  %s1665 = smul.u32 %s1663, 4
                  %s1666 = scalar_lea.vmem %s1647, %s1664 [#allocation2]
                  %s1667 = scalar_lea.vmem %s1649, %s1665
                $region78: #{dqn_forward.6} parent=65 // loop_footer
                  %s1653 = sadd.s32 %s1651, 1
                $region79: #{dqn_forward.6} parent=65 // loop_footer_branch
                  %1650 = sbr.rel target = $region75
                $region80: #{dqn_forward.6} parent=65 // loop_exit
                  _
              $region66: #{dqn_forward.6} parent=43 // pred_fallthru
                _
            $region44: #{dqn_forward.6} parent=39 // pred_fallthru
              _
            // Predicated region
            $region45: #{dqn_forward.6} parent=39 // pred_check
              _
            $region46: #{dqn_forward.6} parent=39 // pred_check_branch
              %1561 = sbr.rel (0) target = $region48
            $region47: #{dqn_forward.6} parent=39 // pred_region
              %s1563 = ssub.s32 16, 1
              %s1564 = sshrl.u32 %s1550, 2
              // While loop
              $region49: #{dqn_forward.6} parent=47 // loop_pre_header
                _
              $region50: #{dqn_forward.6} parent=47 // loop_header
                %s1566 = sphi 0, %s1568
                %p1567 = scmp.ge.s32.totalorder %s1566, %s1564
                %s1571 = sphi 0, %s1584
                %s1572 = sphi %s1543, %s1587
                %s1573 = sphi %s1554, %s1588
              $region51: #{dqn_forward.6} parent=47 // loop_header_branch
                %1570 = sbr.rel (%p1567) target = $region55
              $region52: #{dqn_forward.6} parent=47 // loop_body
                %v1574 = vld [vmem:[%s1572] sm:%s1563]
                %1575 = vst [vmem:[%s1573] sm:%s1563] %v1574
                %v1576 = vld [vmem:[%s1572 + $0x4] sm:%s1563]
                %1577 = vst [vmem:[%s1573 + $0x4] sm:%s1563] %v1576
                %v1578 = vld [vmem:[%s1572 + $0x8] sm:%s1563]
                %1579 = vst [vmem:[%s1573 + $0x8] sm:%s1563] %v1578
                %v1580 = vld [vmem:[%s1572 + $0xc] sm:%s1563]
                %1581 = vst [vmem:[%s1573 + $0xc] sm:%s1563] %v1580
                %s1582 = sadd.s32 1, %s1571
                %p1583 = scmp.ge.s32.totalorder %s1582, %s1564
                %s1584 = scalar_select %p1583, 0, %s1582
                %s1585 = smul.u32 %s1584, 16
                %s1586 = smul.u32 %s1584, 16
                %s1587 = scalar_lea.vmem %s1543, %s1585 [#allocation2]
                %s1588 = scalar_lea.vmem %s1554, %s1586
              $region53: #{dqn_forward.6} parent=47 // loop_footer
                %s1568 = sadd.s32 %s1566, 1
              $region54: #{dqn_forward.6} parent=47 // loop_footer_branch
                %1565 = sbr.rel target = $region50
              $region55: #{dqn_forward.6} parent=47 // loop_exit
                _
              %s1589 = sshrl.u32 %s1550, 2
              %s1590 = sand.u32 %s1550, 3
              %s1591 = smul.u32 %s1589, 4
              %s1592 = smul.u32 4, %s1591
              %s1593 = scalar_lea.vmem %s1543, %s1592 [#allocation2]
              %s1594 = smul.u32 4, %s1591
              %s1595 = scalar_lea.vmem %s1554, %s1594
              // While loop
              $region56: #{dqn_forward.6} parent=47 // loop_pre_header
                _
              $region57: #{dqn_forward.6} parent=47 // loop_header
                %s1597 = sphi 0, %s1599
                %p1598 = scmp.ge.s32.totalorder %s1597, %s1590
                %s1602 = sphi 0, %s1609
                %s1603 = sphi %s1593, %s1612
                %s1604 = sphi %s1595, %s1613
              $region58: #{dqn_forward.6} parent=47 // loop_header_branch
                %1601 = sbr.rel (%p1598) target = $region62
              $region59: #{dqn_forward.6} parent=47 // loop_body
                %v1605 = vld [vmem:[%s1603] sm:%s1563]
                %1606 = vst [vmem:[%s1604] sm:%s1563] %v1605
                %s1607 = sadd.s32 1, %s1602
                %p1608 = scmp.ge.s32.totalorder %s1607, %s1590
                %s1609 = scalar_select %p1608, 0, %s1607
                %s1610 = smul.u32 %s1609, 4
                %s1611 = smul.u32 %s1609, 4
                %s1612 = scalar_lea.vmem %s1593, %s1610 [#allocation2]
                %s1613 = scalar_lea.vmem %s1595, %s1611
              $region60: #{dqn_forward.6} parent=47 // loop_footer
                %s1599 = sadd.s32 %s1597, 1
              $region61: #{dqn_forward.6} parent=47 // loop_footer_branch
                %1596 = sbr.rel target = $region57
              $region62: #{dqn_forward.6} parent=47 // loop_exit
                _
            $region48: #{dqn_forward.6} parent=39 // pred_fallthru
              _
          $region40: #{dqn_forward.6} parent=35 // pred_fallthru
            _
          %1668 = vnop
        $region36: #{dqn_forward.6} parent=31 // pred_fallthru
          _
      $region32: #{dqn_forward.6} parent=5 // pred_fallthru
        _
      %p1669 = scmp.le.s32.totalorder 2, %s9
      // Predicated region
      $region81: #{dqn_forward.6} parent=5 // pred_check
        %p1670 = pneg %p1669
      $region82: #{dqn_forward.6} parent=5 // pred_check_branch
        %1672 = sbr.rel (%p1670) target = $region84
      $region83: #{dqn_forward.6} parent=5 // pred_region
        %s1673 = ssub.s32 %s9, 2
        // Predicated region
        $region85: #{dqn_forward.6} parent=83 // pred_check
          %p1674 = pneg %p106
        $region86: #{dqn_forward.6} parent=83 // pred_check_branch
          %1676 = sbr.rel (%p1674) target = $region88
        $region87: #{dqn_forward.6} parent=83 // pred_region
          %s1677 = sand.u32 %s91, 1
          %s1678 = sand.u32 %s91, 1
          %s1679 = smul.addr %s1678, 16
          %s1680 = scalar_lea.vmem [#allocation2], %s1679
        $region88: #{dqn_forward.6} parent=83 // pred_fallthru
          _
      $region84: #{dqn_forward.6} parent=5 // pred_fallthru
        _
    $region6: #{dqn_forward.6} parent=1 // loop_footer
      %s13 = sadd.s32 1, %s9
    $region7: #{dqn_forward.6} parent=1 // loop_footer_branch
      %8 = sbr.rel target = $region3
    $region8: #{dqn_forward.6} parent=1 // loop_exit
      _

// kernel: dqn_forward.7
$region0: #{dqn_forward.7}
  #allocation0 [shape = 'u32[]', space=smem, size = 0x4, offset = 0x4, fixed_abs, tag = 'smem constant byte address 0x4 - core index']
  #allocation1 [shape = 'u32[144,128]{1,0:T(1,128)}', space=vmem, size = 0x12000, scoped, tag = 'internal scratch']
  %s0 = inlined_call_operand.vmem [shape: bf16[2,3200], index: 0, kind: input, shape index: {}]
  %s1 = inlined_call_operand.vmem [shape: bf16[3200,384], index: 1, kind: input, shape index: {}]
  %s2 = inlined_call_operand.vmem [shape: f32[1,384], index: 2, kind: input, shape index: {}]
  %s3 = inlined_call_operand.vmem [shape: bf16[384,128], index: 3, kind: input, shape index: {}]
  %s4 = inlined_call_operand.vmem [shape: f32[1,128], index: 4, kind: input, shape index: {}]
  %s5 = inlined_call_operand.hbm [shape: f32[2,128], index: 5, kind: output, shape index: {}]
  %s6 = sld [smem:[#allocation0]]
  $region30: #{dqn_forward.7} parent=0
    _
  %s8 = ssub.s32 1, %s6
  %s9 = scalar_select 0, %s8, %s6
  $region1: #{dqn_forward.7} parent=0
    #allocation2 [shape = 'u8[1024]{0}', space=vmem, size = 0x400, scoped, tag = 'output window, operand 0, single buffered']
    #allocation3 [shape = 's32[1]{0}', space=sflag, size = 0x4, scoped, tag = 'scoped memory for dqn_forward.7']
    %10 = vsyncpa [#allocation3], 0
    // Predicated region
    $region2: #{dqn_forward.7} parent=1 // pred_check
      _
    $region3: #{dqn_forward.7} parent=1 // pred_check_branch
      %12 = sbr.rel (0) target = $region5
    $region4: #{dqn_forward.7} parent=1 // pred_region
      _
    $region5: #{dqn_forward.7} parent=1 // pred_fallthru
      _
    // Predicated region
    $region6: #{dqn_forward.7} parent=1 // pred_check
      _
    $region7: #{dqn_forward.7} parent=1 // pred_check_branch
      %14 = sbr.rel (0) target = $region9
    $region8: #{dqn_forward.7} parent=1 // pred_region
      _
    $region9: #{dqn_forward.7} parent=1 // pred_fallthru
      _
    // Predicated region
    $region10: #{dqn_forward.7} parent=1 // pred_check
      _
    $region11: #{dqn_forward.7} parent=1 // pred_check_branch
      %16 = sbr.rel (0) target = $region13
    $region12: #{dqn_forward.7} parent=1 // pred_region
      _
    $region13: #{dqn_forward.7} parent=1 // pred_fallthru
      _
    // Predicated region
    $region14: #{dqn_forward.7} parent=1 // pred_check
      _
    $region15: #{dqn_forward.7} parent=1 // pred_check_branch
      %18 = sbr.rel (0) target = $region17
    $region16: #{dqn_forward.7} parent=1 // pred_region
      _
    $region17: #{dqn_forward.7} parent=1 // pred_fallthru
      _
    // Predicated region
    $region18: #{dqn_forward.7} parent=1 // pred_check
      _
    $region19: #{dqn_forward.7} parent=1 // pred_check_branch
      %20 = sbr.rel (0) target = $region21
    $region20: #{dqn_forward.7} parent=1 // pred_region
      _
    $region21: #{dqn_forward.7} parent=1 // pred_fallthru
      _
    %v22 = vld [vmem:[%s0] sm:$0xff]
    %v23 = vld [vmem:[%s0 + $0x8] sm:$0xff]
    %v24 = vld [vmem:[%s0 + $0x10] sm:$0xff]
    %v25 = vld [vmem:[%s0 + $0x18] sm:$0x1]
    %v26 = vld [vmem:[%s1] sm:$0xff]
    %v27 = vld [vmem:[%s1 + $0x8] sm:$0xf]
    %v28 = vld [vmem:[%s1 + $0xc] sm:$0xff]
    %v29 = vld [vmem:[%s1 + $0x14] sm:$0xf]
    %v30 = vld [vmem:[%s1 + $0x18] sm:$0xff]
    %v31 = vld [vmem:[%s1 + $0x20] sm:$0xf]
    %v32 = vld [vmem:[%s1 + $0x24] sm:$0xff]
    %v33 = vld [vmem:[%s1 + $0x2c] sm:$0xf]
    %v34 = vld [vmem:[%s1 + $0x30] sm:$0xff]
    %v35 = vld [vmem:[%s1 + $0x38] sm:$0xf]
    %v36 = vld [vmem:[%s1 + $0x3c] sm:$0xff]
    %v37 = vld [vmem:[%s1 + $0x44] sm:$0xf]
    %v38 = vld [vmem:[%s1 + $0x48] sm:$0xff]
    %v39 = vld [vmem:[%s1 + $0x50] sm:$0xf]
    %v40 = vld [vmem:[%s1 + $0x54] sm:$0xff]
    %v41 = vld [vmem:[%s1 + $0x5c] sm:$0xf]
    %v42 = vld [vmem:[%s1 + $0x60] sm:$0xff]
    %v43 = vld [vmem:[%s1 + $0x68] sm:$0xf]
    %v44 = vld [vmem:[%s1 + $0x6c] sm:$0xff]
    %v45 = vld [vmem:[%s1 + $0x74] sm:$0xf]
    %v46 = vld [vmem:[%s1 + $0x78] sm:$0xff]
    %v47 = vld [vmem:[%s1 + $0x80] sm:$0xf]
    %v48 = vld [vmem:[%s1 + $0x84] sm:$0xff]
    %v49 = vld [vmem:[%s1 + $0x8c] sm:$0xf]
    %v50 = vld [vmem:[%s1 + $0x90] sm:$0xff]
    %v51 = vld [vmem:[%s1 + $0x98] sm:$0xf]
    %v52 = vld [vmem:[%s1 + $0x9c] sm:$0xff]
    %v53 = vld [vmem:[%s1 + $0xa4] sm:$0xf]
    %v54 = vld [vmem:[%s1 + $0xa8] sm:$0xff]
    %v55 = vld [vmem:[%s1 + $0xb0] sm:$0xf]
    %v56 = vld [vmem:[%s1 + $0xb4] sm:$0xff]
    %v57 = vld [vmem:[%s1 + $0xbc] sm:$0xf]
    %v58 = vld [vmem:[%s1 + $0xc0] sm:$0xff]
    %v59 = vld [vmem:[%s1 + $0xc8] sm:$0xf]
    %v60 = vld [vmem:[%s1 + $0xcc] sm:$0xff]
    %v61 = vld [vmem:[%s1 + $0xd4] sm:$0xf]
    %v62 = vld [vmem:[%s1 + $0xd8] sm:$0xff]
    %v63 = vld [vmem:[%s1 + $0xe0] sm:$0xf]
    %v64 = vld [vmem:[%s1 + $0xe4] sm:$0xff]
    %v65 = vld [vmem:[%s1 + $0xec] sm:$0xf]
    %v66 = vld [vmem:[%s1 + $0xf0] sm:$0xff]
    %v67 = vld [vmem:[%s1 + $0xf8] sm:$0xf]
    %v68 = vld [vmem:[%s1 + $0xfc] sm:$0xff]
    %v69 = vld [vmem:[%s1 + $0x104] sm:$0xf]
    %v70 = vld [vmem:[%s1 + $0x108] sm:$0xff]
    %v71 = vld [vmem:[%s1 + $0x110] sm:$0xf]
    %v72 = vld [vmem:[%s1 + $0x114] sm:$0xff]
    %v73 = vld [vmem:[%s1 + $0x11c] sm:$0xf]
    %v74 = vld [vmem:[%s1 + $0x120] sm:$0xff]
    %v75 = vld [vmem:[%s1 + $0x128] sm:$0xf]
    %v76 = vld [vmem:[%s1 + $0x12c] sm:$0xff]
    %v77 = vld [vmem:[%s1 + $0x134] sm:$0xf]
    %v78 = vld [vmem:[%s1 + $0x138] sm:$0xff]
    %v79 = vld [vmem:[%s1 + $0x140] sm:$0xf]
    %v80 = vld [vmem:[%s1 + $0x144] sm:$0xff]
    %v81 = vld [vmem:[%s1 + $0x14c] sm:$0xf]
    %v82 = vld [vmem:[%s1 + $0x150] sm:$0xff]
    %v83 = vld [vmem:[%s1 + $0x158] sm:$0xf]
    %v84 = vld [vmem:[%s1 + $0x15c] sm:$0xff]
    %v85 = vld [vmem:[%s1 + $0x164] sm:$0xf]
    %v86 = vld [vmem:[%s1 + $0x168] sm:$0xff]
    %v87 = vld [vmem:[%s1 + $0x170] sm:$0xf]
    %v88 = vld [vmem:[%s1 + $0x174] sm:$0xff]
    %v89 = vld [vmem:[%s1 + $0x17c] sm:$0xf]
    %v90 = vld [vmem:[%s1 + $0x180] sm:$0xff]
    %v91 = vld [vmem:[%s1 + $0x188] sm:$0xf]
    %v92 = vld [vmem:[%s1 + $0x18c] sm:$0xff]
    %v93 = vld [vmem:[%s1 + $0x194] sm:$0xf]
    %v94 = vld [vmem:[%s1 + $0x198] sm:$0xff]
    %v95 = vld [vmem:[%s1 + $0x1a0] sm:$0xf]
    %v96 = vld [vmem:[%s1 + $0x1a4] sm:$0xff]
    %v97 = vld [vmem:[%s1 + $0x1ac] sm:$0xf]
    %v98 = vld [vmem:[%s1 + $0x1b0] sm:$0xff]
    %v99 = vld [vmem:[%s1 + $0x1b8] sm:$0xf]
    %v100 = vld [vmem:[%s1 + $0x1bc] sm:$0xff]
    %v101 = vld [vmem:[%s1 + $0x1c4] sm:$0xf]
    %v102 = vld [vmem:[%s1 + $0x1c8] sm:$0xff]
    %v103 = vld [vmem:[%s1 + $0x1d0] sm:$0xf]
    %v104 = vld [vmem:[%s1 + $0x1d4] sm:$0xff]
    %v105 = vld [vmem:[%s1 + $0x1dc] sm:$0xf]
    %v106 = vld [vmem:[%s1 + $0x1e0] sm:$0xff]
    %v107 = vld [vmem:[%s1 + $0x1e8] sm:$0xf]
    %v108 = vld [vmem:[%s1 + $0x1ec] sm:$0xff]
    %v109 = vld [vmem:[%s1 + $0x1f4] sm:$0xf]
    %v110 = vld [vmem:[%s1 + $0x1f8] sm:$0xff]
    %v111 = vld [vmem:[%s1 + $0x200] sm:$0xf]
    %v112 = vld [vmem:[%s1 + $0x204] sm:$0xff]
    %v113 = vld [vmem:[%s1 + $0x20c] sm:$0xf]
    %v114 = vld [vmem:[%s1 + $0x210] sm:$0xff]
    %v115 = vld [vmem:[%s1 + $0x218] sm:$0xf]
    %v116 = vld [vmem:[%s1 + $0x21c] sm:$0xff]
    %v117 = vld [vmem:[%s1 + $0x224] sm:$0xf]
    %v118 = vld [vmem:[%s1 + $0x228] sm:$0xff]
    %v119 = vld [vmem:[%s1 + $0x230] sm:$0xf]
    %v120 = vld [vmem:[%s1 + $0x234] sm:$0xff]
    %v121 = vld [vmem:[%s1 + $0x23c] sm:$0xf]
    %v122 = vld [vmem:[%s1 + $0x240] sm:$0xff]
    %v123 = vld [vmem:[%s1 + $0x248] sm:$0xf]
    %v124 = vld [vmem:[%s1 + $0x24c] sm:$0xff]
    %v125 = vld [vmem:[%s1 + $0x254] sm:$0xf]
    %v126 = vld [vmem:[%s1 + $0x258] sm:$0xff]
    %v127 = vld [vmem:[%s1 + $0x260] sm:$0xf]
    %v128 = vld [vmem:[%s1 + $0x264] sm:$0xff]
    %v129 = vld [vmem:[%s1 + $0x26c] sm:$0xf]
    %v130 = vld [vmem:[%s1 + $0x270] sm:$0xff]
    %v131 = vld [vmem:[%s1 + $0x278] sm:$0xf]
    %v132 = vld [vmem:[%s1 + $0x27c] sm:$0xff]
    %v133 = vld [vmem:[%s1 + $0x284] sm:$0xf]
    %v134 = vld [vmem:[%s1 + $0x288] sm:$0xff]
    %v135 = vld [vmem:[%s1 + $0x290] sm:$0xf]
    %v136 = vld [vmem:[%s1 + $0x294] sm:$0xff]
    %v137 = vld [vmem:[%s1 + $0x29c] sm:$0xf]
    %v138 = vld [vmem:[%s1 + $0x2a0] sm:$0xff]
    %v139 = vld [vmem:[%s1 + $0x2a8] sm:$0xf]
    %v140 = vld [vmem:[%s1 + $0x2ac] sm:$0xff]
    %v141 = vld [vmem:[%s1 + $0x2b4] sm:$0xf]
    %v142 = vld [vmem:[%s1 + $0x2b8] sm:$0xff]
    %v143 = vld [vmem:[%s1 + $0x2c0] sm:$0xf]
    %v144 = vld [vmem:[%s1 + $0x2c4] sm:$0xff]
    %v145 = vld [vmem:[%s1 + $0x2cc] sm:$0xf]
    %v146 = vld [vmem:[%s1 + $0x2d0] sm:$0xff]
    %v147 = vld [vmem:[%s1 + $0x2d8] sm:$0xf]
    %v148 = vld [vmem:[%s1 + $0x2dc] sm:$0xff]
    %v149 = vld [vmem:[%s1 + $0x2e4] sm:$0xf]
    %v150 = vld [vmem:[%s1 + $0x2e8] sm:$0xff]
    %v151 = vld [vmem:[%s1 + $0x2f0] sm:$0xf]
    %v152 = vld [vmem:[%s1 + $0x2f4] sm:$0xff]
    %v153 = vld [vmem:[%s1 + $0x2fc] sm:$0xf]
    %v154 = vld [vmem:[%s1 + $0x300] sm:$0xff]
    %v155 = vld [vmem:[%s1 + $0x308] sm:$0xf]
    %v156 = vld [vmem:[%s1 + $0x30c] sm:$0xff]
    %v157 = vld [vmem:[%s1 + $0x314] sm:$0xf]
    %v158 = vld [vmem:[%s1 + $0x318] sm:$0xff]
    %v159 = vld [vmem:[%s1 + $0x320] sm:$0xf]
    %v160 = vld [vmem:[%s1 + $0x324] sm:$0xff]
    %v161 = vld [vmem:[%s1 + $0x32c] sm:$0xf]
    %v162 = vld [vmem:[%s1 + $0x330] sm:$0xff]
    %v163 = vld [vmem:[%s1 + $0x338] sm:$0xf]
    %v164 = vld [vmem:[%s1 + $0x33c] sm:$0xff]
    %v165 = vld [vmem:[%s1 + $0x344] sm:$0xf]
    %v166 = vld [vmem:[%s1 + $0x348] sm:$0xff]
    %v167 = vld [vmem:[%s1 + $0x350] sm:$0xf]
    %v168 = vld [vmem:[%s1 + $0x354] sm:$0xff]
    %v169 = vld [vmem:[%s1 + $0x35c] sm:$0xf]
    %v170 = vld [vmem:[%s1 + $0x360] sm:$0xff]
    %v171 = vld [vmem:[%s1 + $0x368] sm:$0xf]
    %v172 = vld [vmem:[%s1 + $0x36c] sm:$0xff]
    %v173 = vld [vmem:[%s1 + $0x374] sm:$0xf]
    %v174 = vld [vmem:[%s1 + $0x378] sm:$0xff]
    %v175 = vld [vmem:[%s1 + $0x380] sm:$0xf]
    %v176 = vld [vmem:[%s1 + $0x384] sm:$0xff]
    %v177 = vld [vmem:[%s1 + $0x38c] sm:$0xf]
    %v178 = vld [vmem:[%s1 + $0x390] sm:$0xff]
    %v179 = vld [vmem:[%s1 + $0x398] sm:$0xf]
    %v180 = vld [vmem:[%s1 + $0x39c] sm:$0xff]
    %v181 = vld [vmem:[%s1 + $0x3a4] sm:$0xf]
    %v182 = vld [vmem:[%s1 + $0x3a8] sm:$0xff]
    %v183 = vld [vmem:[%s1 + $0x3b0] sm:$0xf]
    %v184 = vld [vmem:[%s1 + $0x3b4] sm:$0xff]
    %v185 = vld [vmem:[%s1 + $0x3bc] sm:$0xf]
    %v186 = vld [vmem:[%s1 + $0x3c0] sm:$0xff]
    %v187 = vld [vmem:[%s1 + $0x3c8] sm:$0xf]
    %v188 = vld [vmem:[%s1 + $0x3cc] sm:$0xff]
    %v189 = vld [vmem:[%s1 + $0x3d4] sm:$0xf]
    %v190 = vld [vmem:[%s1 + $0x3d8] sm:$0xff]
    %v191 = vld [vmem:[%s1 + $0x3e0] sm:$0xf]
    %v192 = vld [vmem:[%s1 + $0x3e4] sm:$0xff]
    %v193 = vld [vmem:[%s1 + $0x3ec] sm:$0xf]
    %v194 = vld [vmem:[%s1 + $0x3f0] sm:$0xff]
    %v195 = vld [vmem:[%s1 + $0x3f8] sm:$0xf]
    %v196 = vld [vmem:[%s1 + $0x3fc] sm:$0xff]
    %v197 = vld [vmem:[%s1 + $0x404] sm:$0xf]
    %v198 = vld [vmem:[%s1 + $0x408] sm:$0xff]
    %v199 = vld [vmem:[%s1 + $0x410] sm:$0xf]
    %v200 = vld [vmem:[%s1 + $0x414] sm:$0xff]
    %v201 = vld [vmem:[%s1 + $0x41c] sm:$0xf]
    %v202 = vld [vmem:[%s1 + $0x420] sm:$0xff]
    %v203 = vld [vmem:[%s1 + $0x428] sm:$0xf]
    %v204 = vld [vmem:[%s1 + $0x42c] sm:$0xff]
    %v205 = vld [vmem:[%s1 + $0x434] sm:$0xf]
    %v206 = vld [vmem:[%s1 + $0x438] sm:$0xff]
    %v207 = vld [vmem:[%s1 + $0x440] sm:$0xf]
    %v208 = vld [vmem:[%s1 + $0x444] sm:$0xff]
    %v209 = vld [vmem:[%s1 + $0x44c] sm:$0xf]
    %v210 = vld [vmem:[%s1 + $0x450] sm:$0xff]
    %v211 = vld [vmem:[%s1 + $0x458] sm:$0xf]
    %v212 = vld [vmem:[%s1 + $0x45c] sm:$0xff]
    %v213 = vld [vmem:[%s1 + $0x464] sm:$0xf]
    %v214 = vld [vmem:[%s1 + $0x468] sm:$0xff]
    %v215 = vld [vmem:[%s1 + $0x470] sm:$0xf]
    %v216 = vld [vmem:[%s1 + $0x474] sm:$0xff]
    %v217 = vld [vmem:[%s1 + $0x47c] sm:$0xf]
    %v218 = vld [vmem:[%s1 + $0x480] sm:$0xff]
    %v219 = vld [vmem:[%s1 + $0x488] sm:$0xf]
    %v220 = vld [vmem:[%s1 + $0x48c] sm:$0xff]
    %v221 = vld [vmem:[%s1 + $0x494] sm:$0xf]
    %v222 = vld [vmem:[%s1 + $0x498] sm:$0xff]
    %v223 = vld [vmem:[%s1 + $0x4a0] sm:$0xf]
    %v224 = vld [vmem:[%s1 + $0x4a4] sm:$0xff]
    %v225 = vld [vmem:[%s1 + $0x4ac] sm:$0xf]
    %v226 = vld [vmem:[%s1 + $0x4b0] sm:$0xff]
    %v227 = vld [vmem:[%s1 + $0x4b8] sm:$0xf]
    %v228 = vld [vmem:[%s1 + $0x4bc] sm:$0xff]
    %v229 = vld [vmem:[%s1 + $0x4c4] sm:$0xf]
    %v230 = vld [vmem:[%s1 + $0x4c8] sm:$0xff]
    %v231 = vld [vmem:[%s1 + $0x4d0] sm:$0xf]
    %v232 = vld [vmem:[%s1 + $0x4d4] sm:$0xff]
    %v233 = vld [vmem:[%s1 + $0x4dc] sm:$0xf]
    %v234 = vld [vmem:[%s1 + $0x4e0] sm:$0xff]
    %v235 = vld [vmem:[%s1 + $0x4e8] sm:$0xf]
    %v236 = vld [vmem:[%s1 + $0x4ec] sm:$0xff]
    %v237 = vld [vmem:[%s1 + $0x4f4] sm:$0xf]
    %v238 = vld [vmem:[%s1 + $0x4f8] sm:$0xff]
    %v239 = vld [vmem:[%s1 + $0x500] sm:$0xf]
    %v240 = vld [vmem:[%s1 + $0x504] sm:$0xff]
    %v241 = vld [vmem:[%s1 + $0x50c] sm:$0xf]
    %v242 = vld [vmem:[%s1 + $0x510] sm:$0xff]
    %v243 = vld [vmem:[%s1 + $0x518] sm:$0xf]
    %v244 = vld [vmem:[%s1 + $0x51c] sm:$0xff]
    %v245 = vld [vmem:[%s1 + $0x524] sm:$0xf]
    %v246 = vld [vmem:[%s1 + $0x528] sm:$0xff]
    %v247 = vld [vmem:[%s1 + $0x530] sm:$0xf]
    %v248 = vld [vmem:[%s1 + $0x534] sm:$0xff]
    %v249 = vld [vmem:[%s1 + $0x53c] sm:$0xf]
    %v250 = vld [vmem:[%s1 + $0x540] sm:$0xff]
    %v251 = vld [vmem:[%s1 + $0x548] sm:$0xf]
    %v252 = vld [vmem:[%s1 + $0x54c] sm:$0xff]
    %v253 = vld [vmem:[%s1 + $0x554] sm:$0xf]
    %v254 = vld [vmem:[%s1 + $0x558] sm:$0xff]
    %v255 = vld [vmem:[%s1 + $0x560] sm:$0xf]
    %v256 = vld [vmem:[%s1 + $0x564] sm:$0xff]
    %v257 = vld [vmem:[%s1 + $0x56c] sm:$0xf]
    %v258 = vld [vmem:[%s1 + $0x570] sm:$0xff]
    %v259 = vld [vmem:[%s1 + $0x578] sm:$0xf]
    %v260 = vld [vmem:[%s1 + $0x57c] sm:$0xff]
    %v261 = vld [vmem:[%s1 + $0x584] sm:$0xf]
    %v262 = vld [vmem:[%s1 + $0x588] sm:$0xff]
    %v263 = vld [vmem:[%s1 + $0x590] sm:$0xf]
    %v264 = vld [vmem:[%s1 + $0x594] sm:$0xff]
    %v265 = vld [vmem:[%s1 + $0x59c] sm:$0xf]
    %v266 = vld [vmem:[%s1 + $0x5a0] sm:$0xff]
    %v267 = vld [vmem:[%s1 + $0x5a8] sm:$0xf]
    %v268 = vld [vmem:[%s1 + $0x5ac] sm:$0xff]
    %v269 = vld [vmem:[%s1 + $0x5b4] sm:$0xf]
    %v270 = vld [vmem:[%s1 + $0x5b8] sm:$0xff]
    %v271 = vld [vmem:[%s1 + $0x5c0] sm:$0xf]
    %v272 = vld [vmem:[%s1 + $0x5c4] sm:$0xff]
    %v273 = vld [vmem:[%s1 + $0x5cc] sm:$0xf]
    %v274 = vld [vmem:[%s1 + $0x5d0] sm:$0xff]
    %v275 = vld [vmem:[%s1 + $0x5d8] sm:$0xf]
    %v276 = vld [vmem:[%s1 + $0x5dc] sm:$0xff]
    %v277 = vld [vmem:[%s1 + $0x5e4] sm:$0xf]
    %v278 = vld [vmem:[%s1 + $0x5e8] sm:$0xff]
    %v279 = vld [vmem:[%s1 + $0x5f0] sm:$0xf]
    %v280 = vld [vmem:[%s1 + $0x5f4] sm:$0xff]
    %v281 = vld [vmem:[%s1 + $0x5fc] sm:$0xf]
    %v282 = vld [vmem:[%s1 + $0x600] sm:$0xff]
    %v283 = vld [vmem:[%s1 + $0x608] sm:$0xf]
    %v284 = vld [vmem:[%s1 + $0x60c] sm:$0xff]
    %v285 = vld [vmem:[%s1 + $0x614] sm:$0xf]
    %v286 = vld [vmem:[%s1 + $0x618] sm:$0xff]
    %v287 = vld [vmem:[%s1 + $0x620] sm:$0xf]
    %v288 = vld [vmem:[%s1 + $0x624] sm:$0xff]
    %v289 = vld [vmem:[%s1 + $0x62c] sm:$0xf]
    %v290 = vld [vmem:[%s1 + $0x630] sm:$0xff]
    %v291 = vld [vmem:[%s1 + $0x638] sm:$0xf]
    %v292 = vld [vmem:[%s1 + $0x63c] sm:$0xff]
    %v293 = vld [vmem:[%s1 + $0x644] sm:$0xf]
    %v294 = vld [vmem:[%s1 + $0x648] sm:$0xff]
    %v295 = vld [vmem:[%s1 + $0x650] sm:$0xf]
    %v296 = vld [vmem:[%s1 + $0x654] sm:$0xff]
    %v297 = vld [vmem:[%s1 + $0x65c] sm:$0xf]
    %v298 = vld [vmem:[%s1 + $0x660] sm:$0xff]
    %v299 = vld [vmem:[%s1 + $0x668] sm:$0xf]
    %v300 = vld [vmem:[%s1 + $0x66c] sm:$0xff]
    %v301 = vld [vmem:[%s1 + $0x674] sm:$0xf]
    %v302 = vld [vmem:[%s1 + $0x678] sm:$0xff]
    %v303 = vld [vmem:[%s1 + $0x680] sm:$0xf]
    %v304 = vld [vmem:[%s1 + $0x684] sm:$0xff]
    %v305 = vld [vmem:[%s1 + $0x68c] sm:$0xf]
    %v306 = vld [vmem:[%s1 + $0x690] sm:$0xff]
    %v307 = vld [vmem:[%s1 + $0x698] sm:$0xf]
    %v308 = vld [vmem:[%s1 + $0x69c] sm:$0xff]
    %v309 = vld [vmem:[%s1 + $0x6a4] sm:$0xf]
    %v310 = vld [vmem:[%s1 + $0x6a8] sm:$0xff]
    %v311 = vld [vmem:[%s1 + $0x6b0] sm:$0xf]
    %v312 = vld [vmem:[%s1 + $0x6b4] sm:$0xff]
    %v313 = vld [vmem:[%s1 + $0x6bc] sm:$0xf]
    %v314 = vld [vmem:[%s1 + $0x6c0] sm:$0xff]
    %v315 = vld [vmem:[%s1 + $0x6c8] sm:$0xf]
    %v316 = vld [vmem:[%s1 + $0x6cc] sm:$0xff]
    %v317 = vld [vmem:[%s1 + $0x6d4] sm:$0xf]
    %v318 = vld [vmem:[%s1 + $0x6d8] sm:$0xff]
    %v319 = vld [vmem:[%s1 + $0x6e0] sm:$0xf]
    %v320 = vld [vmem:[%s1 + $0x6e4] sm:$0xff]
    %v321 = vld [vmem:[%s1 + $0x6ec] sm:$0xf]
    %v322 = vld [vmem:[%s1 + $0x6f0] sm:$0xff]
    %v323 = vld [vmem:[%s1 + $0x6f8] sm:$0xf]
    %v324 = vld [vmem:[%s1 + $0x6fc] sm:$0xff]
    %v325 = vld [vmem:[%s1 + $0x704] sm:$0xf]
    %v326 = vld [vmem:[%s1 + $0x708] sm:$0xff]
    %v327 = vld [vmem:[%s1 + $0x710] sm:$0xf]
    %v328 = vld [vmem:[%s1 + $0x714] sm:$0xff]
    %v329 = vld [vmem:[%s1 + $0x71c] sm:$0xf]
    %v330 = vld [vmem:[%s1 + $0x720] sm:$0xff]
    %v331 = vld [vmem:[%s1 + $0x728] sm:$0xf]
    %v332 = vld [vmem:[%s1 + $0x72c] sm:$0xff]
    %v333 = vld [vmem:[%s1 + $0x734] sm:$0xf]
    %v334 = vld [vmem:[%s1 + $0x738] sm:$0xff]
    %v335 = vld [vmem:[%s1 + $0x740] sm:$0xf]
    %v336 = vld [vmem:[%s1 + $0x744] sm:$0xff]
    %v337 = vld [vmem:[%s1 + $0x74c] sm:$0xf]
    %v338 = vld [vmem:[%s1 + $0x750] sm:$0xff]
    %v339 = vld [vmem:[%s1 + $0x758] sm:$0xf]
    %v340 = vld [vmem:[%s1 + $0x75c] sm:$0xff]
    %v341 = vld [vmem:[%s1 + $0x764] sm:$0xf]
    %v342 = vld [vmem:[%s1 + $0x768] sm:$0xff]
    %v343 = vld [vmem:[%s1 + $0x770] sm:$0xf]
    %v344 = vld [vmem:[%s1 + $0x774] sm:$0xff]
    %v345 = vld [vmem:[%s1 + $0x77c] sm:$0xf]
    %v346 = vld [vmem:[%s1 + $0x780] sm:$0xff]
    %v347 = vld [vmem:[%s1 + $0x788] sm:$0xf]
    %v348 = vld [vmem:[%s1 + $0x78c] sm:$0xff]
    %v349 = vld [vmem:[%s1 + $0x794] sm:$0xf]
    %v350 = vld [vmem:[%s1 + $0x798] sm:$0xff]
    %v351 = vld [vmem:[%s1 + $0x7a0] sm:$0xf]
    %v352 = vld [vmem:[%s1 + $0x7a4] sm:$0xff]
    %v353 = vld [vmem:[%s1 + $0x7ac] sm:$0xf]
    %v354 = vld [vmem:[%s1 + $0x7b0] sm:$0xff]
    %v355 = vld [vmem:[%s1 + $0x7b8] sm:$0xf]
    %v356 = vld [vmem:[%s1 + $0x7bc] sm:$0xff]
    %v357 = vld [vmem:[%s1 + $0x7c4] sm:$0xf]
    %v358 = vld [vmem:[%s1 + $0x7c8] sm:$0xff]
    %v359 = vld [vmem:[%s1 + $0x7d0] sm:$0xf]
    %v360 = vld [vmem:[%s1 + $0x7d4] sm:$0xff]
    %v361 = vld [vmem:[%s1 + $0x7dc] sm:$0xf]
    %v362 = vld [vmem:[%s1 + $0x7e0] sm:$0xff]
    %v363 = vld [vmem:[%s1 + $0x7e8] sm:$0xf]
    %v364 = vld [vmem:[%s1 + $0x7ec] sm:$0xff]
    %v365 = vld [vmem:[%s1 + $0x7f4] sm:$0xf]
    %v366 = vld [vmem:[%s1 + $0x7f8] sm:$0xff]
    %v367 = vld [vmem:[%s1 + $0x800] sm:$0xf]
    %v368 = vld [vmem:[%s1 + $0x804] sm:$0xff]
    %v369 = vld [vmem:[%s1 + $0x80c] sm:$0xf]
    %v370 = vld [vmem:[%s1 + $0x810] sm:$0xff]
    %v371 = vld [vmem:[%s1 + $0x818] sm:$0xf]
    %v372 = vld [vmem:[%s1 + $0x81c] sm:$0xff]
    %v373 = vld [vmem:[%s1 + $0x824] sm:$0xf]
    %v374 = vld [vmem:[%s1 + $0x828] sm:$0xff]
    %v375 = vld [vmem:[%s1 + $0x830] sm:$0xf]
    %v376 = vld [vmem:[%s1 + $0x834] sm:$0xff]
    %v377 = vld [vmem:[%s1 + $0x83c] sm:$0xf]
    %v378 = vld [vmem:[%s1 + $0x840] sm:$0xff]
    %v379 = vld [vmem:[%s1 + $0x848] sm:$0xf]
    %v380 = vld [vmem:[%s1 + $0x84c] sm:$0xff]
    %v381 = vld [vmem:[%s1 + $0x854] sm:$0xf]
    %v382 = vld [vmem:[%s1 + $0x858] sm:$0xff]
    %v383 = vld [vmem:[%s1 + $0x860] sm:$0xf]
    %v384 = vld [vmem:[%s1 + $0x864] sm:$0xff]
    %v385 = vld [vmem:[%s1 + $0x86c] sm:$0xf]
    %v386 = vld [vmem:[%s1 + $0x870] sm:$0xff]
    %v387 = vld [vmem:[%s1 + $0x878] sm:$0xf]
    %v388 = vld [vmem:[%s1 + $0x87c] sm:$0xff]
    %v389 = vld [vmem:[%s1 + $0x884] sm:$0xf]
    %v390 = vld [vmem:[%s1 + $0x888] sm:$0xff]
    %v391 = vld [vmem:[%s1 + $0x890] sm:$0xf]
    %v392 = vld [vmem:[%s1 + $0x894] sm:$0xff]
    %v393 = vld [vmem:[%s1 + $0x89c] sm:$0xf]
    %v394 = vld [vmem:[%s1 + $0x8a0] sm:$0xff]
    %v395 = vld [vmem:[%s1 + $0x8a8] sm:$0xf]
    %v396 = vld [vmem:[%s1 + $0x8ac] sm:$0xff]
    %v397 = vld [vmem:[%s1 + $0x8b4] sm:$0xf]
    %v398 = vld [vmem:[%s1 + $0x8b8] sm:$0xff]
    %v399 = vld [vmem:[%s1 + $0x8c0] sm:$0xf]
    %v400 = vld [vmem:[%s1 + $0x8c4] sm:$0xff]
    %v401 = vld [vmem:[%s1 + $0x8cc] sm:$0xf]
    %v402 = vld [vmem:[%s1 + $0x8d0] sm:$0xff]
    %v403 = vld [vmem:[%s1 + $0x8d8] sm:$0xf]
    %v404 = vld [vmem:[%s1 + $0x8dc] sm:$0xff]
    %v405 = vld [vmem:[%s1 + $0x8e4] sm:$0xf]
    %v406 = vld [vmem:[%s1 + $0x8e8] sm:$0xff]
    %v407 = vld [vmem:[%s1 + $0x8f0] sm:$0xf]
    %v408 = vld [vmem:[%s1 + $0x8f4] sm:$0xff]
    %v409 = vld [vmem:[%s1 + $0x8fc] sm:$0xf]
    %v410 = vld [vmem:[%s1 + $0x900] sm:$0xff]
    %v411 = vld [vmem:[%s1 + $0x908] sm:$0xf]
    %v412 = vld [vmem:[%s1 + $0x90c] sm:$0xff]
    %v413 = vld [vmem:[%s1 + $0x914] sm:$0xf]
    %v414 = vld [vmem:[%s1 + $0x918] sm:$0xff]
    %v415 = vld [vmem:[%s1 + $0x920] sm:$0xf]
    %v416 = vld [vmem:[%s1 + $0x924] sm:$0xff]
    %v417 = vld [vmem:[%s1 + $0x92c] sm:$0xf]
    %v418 = vld [vmem:[%s1 + $0x930] sm:$0xff]
    %v419 = vld [vmem:[%s1 + $0x938] sm:$0xf]
    %v420 = vld [vmem:[%s1 + $0x93c] sm:$0xff]
    %v421 = vld [vmem:[%s1 + $0x944] sm:$0xf]
    %v422 = vld [vmem:[%s1 + $0x948] sm:$0xff]
    %v423 = vld [vmem:[%s1 + $0x950] sm:$0xf]
    %v424 = vld [vmem:[%s1 + $0x954] sm:$0xff]
    %v425 = vld [vmem:[%s1 + $0x95c] sm:$0xf]
    %v426 = vld [vmem:[%s1 + $0x960] sm:$0xff]
    %v427 = vld [vmem:[%s1 + $0x968] sm:$0xf]
    %v428 = vld [vmem:[%s1 + $0x96c] sm:$0xff]
    %v429 = vld [vmem:[%s1 + $0x974] sm:$0xf]
    %v430 = vld [vmem:[%s1 + $0x978] sm:$0xff]
    %v431 = vld [vmem:[%s1 + $0x980] sm:$0xf]
    %v432 = vld [vmem:[%s1 + $0x984] sm:$0xff]
    %v433 = vld [vmem:[%s1 + $0x98c] sm:$0xf]
    %v434 = vld [vmem:[%s1 + $0x990] sm:$0xff]
    %v435 = vld [vmem:[%s1 + $0x998] sm:$0xf]
    %v436 = vld [vmem:[%s1 + $0x99c] sm:$0xff]
    %v437 = vld [vmem:[%s1 + $0x9a4] sm:$0xf]
    %v438 = vld [vmem:[%s1 + $0x9a8] sm:$0xff]
    %v439 = vld [vmem:[%s1 + $0x9b0] sm:$0xf]
    %v440 = vld [vmem:[%s1 + $0x9b4] sm:$0xff]
    %v441 = vld [vmem:[%s1 + $0x9bc] sm:$0xf]
    %v442 = vld [vmem:[%s1 + $0x9c0] sm:$0xff]
    %v443 = vld [vmem:[%s1 + $0x9c8] sm:$0xf]
    %v444 = vld [vmem:[%s1 + $0x9cc] sm:$0xff]
    %v445 = vld [vmem:[%s1 + $0x9d4] sm:$0xf]
    %v446 = vld [vmem:[%s1 + $0x9d8] sm:$0xff]
    %v447 = vld [vmem:[%s1 + $0x9e0] sm:$0xf]
    %v448 = vld [vmem:[%s1 + $0x9e4] sm:$0xff]
    %v449 = vld [vmem:[%s1 + $0x9ec] sm:$0xf]
    %v450 = vld [vmem:[%s1 + $0x9f0] sm:$0xff]
    %v451 = vld [vmem:[%s1 + $0x9f8] sm:$0xf]
    %v452 = vld [vmem:[%s1 + $0x9fc] sm:$0xff]
    %v453 = vld [vmem:[%s1 + $0xa04] sm:$0xf]
    %v454 = vld [vmem:[%s1 + $0xa08] sm:$0xff]
    %v455 = vld [vmem:[%s1 + $0xa10] sm:$0xf]
    %v456 = vld [vmem:[%s1 + $0xa14] sm:$0xff]
    %v457 = vld [vmem:[%s1 + $0xa1c] sm:$0xf]
    %v458 = vld [vmem:[%s1 + $0xa20] sm:$0xff]
    %v459 = vld [vmem:[%s1 + $0xa28] sm:$0xf]
    %v460 = vld [vmem:[%s1 + $0xa2c] sm:$0xff]
    %v461 = vld [vmem:[%s1 + $0xa34] sm:$0xf]
    %v462 = vld [vmem:[%s1 + $0xa38] sm:$0xff]
    %v463 = vld [vmem:[%s1 + $0xa40] sm:$0xf]
    %v464 = vld [vmem:[%s1 + $0xa44] sm:$0xff]
    %v465 = vld [vmem:[%s1 + $0xa4c] sm:$0xf]
    %v466 = vld [vmem:[%s1 + $0xa50] sm:$0xff]
    %v467 = vld [vmem:[%s1 + $0xa58] sm:$0xf]
    %v468 = vld [vmem:[%s1 + $0xa5c] sm:$0xff]
    %v469 = vld [vmem:[%s1 + $0xa64] sm:$0xf]
    %v470 = vld [vmem:[%s1 + $0xa68] sm:$0xff]
    %v471 = vld [vmem:[%s1 + $0xa70] sm:$0xf]
    %v472 = vld [vmem:[%s1 + $0xa74] sm:$0xff]
    %v473 = vld [vmem:[%s1 + $0xa7c] sm:$0xf]
    %v474 = vld [vmem:[%s1 + $0xa80] sm:$0xff]
    %v475 = vld [vmem:[%s1 + $0xa88] sm:$0xf]
    %v476 = vld [vmem:[%s1 + $0xa8c] sm:$0xff]
    %v477 = vld [vmem:[%s1 + $0xa94] sm:$0xf]
    %v478 = vld [vmem:[%s1 + $0xa98] sm:$0xff]
    %v479 = vld [vmem:[%s1 + $0xaa0] sm:$0xf]
    %v480 = vld [vmem:[%s1 + $0xaa4] sm:$0xff]
    %v481 = vld [vmem:[%s1 + $0xaac] sm:$0xf]
    %v482 = vld [vmem:[%s1 + $0xab0] sm:$0xff]
    %v483 = vld [vmem:[%s1 + $0xab8] sm:$0xf]
    %v484 = vld [vmem:[%s1 + $0xabc] sm:$0xff]
    %v485 = vld [vmem:[%s1 + $0xac4] sm:$0xf]
    %v486 = vld [vmem:[%s1 + $0xac8] sm:$0xff]
    %v487 = vld [vmem:[%s1 + $0xad0] sm:$0xf]
    %v488 = vld [vmem:[%s1 + $0xad4] sm:$0xff]
    %v489 = vld [vmem:[%s1 + $0xadc] sm:$0xf]
    %v490 = vld [vmem:[%s1 + $0xae0] sm:$0xff]
    %v491 = vld [vmem:[%s1 + $0xae8] sm:$0xf]
    %v492 = vld [vmem:[%s1 + $0xaec] sm:$0xff]
    %v493 = vld [vmem:[%s1 + $0xaf4] sm:$0xf]
    %v494 = vld [vmem:[%s1 + $0xaf8] sm:$0xff]
    %v495 = vld [vmem:[%s1 + $0xb00] sm:$0xf]
    %v496 = vld [vmem:[%s1 + $0xb04] sm:$0xff]
    %v497 = vld [vmem:[%s1 + $0xb0c] sm:$0xf]
    %v498 = vld [vmem:[%s1 + $0xb10] sm:$0xff]
    %v499 = vld [vmem:[%s1 + $0xb18] sm:$0xf]
    %v500 = vld [vmem:[%s1 + $0xb1c] sm:$0xff]
    %v501 = vld [vmem:[%s1 + $0xb24] sm:$0xf]
    %v502 = vld [vmem:[%s1 + $0xb28] sm:$0xff]
    %v503 = vld [vmem:[%s1 + $0xb30] sm:$0xf]
    %v504 = vld [vmem:[%s1 + $0xb34] sm:$0xff]
    %v505 = vld [vmem:[%s1 + $0xb3c] sm:$0xf]
    %v506 = vld [vmem:[%s1 + $0xb40] sm:$0xff]
    %v507 = vld [vmem:[%s1 + $0xb48] sm:$0xf]
    %v508 = vld [vmem:[%s1 + $0xb4c] sm:$0xff]
    %v509 = vld [vmem:[%s1 + $0xb54] sm:$0xf]
    %v510 = vld [vmem:[%s1 + $0xb58] sm:$0xff]
    %v511 = vld [vmem:[%s1 + $0xb60] sm:$0xf]
    %v512 = vld [vmem:[%s1 + $0xb64] sm:$0xff]
    %v513 = vld [vmem:[%s1 + $0xb6c] sm:$0xf]
    %v514 = vld [vmem:[%s1 + $0xb70] sm:$0xff]
    %v515 = vld [vmem:[%s1 + $0xb78] sm:$0xf]
    %v516 = vld [vmem:[%s1 + $0xb7c] sm:$0xff]
    %v517 = vld [vmem:[%s1 + $0xb84] sm:$0xf]
    %v518 = vld [vmem:[%s1 + $0xb88] sm:$0xff]
    %v519 = vld [vmem:[%s1 + $0xb90] sm:$0xf]
    %v520 = vld [vmem:[%s1 + $0xb94] sm:$0xff]
    %v521 = vld [vmem:[%s1 + $0xb9c] sm:$0xf]
    %v522 = vld [vmem:[%s1 + $0xba0] sm:$0xff]
    %v523 = vld [vmem:[%s1 + $0xba8] sm:$0xf]
    %v524 = vld [vmem:[%s1 + $0xbac] sm:$0xff]
    %v525 = vld [vmem:[%s1 + $0xbb4] sm:$0xf]
    %v526 = vld [vmem:[%s1 + $0xbb8] sm:$0xff]
    %v527 = vld [vmem:[%s1 + $0xbc0] sm:$0xf]
    %v528 = vld [vmem:[%s1 + $0xbc4] sm:$0xff]
    %v529 = vld [vmem:[%s1 + $0xbcc] sm:$0xf]
    %v530 = vld [vmem:[%s1 + $0xbd0] sm:$0xff]
    %v531 = vld [vmem:[%s1 + $0xbd8] sm:$0xf]
    %v532 = vld [vmem:[%s1 + $0xbdc] sm:$0xff]
    %v533 = vld [vmem:[%s1 + $0xbe4] sm:$0xf]
    %v534 = vld [vmem:[%s1 + $0xbe8] sm:$0xff]
    %v535 = vld [vmem:[%s1 + $0xbf0] sm:$0xf]
    %v536 = vld [vmem:[%s1 + $0xbf4] sm:$0xff]
    %v537 = vld [vmem:[%s1 + $0xbfc] sm:$0xf]
    %v538 = vld [vmem:[%s1 + $0xc00] sm:$0xff]
    %v539 = vld [vmem:[%s1 + $0xc08] sm:$0xf]
    %v540 = vld [vmem:[%s1 + $0xc0c] sm:$0xff]
    %v541 = vld [vmem:[%s1 + $0xc14] sm:$0xf]
    %v542 = vld [vmem:[%s1 + $0xc18] sm:$0xff]
    %v543 = vld [vmem:[%s1 + $0xc20] sm:$0xf]
    %v544 = vld [vmem:[%s1 + $0xc24] sm:$0xff]
    %v545 = vld [vmem:[%s1 + $0xc2c] sm:$0xf]
    %v546 = vld [vmem:[%s1 + $0xc30] sm:$0xff]
    %v547 = vld [vmem:[%s1 + $0xc38] sm:$0xf]
    %v548 = vld [vmem:[%s1 + $0xc3c] sm:$0xff]
    %v549 = vld [vmem:[%s1 + $0xc44] sm:$0xf]
    %v550 = vld [vmem:[%s1 + $0xc48] sm:$0xff]
    %v551 = vld [vmem:[%s1 + $0xc50] sm:$0xf]
    %v552 = vld [vmem:[%s1 + $0xc54] sm:$0xff]
    %v553 = vld [vmem:[%s1 + $0xc5c] sm:$0xf]
    %v554 = vld [vmem:[%s1 + $0xc60] sm:$0xff]
    %v555 = vld [vmem:[%s1 + $0xc68] sm:$0xf]
    %v556 = vld [vmem:[%s1 + $0xc6c] sm:$0xff]
    %v557 = vld [vmem:[%s1 + $0xc74] sm:$0xf]
    %v558 = vld [vmem:[%s1 + $0xc78] sm:$0xff]
    %v559 = vld [vmem:[%s1 + $0xc80] sm:$0xf]
    %v560 = vld [vmem:[%s1 + $0xc84] sm:$0xff]
    %v561 = vld [vmem:[%s1 + $0xc8c] sm:$0xf]
    %v562 = vld [vmem:[%s1 + $0xc90] sm:$0xff]
    %v563 = vld [vmem:[%s1 + $0xc98] sm:$0xf]
    %v564 = vld [vmem:[%s1 + $0xc9c] sm:$0xff]
    %v565 = vld [vmem:[%s1 + $0xca4] sm:$0xf]
    %v566 = vld [vmem:[%s1 + $0xca8] sm:$0xff]
    %v567 = vld [vmem:[%s1 + $0xcb0] sm:$0xf]
    %v568 = vld [vmem:[%s1 + $0xcb4] sm:$0xff]
    %v569 = vld [vmem:[%s1 + $0xcbc] sm:$0xf]
    %v570 = vld [vmem:[%s1 + $0xcc0] sm:$0xff]
    %v571 = vld [vmem:[%s1 + $0xcc8] sm:$0xf]
    %v572 = vld [vmem:[%s1 + $0xccc] sm:$0xff]
    %v573 = vld [vmem:[%s1 + $0xcd4] sm:$0xf]
    %v574 = vld [vmem:[%s1 + $0xcd8] sm:$0xff]
    %v575 = vld [vmem:[%s1 + $0xce0] sm:$0xf]
    %v576 = vld [vmem:[%s1 + $0xce4] sm:$0xff]
    %v577 = vld [vmem:[%s1 + $0xcec] sm:$0xf]
    %v578 = vld [vmem:[%s1 + $0xcf0] sm:$0xff]
    %v579 = vld [vmem:[%s1 + $0xcf8] sm:$0xf]
    %v580 = vld [vmem:[%s1 + $0xcfc] sm:$0xff]
    %v581 = vld [vmem:[%s1 + $0xd04] sm:$0xf]
    %v582 = vld [vmem:[%s1 + $0xd08] sm:$0xff]
    %v583 = vld [vmem:[%s1 + $0xd10] sm:$0xf]
    %v584 = vld [vmem:[%s1 + $0xd14] sm:$0xff]
    %v585 = vld [vmem:[%s1 + $0xd1c] sm:$0xf]
    %v586 = vld [vmem:[%s1 + $0xd20] sm:$0xff]
    %v587 = vld [vmem:[%s1 + $0xd28] sm:$0xf]
    %v588 = vld [vmem:[%s1 + $0xd2c] sm:$0xff]
    %v589 = vld [vmem:[%s1 + $0xd34] sm:$0xf]
    %v590 = vld [vmem:[%s1 + $0xd38] sm:$0xff]
    %v591 = vld [vmem:[%s1 + $0xd40] sm:$0xf]
    %v592 = vld [vmem:[%s1 + $0xd44] sm:$0xff]
    %v593 = vld [vmem:[%s1 + $0xd4c] sm:$0xf]
    %v594 = vld [vmem:[%s1 + $0xd50] sm:$0xff]
    %v595 = vld [vmem:[%s1 + $0xd58] sm:$0xf]
    %v596 = vld [vmem:[%s1 + $0xd5c] sm:$0xff]
    %v597 = vld [vmem:[%s1 + $0xd64] sm:$0xf]
    %v598 = vld [vmem:[%s1 + $0xd68] sm:$0xff]
    %v599 = vld [vmem:[%s1 + $0xd70] sm:$0xf]
    %v600 = vld [vmem:[%s1 + $0xd74] sm:$0xff]
    %v601 = vld [vmem:[%s1 + $0xd7c] sm:$0xf]
    %v602 = vld [vmem:[%s1 + $0xd80] sm:$0xff]
    %v603 = vld [vmem:[%s1 + $0xd88] sm:$0xf]
    %v604 = vld [vmem:[%s1 + $0xd8c] sm:$0xff]
    %v605 = vld [vmem:[%s1 + $0xd94] sm:$0xf]
    %v606 = vld [vmem:[%s1 + $0xd98] sm:$0xff]
    %v607 = vld [vmem:[%s1 + $0xda0] sm:$0xf]
    %v608 = vld [vmem:[%s1 + $0xda4] sm:$0xff]
    %v609 = vld [vmem:[%s1 + $0xdac] sm:$0xf]
    %v610 = vld [vmem:[%s1 + $0xdb0] sm:$0xff]
    %v611 = vld [vmem:[%s1 + $0xdb8] sm:$0xf]
    %v612 = vld [vmem:[%s1 + $0xdbc] sm:$0xff]
    %v613 = vld [vmem:[%s1 + $0xdc4] sm:$0xf]
    %v614 = vld [vmem:[%s1 + $0xdc8] sm:$0xff]
    %v615 = vld [vmem:[%s1 + $0xdd0] sm:$0xf]
    %v616 = vld [vmem:[%s1 + $0xdd4] sm:$0xff]
    %v617 = vld [vmem:[%s1 + $0xddc] sm:$0xf]
    %v618 = vld [vmem:[%s1 + $0xde0] sm:$0xff]
    %v619 = vld [vmem:[%s1 + $0xde8] sm:$0xf]
    %v620 = vld [vmem:[%s1 + $0xdec] sm:$0xff]
    %v621 = vld [vmem:[%s1 + $0xdf4] sm:$0xf]
    %v622 = vld [vmem:[%s1 + $0xdf8] sm:$0xff]
    %v623 = vld [vmem:[%s1 + $0xe00] sm:$0xf]
    %v624 = vld [vmem:[%s1 + $0xe04] sm:$0xff]
    %v625 = vld [vmem:[%s1 + $0xe0c] sm:$0xf]
    %v626 = vld [vmem:[%s1 + $0xe10] sm:$0xff]
    %v627 = vld [vmem:[%s1 + $0xe18] sm:$0xf]
    %v628 = vld [vmem:[%s1 + $0xe1c] sm:$0xff]
    %v629 = vld [vmem:[%s1 + $0xe24] sm:$0xf]
    %v630 = vld [vmem:[%s1 + $0xe28] sm:$0xff]
    %v631 = vld [vmem:[%s1 + $0xe30] sm:$0xf]
    %v632 = vld [vmem:[%s1 + $0xe34] sm:$0xff]
    %v633 = vld [vmem:[%s1 + $0xe3c] sm:$0xf]
    %v634 = vld [vmem:[%s1 + $0xe40] sm:$0xff]
    %v635 = vld [vmem:[%s1 + $0xe48] sm:$0xf]
    %v636 = vld [vmem:[%s1 + $0xe4c] sm:$0xff]
    %v637 = vld [vmem:[%s1 + $0xe54] sm:$0xf]
    %v638 = vld [vmem:[%s1 + $0xe58] sm:$0xff]
    %v639 = vld [vmem:[%s1 + $0xe60] sm:$0xf]
    %v640 = vld [vmem:[%s1 + $0xe64] sm:$0xff]
    %v641 = vld [vmem:[%s1 + $0xe6c] sm:$0xf]
    %v642 = vld [vmem:[%s1 + $0xe70] sm:$0xff]
    %v643 = vld [vmem:[%s1 + $0xe78] sm:$0xf]
    %v644 = vld [vmem:[%s1 + $0xe7c] sm:$0xff]
    %v645 = vld [vmem:[%s1 + $0xe84] sm:$0xf]
    %v646 = vld [vmem:[%s1 + $0xe88] sm:$0xff]
    %v647 = vld [vmem:[%s1 + $0xe90] sm:$0xf]
    %v648 = vld [vmem:[%s1 + $0xe94] sm:$0xff]
    %v649 = vld [vmem:[%s1 + $0xe9c] sm:$0xf]
    %v650 = vld [vmem:[%s1 + $0xea0] sm:$0xff]
    %v651 = vld [vmem:[%s1 + $0xea8] sm:$0xf]
    %v652 = vld [vmem:[%s1 + $0xeac] sm:$0xff]
    %v653 = vld [vmem:[%s1 + $0xeb4] sm:$0xf]
    %v654 = vld [vmem:[%s1 + $0xeb8] sm:$0xff]
    %v655 = vld [vmem:[%s1 + $0xec0] sm:$0xf]
    %v656 = vld [vmem:[%s1 + $0xec4] sm:$0xff]
    %v657 = vld [vmem:[%s1 + $0xecc] sm:$0xf]
    %v658 = vld [vmem:[%s1 + $0xed0] sm:$0xff]
    %v659 = vld [vmem:[%s1 + $0xed8] sm:$0xf]
    %v660 = vld [vmem:[%s1 + $0xedc] sm:$0xff]
    %v661 = vld [vmem:[%s1 + $0xee4] sm:$0xf]
    %v662 = vld [vmem:[%s1 + $0xee8] sm:$0xff]
    %v663 = vld [vmem:[%s1 + $0xef0] sm:$0xf]
    %v664 = vld [vmem:[%s1 + $0xef4] sm:$0xff]
    %v665 = vld [vmem:[%s1 + $0xefc] sm:$0xf]
    %v666 = vld [vmem:[%s1 + $0xf00] sm:$0xff]
    %v667 = vld [vmem:[%s1 + $0xf08] sm:$0xf]
    %v668 = vld [vmem:[%s1 + $0xf0c] sm:$0xff]
    %v669 = vld [vmem:[%s1 + $0xf14] sm:$0xf]
    %v670 = vld [vmem:[%s1 + $0xf18] sm:$0xff]
    %v671 = vld [vmem:[%s1 + $0xf20] sm:$0xf]
    %v672 = vld [vmem:[%s1 + $0xf24] sm:$0xff]
    %v673 = vld [vmem:[%s1 + $0xf2c] sm:$0xf]
    %v674 = vld [vmem:[%s1 + $0xf30] sm:$0xff]
    %v675 = vld [vmem:[%s1 + $0xf38] sm:$0xf]
    %v676 = vld [vmem:[%s1 + $0xf3c] sm:$0xff]
    %v677 = vld [vmem:[%s1 + $0xf44] sm:$0xf]
    %v678 = vld [vmem:[%s1 + $0xf48] sm:$0xff]
    %v679 = vld [vmem:[%s1 + $0xf50] sm:$0xf]
    %v680 = vld [vmem:[%s1 + $0xf54] sm:$0xff]
    %v681 = vld [vmem:[%s1 + $0xf5c] sm:$0xf]
    %v682 = vld [vmem:[%s1 + $0xf60] sm:$0xff]
    %v683 = vld [vmem:[%s1 + $0xf68] sm:$0xf]
    %v684 = vld [vmem:[%s1 + $0xf6c] sm:$0xff]
    %v685 = vld [vmem:[%s1 + $0xf74] sm:$0xf]
    %v686 = vld [vmem:[%s1 + $0xf78] sm:$0xff]
    %v687 = vld [vmem:[%s1 + $0xf80] sm:$0xf]
    %v688 = vld [vmem:[%s1 + $0xf84] sm:$0xff]
    %v689 = vld [vmem:[%s1 + $0xf8c] sm:$0xf]
    %v690 = vld [vmem:[%s1 + $0xf90] sm:$0xff]
    %v691 = vld [vmem:[%s1 + $0xf98] sm:$0xf]
    %v692 = vld [vmem:[%s1 + $0xf9c] sm:$0xff]
    %v693 = vld [vmem:[%s1 + $0xfa4] sm:$0xf]
    %v694 = vld [vmem:[%s1 + $0xfa8] sm:$0xff]
    %v695 = vld [vmem:[%s1 + $0xfb0] sm:$0xf]
    %v696 = vld [vmem:[%s1 + $0xfb4] sm:$0xff]
    %v697 = vld [vmem:[%s1 + $0xfbc] sm:$0xf]
    %v698 = vld [vmem:[%s1 + $0xfc0] sm:$0xff]
    %v699 = vld [vmem:[%s1 + $0xfc8] sm:$0xf]
    %v700 = vld [vmem:[%s1 + $0xfcc] sm:$0xff]
    %v701 = vld [vmem:[%s1 + $0xfd4] sm:$0xf]
    %v702 = vld [vmem:[%s1 + $0xfd8] sm:$0xff]
    %v703 = vld [vmem:[%s1 + $0xfe0] sm:$0xf]
    %v704 = vld [vmem:[%s1 + $0xfe4] sm:$0xff]
    %v705 = vld [vmem:[%s1 + $0xfec] sm:$0xf]
    %v706 = vld [vmem:[%s1 + $0xff0] sm:$0xff]
    %v707 = vld [vmem:[%s1 + $0xff8] sm:$0xf]
    %v708 = vld [vmem:[%s1 + $0xffc] sm:$0xff]
    %v709 = vld [vmem:[%s1 + $0x1004] sm:$0xf]
    %v710 = vld [vmem:[%s1 + $0x1008] sm:$0xff]
    %v711 = vld [vmem:[%s1 + $0x1010] sm:$0xf]
    %v712 = vld [vmem:[%s1 + $0x1014] sm:$0xff]
    %v713 = vld [vmem:[%s1 + $0x101c] sm:$0xf]
    %v714 = vld [vmem:[%s1 + $0x1020] sm:$0xff]
    %v715 = vld [vmem:[%s1 + $0x1028] sm:$0xf]
    %v716 = vld [vmem:[%s1 + $0x102c] sm:$0xff]
    %v717 = vld [vmem:[%s1 + $0x1034] sm:$0xf]
    %v718 = vld [vmem:[%s1 + $0x1038] sm:$0xff]
    %v719 = vld [vmem:[%s1 + $0x1040] sm:$0xf]
    %v720 = vld [vmem:[%s1 + $0x1044] sm:$0xff]
    %v721 = vld [vmem:[%s1 + $0x104c] sm:$0xf]
    %v722 = vld [vmem:[%s1 + $0x1050] sm:$0xff]
    %v723 = vld [vmem:[%s1 + $0x1058] sm:$0xf]
    %v724 = vld [vmem:[%s1 + $0x105c] sm:$0xff]
    %v725 = vld [vmem:[%s1 + $0x1064] sm:$0xf]
    %v726 = vld [vmem:[%s1 + $0x1068] sm:$0xff]
    %v727 = vld [vmem:[%s1 + $0x1070] sm:$0xf]
    %v728 = vld [vmem:[%s1 + $0x1074] sm:$0xff]
    %v729 = vld [vmem:[%s1 + $0x107c] sm:$0xf]
    %v730 = vld [vmem:[%s1 + $0x1080] sm:$0xff]
    %v731 = vld [vmem:[%s1 + $0x1088] sm:$0xf]
    %v732 = vld [vmem:[%s1 + $0x108c] sm:$0xff]
    %v733 = vld [vmem:[%s1 + $0x1094] sm:$0xf]
    %v734 = vld [vmem:[%s1 + $0x1098] sm:$0xff]
    %v735 = vld [vmem:[%s1 + $0x10a0] sm:$0xf]
    %v736 = vld [vmem:[%s1 + $0x10a4] sm:$0xff]
    %v737 = vld [vmem:[%s1 + $0x10ac] sm:$0xf]
    %v738 = vld [vmem:[%s1 + $0x10b0] sm:$0xff]
    %v739 = vld [vmem:[%s1 + $0x10b8] sm:$0xf]
    %v740 = vld [vmem:[%s1 + $0x10bc] sm:$0xff]
    %v741 = vld [vmem:[%s1 + $0x10c4] sm:$0xf]
    %v742 = vld [vmem:[%s1 + $0x10c8] sm:$0xff]
    %v743 = vld [vmem:[%s1 + $0x10d0] sm:$0xf]
    %v744 = vld [vmem:[%s1 + $0x10d4] sm:$0xff]
    %v745 = vld [vmem:[%s1 + $0x10dc] sm:$0xf]
    %v746 = vld [vmem:[%s1 + $0x10e0] sm:$0xff]
    %v747 = vld [vmem:[%s1 + $0x10e8] sm:$0xf]
    %v748 = vld [vmem:[%s1 + $0x10ec] sm:$0xff]
    %v749 = vld [vmem:[%s1 + $0x10f4] sm:$0xf]
    %v750 = vld [vmem:[%s1 + $0x10f8] sm:$0xff]
    %v751 = vld [vmem:[%s1 + $0x1100] sm:$0xf]
    %v752 = vld [vmem:[%s1 + $0x1104] sm:$0xff]
    %v753 = vld [vmem:[%s1 + $0x110c] sm:$0xf]
    %v754 = vld [vmem:[%s1 + $0x1110] sm:$0xff]
    %v755 = vld [vmem:[%s1 + $0x1118] sm:$0xf]
    %v756 = vld [vmem:[%s1 + $0x111c] sm:$0xff]
    %v757 = vld [vmem:[%s1 + $0x1124] sm:$0xf]
    %v758 = vld [vmem:[%s1 + $0x1128] sm:$0xff]
    %v759 = vld [vmem:[%s1 + $0x1130] sm:$0xf]
    %v760 = vld [vmem:[%s1 + $0x1134] sm:$0xff]
    %v761 = vld [vmem:[%s1 + $0x113c] sm:$0xf]
    %v762 = vld [vmem:[%s1 + $0x1140] sm:$0xff]
    %v763 = vld [vmem:[%s1 + $0x1148] sm:$0xf]
    %v764 = vld [vmem:[%s1 + $0x114c] sm:$0xff]
    %v765 = vld [vmem:[%s1 + $0x1154] sm:$0xf]
    %v766 = vld [vmem:[%s1 + $0x1158] sm:$0xff]
    %v767 = vld [vmem:[%s1 + $0x1160] sm:$0xf]
    %v768 = vld [vmem:[%s1 + $0x1164] sm:$0xff]
    %v769 = vld [vmem:[%s1 + $0x116c] sm:$0xf]
    %v770 = vld [vmem:[%s1 + $0x1170] sm:$0xff]
    %v771 = vld [vmem:[%s1 + $0x1178] sm:$0xf]
    %v772 = vld [vmem:[%s1 + $0x117c] sm:$0xff]
    %v773 = vld [vmem:[%s1 + $0x1184] sm:$0xf]
    %v774 = vld [vmem:[%s1 + $0x1188] sm:$0xff]
    %v775 = vld [vmem:[%s1 + $0x1190] sm:$0xf]
    %v776 = vld [vmem:[%s1 + $0x1194] sm:$0xff]
    %v777 = vld [vmem:[%s1 + $0x119c] sm:$0xf]
    %v778 = vld [vmem:[%s1 + $0x11a0] sm:$0xff]
    %v779 = vld [vmem:[%s1 + $0x11a8] sm:$0xf]
    %v780 = vld [vmem:[%s1 + $0x11ac] sm:$0xff]
    %v781 = vld [vmem:[%s1 + $0x11b4] sm:$0xf]
    %v782 = vld [vmem:[%s1 + $0x11b8] sm:$0xff]
    %v783 = vld [vmem:[%s1 + $0x11c0] sm:$0xf]
    %v784 = vld [vmem:[%s1 + $0x11c4] sm:$0xff]
    %v785 = vld [vmem:[%s1 + $0x11cc] sm:$0xf]
    %v786 = vld [vmem:[%s1 + $0x11d0] sm:$0xff]
    %v787 = vld [vmem:[%s1 + $0x11d8] sm:$0xf]
    %v788 = vld [vmem:[%s1 + $0x11dc] sm:$0xff]
    %v789 = vld [vmem:[%s1 + $0x11e4] sm:$0xf]
    %v790 = vld [vmem:[%s1 + $0x11e8] sm:$0xff]
    %v791 = vld [vmem:[%s1 + $0x11f0] sm:$0xf]
    %v792 = vld [vmem:[%s1 + $0x11f4] sm:$0xff]
    %v793 = vld [vmem:[%s1 + $0x11fc] sm:$0xf]
    %v794 = vld [vmem:[%s1 + $0x1200] sm:$0xff]
    %v795 = vld [vmem:[%s1 + $0x1208] sm:$0xf]
    %v796 = vld [vmem:[%s1 + $0x120c] sm:$0xff]
    %v797 = vld [vmem:[%s1 + $0x1214] sm:$0xf]
    %v798 = vld [vmem:[%s1 + $0x1218] sm:$0xff]
    %v799 = vld [vmem:[%s1 + $0x1220] sm:$0xf]
    %v800 = vld [vmem:[%s1 + $0x1224] sm:$0xff]
    %v801 = vld [vmem:[%s1 + $0x122c] sm:$0xf]
    %v802 = vld [vmem:[%s1 + $0x1230] sm:$0xff]
    %v803 = vld [vmem:[%s1 + $0x1238] sm:$0xf]
    %v804 = vld [vmem:[%s1 + $0x123c] sm:$0xff]
    %v805 = vld [vmem:[%s1 + $0x1244] sm:$0xf]
    %v806 = vld [vmem:[%s1 + $0x1248] sm:$0xff]
    %v807 = vld [vmem:[%s1 + $0x1250] sm:$0xf]
    %v808 = vld [vmem:[%s1 + $0x1254] sm:$0xff]
    %v809 = vld [vmem:[%s1 + $0x125c] sm:$0xf]
    %v810 = vld [vmem:[%s1 + $0x1260] sm:$0xff]
    %v811 = vld [vmem:[%s1 + $0x1268] sm:$0xf]
    %v812 = vld [vmem:[%s1 + $0x126c] sm:$0xff]
    %v813 = vld [vmem:[%s1 + $0x1274] sm:$0xf]
    %v814 = vld [vmem:[%s1 + $0x1278] sm:$0xff]
    %v815 = vld [vmem:[%s1 + $0x1280] sm:$0xf]
    %v816 = vld [vmem:[%s1 + $0x1284] sm:$0xff]
    %v817 = vld [vmem:[%s1 + $0x128c] sm:$0xf]
    %v818 = vld [vmem:[%s1 + $0x1290] sm:$0xff]
    %v819 = vld [vmem:[%s1 + $0x1298] sm:$0xf]
    %v820 = vld [vmem:[%s1 + $0x129c] sm:$0xff]
    %v821 = vld [vmem:[%s1 + $0x12a4] sm:$0xf]
    %v822 = vld [vmem:[%s1 + $0x12a8] sm:$0xff]
    %v823 = vld [vmem:[%s1 + $0x12b0] sm:$0xf]
    %v824 = vld [vmem:[%s1 + $0x12b4] sm:$0xff]
    %v825 = vld [vmem:[%s1 + $0x12bc] sm:$0xf]
    %v826 = vld [vmem:[%s2] sm:$0x7]
    %v828 = vlaneseq
    %v829 = vshrl.u32 %v828, 7
    %v830 = vsub.s32 0, %v829
    %v831 = vrot.slane %v826, %v830
    %v832 = vlaneseq
    %v833 = vshrl.u32 %v832, 7
    %v834 = vsub.s32 1, %v833
    %v835 = vrot.slane %v826, %v834
    %v836 = vlaneseq
    %v837 = vshrl.u32 %v836, 7
    %v838 = vsub.s32 2, %v837
    %v839 = vrot.slane %v826, %v838
    %v847 = vcombine.high %v22, %v22
    %v849 = vunpack.c.l.s4 1966171168
    %v850 = vunpack.c.0.s8 %v849
    %v851 = vlaneseq
    %v852 = vshrl.u32 %v851, 7
    %v853 = vsub.s32 %v850, %v852
    %v854 = vrot.slane %v22, %v853
    %v856 = vunpack.c.l.s4 1966171168
    %v857 = vunpack.c.0.s8 %v856
    %v858 = vlaneseq
    %v859 = vshrl.u32 %v858, 7
    %v860 = vsub.s32 %v857, %v859
    %v861 = vrot.slane %v847, %v860
    %v862 = vcombine.high %v854, %v854
    %v863 = vcombine.high %v861, %v861
    %v865 = vunpack.c.l.s4 1966171168
    %v866 = vunpack.c.0.s8 %v865
    %v867 = vlaneseq
    %v868 = vshrl.u32 %v867, 7
    %v869 = vsub.s32 %v866, %v868
    %v870 = vrot.slane %v854, %v869
    %v872 = vunpack.c.l.s4 1966171168
    %v873 = vunpack.c.0.s8 %v872
    %v874 = vlaneseq
    %v875 = vshrl.u32 %v874, 7
    %v876 = vsub.s32 %v873, %v875
    %v877 = vrot.slane %v861, %v876
    %v879 = vunpack.c.l.s4 1966171168
    %v880 = vunpack.c.0.s8 %v879
    %v881 = vlaneseq
    %v882 = vshrl.u32 %v881, 7
    %v883 = vsub.s32 %v880, %v882
    %v884 = vrot.slane %v862, %v883
    %v886 = vunpack.c.l.s4 1966171168
    %v887 = vunpack.c.0.s8 %v886
    %v888 = vlaneseq
    %v889 = vshrl.u32 %v888, 7
    %v890 = vsub.s32 %v887, %v889
    %v891 = vrot.slane %v863, %v890
    %v892 = vcombine.high %v870, %v870
    %v893 = vcombine.high %v877, %v877
    %v894 = vcombine.high %v884, %v884
    %v895 = vcombine.high %v891, %v891
    %v896 = vcombine.high %v23, %v23
    %v898 = vunpack.c.l.s4 1966171168
    %v899 = vunpack.c.0.s8 %v898
    %v900 = vlaneseq
    %v901 = vshrl.u32 %v900, 7
    %v902 = vsub.s32 %v899, %v901
    %v903 = vrot.slane %v23, %v902
    %v905 = vunpack.c.l.s4 1966171168
    %v906 = vunpack.c.0.s8 %v905
    %v907 = vlaneseq
    %v908 = vshrl.u32 %v907, 7
    %v909 = vsub.s32 %v906, %v908
    %v910 = vrot.slane %v896, %v909
    %v911 = vcombine.high %v903, %v903
    %v912 = vcombine.high %v910, %v910
    %v914 = vunpack.c.l.s4 1966171168
    %v915 = vunpack.c.0.s8 %v914
    %v916 = vlaneseq
    %v917 = vshrl.u32 %v916, 7
    %v918 = vsub.s32 %v915, %v917
    %v919 = vrot.slane %v903, %v918
    %v921 = vunpack.c.l.s4 1966171168
    %v922 = vunpack.c.0.s8 %v921
    %v923 = vlaneseq
    %v924 = vshrl.u32 %v923, 7
    %v925 = vsub.s32 %v922, %v924
    %v926 = vrot.slane %v910, %v925
    %v928 = vunpack.c.l.s4 1966171168
    %v929 = vunpack.c.0.s8 %v928
    %v930 = vlaneseq
    %v931 = vshrl.u32 %v930, 7
    %v932 = vsub.s32 %v929, %v931
    %v933 = vrot.slane %v911, %v932
    %v935 = vunpack.c.l.s4 1966171168
    %v936 = vunpack.c.0.s8 %v935
    %v937 = vlaneseq
    %v938 = vshrl.u32 %v937, 7
    %v939 = vsub.s32 %v936, %v938
    %v940 = vrot.slane %v912, %v939
    %v941 = vcombine.high %v919, %v919
    %v942 = vcombine.high %v926, %v926
    %v943 = vcombine.high %v933, %v933
    %v944 = vcombine.high %v940, %v940
    %v945 = vcombine.high %v24, %v24
    %v947 = vunpack.c.l.s4 1966171168
    %v948 = vunpack.c.0.s8 %v947
    %v949 = vlaneseq
    %v950 = vshrl.u32 %v949, 7
    %v951 = vsub.s32 %v948, %v950
    %v952 = vrot.slane %v24, %v951
    %v954 = vunpack.c.l.s4 1966171168
    %v955 = vunpack.c.0.s8 %v954
    %v956 = vlaneseq
    %v957 = vshrl.u32 %v956, 7
    %v958 = vsub.s32 %v955, %v957
    %v959 = vrot.slane %v945, %v958
    %v960 = vcombine.high %v952, %v952
    %v961 = vcombine.high %v959, %v959
    %v963 = vunpack.c.l.s4 1966171168
    %v964 = vunpack.c.0.s8 %v963
    %v965 = vlaneseq
    %v966 = vshrl.u32 %v965, 7
    %v967 = vsub.s32 %v964, %v966
    %v968 = vrot.slane %v952, %v967
    %v970 = vunpack.c.l.s4 1966171168
    %v971 = vunpack.c.0.s8 %v970
    %v972 = vlaneseq
    %v973 = vshrl.u32 %v972, 7
    %v974 = vsub.s32 %v971, %v973
    %v975 = vrot.slane %v959, %v974
    %v977 = vunpack.c.l.s4 1966171168
    %v978 = vunpack.c.0.s8 %v977
    %v979 = vlaneseq
    %v980 = vshrl.u32 %v979, 7
    %v981 = vsub.s32 %v978, %v980
    %v982 = vrot.slane %v960, %v981
    %v984 = vunpack.c.l.s4 1966171168
    %v985 = vunpack.c.0.s8 %v984
    %v986 = vlaneseq
    %v987 = vshrl.u32 %v986, 7
    %v988 = vsub.s32 %v985, %v987
    %v989 = vrot.slane %v961, %v988
    %v990 = vcombine.high %v968, %v968
    %v991 = vcombine.high %v975, %v975
    %v992 = vcombine.high %v982, %v982
    %v993 = vcombine.high %v989, %v989
    %v995 = vunpack.c.l.s4 1966171168
    %v996 = vunpack.c.0.s8 %v995
    %v997 = vlaneseq
    %v998 = vshrl.u32 %v997, 7
    %v999 = vsub.s32 %v996, %v998
    %v1000 = vrot.slane %v25, %v999
    %v1002 = vunpack.c.l.s4 1966171168
    %v1003 = vunpack.c.0.s8 %v1002
    %v1004 = vlaneseq
    %v1005 = vshrl.u32 %v1004, 7
    %v1006 = vsub.s32 %v1003, %v1005
    %v1007 = vrot.slane %v1000, %v1006
    %v1833 = vunpack.c.l.b16 %v26
    %v1834 = vunpack.c.h.b16 %v26
    %v1835 = vunpack.c.l.b16 %v27
    %v1836 = vunpack.c.l.b16 %v28
    %v1837 = vunpack.c.h.b16 %v28
    %v1838 = vunpack.c.l.b16 %v29
    %v1839 = vunpack.c.l.b16 %v30
    %v1840 = vunpack.c.h.b16 %v30
    %v1841 = vunpack.c.l.b16 %v31
    %v1842 = vunpack.c.l.b16 %v32
    %v1843 = vunpack.c.h.b16 %v32
    %v1844 = vunpack.c.l.b16 %v33
    %v1845 = vunpack.c.l.b16 %v34
    %v1846 = vunpack.c.h.b16 %v34
    %v1847 = vunpack.c.l.b16 %v35
    %v1848 = vunpack.c.l.b16 %v36
    %v1849 = vunpack.c.h.b16 %v36
    %v1850 = vunpack.c.l.b16 %v37
    %v1851 = vunpack.c.l.b16 %v38
    %v1852 = vunpack.c.h.b16 %v38
    %v1853 = vunpack.c.l.b16 %v39
    %v1854 = vunpack.c.l.b16 %v40
    %v1855 = vunpack.c.h.b16 %v40
    %v1856 = vunpack.c.l.b16 %v41
    %v1857 = vunpack.c.l.b16 %v42
    %v1858 = vunpack.c.h.b16 %v42
    %v1859 = vunpack.c.l.b16 %v43
    %v1860 = vunpack.c.l.b16 %v44
    %v1861 = vunpack.c.h.b16 %v44
    %v1862 = vunpack.c.l.b16 %v45
    %v1863 = vunpack.c.l.b16 %v46
    %v1864 = vunpack.c.h.b16 %v46
    %v1865 = vunpack.c.l.b16 %v47
    %v1866 = vunpack.c.l.b16 %v48
    %v1867 = vunpack.c.h.b16 %v48
    %v1868 = vunpack.c.l.b16 %v49
    %v1869 = vunpack.c.l.b16 %v50
    %v1870 = vunpack.c.h.b16 %v50
    %v1871 = vunpack.c.l.b16 %v51
    %v1872 = vunpack.c.l.b16 %v52
    %v1873 = vunpack.c.h.b16 %v52
    %v1874 = vunpack.c.l.b16 %v53
    %v1875 = vunpack.c.l.b16 %v54
    %v1876 = vunpack.c.h.b16 %v54
    %v1877 = vunpack.c.l.b16 %v55
    %v1878 = vunpack.c.l.b16 %v56
    %v1879 = vunpack.c.h.b16 %v56
    %v1880 = vunpack.c.l.b16 %v57
    %v1881 = vunpack.c.l.b16 %v58
    %v1882 = vunpack.c.h.b16 %v58
    %v1883 = vunpack.c.l.b16 %v59
    %v1884 = vunpack.c.l.b16 %v60
    %v1885 = vunpack.c.h.b16 %v60
    %v1886 = vunpack.c.l.b16 %v61
    %v1887 = vunpack.c.l.b16 %v62
    %v1888 = vunpack.c.h.b16 %v62
    %v1889 = vunpack.c.l.b16 %v63
    %v1890 = vunpack.c.l.b16 %v64
    %v1891 = vunpack.c.h.b16 %v64
    %v1892 = vunpack.c.l.b16 %v65
    %v1893 = vunpack.c.l.b16 %v66
    %v1894 = vunpack.c.h.b16 %v66
    %v1895 = vunpack.c.l.b16 %v67
    %v1896 = vunpack.c.l.b16 %v68
    %v1897 = vunpack.c.h.b16 %v68
    %v1898 = vunpack.c.l.b16 %v69
    %v1899 = vunpack.c.l.b16 %v70
    %v1900 = vunpack.c.h.b16 %v70
    %v1901 = vunpack.c.l.b16 %v71
    %v1902 = vunpack.c.l.b16 %v72
    %v1903 = vunpack.c.h.b16 %v72
    %v1904 = vunpack.c.l.b16 %v73
    %v1905 = vunpack.c.l.b16 %v74
    %v1906 = vunpack.c.h.b16 %v74
    %v1907 = vunpack.c.l.b16 %v75
    %v1908 = vunpack.c.l.b16 %v76
    %v1909 = vunpack.c.h.b16 %v76
    %v1910 = vunpack.c.l.b16 %v77
    %v1911 = vunpack.c.l.b16 %v78
    %v1912 = vunpack.c.h.b16 %v78
    %v1913 = vunpack.c.l.b16 %v79
    %v1914 = vunpack.c.l.b16 %v80
    %v1915 = vunpack.c.h.b16 %v80
    %v1916 = vunpack.c.l.b16 %v81
    %v1917 = vunpack.c.l.b16 %v82
    %v1918 = vunpack.c.h.b16 %v82
    %v1919 = vunpack.c.l.b16 %v83
    %v1920 = vunpack.c.l.b16 %v84
    %v1921 = vunpack.c.h.b16 %v84
    %v1922 = vunpack.c.l.b16 %v85
    %v1923 = vunpack.c.l.b16 %v86
    %v1924 = vunpack.c.h.b16 %v86
    %v1925 = vunpack.c.l.b16 %v87
    %v1926 = vunpack.c.l.b16 %v88
    %v1927 = vunpack.c.h.b16 %v88
    %v1928 = vunpack.c.l.b16 %v89
    %v1929 = vunpack.c.l.b16 %v90
    %v1930 = vunpack.c.h.b16 %v90
    %v1931 = vunpack.c.l.b16 %v91
    %v1932 = vunpack.c.l.b16 %v92
    %v1933 = vunpack.c.h.b16 %v92
    %v1934 = vunpack.c.l.b16 %v93
    %v1935 = vunpack.c.l.b16 %v94
    %v1936 = vunpack.c.h.b16 %v94
    %v1937 = vunpack.c.l.b16 %v95
    %v1938 = vunpack.c.l.b16 %v96
    %v1939 = vunpack.c.h.b16 %v96
    %v1940 = vunpack.c.l.b16 %v97
    %v1941 = vunpack.c.l.b16 %v98
    %v1942 = vunpack.c.h.b16 %v98
    %v1943 = vunpack.c.l.b16 %v99
    %v1944 = vunpack.c.l.b16 %v100
    %v1945 = vunpack.c.h.b16 %v100
    %v1946 = vunpack.c.l.b16 %v101
    %v1947 = vunpack.c.l.b16 %v102
    %v1948 = vunpack.c.h.b16 %v102
    %v1949 = vunpack.c.l.b16 %v103
    %v1950 = vunpack.c.l.b16 %v104
    %v1951 = vunpack.c.h.b16 %v104
    %v1952 = vunpack.c.l.b16 %v105
    %v1953 = vunpack.c.l.b16 %v106
    %v1954 = vunpack.c.h.b16 %v106
    %v1955 = vunpack.c.l.b16 %v107
    %v1956 = vunpack.c.l.b16 %v108
    %v1957 = vunpack.c.h.b16 %v108
    %v1958 = vunpack.c.l.b16 %v109
    %v1959 = vunpack.c.l.b16 %v110
    %v1960 = vunpack.c.h.b16 %v110
    %v1961 = vunpack.c.l.b16 %v111
    %v1962 = vunpack.c.l.b16 %v112
    %v1963 = vunpack.c.h.b16 %v112
    %v1964 = vunpack.c.l.b16 %v113
    %v1965 = vunpack.c.l.b16 %v114
    %v1966 = vunpack.c.h.b16 %v114
    %v1967 = vunpack.c.l.b16 %v115
    %v1968 = vunpack.c.l.b16 %v116
    %v1969 = vunpack.c.h.b16 %v116
    %v1970 = vunpack.c.l.b16 %v117
    %v1971 = vunpack.c.l.b16 %v118
    %v1972 = vunpack.c.h.b16 %v118
    %v1973 = vunpack.c.l.b16 %v119
    %v1974 = vunpack.c.l.b16 %v120
    %v1975 = vunpack.c.h.b16 %v120
    %v1976 = vunpack.c.l.b16 %v121
    %v1977 = vunpack.c.l.b16 %v122
    %v1978 = vunpack.c.h.b16 %v122
    %v1979 = vunpack.c.l.b16 %v123
    %v1980 = vunpack.c.l.b16 %v124
    %v1981 = vunpack.c.h.b16 %v124
    %v1982 = vunpack.c.l.b16 %v125
    %v1983 = vunpack.c.l.b16 %v126
    %v1984 = vunpack.c.h.b16 %v126
    %v1985 = vunpack.c.l.b16 %v127
    %v1986 = vunpack.c.l.b16 %v128
    %v1987 = vunpack.c.h.b16 %v128
    %v1988 = vunpack.c.l.b16 %v129
    %v1989 = vunpack.c.l.b16 %v130
    %v1990 = vunpack.c.h.b16 %v130
    %v1991 = vunpack.c.l.b16 %v131
    %v1992 = vunpack.c.l.b16 %v132
    %v1993 = vunpack.c.h.b16 %v132
    %v1994 = vunpack.c.l.b16 %v133
    %v1995 = vunpack.c.l.b16 %v134
    %v1996 = vunpack.c.h.b16 %v134
    %v1997 = vunpack.c.l.b16 %v135
    %v1998 = vunpack.c.l.b16 %v136
    %v1999 = vunpack.c.h.b16 %v136
    %v2000 = vunpack.c.l.b16 %v137
    %v2001 = vunpack.c.l.b16 %v138
    %v2002 = vunpack.c.h.b16 %v138
    %v2003 = vunpack.c.l.b16 %v139
    %v2004 = vunpack.c.l.b16 %v140
    %v2005 = vunpack.c.h.b16 %v140
    %v2006 = vunpack.c.l.b16 %v141
    %v2007 = vunpack.c.l.b16 %v142
    %v2008 = vunpack.c.h.b16 %v142
    %v2009 = vunpack.c.l.b16 %v143
    %v2010 = vunpack.c.l.b16 %v144
    %v2011 = vunpack.c.h.b16 %v144
    %v2012 = vunpack.c.l.b16 %v145
    %v2013 = vunpack.c.l.b16 %v146
    %v2014 = vunpack.c.h.b16 %v146
    %v2015 = vunpack.c.l.b16 %v147
    %v2016 = vunpack.c.l.b16 %v148
    %v2017 = vunpack.c.h.b16 %v148
    %v2018 = vunpack.c.l.b16 %v149
    %v2019 = vunpack.c.l.b16 %v150
    %v2020 = vunpack.c.h.b16 %v150
    %v2021 = vunpack.c.l.b16 %v151
    %v2022 = vunpack.c.l.b16 %v152
    %v2023 = vunpack.c.h.b16 %v152
    %v2024 = vunpack.c.l.b16 %v153
    %v2025 = vunpack.c.l.b16 %v154
    %v2026 = vunpack.c.h.b16 %v154
    %v2027 = vunpack.c.l.b16 %v155
    %v2028 = vunpack.c.l.b16 %v156
    %v2029 = vunpack.c.h.b16 %v156
    %v2030 = vunpack.c.l.b16 %v157
    %v2031 = vunpack.c.l.b16 %v158
    %v2032 = vunpack.c.h.b16 %v158
    %v2033 = vunpack.c.l.b16 %v159
    %v2034 = vunpack.c.l.b16 %v160
    %v2035 = vunpack.c.h.b16 %v160
    %v2036 = vunpack.c.l.b16 %v161
    %v2037 = vunpack.c.l.b16 %v162
    %v2038 = vunpack.c.h.b16 %v162
    %v2039 = vunpack.c.l.b16 %v163
    %v2040 = vunpack.c.l.b16 %v164
    %v2041 = vunpack.c.h.b16 %v164
    %v2042 = vunpack.c.l.b16 %v165
    %v2043 = vunpack.c.l.b16 %v166
    %v2044 = vunpack.c.h.b16 %v166
    %v2045 = vunpack.c.l.b16 %v167
    %v2046 = vunpack.c.l.b16 %v168
    %v2047 = vunpack.c.h.b16 %v168
    %v2048 = vunpack.c.l.b16 %v169
    %v2049 = vunpack.c.l.b16 %v170
    %v2050 = vunpack.c.h.b16 %v170
    %v2051 = vunpack.c.l.b16 %v171
    %v2052 = vunpack.c.l.b16 %v172
    %v2053 = vunpack.c.h.b16 %v172
    %v2054 = vunpack.c.l.b16 %v173
    %v2055 = vunpack.c.l.b16 %v174
    %v2056 = vunpack.c.h.b16 %v174
    %v2057 = vunpack.c.l.b16 %v175
    %v2058 = vunpack.c.l.b16 %v176
    %v2059 = vunpack.c.h.b16 %v176
    %v2060 = vunpack.c.l.b16 %v177
    %v2061 = vunpack.c.l.b16 %v178
    %v2062 = vunpack.c.h.b16 %v178
    %v2063 = vunpack.c.l.b16 %v179
    %v2064 = vunpack.c.l.b16 %v180
    %v2065 = vunpack.c.h.b16 %v180
    %v2066 = vunpack.c.l.b16 %v181
    %v2067 = vunpack.c.l.b16 %v182
    %v2068 = vunpack.c.h.b16 %v182
    %v2069 = vunpack.c.l.b16 %v183
    %v2070 = vunpack.c.l.b16 %v184
    %v2071 = vunpack.c.h.b16 %v184
    %v2072 = vunpack.c.l.b16 %v185
    %v2073 = vunpack.c.l.b16 %v186
    %v2074 = vunpack.c.h.b16 %v186
    %v2075 = vunpack.c.l.b16 %v187
    %v2076 = vunpack.c.l.b16 %v188
    %v2077 = vunpack.c.h.b16 %v188
    %v2078 = vunpack.c.l.b16 %v189
    %v2079 = vunpack.c.l.b16 %v190
    %v2080 = vunpack.c.h.b16 %v190
    %v2081 = vunpack.c.l.b16 %v191
    %v2082 = vunpack.c.l.b16 %v192
    %v2083 = vunpack.c.h.b16 %v192
    %v2084 = vunpack.c.l.b16 %v193
    %v2085 = vunpack.c.l.b16 %v194
    %v2086 = vunpack.c.h.b16 %v194
    %v2087 = vunpack.c.l.b16 %v195
    %v2088 = vunpack.c.l.b16 %v196
    %v2089 = vunpack.c.h.b16 %v196
    %v2090 = vunpack.c.l.b16 %v197
    %v2091 = vunpack.c.l.b16 %v198
    %v2092 = vunpack.c.h.b16 %v198
    %v2093 = vunpack.c.l.b16 %v199
    %v2094 = vunpack.c.l.b16 %v200
    %v2095 = vunpack.c.h.b16 %v200
    %v2096 = vunpack.c.l.b16 %v201
    %v2097 = vunpack.c.l.b16 %v202
    %v2098 = vunpack.c.h.b16 %v202
    %v2099 = vunpack.c.l.b16 %v203
    %v2100 = vunpack.c.l.b16 %v204
    %v2101 = vunpack.c.h.b16 %v204
    %v2102 = vunpack.c.l.b16 %v205
    %v2103 = vunpack.c.l.b16 %v206
    %v2104 = vunpack.c.h.b16 %v206
    %v2105 = vunpack.c.l.b16 %v207
    %v2106 = vunpack.c.l.b16 %v208
    %v2107 = vunpack.c.h.b16 %v208
    %v2108 = vunpack.c.l.b16 %v209
    %v2109 = vunpack.c.l.b16 %v210
    %v2110 = vunpack.c.h.b16 %v210
    %v2111 = vunpack.c.l.b16 %v211
    %v2112 = vunpack.c.l.b16 %v212
    %v2113 = vunpack.c.h.b16 %v212
    %v2114 = vunpack.c.l.b16 %v213
    %v2115 = vunpack.c.l.b16 %v214
    %v2116 = vunpack.c.h.b16 %v214
    %v2117 = vunpack.c.l.b16 %v215
    %v2118 = vunpack.c.l.b16 %v216
    %v2119 = vunpack.c.h.b16 %v216
    %v2120 = vunpack.c.l.b16 %v217
    %v2121 = vunpack.c.l.b16 %v218
    %v2122 = vunpack.c.h.b16 %v218
    %v2123 = vunpack.c.l.b16 %v219
    %v2124 = vunpack.c.l.b16 %v220
    %v2125 = vunpack.c.h.b16 %v220
    %v2126 = vunpack.c.l.b16 %v221
    %v2127 = vunpack.c.l.b16 %v222
    %v2128 = vunpack.c.h.b16 %v222
    %v2129 = vunpack.c.l.b16 %v223
    %v2130 = vunpack.c.l.b16 %v224
    %v2131 = vunpack.c.h.b16 %v224
    %v2132 = vunpack.c.l.b16 %v225
    %v2133 = vunpack.c.l.b16 %v226
    %v2134 = vunpack.c.h.b16 %v226
    %v2135 = vunpack.c.l.b16 %v227
    %v2136 = vunpack.c.l.b16 %v228
    %v2137 = vunpack.c.h.b16 %v228
    %v2138 = vunpack.c.l.b16 %v229
    %v2139 = vunpack.c.l.b16 %v230
    %v2140 = vunpack.c.h.b16 %v230
    %v2141 = vunpack.c.l.b16 %v231
    %v2142 = vunpack.c.l.b16 %v232
    %v2143 = vunpack.c.h.b16 %v232
    %v2144 = vunpack.c.l.b16 %v233
    %v2145 = vunpack.c.l.b16 %v234
    %v2146 = vunpack.c.h.b16 %v234
    %v2147 = vunpack.c.l.b16 %v235
    %v2148 = vunpack.c.l.b16 %v236
    %v2149 = vunpack.c.h.b16 %v236
    %v2150 = vunpack.c.l.b16 %v237
    %v2151 = vunpack.c.l.b16 %v238
    %v2152 = vunpack.c.h.b16 %v238
    %v2153 = vunpack.c.l.b16 %v239
    %v2154 = vunpack.c.l.b16 %v240
    %v2155 = vunpack.c.h.b16 %v240
    %v2156 = vunpack.c.l.b16 %v241
    %v2157 = vunpack.c.l.b16 %v242
    %v2158 = vunpack.c.h.b16 %v242
    %v2159 = vunpack.c.l.b16 %v243
    %v2160 = vunpack.c.l.b16 %v244
    %v2161 = vunpack.c.h.b16 %v244
    %v2162 = vunpack.c.l.b16 %v245
    %v2163 = vunpack.c.l.b16 %v246
    %v2164 = vunpack.c.h.b16 %v246
    %v2165 = vunpack.c.l.b16 %v247
    %v2166 = vunpack.c.l.b16 %v248
    %v2167 = vunpack.c.h.b16 %v248
    %v2168 = vunpack.c.l.b16 %v249
    %v2169 = vunpack.c.l.b16 %v250
    %v2170 = vunpack.c.h.b16 %v250
    %v2171 = vunpack.c.l.b16 %v251
    %v2172 = vunpack.c.l.b16 %v252
    %v2173 = vunpack.c.h.b16 %v252
    %v2174 = vunpack.c.l.b16 %v253
    %v2175 = vunpack.c.l.b16 %v254
    %v2176 = vunpack.c.h.b16 %v254
    %v2177 = vunpack.c.l.b16 %v255
    %v2178 = vunpack.c.l.b16 %v256
    %v2179 = vunpack.c.h.b16 %v256
    %v2180 = vunpack.c.l.b16 %v257
    %v2181 = vunpack.c.l.b16 %v258
    %v2182 = vunpack.c.h.b16 %v258
    %v2183 = vunpack.c.l.b16 %v259
    %v2184 = vunpack.c.l.b16 %v260
    %v2185 = vunpack.c.h.b16 %v260
    %v2186 = vunpack.c.l.b16 %v261
    %v2187 = vunpack.c.l.b16 %v262
    %v2188 = vunpack.c.h.b16 %v262
    %v2189 = vunpack.c.l.b16 %v263
    %v2190 = vunpack.c.l.b16 %v264
    %v2191 = vunpack.c.h.b16 %v264
    %v2192 = vunpack.c.l.b16 %v265
    %v2193 = vunpack.c.l.b16 %v266
    %v2194 = vunpack.c.h.b16 %v266
    %v2195 = vunpack.c.l.b16 %v267
    %v2196 = vunpack.c.l.b16 %v268
    %v2197 = vunpack.c.h.b16 %v268
    %v2198 = vunpack.c.l.b16 %v269
    %v2199 = vunpack.c.l.b16 %v270
    %v2200 = vunpack.c.h.b16 %v270
    %v2201 = vunpack.c.l.b16 %v271
    %v2202 = vunpack.c.l.b16 %v272
    %v2203 = vunpack.c.h.b16 %v272
    %v2204 = vunpack.c.l.b16 %v273
    %v2205 = vunpack.c.l.b16 %v274
    %v2206 = vunpack.c.h.b16 %v274
    %v2207 = vunpack.c.l.b16 %v275
    %v2208 = vunpack.c.l.b16 %v276
    %v2209 = vunpack.c.h.b16 %v276
    %v2210 = vunpack.c.l.b16 %v277
    %v2211 = vunpack.c.l.b16 %v278
    %v2212 = vunpack.c.h.b16 %v278
    %v2213 = vunpack.c.l.b16 %v279
    %v2214 = vunpack.c.l.b16 %v280
    %v2215 = vunpack.c.h.b16 %v280
    %v2216 = vunpack.c.l.b16 %v281
    %v2217 = vunpack.c.l.b16 %v282
    %v2218 = vunpack.c.h.b16 %v282
    %v2219 = vunpack.c.l.b16 %v283
    %v2220 = vunpack.c.l.b16 %v284
    %v2221 = vunpack.c.h.b16 %v284
    %v2222 = vunpack.c.l.b16 %v285
    %v2223 = vunpack.c.l.b16 %v286
    %v2224 = vunpack.c.h.b16 %v286
    %v2225 = vunpack.c.l.b16 %v287
    %v2226 = vunpack.c.l.b16 %v288
    %v2227 = vunpack.c.h.b16 %v288
    %v2228 = vunpack.c.l.b16 %v289
    %v2229 = vunpack.c.l.b16 %v290
    %v2230 = vunpack.c.h.b16 %v290
    %v2231 = vunpack.c.l.b16 %v291
    %v2232 = vunpack.c.l.b16 %v292
    %v2233 = vunpack.c.h.b16 %v292
    %v2234 = vunpack.c.l.b16 %v293
    %v2235 = vunpack.c.l.b16 %v294
    %v2236 = vunpack.c.h.b16 %v294
    %v2237 = vunpack.c.l.b16 %v295
    %v2238 = vunpack.c.l.b16 %v296
    %v2239 = vunpack.c.h.b16 %v296
    %v2240 = vunpack.c.l.b16 %v297
    %v2241 = vunpack.c.l.b16 %v298
    %v2242 = vunpack.c.h.b16 %v298
    %v2243 = vunpack.c.l.b16 %v299
    %v2244 = vunpack.c.l.b16 %v300
    %v2245 = vunpack.c.h.b16 %v300
    %v2246 = vunpack.c.l.b16 %v301
    %v2247 = vunpack.c.l.b16 %v302
    %v2248 = vunpack.c.h.b16 %v302
    %v2249 = vunpack.c.l.b16 %v303
    %v2250 = vunpack.c.l.b16 %v304
    %v2251 = vunpack.c.h.b16 %v304
    %v2252 = vunpack.c.l.b16 %v305
    %v2253 = vunpack.c.l.b16 %v306
    %v2254 = vunpack.c.h.b16 %v306
    %v2255 = vunpack.c.l.b16 %v307
    %v2256 = vunpack.c.l.b16 %v308
    %v2257 = vunpack.c.h.b16 %v308
    %v2258 = vunpack.c.l.b16 %v309
    %v2259 = vunpack.c.l.b16 %v310
    %v2260 = vunpack.c.h.b16 %v310
    %v2261 = vunpack.c.l.b16 %v311
    %v2262 = vunpack.c.l.b16 %v312
    %v2263 = vunpack.c.h.b16 %v312
    %v2264 = vunpack.c.l.b16 %v313
    %v2265 = vunpack.c.l.b16 %v314
    %v2266 = vunpack.c.h.b16 %v314
    %v2267 = vunpack.c.l.b16 %v315
    %v2268 = vunpack.c.l.b16 %v316
    %v2269 = vunpack.c.h.b16 %v316
    %v2270 = vunpack.c.l.b16 %v317
    %v2271 = vunpack.c.l.b16 %v318
    %v2272 = vunpack.c.h.b16 %v318
    %v2273 = vunpack.c.l.b16 %v319
    %v2274 = vunpack.c.l.b16 %v320
    %v2275 = vunpack.c.h.b16 %v320
    %v2276 = vunpack.c.l.b16 %v321
    %v2277 = vunpack.c.l.b16 %v322
    %v2278 = vunpack.c.h.b16 %v322
    %v2279 = vunpack.c.l.b16 %v323
    %v2280 = vunpack.c.l.b16 %v324
    %v2281 = vunpack.c.h.b16 %v324
    %v2282 = vunpack.c.l.b16 %v325
    %v2283 = vunpack.c.l.b16 %v326
    %v2284 = vunpack.c.h.b16 %v326
    %v2285 = vunpack.c.l.b16 %v327
    %v2286 = vunpack.c.l.b16 %v328
    %v2287 = vunpack.c.h.b16 %v328
    %v2288 = vunpack.c.l.b16 %v329
    %v2289 = vunpack.c.l.b16 %v330
    %v2290 = vunpack.c.h.b16 %v330
    %v2291 = vunpack.c.l.b16 %v331
    %v2292 = vunpack.c.l.b16 %v332
    %v2293 = vunpack.c.h.b16 %v332
    %v2294 = vunpack.c.l.b16 %v333
    %v2295 = vunpack.c.l.b16 %v334
    %v2296 = vunpack.c.h.b16 %v334
    %v2297 = vunpack.c.l.b16 %v335
    %v2298 = vunpack.c.l.b16 %v336
    %v2299 = vunpack.c.h.b16 %v336
    %v2300 = vunpack.c.l.b16 %v337
    %v2301 = vunpack.c.l.b16 %v338
    %v2302 = vunpack.c.h.b16 %v338
    %v2303 = vunpack.c.l.b16 %v339
    %v2304 = vunpack.c.l.b16 %v340
    %v2305 = vunpack.c.h.b16 %v340
    %v2306 = vunpack.c.l.b16 %v341
    %v2307 = vunpack.c.l.b16 %v342
    %v2308 = vunpack.c.h.b16 %v342
    %v2309 = vunpack.c.l.b16 %v343
    %v2310 = vunpack.c.l.b16 %v344
    %v2311 = vunpack.c.h.b16 %v344
    %v2312 = vunpack.c.l.b16 %v345
    %v2313 = vunpack.c.l.b16 %v346
    %v2314 = vunpack.c.h.b16 %v346
    %v2315 = vunpack.c.l.b16 %v347
    %v2316 = vunpack.c.l.b16 %v348
    %v2317 = vunpack.c.h.b16 %v348
    %v2318 = vunpack.c.l.b16 %v349
    %v2319 = vunpack.c.l.b16 %v350
    %v2320 = vunpack.c.h.b16 %v350
    %v2321 = vunpack.c.l.b16 %v351
    %v2322 = vunpack.c.l.b16 %v352
    %v2323 = vunpack.c.h.b16 %v352
    %v2324 = vunpack.c.l.b16 %v353
    %v2325 = vunpack.c.l.b16 %v354
    %v2326 = vunpack.c.h.b16 %v354
    %v2327 = vunpack.c.l.b16 %v355
    %v2328 = vunpack.c.l.b16 %v356
    %v2329 = vunpack.c.h.b16 %v356
    %v2330 = vunpack.c.l.b16 %v357
    %v2331 = vunpack.c.l.b16 %v358
    %v2332 = vunpack.c.h.b16 %v358
    %v2333 = vunpack.c.l.b16 %v359
    %v2334 = vunpack.c.l.b16 %v360
    %v2335 = vunpack.c.h.b16 %v360
    %v2336 = vunpack.c.l.b16 %v361
    %v2337 = vunpack.c.l.b16 %v362
    %v2338 = vunpack.c.h.b16 %v362
    %v2339 = vunpack.c.l.b16 %v363
    %v2340 = vunpack.c.l.b16 %v364
    %v2341 = vunpack.c.h.b16 %v364
    %v2342 = vunpack.c.l.b16 %v365
    %v2343 = vunpack.c.l.b16 %v366
    %v2344 = vunpack.c.h.b16 %v366
    %v2345 = vunpack.c.l.b16 %v367
    %v2346 = vunpack.c.l.b16 %v368
    %v2347 = vunpack.c.h.b16 %v368
    %v2348 = vunpack.c.l.b16 %v369
    %v2349 = vunpack.c.l.b16 %v370
    %v2350 = vunpack.c.h.b16 %v370
    %v2351 = vunpack.c.l.b16 %v371
    %v2352 = vunpack.c.l.b16 %v372
    %v2353 = vunpack.c.h.b16 %v372
    %v2354 = vunpack.c.l.b16 %v373
    %v2355 = vunpack.c.l.b16 %v374
    %v2356 = vunpack.c.h.b16 %v374
    %v2357 = vunpack.c.l.b16 %v375
    %v2358 = vunpack.c.l.b16 %v376
    %v2359 = vunpack.c.h.b16 %v376
    %v2360 = vunpack.c.l.b16 %v377
    %v2361 = vunpack.c.l.b16 %v378
    %v2362 = vunpack.c.h.b16 %v378
    %v2363 = vunpack.c.l.b16 %v379
    %v2364 = vunpack.c.l.b16 %v380
    %v2365 = vunpack.c.h.b16 %v380
    %v2366 = vunpack.c.l.b16 %v381
    %v2367 = vunpack.c.l.b16 %v382
    %v2368 = vunpack.c.h.b16 %v382
    %v2369 = vunpack.c.l.b16 %v383
    %v2370 = vunpack.c.l.b16 %v384
    %v2371 = vunpack.c.h.b16 %v384
    %v2372 = vunpack.c.l.b16 %v385
    %v2373 = vunpack.c.l.b16 %v386
    %v2374 = vunpack.c.h.b16 %v386
    %v2375 = vunpack.c.l.b16 %v387
    %v2376 = vunpack.c.l.b16 %v388
    %v2377 = vunpack.c.h.b16 %v388
    %v2378 = vunpack.c.l.b16 %v389
    %v2379 = vunpack.c.l.b16 %v390
    %v2380 = vunpack.c.h.b16 %v390
    %v2381 = vunpack.c.l.b16 %v391
    %v2382 = vunpack.c.l.b16 %v392
    %v2383 = vunpack.c.h.b16 %v392
    %v2384 = vunpack.c.l.b16 %v393
    %v2385 = vunpack.c.l.b16 %v394
    %v2386 = vunpack.c.h.b16 %v394
    %v2387 = vunpack.c.l.b16 %v395
    %v2388 = vunpack.c.l.b16 %v396
    %v2389 = vunpack.c.h.b16 %v396
    %v2390 = vunpack.c.l.b16 %v397
    %v2391 = vunpack.c.l.b16 %v398
    %v2392 = vunpack.c.h.b16 %v398
    %v2393 = vunpack.c.l.b16 %v399
    %v2394 = vunpack.c.l.b16 %v400
    %v2395 = vunpack.c.h.b16 %v400
    %v2396 = vunpack.c.l.b16 %v401
    %v2397 = vunpack.c.l.b16 %v402
    %v2398 = vunpack.c.h.b16 %v402
    %v2399 = vunpack.c.l.b16 %v403
    %v2400 = vunpack.c.l.b16 %v404
    %v2401 = vunpack.c.h.b16 %v404
    %v2402 = vunpack.c.l.b16 %v405
    %v2403 = vunpack.c.l.b16 %v406
    %v2404 = vunpack.c.h.b16 %v406
    %v2405 = vunpack.c.l.b16 %v407
    %v2406 = vunpack.c.l.b16 %v408
    %v2407 = vunpack.c.h.b16 %v408
    %v2408 = vunpack.c.l.b16 %v409
    %v2409 = vunpack.c.l.b16 %v410
    %v2410 = vunpack.c.h.b16 %v410
    %v2411 = vunpack.c.l.b16 %v411
    %v2412 = vunpack.c.l.b16 %v412
    %v2413 = vunpack.c.h.b16 %v412
    %v2414 = vunpack.c.l.b16 %v413
    %v2415 = vunpack.c.l.b16 %v414
    %v2416 = vunpack.c.h.b16 %v414
    %v2417 = vunpack.c.l.b16 %v415
    %v2418 = vunpack.c.l.b16 %v416
    %v2419 = vunpack.c.h.b16 %v416
    %v2420 = vunpack.c.l.b16 %v417
    %v2421 = vunpack.c.l.b16 %v418
    %v2422 = vunpack.c.h.b16 %v418
    %v2423 = vunpack.c.l.b16 %v419
    %v2424 = vunpack.c.l.b16 %v420
    %v2425 = vunpack.c.h.b16 %v420
    %v2426 = vunpack.c.l.b16 %v421
    %v2427 = vunpack.c.l.b16 %v422
    %v2428 = vunpack.c.h.b16 %v422
    %v2429 = vunpack.c.l.b16 %v423
    %v2430 = vunpack.c.l.b16 %v424
    %v2431 = vunpack.c.h.b16 %v424
    %v2432 = vunpack.c.l.b16 %v425
    %v2433 = vunpack.c.l.b16 %v426
    %v2434 = vunpack.c.h.b16 %v426
    %v2435 = vunpack.c.l.b16 %v427
    %v2436 = vunpack.c.l.b16 %v428
    %v2437 = vunpack.c.h.b16 %v428
    %v2438 = vunpack.c.l.b16 %v429
    %v2439 = vunpack.c.l.b16 %v430
    %v2440 = vunpack.c.h.b16 %v430
    %v2441 = vunpack.c.l.b16 %v431
    %v2442 = vunpack.c.l.b16 %v432
    %v2443 = vunpack.c.h.b16 %v432
    %v2444 = vunpack.c.l.b16 %v433
    %v2445 = vunpack.c.l.b16 %v434
    %v2446 = vunpack.c.h.b16 %v434
    %v2447 = vunpack.c.l.b16 %v435
    %v2448 = vunpack.c.l.b16 %v436
    %v2449 = vunpack.c.h.b16 %v436
    %v2450 = vunpack.c.l.b16 %v437
    %v2451 = vunpack.c.l.b16 %v438
    %v2452 = vunpack.c.h.b16 %v438
    %v2453 = vunpack.c.l.b16 %v439
    %v2454 = vunpack.c.l.b16 %v440
    %v2455 = vunpack.c.h.b16 %v440
    %v2456 = vunpack.c.l.b16 %v441
    %v2457 = vunpack.c.l.b16 %v442
    %v2458 = vunpack.c.h.b16 %v442
    %v2459 = vunpack.c.l.b16 %v443
    %v2460 = vunpack.c.l.b16 %v444
    %v2461 = vunpack.c.h.b16 %v444
    %v2462 = vunpack.c.l.b16 %v445
    %v2463 = vunpack.c.l.b16 %v446
    %v2464 = vunpack.c.h.b16 %v446
    %v2465 = vunpack.c.l.b16 %v447
    %v2466 = vunpack.c.l.b16 %v448
    %v2467 = vunpack.c.h.b16 %v448
    %v2468 = vunpack.c.l.b16 %v449
    %v2469 = vunpack.c.l.b16 %v450
    %v2470 = vunpack.c.h.b16 %v450
    %v2471 = vunpack.c.l.b16 %v451
    %v2472 = vunpack.c.l.b16 %v452
    %v2473 = vunpack.c.h.b16 %v452
    %v2474 = vunpack.c.l.b16 %v453
    %v2475 = vunpack.c.l.b16 %v454
    %v2476 = vunpack.c.h.b16 %v454
    %v2477 = vunpack.c.l.b16 %v455
    %v2478 = vunpack.c.l.b16 %v456
    %v2479 = vunpack.c.h.b16 %v456
    %v2480 = vunpack.c.l.b16 %v457
    %v2481 = vunpack.c.l.b16 %v458
    %v2482 = vunpack.c.h.b16 %v458
    %v2483 = vunpack.c.l.b16 %v459
    %v2484 = vunpack.c.l.b16 %v460
    %v2485 = vunpack.c.h.b16 %v460
    %v2486 = vunpack.c.l.b16 %v461
    %v2487 = vunpack.c.l.b16 %v462
    %v2488 = vunpack.c.h.b16 %v462
    %v2489 = vunpack.c.l.b16 %v463
    %v2490 = vunpack.c.l.b16 %v464
    %v2491 = vunpack.c.h.b16 %v464
    %v2492 = vunpack.c.l.b16 %v465
    %v2493 = vunpack.c.l.b16 %v466
    %v2494 = vunpack.c.h.b16 %v466
    %v2495 = vunpack.c.l.b16 %v467
    %v2496 = vunpack.c.l.b16 %v468
    %v2497 = vunpack.c.h.b16 %v468
    %v2498 = vunpack.c.l.b16 %v469
    %v2499 = vunpack.c.l.b16 %v470
    %v2500 = vunpack.c.h.b16 %v470
    %v2501 = vunpack.c.l.b16 %v471
    %v2502 = vunpack.c.l.b16 %v472
    %v2503 = vunpack.c.h.b16 %v472
    %v2504 = vunpack.c.l.b16 %v473
    %v2505 = vunpack.c.l.b16 %v474
    %v2506 = vunpack.c.h.b16 %v474
    %v2507 = vunpack.c.l.b16 %v475
    %v2508 = vunpack.c.l.b16 %v476
    %v2509 = vunpack.c.h.b16 %v476
    %v2510 = vunpack.c.l.b16 %v477
    %v2511 = vunpack.c.l.b16 %v478
    %v2512 = vunpack.c.h.b16 %v478
    %v2513 = vunpack.c.l.b16 %v479
    %v2514 = vunpack.c.l.b16 %v480
    %v2515 = vunpack.c.h.b16 %v480
    %v2516 = vunpack.c.l.b16 %v481
    %v2517 = vunpack.c.l.b16 %v482
    %v2518 = vunpack.c.h.b16 %v482
    %v2519 = vunpack.c.l.b16 %v483
    %v2520 = vunpack.c.l.b16 %v484
    %v2521 = vunpack.c.h.b16 %v484
    %v2522 = vunpack.c.l.b16 %v485
    %v2523 = vunpack.c.l.b16 %v486
    %v2524 = vunpack.c.h.b16 %v486
    %v2525 = vunpack.c.l.b16 %v487
    %v2526 = vunpack.c.l.b16 %v488
    %v2527 = vunpack.c.h.b16 %v488
    %v2528 = vunpack.c.l.b16 %v489
    %v2529 = vunpack.c.l.b16 %v490
    %v2530 = vunpack.c.h.b16 %v490
    %v2531 = vunpack.c.l.b16 %v491
    %v2532 = vunpack.c.l.b16 %v492
    %v2533 = vunpack.c.h.b16 %v492
    %v2534 = vunpack.c.l.b16 %v493
    %v2535 = vunpack.c.l.b16 %v494
    %v2536 = vunpack.c.h.b16 %v494
    %v2537 = vunpack.c.l.b16 %v495
    %v2538 = vunpack.c.l.b16 %v496
    %v2539 = vunpack.c.h.b16 %v496
    %v2540 = vunpack.c.l.b16 %v497
    %v2541 = vunpack.c.l.b16 %v498
    %v2542 = vunpack.c.h.b16 %v498
    %v2543 = vunpack.c.l.b16 %v499
    %v2544 = vunpack.c.l.b16 %v500
    %v2545 = vunpack.c.h.b16 %v500
    %v2546 = vunpack.c.l.b16 %v501
    %v2547 = vunpack.c.l.b16 %v502
    %v2548 = vunpack.c.h.b16 %v502
    %v2549 = vunpack.c.l.b16 %v503
    %v2550 = vunpack.c.l.b16 %v504
    %v2551 = vunpack.c.h.b16 %v504
    %v2552 = vunpack.c.l.b16 %v505
    %v2553 = vunpack.c.l.b16 %v506
    %v2554 = vunpack.c.h.b16 %v506
    %v2555 = vunpack.c.l.b16 %v507
    %v2556 = vunpack.c.l.b16 %v508
    %v2557 = vunpack.c.h.b16 %v508
    %v2558 = vunpack.c.l.b16 %v509
    %v2559 = vunpack.c.l.b16 %v510
    %v2560 = vunpack.c.h.b16 %v510
    %v2561 = vunpack.c.l.b16 %v511
    %v2562 = vunpack.c.l.b16 %v512
    %v2563 = vunpack.c.h.b16 %v512
    %v2564 = vunpack.c.l.b16 %v513
    %v2565 = vunpack.c.l.b16 %v514
    %v2566 = vunpack.c.h.b16 %v514
    %v2567 = vunpack.c.l.b16 %v515
    %v2568 = vunpack.c.l.b16 %v516
    %v2569 = vunpack.c.h.b16 %v516
    %v2570 = vunpack.c.l.b16 %v517
    %v2571 = vunpack.c.l.b16 %v518
    %v2572 = vunpack.c.h.b16 %v518
    %v2573 = vunpack.c.l.b16 %v519
    %v2574 = vunpack.c.l.b16 %v520
    %v2575 = vunpack.c.h.b16 %v520
    %v2576 = vunpack.c.l.b16 %v521
    %v2577 = vunpack.c.l.b16 %v522
    %v2578 = vunpack.c.h.b16 %v522
    %v2579 = vunpack.c.l.b16 %v523
    %v2580 = vunpack.c.l.b16 %v524
    %v2581 = vunpack.c.h.b16 %v524
    %v2582 = vunpack.c.l.b16 %v525
    %v2583 = vunpack.c.l.b16 %v526
    %v2584 = vunpack.c.h.b16 %v526
    %v2585 = vunpack.c.l.b16 %v527
    %v2586 = vunpack.c.l.b16 %v528
    %v2587 = vunpack.c.h.b16 %v528
    %v2588 = vunpack.c.l.b16 %v529
    %v2589 = vunpack.c.l.b16 %v530
    %v2590 = vunpack.c.h.b16 %v530
    %v2591 = vunpack.c.l.b16 %v531
    %v2592 = vunpack.c.l.b16 %v532
    %v2593 = vunpack.c.h.b16 %v532
    %v2594 = vunpack.c.l.b16 %v533
    %v2595 = vunpack.c.l.b16 %v534
    %v2596 = vunpack.c.h.b16 %v534
    %v2597 = vunpack.c.l.b16 %v535
    %v2598 = vunpack.c.l.b16 %v536
    %v2599 = vunpack.c.h.b16 %v536
    %v2600 = vunpack.c.l.b16 %v537
    %v2601 = vunpack.c.l.b16 %v538
    %v2602 = vunpack.c.h.b16 %v538
    %v2603 = vunpack.c.l.b16 %v539
    %v2604 = vunpack.c.l.b16 %v540
    %v2605 = vunpack.c.h.b16 %v540
    %v2606 = vunpack.c.l.b16 %v541
    %v2607 = vunpack.c.l.b16 %v542
    %v2608 = vunpack.c.h.b16 %v542
    %v2609 = vunpack.c.l.b16 %v543
    %v2610 = vunpack.c.l.b16 %v544
    %v2611 = vunpack.c.h.b16 %v544
    %v2612 = vunpack.c.l.b16 %v545
    %v2613 = vunpack.c.l.b16 %v546
    %v2614 = vunpack.c.h.b16 %v546
    %v2615 = vunpack.c.l.b16 %v547
    %v2616 = vunpack.c.l.b16 %v548
    %v2617 = vunpack.c.h.b16 %v548
    %v2618 = vunpack.c.l.b16 %v549
    %v2619 = vunpack.c.l.b16 %v550
    %v2620 = vunpack.c.h.b16 %v550
    %v2621 = vunpack.c.l.b16 %v551
    %v2622 = vunpack.c.l.b16 %v552
    %v2623 = vunpack.c.h.b16 %v552
    %v2624 = vunpack.c.l.b16 %v553
    %v2625 = vunpack.c.l.b16 %v554
    %v2626 = vunpack.c.h.b16 %v554
    %v2627 = vunpack.c.l.b16 %v555
    %v2628 = vunpack.c.l.b16 %v556
    %v2629 = vunpack.c.h.b16 %v556
    %v2630 = vunpack.c.l.b16 %v557
    %v2631 = vunpack.c.l.b16 %v558
    %v2632 = vunpack.c.h.b16 %v558
    %v2633 = vunpack.c.l.b16 %v559
    %v2634 = vunpack.c.l.b16 %v560
    %v2635 = vunpack.c.h.b16 %v560
    %v2636 = vunpack.c.l.b16 %v561
    %v2637 = vunpack.c.l.b16 %v562
    %v2638 = vunpack.c.h.b16 %v562
    %v2639 = vunpack.c.l.b16 %v563
    %v2640 = vunpack.c.l.b16 %v564
    %v2641 = vunpack.c.h.b16 %v564
    %v2642 = vunpack.c.l.b16 %v565
    %v2643 = vunpack.c.l.b16 %v566
    %v2644 = vunpack.c.h.b16 %v566
    %v2645 = vunpack.c.l.b16 %v567
    %v2646 = vunpack.c.l.b16 %v568
    %v2647 = vunpack.c.h.b16 %v568
    %v2648 = vunpack.c.l.b16 %v569
    %v2649 = vunpack.c.l.b16 %v570
    %v2650 = vunpack.c.h.b16 %v570
    %v2651 = vunpack.c.l.b16 %v571
    %v2652 = vunpack.c.l.b16 %v572
    %v2653 = vunpack.c.h.b16 %v572
    %v2654 = vunpack.c.l.b16 %v573
    %v2655 = vunpack.c.l.b16 %v574
    %v2656 = vunpack.c.h.b16 %v574
    %v2657 = vunpack.c.l.b16 %v575
    %v2658 = vunpack.c.l.b16 %v576
    %v2659 = vunpack.c.h.b16 %v576
    %v2660 = vunpack.c.l.b16 %v577
    %v2661 = vunpack.c.l.b16 %v578
    %v2662 = vunpack.c.h.b16 %v578
    %v2663 = vunpack.c.l.b16 %v579
    %v2664 = vunpack.c.l.b16 %v580
    %v2665 = vunpack.c.h.b16 %v580
    %v2666 = vunpack.c.l.b16 %v581
    %v2667 = vunpack.c.l.b16 %v582
    %v2668 = vunpack.c.h.b16 %v582
    %v2669 = vunpack.c.l.b16 %v583
    %v2670 = vunpack.c.l.b16 %v584
    %v2671 = vunpack.c.h.b16 %v584
    %v2672 = vunpack.c.l.b16 %v585
    %v2673 = vunpack.c.l.b16 %v586
    %v2674 = vunpack.c.h.b16 %v586
    %v2675 = vunpack.c.l.b16 %v587
    %v2676 = vunpack.c.l.b16 %v588
    %v2677 = vunpack.c.h.b16 %v588
    %v2678 = vunpack.c.l.b16 %v589
    %v2679 = vunpack.c.l.b16 %v590
    %v2680 = vunpack.c.h.b16 %v590
    %v2681 = vunpack.c.l.b16 %v591
    %v2682 = vunpack.c.l.b16 %v592
    %v2683 = vunpack.c.h.b16 %v592
    %v2684 = vunpack.c.l.b16 %v593
    %v2685 = vunpack.c.l.b16 %v594
    %v2686 = vunpack.c.h.b16 %v594
    %v2687 = vunpack.c.l.b16 %v595
    %v2688 = vunpack.c.l.b16 %v596
    %v2689 = vunpack.c.h.b16 %v596
    %v2690 = vunpack.c.l.b16 %v597
    %v2691 = vunpack.c.l.b16 %v598
    %v2692 = vunpack.c.h.b16 %v598
    %v2693 = vunpack.c.l.b16 %v599
    %v2694 = vunpack.c.l.b16 %v600
    %v2695 = vunpack.c.h.b16 %v600
    %v2696 = vunpack.c.l.b16 %v601
    %v2697 = vunpack.c.l.b16 %v602
    %v2698 = vunpack.c.h.b16 %v602
    %v2699 = vunpack.c.l.b16 %v603
    %v2700 = vunpack.c.l.b16 %v604
    %v2701 = vunpack.c.h.b16 %v604
    %v2702 = vunpack.c.l.b16 %v605
    %v2703 = vunpack.c.l.b16 %v606
    %v2704 = vunpack.c.h.b16 %v606
    %v2705 = vunpack.c.l.b16 %v607
    %v2706 = vunpack.c.l.b16 %v608
    %v2707 = vunpack.c.h.b16 %v608
    %v2708 = vunpack.c.l.b16 %v609
    %v2709 = vunpack.c.l.b16 %v610
    %v2710 = vunpack.c.h.b16 %v610
    %v2711 = vunpack.c.l.b16 %v611
    %v2712 = vunpack.c.l.b16 %v612
    %v2713 = vunpack.c.h.b16 %v612
    %v2714 = vunpack.c.l.b16 %v613
    %v2715 = vunpack.c.l.b16 %v614
    %v2716 = vunpack.c.h.b16 %v614
    %v2717 = vunpack.c.l.b16 %v615
    %v2718 = vunpack.c.l.b16 %v616
    %v2719 = vunpack.c.h.b16 %v616
    %v2720 = vunpack.c.l.b16 %v617
    %v2721 = vunpack.c.l.b16 %v618
    %v2722 = vunpack.c.h.b16 %v618
    %v2723 = vunpack.c.l.b16 %v619
    %v2724 = vunpack.c.l.b16 %v620
    %v2725 = vunpack.c.h.b16 %v620
    %v2726 = vunpack.c.l.b16 %v621
    %v2727 = vunpack.c.l.b16 %v622
    %v2728 = vunpack.c.h.b16 %v622
    %v2729 = vunpack.c.l.b16 %v623
    %v2730 = vunpack.c.l.b16 %v624
    %v2731 = vunpack.c.h.b16 %v624
    %v2732 = vunpack.c.l.b16 %v625
    %v2733 = vunpack.c.l.b16 %v626
    %v2734 = vunpack.c.h.b16 %v626
    %v2735 = vunpack.c.l.b16 %v627
    %v2736 = vunpack.c.l.b16 %v628
    %v2737 = vunpack.c.h.b16 %v628
    %v2738 = vunpack.c.l.b16 %v629
    %v2739 = vunpack.c.l.b16 %v630
    %v2740 = vunpack.c.h.b16 %v630
    %v2741 = vunpack.c.l.b16 %v631
    %v2742 = vunpack.c.l.b16 %v632
    %v2743 = vunpack.c.h.b16 %v632
    %v2744 = vunpack.c.l.b16 %v633
    %v2745 = vunpack.c.l.b16 %v634
    %v2746 = vunpack.c.h.b16 %v634
    %v2747 = vunpack.c.l.b16 %v635
    %v2748 = vunpack.c.l.b16 %v636
    %v2749 = vunpack.c.h.b16 %v636
    %v2750 = vunpack.c.l.b16 %v637
    %v2751 = vunpack.c.l.b16 %v638
    %v2752 = vunpack.c.h.b16 %v638
    %v2753 = vunpack.c.l.b16 %v639
    %v2754 = vunpack.c.l.b16 %v640
    %v2755 = vunpack.c.h.b16 %v640
    %v2756 = vunpack.c.l.b16 %v641
    %v2757 = vunpack.c.l.b16 %v642
    %v2758 = vunpack.c.h.b16 %v642
    %v2759 = vunpack.c.l.b16 %v643
    %v2760 = vunpack.c.l.b16 %v644
    %v2761 = vunpack.c.h.b16 %v644
    %v2762 = vunpack.c.l.b16 %v645
    %v2763 = vunpack.c.l.b16 %v646
    %v2764 = vunpack.c.h.b16 %v646
    %v2765 = vunpack.c.l.b16 %v647
    %v2766 = vunpack.c.l.b16 %v648
    %v2767 = vunpack.c.h.b16 %v648
    %v2768 = vunpack.c.l.b16 %v649
    %v2769 = vunpack.c.l.b16 %v650
    %v2770 = vunpack.c.h.b16 %v650
    %v2771 = vunpack.c.l.b16 %v651
    %v2772 = vunpack.c.l.b16 %v652
    %v2773 = vunpack.c.h.b16 %v652
    %v2774 = vunpack.c.l.b16 %v653
    %v2775 = vunpack.c.l.b16 %v654
    %v2776 = vunpack.c.h.b16 %v654
    %v2777 = vunpack.c.l.b16 %v655
    %v2778 = vunpack.c.l.b16 %v656
    %v2779 = vunpack.c.h.b16 %v656
    %v2780 = vunpack.c.l.b16 %v657
    %v2781 = vunpack.c.l.b16 %v658
    %v2782 = vunpack.c.h.b16 %v658
    %v2783 = vunpack.c.l.b16 %v659
    %v2784 = vunpack.c.l.b16 %v660
    %v2785 = vunpack.c.h.b16 %v660
    %v2786 = vunpack.c.l.b16 %v661
    %v2787 = vunpack.c.l.b16 %v662
    %v2788 = vunpack.c.h.b16 %v662
    %v2789 = vunpack.c.l.b16 %v663
    %v2790 = vunpack.c.l.b16 %v664
    %v2791 = vunpack.c.h.b16 %v664
    %v2792 = vunpack.c.l.b16 %v665
    %v2793 = vunpack.c.l.b16 %v666
    %v2794 = vunpack.c.h.b16 %v666
    %v2795 = vunpack.c.l.b16 %v667
    %v2796 = vunpack.c.l.b16 %v668
    %v2797 = vunpack.c.h.b16 %v668
    %v2798 = vunpack.c.l.b16 %v669
    %v2799 = vunpack.c.l.b16 %v670
    %v2800 = vunpack.c.h.b16 %v670
    %v2801 = vunpack.c.l.b16 %v671
    %v2802 = vunpack.c.l.b16 %v672
    %v2803 = vunpack.c.h.b16 %v672
    %v2804 = vunpack.c.l.b16 %v673
    %v2805 = vunpack.c.l.b16 %v674
    %v2806 = vunpack.c.h.b16 %v674
    %v2807 = vunpack.c.l.b16 %v675
    %v2808 = vunpack.c.l.b16 %v676
    %v2809 = vunpack.c.h.b16 %v676
    %v2810 = vunpack.c.l.b16 %v677
    %v2811 = vunpack.c.l.b16 %v678
    %v2812 = vunpack.c.h.b16 %v678
    %v2813 = vunpack.c.l.b16 %v679
    %v2814 = vunpack.c.l.b16 %v680
    %v2815 = vunpack.c.h.b16 %v680
    %v2816 = vunpack.c.l.b16 %v681
    %v2817 = vunpack.c.l.b16 %v682
    %v2818 = vunpack.c.h.b16 %v682
    %v2819 = vunpack.c.l.b16 %v683
    %v2820 = vunpack.c.l.b16 %v684
    %v2821 = vunpack.c.h.b16 %v684
    %v2822 = vunpack.c.l.b16 %v685
    %v2823 = vunpack.c.l.b16 %v686
    %v2824 = vunpack.c.h.b16 %v686
    %v2825 = vunpack.c.l.b16 %v687
    %v2826 = vunpack.c.l.b16 %v688
    %v2827 = vunpack.c.h.b16 %v688
    %v2828 = vunpack.c.l.b16 %v689
    %v2829 = vunpack.c.l.b16 %v690
    %v2830 = vunpack.c.h.b16 %v690
    %v2831 = vunpack.c.l.b16 %v691
    %v2832 = vunpack.c.l.b16 %v692
    %v2833 = vunpack.c.h.b16 %v692
    %v2834 = vunpack.c.l.b16 %v693
    %v2835 = vunpack.c.l.b16 %v694
    %v2836 = vunpack.c.h.b16 %v694
    %v2837 = vunpack.c.l.b16 %v695
    %v2838 = vunpack.c.l.b16 %v696
    %v2839 = vunpack.c.h.b16 %v696
    %v2840 = vunpack.c.l.b16 %v697
    %v2841 = vunpack.c.l.b16 %v698
    %v2842 = vunpack.c.h.b16 %v698
    %v2843 = vunpack.c.l.b16 %v699
    %v2844 = vunpack.c.l.b16 %v700
    %v2845 = vunpack.c.h.b16 %v700
    %v2846 = vunpack.c.l.b16 %v701
    %v2847 = vunpack.c.l.b16 %v702
    %v2848 = vunpack.c.h.b16 %v702
    %v2849 = vunpack.c.l.b16 %v703
    %v2850 = vunpack.c.l.b16 %v704
    %v2851 = vunpack.c.h.b16 %v704
    %v2852 = vunpack.c.l.b16 %v705
    %v2853 = vunpack.c.l.b16 %v706
    %v2854 = vunpack.c.h.b16 %v706
    %v2855 = vunpack.c.l.b16 %v707
    %v2856 = vunpack.c.l.b16 %v708
    %v2857 = vunpack.c.h.b16 %v708
    %v2858 = vunpack.c.l.b16 %v709
    %v2859 = vunpack.c.l.b16 %v710
    %v2860 = vunpack.c.h.b16 %v710
    %v2861 = vunpack.c.l.b16 %v711
    %v2862 = vunpack.c.l.b16 %v712
    %v2863 = vunpack.c.h.b16 %v712
    %v2864 = vunpack.c.l.b16 %v713
    %v2865 = vunpack.c.l.b16 %v714
    %v2866 = vunpack.c.h.b16 %v714
    %v2867 = vunpack.c.l.b16 %v715
    %v2868 = vunpack.c.l.b16 %v716
    %v2869 = vunpack.c.h.b16 %v716
    %v2870 = vunpack.c.l.b16 %v717
    %v2871 = vunpack.c.l.b16 %v718
    %v2872 = vunpack.c.h.b16 %v718
    %v2873 = vunpack.c.l.b16 %v719
    %v2874 = vunpack.c.l.b16 %v720
    %v2875 = vunpack.c.h.b16 %v720
    %v2876 = vunpack.c.l.b16 %v721
    %v2877 = vunpack.c.l.b16 %v722
    %v2878 = vunpack.c.h.b16 %v722
    %v2879 = vunpack.c.l.b16 %v723
    %v2880 = vunpack.c.l.b16 %v724
    %v2881 = vunpack.c.h.b16 %v724
    %v2882 = vunpack.c.l.b16 %v725
    %v2883 = vunpack.c.l.b16 %v726
    %v2884 = vunpack.c.h.b16 %v726
    %v2885 = vunpack.c.l.b16 %v727
    %v2886 = vunpack.c.l.b16 %v728
    %v2887 = vunpack.c.h.b16 %v728
    %v2888 = vunpack.c.l.b16 %v729
    %v2889 = vunpack.c.l.b16 %v730
    %v2890 = vunpack.c.h.b16 %v730
    %v2891 = vunpack.c.l.b16 %v731
    %v2892 = vunpack.c.l.b16 %v732
    %v2893 = vunpack.c.h.b16 %v732
    %v2894 = vunpack.c.l.b16 %v733
    %v2895 = vunpack.c.l.b16 %v734
    %v2896 = vunpack.c.h.b16 %v734
    %v2897 = vunpack.c.l.b16 %v735
    %v2898 = vunpack.c.l.b16 %v736
    %v2899 = vunpack.c.h.b16 %v736
    %v2900 = vunpack.c.l.b16 %v737
    %v2901 = vunpack.c.l.b16 %v738
    %v2902 = vunpack.c.h.b16 %v738
    %v2903 = vunpack.c.l.b16 %v739
    %v2904 = vunpack.c.l.b16 %v740
    %v2905 = vunpack.c.h.b16 %v740
    %v2906 = vunpack.c.l.b16 %v741
    %v2907 = vunpack.c.l.b16 %v742
    %v2908 = vunpack.c.h.b16 %v742
    %v2909 = vunpack.c.l.b16 %v743
    %v2910 = vunpack.c.l.b16 %v744
    %v2911 = vunpack.c.h.b16 %v744
    %v2912 = vunpack.c.l.b16 %v745
    %v2913 = vunpack.c.l.b16 %v746
    %v2914 = vunpack.c.h.b16 %v746
    %v2915 = vunpack.c.l.b16 %v747
    %v2916 = vunpack.c.l.b16 %v748
    %v2917 = vunpack.c.h.b16 %v748
    %v2918 = vunpack.c.l.b16 %v749
    %v2919 = vunpack.c.l.b16 %v750
    %v2920 = vunpack.c.h.b16 %v750
    %v2921 = vunpack.c.l.b16 %v751
    %v2922 = vunpack.c.l.b16 %v752
    %v2923 = vunpack.c.h.b16 %v752
    %v2924 = vunpack.c.l.b16 %v753
    %v2925 = vunpack.c.l.b16 %v754
    %v2926 = vunpack.c.h.b16 %v754
    %v2927 = vunpack.c.l.b16 %v755
    %v2928 = vunpack.c.l.b16 %v756
    %v2929 = vunpack.c.h.b16 %v756
    %v2930 = vunpack.c.l.b16 %v757
    %v2931 = vunpack.c.l.b16 %v758
    %v2932 = vunpack.c.h.b16 %v758
    %v2933 = vunpack.c.l.b16 %v759
    %v2934 = vunpack.c.l.b16 %v760
    %v2935 = vunpack.c.h.b16 %v760
    %v2936 = vunpack.c.l.b16 %v761
    %v2937 = vunpack.c.l.b16 %v762
    %v2938 = vunpack.c.h.b16 %v762
    %v2939 = vunpack.c.l.b16 %v763
    %v2940 = vunpack.c.l.b16 %v764
    %v2941 = vunpack.c.h.b16 %v764
    %v2942 = vunpack.c.l.b16 %v765
    %v2943 = vunpack.c.l.b16 %v766
    %v2944 = vunpack.c.h.b16 %v766
    %v2945 = vunpack.c.l.b16 %v767
    %v2946 = vunpack.c.l.b16 %v768
    %v2947 = vunpack.c.h.b16 %v768
    %v2948 = vunpack.c.l.b16 %v769
    %v2949 = vunpack.c.l.b16 %v770
    %v2950 = vunpack.c.h.b16 %v770
    %v2951 = vunpack.c.l.b16 %v771
    %v2952 = vunpack.c.l.b16 %v772
    %v2953 = vunpack.c.h.b16 %v772
    %v2954 = vunpack.c.l.b16 %v773
    %v2955 = vunpack.c.l.b16 %v774
    %v2956 = vunpack.c.h.b16 %v774
    %v2957 = vunpack.c.l.b16 %v775
    %v2958 = vunpack.c.l.b16 %v776
    %v2959 = vunpack.c.h.b16 %v776
    %v2960 = vunpack.c.l.b16 %v777
    %v2961 = vunpack.c.l.b16 %v778
    %v2962 = vunpack.c.h.b16 %v778
    %v2963 = vunpack.c.l.b16 %v779
    %v2964 = vunpack.c.l.b16 %v780
    %v2965 = vunpack.c.h.b16 %v780
    %v2966 = vunpack.c.l.b16 %v781
    %v2967 = vunpack.c.l.b16 %v782
    %v2968 = vunpack.c.h.b16 %v782
    %v2969 = vunpack.c.l.b16 %v783
    %v2970 = vunpack.c.l.b16 %v784
    %v2971 = vunpack.c.h.b16 %v784
    %v2972 = vunpack.c.l.b16 %v785
    %v2973 = vunpack.c.l.b16 %v786
    %v2974 = vunpack.c.h.b16 %v786
    %v2975 = vunpack.c.l.b16 %v787
    %v2976 = vunpack.c.l.b16 %v788
    %v2977 = vunpack.c.h.b16 %v788
    %v2978 = vunpack.c.l.b16 %v789
    %v2979 = vunpack.c.l.b16 %v790
    %v2980 = vunpack.c.h.b16 %v790
    %v2981 = vunpack.c.l.b16 %v791
    %v2982 = vunpack.c.l.b16 %v792
    %v2983 = vunpack.c.h.b16 %v792
    %v2984 = vunpack.c.l.b16 %v793
    %v2985 = vunpack.c.l.b16 %v794
    %v2986 = vunpack.c.h.b16 %v794
    %v2987 = vunpack.c.l.b16 %v795
    %v2988 = vunpack.c.l.b16 %v796
    %v2989 = vunpack.c.h.b16 %v796
    %v2990 = vunpack.c.l.b16 %v797
    %v2991 = vunpack.c.l.b16 %v798
    %v2992 = vunpack.c.h.b16 %v798
    %v2993 = vunpack.c.l.b16 %v799
    %v2994 = vunpack.c.l.b16 %v800
    %v2995 = vunpack.c.h.b16 %v800
    %v2996 = vunpack.c.l.b16 %v801
    %v2997 = vunpack.c.l.b16 %v802
    %v2998 = vunpack.c.h.b16 %v802
    %v2999 = vunpack.c.l.b16 %v803
    %v3000 = vunpack.c.l.b16 %v804
    %v3001 = vunpack.c.h.b16 %v804
    %v3002 = vunpack.c.l.b16 %v805
    %v3003 = vunpack.c.l.b16 %v806
    %v3004 = vunpack.c.h.b16 %v806
    %v3005 = vunpack.c.l.b16 %v807
    %v3006 = vunpack.c.l.b16 %v808
    %v3007 = vunpack.c.h.b16 %v808
    %v3008 = vunpack.c.l.b16 %v809
    %v3009 = vunpack.c.l.b16 %v810
    %v3010 = vunpack.c.h.b16 %v810
    %v3011 = vunpack.c.l.b16 %v811
    %v3012 = vunpack.c.l.b16 %v812
    %v3013 = vunpack.c.h.b16 %v812
    %v3014 = vunpack.c.l.b16 %v813
    %v3015 = vunpack.c.l.b16 %v814
    %v3016 = vunpack.c.h.b16 %v814
    %v3017 = vunpack.c.l.b16 %v815
    %v3018 = vunpack.c.l.b16 %v816
    %v3019 = vunpack.c.h.b16 %v816
    %v3020 = vunpack.c.l.b16 %v817
    %v3021 = vunpack.c.l.b16 %v818
    %v3022 = vunpack.c.h.b16 %v818
    %v3023 = vunpack.c.l.b16 %v819
    %v3024 = vunpack.c.l.b16 %v820
    %v3025 = vunpack.c.h.b16 %v820
    %v3026 = vunpack.c.l.b16 %v821
    %v3027 = vunpack.c.l.b16 %v822
    %v3028 = vunpack.c.h.b16 %v822
    %v3029 = vunpack.c.l.b16 %v823
    %v3030 = vunpack.c.l.b16 %v824
    %v3031 = vunpack.c.h.b16 %v824
    %v3032 = vunpack.c.l.b16 %v825
    %v3033 = vpack.c.b16 %v1836, %v1833
    %v3034 = vpack.c.b16 %v1837, %v1834
    %v3035 = vpack.c.b16 %v1838, %v1835
    %v3036 = vpack.c.b16 %v1842, %v1839
    %v3037 = vpack.c.b16 %v1843, %v1840
    %v3038 = vpack.c.b16 %v1844, %v1841
    %v3039 = vpack.c.b16 %v1848, %v1845
    %v3040 = vpack.c.b16 %v1849, %v1846
    %v3041 = vpack.c.b16 %v1850, %v1847
    %v3042 = vpack.c.b16 %v1854, %v1851
    %v3043 = vpack.c.b16 %v1855, %v1852
    %v3044 = vpack.c.b16 %v1856, %v1853
    %v3045 = vpack.c.b16 %v1860, %v1857
    %v3046 = vpack.c.b16 %v1861, %v1858
    %v3047 = vpack.c.b16 %v1862, %v1859
    %v3048 = vpack.c.b16 %v1866, %v1863
    %v3049 = vpack.c.b16 %v1867, %v1864
    %v3050 = vpack.c.b16 %v1868, %v1865
    %v3051 = vpack.c.b16 %v1872, %v1869
    %v3052 = vpack.c.b16 %v1873, %v1870
    %v3053 = vpack.c.b16 %v1874, %v1871
    %v3054 = vpack.c.b16 %v1878, %v1875
    %v3055 = vpack.c.b16 %v1879, %v1876
    %v3056 = vpack.c.b16 %v1880, %v1877
    %v3057 = vpack.c.b16 %v1884, %v1881
    %v3058 = vpack.c.b16 %v1885, %v1882
    %v3059 = vpack.c.b16 %v1886, %v1883
    %v3060 = vpack.c.b16 %v1890, %v1887
    %v3061 = vpack.c.b16 %v1891, %v1888
    %v3062 = vpack.c.b16 %v1892, %v1889
    %v3063 = vpack.c.b16 %v1896, %v1893
    %v3064 = vpack.c.b16 %v1897, %v1894
    %v3065 = vpack.c.b16 %v1898, %v1895
    %v3066 = vpack.c.b16 %v1902, %v1899
    %v3067 = vpack.c.b16 %v1903, %v1900
    %v3068 = vpack.c.b16 %v1904, %v1901
    %v3069 = vpack.c.b16 %v1908, %v1905
    %v3070 = vpack.c.b16 %v1909, %v1906
    %v3071 = vpack.c.b16 %v1910, %v1907
    %v3072 = vpack.c.b16 %v1914, %v1911
    %v3073 = vpack.c.b16 %v1915, %v1912
    %v3074 = vpack.c.b16 %v1916, %v1913
    %v3075 = vpack.c.b16 %v1920, %v1917
    %v3076 = vpack.c.b16 %v1921, %v1918
    %v3077 = vpack.c.b16 %v1922, %v1919
    %v3078 = vpack.c.b16 %v1926, %v1923
    %v3079 = vpack.c.b16 %v1927, %v1924
    %v3080 = vpack.c.b16 %v1928, %v1925
    %v3081 = vpack.c.b16 %v1932, %v1929
    %v3082 = vpack.c.b16 %v1933, %v1930
    %v3083 = vpack.c.b16 %v1934, %v1931
    %v3084 = vpack.c.b16 %v1938, %v1935
    %v3085 = vpack.c.b16 %v1939, %v1936
    %v3086 = vpack.c.b16 %v1940, %v1937
    %v3087 = vpack.c.b16 %v1944, %v1941
    %v3088 = vpack.c.b16 %v1945, %v1942
    %v3089 = vpack.c.b16 %v1946, %v1943
    %v3090 = vpack.c.b16 %v1950, %v1947
    %v3091 = vpack.c.b16 %v1951, %v1948
    %v3092 = vpack.c.b16 %v1952, %v1949
    %v3093 = vpack.c.b16 %v1956, %v1953
    %v3094 = vpack.c.b16 %v1957, %v1954
    %v3095 = vpack.c.b16 %v1958, %v1955
    %v3096 = vpack.c.b16 %v1962, %v1959
    %v3097 = vpack.c.b16 %v1963, %v1960
    %v3098 = vpack.c.b16 %v1964, %v1961
    %v3099 = vpack.c.b16 %v1968, %v1965
    %v3100 = vpack.c.b16 %v1969, %v1966
    %v3101 = vpack.c.b16 %v1970, %v1967
    %v3102 = vpack.c.b16 %v1974, %v1971
    %v3103 = vpack.c.b16 %v1975, %v1972
    %v3104 = vpack.c.b16 %v1976, %v1973
    %v3105 = vpack.c.b16 %v1980, %v1977
    %v3106 = vpack.c.b16 %v1981, %v1978
    %v3107 = vpack.c.b16 %v1982, %v1979
    %v3108 = vpack.c.b16 %v1986, %v1983
    %v3109 = vpack.c.b16 %v1987, %v1984
    %v3110 = vpack.c.b16 %v1988, %v1985
    %v3111 = vpack.c.b16 %v1992, %v1989
    %v3112 = vpack.c.b16 %v1993, %v1990
    %v3113 = vpack.c.b16 %v1994, %v1991
    %v3114 = vpack.c.b16 %v1998, %v1995
    %v3115 = vpack.c.b16 %v1999, %v1996
    %v3116 = vpack.c.b16 %v2000, %v1997
    %v3117 = vpack.c.b16 %v2004, %v2001
    %v3118 = vpack.c.b16 %v2005, %v2002
    %v3119 = vpack.c.b16 %v2006, %v2003
    %v3120 = vpack.c.b16 %v2010, %v2007
    %v3121 = vpack.c.b16 %v2011, %v2008
    %v3122 = vpack.c.b16 %v2012, %v2009
    %v3123 = vpack.c.b16 %v2016, %v2013
    %v3124 = vpack.c.b16 %v2017, %v2014
    %v3125 = vpack.c.b16 %v2018, %v2015
    %v3126 = vpack.c.b16 %v2022, %v2019
    %v3127 = vpack.c.b16 %v2023, %v2020
    %v3128 = vpack.c.b16 %v2024, %v2021
    %v3129 = vpack.c.b16 %v2028, %v2025
    %v3130 = vpack.c.b16 %v2029, %v2026
    %v3131 = vpack.c.b16 %v2030, %v2027
    %v3132 = vpack.c.b16 %v2034, %v2031
    %v3133 = vpack.c.b16 %v2035, %v2032
    %v3134 = vpack.c.b16 %v2036, %v2033
    %v3135 = vpack.c.b16 %v2040, %v2037
    %v3136 = vpack.c.b16 %v2041, %v2038
    %v3137 = vpack.c.b16 %v2042, %v2039
    %v3138 = vpack.c.b16 %v2046, %v2043
    %v3139 = vpack.c.b16 %v2047, %v2044
    %v3140 = vpack.c.b16 %v2048, %v2045
    %v3141 = vpack.c.b16 %v2052, %v2049
    %v3142 = vpack.c.b16 %v2053, %v2050
    %v3143 = vpack.c.b16 %v2054, %v2051
    %v3144 = vpack.c.b16 %v2058, %v2055
    %v3145 = vpack.c.b16 %v2059, %v2056
    %v3146 = vpack.c.b16 %v2060, %v2057
    %v3147 = vpack.c.b16 %v2064, %v2061
    %v3148 = vpack.c.b16 %v2065, %v2062
    %v3149 = vpack.c.b16 %v2066, %v2063
    %v3150 = vpack.c.b16 %v2070, %v2067
    %v3151 = vpack.c.b16 %v2071, %v2068
    %v3152 = vpack.c.b16 %v2072, %v2069
    %v3153 = vpack.c.b16 %v2076, %v2073
    %v3154 = vpack.c.b16 %v2077, %v2074
    %v3155 = vpack.c.b16 %v2078, %v2075
    %v3156 = vpack.c.b16 %v2082, %v2079
    %v3157 = vpack.c.b16 %v2083, %v2080
    %v3158 = vpack.c.b16 %v2084, %v2081
    %v3159 = vpack.c.b16 %v2088, %v2085
    %v3160 = vpack.c.b16 %v2089, %v2086
    %v3161 = vpack.c.b16 %v2090, %v2087
    %v3162 = vpack.c.b16 %v2094, %v2091
    %v3163 = vpack.c.b16 %v2095, %v2092
    %v3164 = vpack.c.b16 %v2096, %v2093
    %v3165 = vpack.c.b16 %v2100, %v2097
    %v3166 = vpack.c.b16 %v2101, %v2098
    %v3167 = vpack.c.b16 %v2102, %v2099
    %v3168 = vpack.c.b16 %v2106, %v2103
    %v3169 = vpack.c.b16 %v2107, %v2104
    %v3170 = vpack.c.b16 %v2108, %v2105
    %v3171 = vpack.c.b16 %v2112, %v2109
    %v3172 = vpack.c.b16 %v2113, %v2110
    %v3173 = vpack.c.b16 %v2114, %v2111
    %v3174 = vpack.c.b16 %v2118, %v2115
    %v3175 = vpack.c.b16 %v2119, %v2116
    %v3176 = vpack.c.b16 %v2120, %v2117
    %v3177 = vpack.c.b16 %v2124, %v2121
    %v3178 = vpack.c.b16 %v2125, %v2122
    %v3179 = vpack.c.b16 %v2126, %v2123
    %v3180 = vpack.c.b16 %v2130, %v2127
    %v3181 = vpack.c.b16 %v2131, %v2128
    %v3182 = vpack.c.b16 %v2132, %v2129
    %v3183 = vpack.c.b16 %v2136, %v2133
    %v3184 = vpack.c.b16 %v2137, %v2134
    %v3185 = vpack.c.b16 %v2138, %v2135
    %v3186 = vpack.c.b16 %v2142, %v2139
    %v3187 = vpack.c.b16 %v2143, %v2140
    %v3188 = vpack.c.b16 %v2144, %v2141
    %v3189 = vpack.c.b16 %v2148, %v2145
    %v3190 = vpack.c.b16 %v2149, %v2146
    %v3191 = vpack.c.b16 %v2150, %v2147
    %v3192 = vpack.c.b16 %v2154, %v2151
    %v3193 = vpack.c.b16 %v2155, %v2152
    %v3194 = vpack.c.b16 %v2156, %v2153
    %v3195 = vpack.c.b16 %v2160, %v2157
    %v3196 = vpack.c.b16 %v2161, %v2158
    %v3197 = vpack.c.b16 %v2162, %v2159
    %v3198 = vpack.c.b16 %v2166, %v2163
    %v3199 = vpack.c.b16 %v2167, %v2164
    %v3200 = vpack.c.b16 %v2168, %v2165
    %v3201 = vpack.c.b16 %v2172, %v2169
    %v3202 = vpack.c.b16 %v2173, %v2170
    %v3203 = vpack.c.b16 %v2174, %v2171
    %v3204 = vpack.c.b16 %v2178, %v2175
    %v3205 = vpack.c.b16 %v2179, %v2176
    %v3206 = vpack.c.b16 %v2180, %v2177
    %v3207 = vpack.c.b16 %v2184, %v2181
    %v3208 = vpack.c.b16 %v2185, %v2182
    %v3209 = vpack.c.b16 %v2186, %v2183
    %v3210 = vpack.c.b16 %v2190, %v2187
    %v3211 = vpack.c.b16 %v2191, %v2188
    %v3212 = vpack.c.b16 %v2192, %v2189
    %v3213 = vpack.c.b16 %v2196, %v2193
    %v3214 = vpack.c.b16 %v2197, %v2194
    %v3215 = vpack.c.b16 %v2198, %v2195
    %v3216 = vpack.c.b16 %v2202, %v2199
    %v3217 = vpack.c.b16 %v2203, %v2200
    %v3218 = vpack.c.b16 %v2204, %v2201
    %v3219 = vpack.c.b16 %v2208, %v2205
    %v3220 = vpack.c.b16 %v2209, %v2206
    %v3221 = vpack.c.b16 %v2210, %v2207
    %v3222 = vpack.c.b16 %v2214, %v2211
    %v3223 = vpack.c.b16 %v2215, %v2212
    %v3224 = vpack.c.b16 %v2216, %v2213
    %v3225 = vpack.c.b16 %v2220, %v2217
    %v3226 = vpack.c.b16 %v2221, %v2218
    %v3227 = vpack.c.b16 %v2222, %v2219
    %v3228 = vpack.c.b16 %v2226, %v2223
    %v3229 = vpack.c.b16 %v2227, %v2224
    %v3230 = vpack.c.b16 %v2228, %v2225
    %v3231 = vpack.c.b16 %v2232, %v2229
    %v3232 = vpack.c.b16 %v2233, %v2230
    %v3233 = vpack.c.b16 %v2234, %v2231
    %v3234 = vpack.c.b16 %v2238, %v2235
    %v3235 = vpack.c.b16 %v2239, %v2236
    %v3236 = vpack.c.b16 %v2240, %v2237
    %v3237 = vpack.c.b16 %v2244, %v2241
    %v3238 = vpack.c.b16 %v2245, %v2242
    %v3239 = vpack.c.b16 %v2246, %v2243
    %v3240 = vpack.c.b16 %v2250, %v2247
    %v3241 = vpack.c.b16 %v2251, %v2248
    %v3242 = vpack.c.b16 %v2252, %v2249
    %v3243 = vpack.c.b16 %v2256, %v2253
    %v3244 = vpack.c.b16 %v2257, %v2254
    %v3245 = vpack.c.b16 %v2258, %v2255
    %v3246 = vpack.c.b16 %v2262, %v2259
    %v3247 = vpack.c.b16 %v2263, %v2260
    %v3248 = vpack.c.b16 %v2264, %v2261
    %v3249 = vpack.c.b16 %v2268, %v2265
    %v3250 = vpack.c.b16 %v2269, %v2266
    %v3251 = vpack.c.b16 %v2270, %v2267
    %v3252 = vpack.c.b16 %v2274, %v2271
    %v3253 = vpack.c.b16 %v2275, %v2272
    %v3254 = vpack.c.b16 %v2276, %v2273
    %v3255 = vpack.c.b16 %v2280, %v2277
    %v3256 = vpack.c.b16 %v2281, %v2278
    %v3257 = vpack.c.b16 %v2282, %v2279
    %v3258 = vpack.c.b16 %v2286, %v2283
    %v3259 = vpack.c.b16 %v2287, %v2284
    %v3260 = vpack.c.b16 %v2288, %v2285
    %v3261 = vpack.c.b16 %v2292, %v2289
    %v3262 = vpack.c.b16 %v2293, %v2290
    %v3263 = vpack.c.b16 %v2294, %v2291
    %v3264 = vpack.c.b16 %v2298, %v2295
    %v3265 = vpack.c.b16 %v2299, %v2296
    %v3266 = vpack.c.b16 %v2300, %v2297
    %v3267 = vpack.c.b16 %v2304, %v2301
    %v3268 = vpack.c.b16 %v2305, %v2302
    %v3269 = vpack.c.b16 %v2306, %v2303
    %v3270 = vpack.c.b16 %v2310, %v2307
    %v3271 = vpack.c.b16 %v2311, %v2308
    %v3272 = vpack.c.b16 %v2312, %v2309
    %v3273 = vpack.c.b16 %v2316, %v2313
    %v3274 = vpack.c.b16 %v2317, %v2314
    %v3275 = vpack.c.b16 %v2318, %v2315
    %v3276 = vpack.c.b16 %v2322, %v2319
    %v3277 = vpack.c.b16 %v2323, %v2320
    %v3278 = vpack.c.b16 %v2324, %v2321
    %v3279 = vpack.c.b16 %v2328, %v2325
    %v3280 = vpack.c.b16 %v2329, %v2326
    %v3281 = vpack.c.b16 %v2330, %v2327
    %v3282 = vpack.c.b16 %v2334, %v2331
    %v3283 = vpack.c.b16 %v2335, %v2332
    %v3284 = vpack.c.b16 %v2336, %v2333
    %v3285 = vpack.c.b16 %v2340, %v2337
    %v3286 = vpack.c.b16 %v2341, %v2338
    %v3287 = vpack.c.b16 %v2342, %v2339
    %v3288 = vpack.c.b16 %v2346, %v2343
    %v3289 = vpack.c.b16 %v2347, %v2344
    %v3290 = vpack.c.b16 %v2348, %v2345
    %v3291 = vpack.c.b16 %v2352, %v2349
    %v3292 = vpack.c.b16 %v2353, %v2350
    %v3293 = vpack.c.b16 %v2354, %v2351
    %v3294 = vpack.c.b16 %v2358, %v2355
    %v3295 = vpack.c.b16 %v2359, %v2356
    %v3296 = vpack.c.b16 %v2360, %v2357
    %v3297 = vpack.c.b16 %v2364, %v2361
    %v3298 = vpack.c.b16 %v2365, %v2362
    %v3299 = vpack.c.b16 %v2366, %v2363
    %v3300 = vpack.c.b16 %v2370, %v2367
    %v3301 = vpack.c.b16 %v2371, %v2368
    %v3302 = vpack.c.b16 %v2372, %v2369
    %v3303 = vpack.c.b16 %v2376, %v2373
    %v3304 = vpack.c.b16 %v2377, %v2374
    %v3305 = vpack.c.b16 %v2378, %v2375
    %v3306 = vpack.c.b16 %v2382, %v2379
    %v3307 = vpack.c.b16 %v2383, %v2380
    %v3308 = vpack.c.b16 %v2384, %v2381
    %v3309 = vpack.c.b16 %v2388, %v2385
    %v3310 = vpack.c.b16 %v2389, %v2386
    %v3311 = vpack.c.b16 %v2390, %v2387
    %v3312 = vpack.c.b16 %v2394, %v2391
    %v3313 = vpack.c.b16 %v2395, %v2392
    %v3314 = vpack.c.b16 %v2396, %v2393
    %v3315 = vpack.c.b16 %v2400, %v2397
    %v3316 = vpack.c.b16 %v2401, %v2398
    %v3317 = vpack.c.b16 %v2402, %v2399
    %v3318 = vpack.c.b16 %v2406, %v2403
    %v3319 = vpack.c.b16 %v2407, %v2404
    %v3320 = vpack.c.b16 %v2408, %v2405
    %v3321 = vpack.c.b16 %v2412, %v2409
    %v3322 = vpack.c.b16 %v2413, %v2410
    %v3323 = vpack.c.b16 %v2414, %v2411
    %v3324 = vpack.c.b16 %v2418, %v2415
    %v3325 = vpack.c.b16 %v2419, %v2416
    %v3326 = vpack.c.b16 %v2420, %v2417
    %v3327 = vpack.c.b16 %v2424, %v2421
    %v3328 = vpack.c.b16 %v2425, %v2422
    %v3329 = vpack.c.b16 %v2426, %v2423
    %v3330 = vpack.c.b16 %v2430, %v2427
    %v3331 = vpack.c.b16 %v2431, %v2428
    %v3332 = vpack.c.b16 %v2432, %v2429
    %v3333 = vpack.c.b16 %v2436, %v2433
    %v3334 = vpack.c.b16 %v2437, %v2434
    %v3335 = vpack.c.b16 %v2438, %v2435
    %v3336 = vpack.c.b16 %v2442, %v2439
    %v3337 = vpack.c.b16 %v2443, %v2440
    %v3338 = vpack.c.b16 %v2444, %v2441
    %v3339 = vpack.c.b16 %v2448, %v2445
    %v3340 = vpack.c.b16 %v2449, %v2446
    %v3341 = vpack.c.b16 %v2450, %v2447
    %v3342 = vpack.c.b16 %v2454, %v2451
    %v3343 = vpack.c.b16 %v2455, %v2452
    %v3344 = vpack.c.b16 %v2456, %v2453
    %v3345 = vpack.c.b16 %v2460, %v2457
    %v3346 = vpack.c.b16 %v2461, %v2458
    %v3347 = vpack.c.b16 %v2462, %v2459
    %v3348 = vpack.c.b16 %v2466, %v2463
    %v3349 = vpack.c.b16 %v2467, %v2464
    %v3350 = vpack.c.b16 %v2468, %v2465
    %v3351 = vpack.c.b16 %v2472, %v2469
    %v3352 = vpack.c.b16 %v2473, %v2470
    %v3353 = vpack.c.b16 %v2474, %v2471
    %v3354 = vpack.c.b16 %v2478, %v2475
    %v3355 = vpack.c.b16 %v2479, %v2476
    %v3356 = vpack.c.b16 %v2480, %v2477
    %v3357 = vpack.c.b16 %v2484, %v2481
    %v3358 = vpack.c.b16 %v2485, %v2482
    %v3359 = vpack.c.b16 %v2486, %v2483
    %v3360 = vpack.c.b16 %v2490, %v2487
    %v3361 = vpack.c.b16 %v2491, %v2488
    %v3362 = vpack.c.b16 %v2492, %v2489
    %v3363 = vpack.c.b16 %v2496, %v2493
    %v3364 = vpack.c.b16 %v2497, %v2494
    %v3365 = vpack.c.b16 %v2498, %v2495
    %v3366 = vpack.c.b16 %v2502, %v2499
    %v3367 = vpack.c.b16 %v2503, %v2500
    %v3368 = vpack.c.b16 %v2504, %v2501
    %v3369 = vpack.c.b16 %v2508, %v2505
    %v3370 = vpack.c.b16 %v2509, %v2506
    %v3371 = vpack.c.b16 %v2510, %v2507
    %v3372 = vpack.c.b16 %v2514, %v2511
    %v3373 = vpack.c.b16 %v2515, %v2512
    %v3374 = vpack.c.b16 %v2516, %v2513
    %v3375 = vpack.c.b16 %v2520, %v2517
    %v3376 = vpack.c.b16 %v2521, %v2518
    %v3377 = vpack.c.b16 %v2522, %v2519
    %v3378 = vpack.c.b16 %v2526, %v2523
    %v3379 = vpack.c.b16 %v2527, %v2524
    %v3380 = vpack.c.b16 %v2528, %v2525
    %v3381 = vpack.c.b16 %v2532, %v2529
    %v3382 = vpack.c.b16 %v2533, %v2530
    %v3383 = vpack.c.b16 %v2534, %v2531
    %v3384 = vpack.c.b16 %v2538, %v2535
    %v3385 = vpack.c.b16 %v2539, %v2536
    %v3386 = vpack.c.b16 %v2540, %v2537
    %v3387 = vpack.c.b16 %v2544, %v2541
    %v3388 = vpack.c.b16 %v2545, %v2542
    %v3389 = vpack.c.b16 %v2546, %v2543
    %v3390 = vpack.c.b16 %v2550, %v2547
    %v3391 = vpack.c.b16 %v2551, %v2548
    %v3392 = vpack.c.b16 %v2552, %v2549
    %v3393 = vpack.c.b16 %v2556, %v2553
    %v3394 = vpack.c.b16 %v2557, %v2554
    %v3395 = vpack.c.b16 %v2558, %v2555
    %v3396 = vpack.c.b16 %v2562, %v2559
    %v3397 = vpack.c.b16 %v2563, %v2560
    %v3398 = vpack.c.b16 %v2564, %v2561
    %v3399 = vpack.c.b16 %v2568, %v2565
    %v3400 = vpack.c.b16 %v2569, %v2566
    %v3401 = vpack.c.b16 %v2570, %v2567
    %v3402 = vpack.c.b16 %v2574, %v2571
    %v3403 = vpack.c.b16 %v2575, %v2572
    %v3404 = vpack.c.b16 %v2576, %v2573
    %v3405 = vpack.c.b16 %v2580, %v2577
    %v3406 = vpack.c.b16 %v2581, %v2578
    %v3407 = vpack.c.b16 %v2582, %v2579
    %v3408 = vpack.c.b16 %v2586, %v2583
    %v3409 = vpack.c.b16 %v2587, %v2584
    %v3410 = vpack.c.b16 %v2588, %v2585
    %v3411 = vpack.c.b16 %v2592, %v2589
    %v3412 = vpack.c.b16 %v2593, %v2590
    %v3413 = vpack.c.b16 %v2594, %v2591
    %v3414 = vpack.c.b16 %v2598, %v2595
    %v3415 = vpack.c.b16 %v2599, %v2596
    %v3416 = vpack.c.b16 %v2600, %v2597
    %v3417 = vpack.c.b16 %v2604, %v2601
    %v3418 = vpack.c.b16 %v2605, %v2602
    %v3419 = vpack.c.b16 %v2606, %v2603
    %v3420 = vpack.c.b16 %v2610, %v2607
    %v3421 = vpack.c.b16 %v2611, %v2608
    %v3422 = vpack.c.b16 %v2612, %v2609
    %v3423 = vpack.c.b16 %v2616, %v2613
    %v3424 = vpack.c.b16 %v2617, %v2614
    %v3425 = vpack.c.b16 %v2618, %v2615
    %v3426 = vpack.c.b16 %v2622, %v2619
    %v3427 = vpack.c.b16 %v2623, %v2620
    %v3428 = vpack.c.b16 %v2624, %v2621
    %v3429 = vpack.c.b16 %v2628, %v2625
    %v3430 = vpack.c.b16 %v2629, %v2626
    %v3431 = vpack.c.b16 %v2630, %v2627
    %v3432 = vpack.c.b16 %v2634, %v2631
    %v3433 = vpack.c.b16 %v2635, %v2632
    %v3434 = vpack.c.b16 %v2636, %v2633
    %v3435 = vpack.c.b16 %v2640, %v2637
    %v3436 = vpack.c.b16 %v2641, %v2638
    %v3437 = vpack.c.b16 %v2642, %v2639
    %v3438 = vpack.c.b16 %v2646, %v2643
    %v3439 = vpack.c.b16 %v2647, %v2644
    %v3440 = vpack.c.b16 %v2648, %v2645
    %v3441 = vpack.c.b16 %v2652, %v2649
    %v3442 = vpack.c.b16 %v2653, %v2650
    %v3443 = vpack.c.b16 %v2654, %v2651
    %v3444 = vpack.c.b16 %v2658, %v2655
    %v3445 = vpack.c.b16 %v2659, %v2656
    %v3446 = vpack.c.b16 %v2660, %v2657
    %v3447 = vpack.c.b16 %v2664, %v2661
    %v3448 = vpack.c.b16 %v2665, %v2662
    %v3449 = vpack.c.b16 %v2666, %v2663
    %v3450 = vpack.c.b16 %v2670, %v2667
    %v3451 = vpack.c.b16 %v2671, %v2668
    %v3452 = vpack.c.b16 %v2672, %v2669
    %v3453 = vpack.c.b16 %v2676, %v2673
    %v3454 = vpack.c.b16 %v2677, %v2674
    %v3455 = vpack.c.b16 %v2678, %v2675
    %v3456 = vpack.c.b16 %v2682, %v2679
    %v3457 = vpack.c.b16 %v2683, %v2680
    %v3458 = vpack.c.b16 %v2684, %v2681
    %v3459 = vpack.c.b16 %v2688, %v2685
    %v3460 = vpack.c.b16 %v2689, %v2686
    %v3461 = vpack.c.b16 %v2690, %v2687
    %v3462 = vpack.c.b16 %v2694, %v2691
    %v3463 = vpack.c.b16 %v2695, %v2692
    %v3464 = vpack.c.b16 %v2696, %v2693
    %v3465 = vpack.c.b16 %v2700, %v2697
    %v3466 = vpack.c.b16 %v2701, %v2698
    %v3467 = vpack.c.b16 %v2702, %v2699
    %v3468 = vpack.c.b16 %v2706, %v2703
    %v3469 = vpack.c.b16 %v2707, %v2704
    %v3470 = vpack.c.b16 %v2708, %v2705
    %v3471 = vpack.c.b16 %v2712, %v2709
    %v3472 = vpack.c.b16 %v2713, %v2710
    %v3473 = vpack.c.b16 %v2714, %v2711
    %v3474 = vpack.c.b16 %v2718, %v2715
    %v3475 = vpack.c.b16 %v2719, %v2716
    %v3476 = vpack.c.b16 %v2720, %v2717
    %v3477 = vpack.c.b16 %v2724, %v2721
    %v3478 = vpack.c.b16 %v2725, %v2722
    %v3479 = vpack.c.b16 %v2726, %v2723
    %v3480 = vpack.c.b16 %v2730, %v2727
    %v3481 = vpack.c.b16 %v2731, %v2728
    %v3482 = vpack.c.b16 %v2732, %v2729
    %v3483 = vpack.c.b16 %v2736, %v2733
    %v3484 = vpack.c.b16 %v2737, %v2734
    %v3485 = vpack.c.b16 %v2738, %v2735
    %v3486 = vpack.c.b16 %v2742, %v2739
    %v3487 = vpack.c.b16 %v2743, %v2740
    %v3488 = vpack.c.b16 %v2744, %v2741
    %v3489 = vpack.c.b16 %v2748, %v2745
    %v3490 = vpack.c.b16 %v2749, %v2746
    %v3491 = vpack.c.b16 %v2750, %v2747
    %v3492 = vpack.c.b16 %v2754, %v2751
    %v3493 = vpack.c.b16 %v2755, %v2752
    %v3494 = vpack.c.b16 %v2756, %v2753
    %v3495 = vpack.c.b16 %v2760, %v2757
    %v3496 = vpack.c.b16 %v2761, %v2758
    %v3497 = vpack.c.b16 %v2762, %v2759
    %v3498 = vpack.c.b16 %v2766, %v2763
    %v3499 = vpack.c.b16 %v2767, %v2764
    %v3500 = vpack.c.b16 %v2768, %v2765
    %v3501 = vpack.c.b16 %v2772, %v2769
    %v3502 = vpack.c.b16 %v2773, %v2770
    %v3503 = vpack.c.b16 %v2774, %v2771
    %v3504 = vpack.c.b16 %v2778, %v2775
    %v3505 = vpack.c.b16 %v2779, %v2776
    %v3506 = vpack.c.b16 %v2780, %v2777
    %v3507 = vpack.c.b16 %v2784, %v2781
    %v3508 = vpack.c.b16 %v2785, %v2782
    %v3509 = vpack.c.b16 %v2786, %v2783
    %v3510 = vpack.c.b16 %v2790, %v2787
    %v3511 = vpack.c.b16 %v2791, %v2788
    %v3512 = vpack.c.b16 %v2792, %v2789
    %v3513 = vpack.c.b16 %v2796, %v2793
    %v3514 = vpack.c.b16 %v2797, %v2794
    %v3515 = vpack.c.b16 %v2798, %v2795
    %v3516 = vpack.c.b16 %v2802, %v2799
    %v3517 = vpack.c.b16 %v2803, %v2800
    %v3518 = vpack.c.b16 %v2804, %v2801
    %v3519 = vpack.c.b16 %v2808, %v2805
    %v3520 = vpack.c.b16 %v2809, %v2806
    %v3521 = vpack.c.b16 %v2810, %v2807
    %v3522 = vpack.c.b16 %v2814, %v2811
    %v3523 = vpack.c.b16 %v2815, %v2812
    %v3524 = vpack.c.b16 %v2816, %v2813
    %v3525 = vpack.c.b16 %v2820, %v2817
    %v3526 = vpack.c.b16 %v2821, %v2818
    %v3527 = vpack.c.b16 %v2822, %v2819
    %v3528 = vpack.c.b16 %v2826, %v2823
    %v3529 = vpack.c.b16 %v2827, %v2824
    %v3530 = vpack.c.b16 %v2828, %v2825
    %v3531 = vpack.c.b16 %v2832, %v2829
    %v3532 = vpack.c.b16 %v2833, %v2830
    %v3533 = vpack.c.b16 %v2834, %v2831
    %v3534 = vpack.c.b16 %v2838, %v2835
    %v3535 = vpack.c.b16 %v2839, %v2836
    %v3536 = vpack.c.b16 %v2840, %v2837
    %v3537 = vpack.c.b16 %v2844, %v2841
    %v3538 = vpack.c.b16 %v2845, %v2842
    %v3539 = vpack.c.b16 %v2846, %v2843
    %v3540 = vpack.c.b16 %v2850, %v2847
    %v3541 = vpack.c.b16 %v2851, %v2848
    %v3542 = vpack.c.b16 %v2852, %v2849
    %v3543 = vpack.c.b16 %v2856, %v2853
    %v3544 = vpack.c.b16 %v2857, %v2854
    %v3545 = vpack.c.b16 %v2858, %v2855
    %v3546 = vpack.c.b16 %v2862, %v2859
    %v3547 = vpack.c.b16 %v2863, %v2860
    %v3548 = vpack.c.b16 %v2864, %v2861
    %v3549 = vpack.c.b16 %v2868, %v2865
    %v3550 = vpack.c.b16 %v2869, %v2866
    %v3551 = vpack.c.b16 %v2870, %v2867
    %v3552 = vpack.c.b16 %v2874, %v2871
    %v3553 = vpack.c.b16 %v2875, %v2872
    %v3554 = vpack.c.b16 %v2876, %v2873
    %v3555 = vpack.c.b16 %v2880, %v2877
    %v3556 = vpack.c.b16 %v2881, %v2878
    %v3557 = vpack.c.b16 %v2882, %v2879
    %v3558 = vpack.c.b16 %v2886, %v2883
    %v3559 = vpack.c.b16 %v2887, %v2884
    %v3560 = vpack.c.b16 %v2888, %v2885
    %v3561 = vpack.c.b16 %v2892, %v2889
    %v3562 = vpack.c.b16 %v2893, %v2890
    %v3563 = vpack.c.b16 %v2894, %v2891
    %v3564 = vpack.c.b16 %v2898, %v2895
    %v3565 = vpack.c.b16 %v2899, %v2896
    %v3566 = vpack.c.b16 %v2900, %v2897
    %v3567 = vpack.c.b16 %v2904, %v2901
    %v3568 = vpack.c.b16 %v2905, %v2902
    %v3569 = vpack.c.b16 %v2906, %v2903
    %v3570 = vpack.c.b16 %v2910, %v2907
    %v3571 = vpack.c.b16 %v2911, %v2908
    %v3572 = vpack.c.b16 %v2912, %v2909
    %v3573 = vpack.c.b16 %v2916, %v2913
    %v3574 = vpack.c.b16 %v2917, %v2914
    %v3575 = vpack.c.b16 %v2918, %v2915
    %v3576 = vpack.c.b16 %v2922, %v2919
    %v3577 = vpack.c.b16 %v2923, %v2920
    %v3578 = vpack.c.b16 %v2924, %v2921
    %v3579 = vpack.c.b16 %v2928, %v2925
    %v3580 = vpack.c.b16 %v2929, %v2926
    %v3581 = vpack.c.b16 %v2930, %v2927
    %v3582 = vpack.c.b16 %v2934, %v2931
    %v3583 = vpack.c.b16 %v2935, %v2932
    %v3584 = vpack.c.b16 %v2936, %v2933
    %v3585 = vpack.c.b16 %v2940, %v2937
    %v3586 = vpack.c.b16 %v2941, %v2938
    %v3587 = vpack.c.b16 %v2942, %v2939
    %v3588 = vpack.c.b16 %v2946, %v2943
    %v3589 = vpack.c.b16 %v2947, %v2944
    %v3590 = vpack.c.b16 %v2948, %v2945
    %v3591 = vpack.c.b16 %v2952, %v2949
    %v3592 = vpack.c.b16 %v2953, %v2950
    %v3593 = vpack.c.b16 %v2954, %v2951
    %v3594 = vpack.c.b16 %v2958, %v2955
    %v3595 = vpack.c.b16 %v2959, %v2956
    %v3596 = vpack.c.b16 %v2960, %v2957
    %v3597 = vpack.c.b16 %v2964, %v2961
    %v3598 = vpack.c.b16 %v2965, %v2962
    %v3599 = vpack.c.b16 %v2966, %v2963
    %v3600 = vpack.c.b16 %v2970, %v2967
    %v3601 = vpack.c.b16 %v2971, %v2968
    %v3602 = vpack.c.b16 %v2972, %v2969
    %v3603 = vpack.c.b16 %v2976, %v2973
    %v3604 = vpack.c.b16 %v2977, %v2974
    %v3605 = vpack.c.b16 %v2978, %v2975
    %v3606 = vpack.c.b16 %v2982, %v2979
    %v3607 = vpack.c.b16 %v2983, %v2980
    %v3608 = vpack.c.b16 %v2984, %v2981
    %v3609 = vpack.c.b16 %v2988, %v2985
    %v3610 = vpack.c.b16 %v2989, %v2986
    %v3611 = vpack.c.b16 %v2990, %v2987
    %v3612 = vpack.c.b16 %v2994, %v2991
    %v3613 = vpack.c.b16 %v2995, %v2992
    %v3614 = vpack.c.b16 %v2996, %v2993
    %v3615 = vpack.c.b16 %v3000, %v2997
    %v3616 = vpack.c.b16 %v3001, %v2998
    %v3617 = vpack.c.b16 %v3002, %v2999
    %v3618 = vpack.c.b16 %v3006, %v3003
    %v3619 = vpack.c.b16 %v3007, %v3004
    %v3620 = vpack.c.b16 %v3008, %v3005
    %v3621 = vpack.c.b16 %v3012, %v3009
    %v3622 = vpack.c.b16 %v3013, %v3010
    %v3623 = vpack.c.b16 %v3014, %v3011
    %v3624 = vpack.c.b16 %v3018, %v3015
    %v3625 = vpack.c.b16 %v3019, %v3016
    %v3626 = vpack.c.b16 %v3020, %v3017
    %v3627 = vpack.c.b16 %v3024, %v3021
    %v3628 = vpack.c.b16 %v3025, %v3022
    %v3629 = vpack.c.b16 %v3026, %v3023
    %v3630 = vpack.c.b16 %v3030, %v3027
    %v3631 = vpack.c.b16 %v3031, %v3028
    %v3632 = vpack.c.b16 %v3032, %v3029
    %4233 = vmatprep.subr.bf16.mxu0 %v3055
    %4234 = vmatpush1.bf16.msra.mxu0 %v3054
    %4235 = vmatprep.subr.bf16.mxu0 %v3052
    %4236 = vmatpush1.bf16.msra.mxu0 %v3051
    %4237 = vmatprep.subr.bf16.mxu0 %v3049
    %4238 = vmatpush1.bf16.msra.mxu0 %v3048
    %4239 = vmatprep.subr.bf16.mxu0 %v3046
    %4240 = vmatpush1.bf16.msra.mxu0 %v3045
    %4241 = vmatprep.subr.bf16.mxu0 %v3043
    %4242 = vmatpush1.bf16.msra.mxu0 %v3042
    %4243 = vmatprep.subr.bf16.mxu0 %v3040
    %4244 = vmatpush1.bf16.msra.mxu0 %v3039
    %4245 = vmatprep.subr.bf16.mxu0 %v3037
    %4246 = vmatpush1.bf16.msra.mxu0 %v3036
    %4247 = vmatprep.subr.bf16.mxu0 %v3034
    %4248 = vmatpush1.bf16.msra.mxu0 %v3033
    %4249 = vmatprep.subr.bf16.mxu0 %v3079
    %4250 = vmatpush2.bf16.msra.mxu0 %v3078
    %4251 = vmatprep.subr.bf16.mxu0 %v3076
    %4252 = vmatpush2.bf16.msra.mxu0 %v3075
    %4253 = vmatprep.subr.bf16.mxu0 %v3073
    %4254 = vmatpush2.bf16.msra.mxu0 %v3072
    %4255 = vmatprep.subr.bf16.mxu0 %v3070
    %4256 = vmatpush2.bf16.msra.mxu0 %v3069
    %4257 = vmatprep.subr.bf16.mxu0 %v3067
    %4258 = vmatpush2.bf16.msra.mxu0 %v3066
    %4259 = vmatprep.subr.bf16.mxu0 %v3064
    %4260 = vmatpush2.bf16.msra.mxu0 %v3063
    %4261 = vmatprep.subr.bf16.mxu0 %v3061
    %4262 = vmatpush2.bf16.msra.mxu0 %v3060
    %4263 = vmatprep.subr.bf16.mxu0 %v3058
    %4264 = vmatpush2.bf16.msra.mxu0 %v3057
    %4265 = vmatprep.mubr.bf16.mxu0 %v884
    %4266 = vmatmul.mubr.bf16.gmra.mxu0 %v870
    %v4267 = vpop.f32.mrf.mxu0
    %v4268 = vadd.f32 %v831, %v4267
    %v4269 = vpop.f32.mrf.mxu0
    %v4270 = vadd.f32 %v835, %v4269
    %v4271 = vpop.f32.mrf.mxu0
    %v4272 = vpop.f32.mrf.mxu0
    %4273 = vdwg.mxu0
    %4274 = vmatprep.subr.bf16.mxu0 %v3103
    %4275 = vmatpush1.bf16.msra.mxu0 %v3102
    %4276 = vmatprep.subr.bf16.mxu0 %v3100
    %4277 = vmatpush1.bf16.msra.mxu0 %v3099
    %4278 = vmatprep.subr.bf16.mxu0 %v3097
    %4279 = vmatpush1.bf16.msra.mxu0 %v3096
    %4280 = vmatprep.subr.bf16.mxu0 %v3094
    %4281 = vmatpush1.bf16.msra.mxu0 %v3093
    %4282 = vmatprep.subr.bf16.mxu0 %v3091
    %4283 = vmatpush1.bf16.msra.mxu0 %v3090
    %4284 = vmatprep.subr.bf16.mxu0 %v3088
    %4285 = vmatpush1.bf16.msra.mxu0 %v3087
    %4286 = vmatprep.subr.bf16.mxu0 %v3085
    %4287 = vmatpush1.bf16.msra.mxu0 %v3084
    %4288 = vmatprep.subr.bf16.mxu0 %v3082
    %4289 = vmatpush1.bf16.msra.mxu0 %v3081
    %4290 = vmatprep.subr.bf16.mxu0 %v3127
    %4291 = vmatpush2.bf16.msra.mxu0 %v3126
    %4292 = vmatprep.subr.bf16.mxu0 %v3124
    %4293 = vmatpush2.bf16.msra.mxu0 %v3123
    %4294 = vmatprep.subr.bf16.mxu0 %v3121
    %4295 = vmatpush2.bf16.msra.mxu0 %v3120
    %4296 = vmatprep.subr.bf16.mxu0 %v3118
    %4297 = vmatpush2.bf16.msra.mxu0 %v3117
    %4298 = vmatprep.subr.bf16.mxu0 %v3115
    %4299 = vmatpush2.bf16.msra.mxu0 %v3114
    %4300 = vmatprep.subr.bf16.mxu0 %v3112
    %4301 = vmatpush2.bf16.msra.mxu0 %v3111
    %4302 = vmatprep.subr.bf16.mxu0 %v3109
    %4303 = vmatpush2.bf16.msra.mxu0 %v3108
    %4304 = vmatprep.subr.bf16.mxu0 %v3106
    %4305 = vmatpush2.bf16.msra.mxu0 %v3105
    %4306 = vmatprep.mubr.bf16.mxu0 %v894
    %4307 = vmatmul.mubr.bf16.gmra.mxu0 %v892
    %v4308 = vpop.f32.mrf.mxu0
    %v4309 = vadd.f32 %v4268, %v4308
    %v4310 = vpop.f32.mrf.mxu0
    %v4311 = vadd.f32 %v4270, %v4310
    %v4312 = vpop.f32.mrf.mxu0
    %v4313 = vpop.f32.mrf.mxu0
    %4314 = vdwg.mxu0
    %4315 = vmatprep.subr.bf16.mxu0 %v3151
    %4316 = vmatpush1.bf16.msra.mxu0 %v3150
    %4317 = vmatprep.subr.bf16.mxu0 %v3148
    %4318 = vmatpush1.bf16.msra.mxu0 %v3147
    %4319 = vmatprep.subr.bf16.mxu0 %v3145
    %4320 = vmatpush1.bf16.msra.mxu0 %v3144
    %4321 = vmatprep.subr.bf16.mxu0 %v3142
    %4322 = vmatpush1.bf16.msra.mxu0 %v3141
    %4323 = vmatprep.subr.bf16.mxu0 %v3139
    %4324 = vmatpush1.bf16.msra.mxu0 %v3138
    %4325 = vmatprep.subr.bf16.mxu0 %v3136
    %4326 = vmatpush1.bf16.msra.mxu0 %v3135
    %4327 = vmatprep.subr.bf16.mxu0 %v3133
    %4328 = vmatpush1.bf16.msra.mxu0 %v3132
    %4329 = vmatprep.subr.bf16.mxu0 %v3130
    %4330 = vmatpush1.bf16.msra.mxu0 %v3129
    %4331 = vmatprep.subr.bf16.mxu0 %v3175
    %4332 = vmatpush2.bf16.msra.mxu0 %v3174
    %4333 = vmatprep.subr.bf16.mxu0 %v3172
    %4334 = vmatpush2.bf16.msra.mxu0 %v3171
    %4335 = vmatprep.subr.bf16.mxu0 %v3169
    %4336 = vmatpush2.bf16.msra.mxu0 %v3168
    %4337 = vmatprep.subr.bf16.mxu0 %v3166
    %4338 = vmatpush2.bf16.msra.mxu0 %v3165
    %4339 = vmatprep.subr.bf16.mxu0 %v3163
    %4340 = vmatpush2.bf16.msra.mxu0 %v3162
    %4341 = vmatprep.subr.bf16.mxu0 %v3160
    %4342 = vmatpush2.bf16.msra.mxu0 %v3159
    %4343 = vmatprep.subr.bf16.mxu0 %v3157
    %4344 = vmatpush2.bf16.msra.mxu0 %v3156
    %4345 = vmatprep.subr.bf16.mxu0 %v3154
    %4346 = vmatpush2.bf16.msra.mxu0 %v3153
    %4347 = vmatprep.mubr.bf16.mxu0 %v891
    %4348 = vmatmul.mubr.bf16.gmra.mxu0 %v877
    %v4349 = vpop.f32.mrf.mxu0
    %v4350 = vadd.f32 %v4309, %v4349
    %v4351 = vpop.f32.mrf.mxu0
    %v4352 = vadd.f32 %v4311, %v4351
    %v4353 = vpop.f32.mrf.mxu0
    %v4354 = vpop.f32.mrf.mxu0
    %4355 = vdwg.mxu0
    %4356 = vmatprep.subr.bf16.mxu0 %v3199
    %4357 = vmatpush1.bf16.msra.mxu0 %v3198
    %4358 = vmatprep.subr.bf16.mxu0 %v3196
    %4359 = vmatpush1.bf16.msra.mxu0 %v3195
    %4360 = vmatprep.subr.bf16.mxu0 %v3193
    %4361 = vmatpush1.bf16.msra.mxu0 %v3192
    %4362 = vmatprep.subr.bf16.mxu0 %v3190
    %4363 = vmatpush1.bf16.msra.mxu0 %v3189
    %4364 = vmatprep.subr.bf16.mxu0 %v3187
    %4365 = vmatpush1.bf16.msra.mxu0 %v3186
    %4366 = vmatprep.subr.bf16.mxu0 %v3184
    %4367 = vmatpush1.bf16.msra.mxu0 %v3183
    %4368 = vmatprep.subr.bf16.mxu0 %v3181
    %4369 = vmatpush1.bf16.msra.mxu0 %v3180
    %4370 = vmatprep.subr.bf16.mxu0 %v3178
    %4371 = vmatpush1.bf16.msra.mxu0 %v3177
    %4372 = vmatprep.subr.bf16.mxu0 %v3223
    %4373 = vmatpush2.bf16.msra.mxu0 %v3222
    %4374 = vmatprep.subr.bf16.mxu0 %v3220
    %4375 = vmatpush2.bf16.msra.mxu0 %v3219
    %4376 = vmatprep.subr.bf16.mxu0 %v3217
    %4377 = vmatpush2.bf16.msra.mxu0 %v3216
    %4378 = vmatprep.subr.bf16.mxu0 %v3214
    %4379 = vmatpush2.bf16.msra.mxu0 %v3213
    %4380 = vmatprep.subr.bf16.mxu0 %v3211
    %4381 = vmatpush2.bf16.msra.mxu0 %v3210
    %4382 = vmatprep.subr.bf16.mxu0 %v3208
    %4383 = vmatpush2.bf16.msra.mxu0 %v3207
    %4384 = vmatprep.subr.bf16.mxu0 %v3205
    %4385 = vmatpush2.bf16.msra.mxu0 %v3204
    %4386 = vmatprep.subr.bf16.mxu0 %v3202
    %4387 = vmatpush2.bf16.msra.mxu0 %v3201
    %4388 = vmatprep.mubr.bf16.mxu0 %v895
    %4389 = vmatmul.mubr.bf16.gmra.mxu0 %v893
    %v4390 = vpop.f32.mrf.mxu0
    %v4391 = vadd.f32 %v4350, %v4390
    %v4392 = vpop.f32.mrf.mxu0
    %v4393 = vadd.f32 %v4352, %v4392
    %v4394 = vpop.f32.mrf.mxu0
    %v4395 = vpop.f32.mrf.mxu0
    %4396 = vdwg.mxu0
    %4397 = vmatprep.subr.bf16.mxu0 %v3247
    %4398 = vmatpush1.bf16.msra.mxu0 %v3246
    %4399 = vmatprep.subr.bf16.mxu0 %v3244
    %4400 = vmatpush1.bf16.msra.mxu0 %v3243
    %4401 = vmatprep.subr.bf16.mxu0 %v3241
    %4402 = vmatpush1.bf16.msra.mxu0 %v3240
    %4403 = vmatprep.subr.bf16.mxu0 %v3238
    %4404 = vmatpush1.bf16.msra.mxu0 %v3237
    %4405 = vmatprep.subr.bf16.mxu0 %v3235
    %4406 = vmatpush1.bf16.msra.mxu0 %v3234
    %4407 = vmatprep.subr.bf16.mxu0 %v3232
    %4408 = vmatpush1.bf16.msra.mxu0 %v3231
    %4409 = vmatprep.subr.bf16.mxu0 %v3229
    %4410 = vmatpush1.bf16.msra.mxu0 %v3228
    %4411 = vmatprep.subr.bf16.mxu0 %v3226
    %4412 = vmatpush1.bf16.msra.mxu0 %v3225
    %4413 = vmatprep.subr.bf16.mxu0 %v3271
    %4414 = vmatpush2.bf16.msra.mxu0 %v3270
    %4415 = vmatprep.subr.bf16.mxu0 %v3268
    %4416 = vmatpush2.bf16.msra.mxu0 %v3267
    %4417 = vmatprep.subr.bf16.mxu0 %v3265
    %4418 = vmatpush2.bf16.msra.mxu0 %v3264
    %4419 = vmatprep.subr.bf16.mxu0 %v3262
    %4420 = vmatpush2.bf16.msra.mxu0 %v3261
    %4421 = vmatprep.subr.bf16.mxu0 %v3259
    %4422 = vmatpush2.bf16.msra.mxu0 %v3258
    %4423 = vmatprep.subr.bf16.mxu0 %v3256
    %4424 = vmatpush2.bf16.msra.mxu0 %v3255
    %4425 = vmatprep.subr.bf16.mxu0 %v3253
    %4426 = vmatpush2.bf16.msra.mxu0 %v3252
    %4427 = vmatprep.subr.bf16.mxu0 %v3250
    %4428 = vmatpush2.bf16.msra.mxu0 %v3249
    %4429 = vmatprep.mubr.bf16.mxu0 %v933
    %4430 = vmatmul.mubr.bf16.gmra.mxu0 %v919
    %v4431 = vpop.f32.mrf.mxu0
    %v4432 = vadd.f32 %v4391, %v4431
    %v4433 = vpop.f32.mrf.mxu0
    %v4434 = vadd.f32 %v4393, %v4433
    %v4435 = vpop.f32.mrf.mxu0
    %v4436 = vpop.f32.mrf.mxu0
    %4437 = vdwg.mxu0
    %4438 = vmatprep.subr.bf16.mxu0 %v3295
    %4439 = vmatpush1.bf16.msra.mxu0 %v3294
    %4440 = vmatprep.subr.bf16.mxu0 %v3292
    %4441 = vmatpush1.bf16.msra.mxu0 %v3291
    %4442 = vmatprep.subr.bf16.mxu0 %v3289
    %4443 = vmatpush1.bf16.msra.mxu0 %v3288
    %4444 = vmatprep.subr.bf16.mxu0 %v3286
    %4445 = vmatpush1.bf16.msra.mxu0 %v3285
    %4446 = vmatprep.subr.bf16.mxu0 %v3283
    %4447 = vmatpush1.bf16.msra.mxu0 %v3282
    %4448 = vmatprep.subr.bf16.mxu0 %v3280
    %4449 = vmatpush1.bf16.msra.mxu0 %v3279
    %4450 = vmatprep.subr.bf16.mxu0 %v3277
    %4451 = vmatpush1.bf16.msra.mxu0 %v3276
    %4452 = vmatprep.subr.bf16.mxu0 %v3274
    %4453 = vmatpush1.bf16.msra.mxu0 %v3273
    %4454 = vmatprep.subr.bf16.mxu0 %v3319
    %4455 = vmatpush2.bf16.msra.mxu0 %v3318
    %4456 = vmatprep.subr.bf16.mxu0 %v3316
    %4457 = vmatpush2.bf16.msra.mxu0 %v3315
    %4458 = vmatprep.subr.bf16.mxu0 %v3313
    %4459 = vmatpush2.bf16.msra.mxu0 %v3312
    %4460 = vmatprep.subr.bf16.mxu0 %v3310
    %4461 = vmatpush2.bf16.msra.mxu0 %v3309
    %4462 = vmatprep.subr.bf16.mxu0 %v3307
    %4463 = vmatpush2.bf16.msra.mxu0 %v3306
    %4464 = vmatprep.subr.bf16.mxu0 %v3304
    %4465 = vmatpush2.bf16.msra.mxu0 %v3303
    %4466 = vmatprep.subr.bf16.mxu0 %v3301
    %4467 = vmatpush2.bf16.msra.mxu0 %v3300
    %4468 = vmatprep.subr.bf16.mxu0 %v3298
    %4469 = vmatpush2.bf16.msra.mxu0 %v3297
    %4470 = vmatprep.mubr.bf16.mxu0 %v943
    %4471 = vmatmul.mubr.bf16.gmra.mxu0 %v941
    %v4472 = vpop.f32.mrf.mxu0
    %v4473 = vadd.f32 %v4432, %v4472
    %v4474 = vpop.f32.mrf.mxu0
    %v4475 = vadd.f32 %v4434, %v4474
    %v4476 = vpop.f32.mrf.mxu0
    %v4477 = vpop.f32.mrf.mxu0
    %4478 = vdwg.mxu0
    %4479 = vmatprep.subr.bf16.mxu0 %v3343
    %4480 = vmatpush1.bf16.msra.mxu0 %v3342
    %4481 = vmatprep.subr.bf16.mxu0 %v3340
    %4482 = vmatpush1.bf16.msra.mxu0 %v3339
    %4483 = vmatprep.subr.bf16.mxu0 %v3337
    %4484 = vmatpush1.bf16.msra.mxu0 %v3336
    %4485 = vmatprep.subr.bf16.mxu0 %v3334
    %4486 = vmatpush1.bf16.msra.mxu0 %v3333
    %4487 = vmatprep.subr.bf16.mxu0 %v3331
    %4488 = vmatpush1.bf16.msra.mxu0 %v3330
    %4489 = vmatprep.subr.bf16.mxu0 %v3328
    %4490 = vmatpush1.bf16.msra.mxu0 %v3327
    %4491 = vmatprep.subr.bf16.mxu0 %v3325
    %4492 = vmatpush1.bf16.msra.mxu0 %v3324
    %4493 = vmatprep.subr.bf16.mxu0 %v3322
    %4494 = vmatpush1.bf16.msra.mxu0 %v3321
    %4495 = vmatprep.subr.bf16.mxu0 %v3367
    %4496 = vmatpush2.bf16.msra.mxu0 %v3366
    %4497 = vmatprep.subr.bf16.mxu0 %v3364
    %4498 = vmatpush2.bf16.msra.mxu0 %v3363
    %4499 = vmatprep.subr.bf16.mxu0 %v3361
    %4500 = vmatpush2.bf16.msra.mxu0 %v3360
    %4501 = vmatprep.subr.bf16.mxu0 %v3358
    %4502 = vmatpush2.bf16.msra.mxu0 %v3357
    %4503 = vmatprep.subr.bf16.mxu0 %v3355
    %4504 = vmatpush2.bf16.msra.mxu0 %v3354
    %4505 = vmatprep.subr.bf16.mxu0 %v3352
    %4506 = vmatpush2.bf16.msra.mxu0 %v3351
    %4507 = vmatprep.subr.bf16.mxu0 %v3349
    %4508 = vmatpush2.bf16.msra.mxu0 %v3348
    %4509 = vmatprep.subr.bf16.mxu0 %v3346
    %4510 = vmatpush2.bf16.msra.mxu0 %v3345
    %4511 = vmatprep.mubr.bf16.mxu0 %v940
    %4512 = vmatmul.mubr.bf16.gmra.mxu0 %v926
    %v4513 = vpop.f32.mrf.mxu0
    %v4514 = vadd.f32 %v4473, %v4513
    %v4515 = vpop.f32.mrf.mxu0
    %v4516 = vadd.f32 %v4475, %v4515
    %v4517 = vpop.f32.mrf.mxu0
    %v4518 = vpop.f32.mrf.mxu0
    %4519 = vdwg.mxu0
    %4520 = vmatprep.subr.bf16.mxu0 %v3391
    %4521 = vmatpush1.bf16.msra.mxu0 %v3390
    %4522 = vmatprep.subr.bf16.mxu0 %v3388
    %4523 = vmatpush1.bf16.msra.mxu0 %v3387
    %4524 = vmatprep.subr.bf16.mxu0 %v3385
    %4525 = vmatpush1.bf16.msra.mxu0 %v3384
    %4526 = vmatprep.subr.bf16.mxu0 %v3382
    %4527 = vmatpush1.bf16.msra.mxu0 %v3381
    %4528 = vmatprep.subr.bf16.mxu0 %v3379
    %4529 = vmatpush1.bf16.msra.mxu0 %v3378
    %4530 = vmatprep.subr.bf16.mxu0 %v3376
    %4531 = vmatpush1.bf16.msra.mxu0 %v3375
    %4532 = vmatprep.subr.bf16.mxu0 %v3373
    %4533 = vmatpush1.bf16.msra.mxu0 %v3372
    %4534 = vmatprep.subr.bf16.mxu0 %v3370
    %4535 = vmatpush1.bf16.msra.mxu0 %v3369
    %4536 = vmatprep.subr.bf16.mxu0 %v3415
    %4537 = vmatpush2.bf16.msra.mxu0 %v3414
    %4538 = vmatprep.subr.bf16.mxu0 %v3412
    %4539 = vmatpush2.bf16.msra.mxu0 %v3411
    %4540 = vmatprep.subr.bf16.mxu0 %v3409
    %4541 = vmatpush2.bf16.msra.mxu0 %v3408
    %4542 = vmatprep.subr.bf16.mxu0 %v3406
    %4543 = vmatpush2.bf16.msra.mxu0 %v3405
    %4544 = vmatprep.subr.bf16.mxu0 %v3403
    %4545 = vmatpush2.bf16.msra.mxu0 %v3402
    %4546 = vmatprep.subr.bf16.mxu0 %v3400
    %4547 = vmatpush2.bf16.msra.mxu0 %v3399
    %4548 = vmatprep.subr.bf16.mxu0 %v3397
    %4549 = vmatpush2.bf16.msra.mxu0 %v3396
    %4550 = vmatprep.subr.bf16.mxu0 %v3394
    %4551 = vmatpush2.bf16.msra.mxu0 %v3393
    %4552 = vmatprep.mubr.bf16.mxu0 %v944
    %4553 = vmatmul.mubr.bf16.gmra.mxu0 %v942
    %v4554 = vpop.f32.mrf.mxu0
    %v4555 = vadd.f32 %v4514, %v4554
    %v4556 = vpop.f32.mrf.mxu0
    %v4557 = vadd.f32 %v4516, %v4556
    %v4558 = vpop.f32.mrf.mxu0
    %v4559 = vpop.f32.mrf.mxu0
    %4560 = vdwg.mxu0
    %4561 = vmatprep.subr.bf16.mxu0 %v3439
    %4562 = vmatpush1.bf16.msra.mxu0 %v3438
    %4563 = vmatprep.subr.bf16.mxu0 %v3436
    %4564 = vmatpush1.bf16.msra.mxu0 %v3435
    %4565 = vmatprep.subr.bf16.mxu0 %v3433
    %4566 = vmatpush1.bf16.msra.mxu0 %v3432
    %4567 = vmatprep.subr.bf16.mxu0 %v3430
    %4568 = vmatpush1.bf16.msra.mxu0 %v3429
    %4569 = vmatprep.subr.bf16.mxu0 %v3427
    %4570 = vmatpush1.bf16.msra.mxu0 %v3426
    %4571 = vmatprep.subr.bf16.mxu0 %v3424
    %4572 = vmatpush1.bf16.msra.mxu0 %v3423
    %4573 = vmatprep.subr.bf16.mxu0 %v3421
    %4574 = vmatpush1.bf16.msra.mxu0 %v3420
    %4575 = vmatprep.subr.bf16.mxu0 %v3418
    %4576 = vmatpush1.bf16.msra.mxu0 %v3417
    %4577 = vmatprep.subr.bf16.mxu0 %v3463
    %4578 = vmatpush2.bf16.msra.mxu0 %v3462
    %4579 = vmatprep.subr.bf16.mxu0 %v3460
    %4580 = vmatpush2.bf16.msra.mxu0 %v3459
    %4581 = vmatprep.subr.bf16.mxu0 %v3457
    %4582 = vmatpush2.bf16.msra.mxu0 %v3456
    %4583 = vmatprep.subr.bf16.mxu0 %v3454
    %4584 = vmatpush2.bf16.msra.mxu0 %v3453
    %4585 = vmatprep.subr.bf16.mxu0 %v3451
    %4586 = vmatpush2.bf16.msra.mxu0 %v3450
    %4587 = vmatprep.subr.bf16.mxu0 %v3448
    %4588 = vmatpush2.bf16.msra.mxu0 %v3447
    %4589 = vmatprep.subr.bf16.mxu0 %v3445
    %4590 = vmatpush2.bf16.msra.mxu0 %v3444
    %4591 = vmatprep.subr.bf16.mxu0 %v3442
    %4592 = vmatpush2.bf16.msra.mxu0 %v3441
    %4593 = vmatprep.mubr.bf16.mxu0 %v982
    %4594 = vmatmul.mubr.bf16.gmra.mxu0 %v968
    %v4595 = vpop.f32.mrf.mxu0
    %v4596 = vadd.f32 %v4555, %v4595
    %v4597 = vpop.f32.mrf.mxu0
    %v4598 = vadd.f32 %v4557, %v4597
    %v4599 = vpop.f32.mrf.mxu0
    %v4600 = vpop.f32.mrf.mxu0
    %4601 = vdwg.mxu0
    %4602 = vmatprep.subr.bf16.mxu0 %v3487
    %4603 = vmatpush1.bf16.msra.mxu0 %v3486
    %4604 = vmatprep.subr.bf16.mxu0 %v3484
    %4605 = vmatpush1.bf16.msra.mxu0 %v3483
    %4606 = vmatprep.subr.bf16.mxu0 %v3481
    %4607 = vmatpush1.bf16.msra.mxu0 %v3480
    %4608 = vmatprep.subr.bf16.mxu0 %v3478
    %4609 = vmatpush1.bf16.msra.mxu0 %v3477
    %4610 = vmatprep.subr.bf16.mxu0 %v3475
    %4611 = vmatpush1.bf16.msra.mxu0 %v3474
    %4612 = vmatprep.subr.bf16.mxu0 %v3472
    %4613 = vmatpush1.bf16.msra.mxu0 %v3471
    %4614 = vmatprep.subr.bf16.mxu0 %v3469
    %4615 = vmatpush1.bf16.msra.mxu0 %v3468
    %4616 = vmatprep.subr.bf16.mxu0 %v3466
    %4617 = vmatpush1.bf16.msra.mxu0 %v3465
    %4618 = vmatprep.subr.bf16.mxu0 %v3511
    %4619 = vmatpush2.bf16.msra.mxu0 %v3510
    %4620 = vmatprep.subr.bf16.mxu0 %v3508
    %4621 = vmatpush2.bf16.msra.mxu0 %v3507
    %4622 = vmatprep.subr.bf16.mxu0 %v3505
    %4623 = vmatpush2.bf16.msra.mxu0 %v3504
    %4624 = vmatprep.subr.bf16.mxu0 %v3502
    %4625 = vmatpush2.bf16.msra.mxu0 %v3501
    %4626 = vmatprep.subr.bf16.mxu0 %v3499
    %4627 = vmatpush2.bf16.msra.mxu0 %v3498
    %4628 = vmatprep.subr.bf16.mxu0 %v3496
    %4629 = vmatpush2.bf16.msra.mxu0 %v3495
    %4630 = vmatprep.subr.bf16.mxu0 %v3493
    %4631 = vmatpush2.bf16.msra.mxu0 %v3492
    %4632 = vmatprep.subr.bf16.mxu0 %v3490
    %4633 = vmatpush2.bf16.msra.mxu0 %v3489
    %4634 = vmatprep.mubr.bf16.mxu0 %v992
    %4635 = vmatmul.mubr.bf16.gmra.mxu0 %v990
    %v4636 = vpop.f32.mrf.mxu0
    %v4637 = vadd.f32 %v4596, %v4636
    %v4638 = vpop.f32.mrf.mxu0
    %v4639 = vadd.f32 %v4598, %v4638
    %v4640 = vpop.f32.mrf.mxu0
    %v4641 = vpop.f32.mrf.mxu0
    %4642 = vdwg.mxu0
    %4643 = vmatprep.subr.bf16.mxu0 %v3535
    %4644 = vmatpush1.bf16.msra.mxu0 %v3534
    %4645 = vmatprep.subr.bf16.mxu0 %v3532
    %4646 = vmatpush1.bf16.msra.mxu0 %v3531
    %4647 = vmatprep.subr.bf16.mxu0 %v3529
    %4648 = vmatpush1.bf16.msra.mxu0 %v3528
    %4649 = vmatprep.subr.bf16.mxu0 %v3526
    %4650 = vmatpush1.bf16.msra.mxu0 %v3525
    %4651 = vmatprep.subr.bf16.mxu0 %v3523
    %4652 = vmatpush1.bf16.msra.mxu0 %v3522
    %4653 = vmatprep.subr.bf16.mxu0 %v3520
    %4654 = vmatpush1.bf16.msra.mxu0 %v3519
    %4655 = vmatprep.subr.bf16.mxu0 %v3517
    %4656 = vmatpush1.bf16.msra.mxu0 %v3516
    %4657 = vmatprep.subr.bf16.mxu0 %v3514
    %4658 = vmatpush1.bf16.msra.mxu0 %v3513
    %4659 = vmatprep.subr.bf16.mxu0 %v3559
    %4660 = vmatpush2.bf16.msra.mxu0 %v3558
    %4661 = vmatprep.subr.bf16.mxu0 %v3556
    %4662 = vmatpush2.bf16.msra.mxu0 %v3555
    %4663 = vmatprep.subr.bf16.mxu0 %v3553
    %4664 = vmatpush2.bf16.msra.mxu0 %v3552
    %4665 = vmatprep.subr.bf16.mxu0 %v3550
    %4666 = vmatpush2.bf16.msra.mxu0 %v3549
    %4667 = vmatprep.subr.bf16.mxu0 %v3547
    %4668 = vmatpush2.bf16.msra.mxu0 %v3546
    %4669 = vmatprep.subr.bf16.mxu0 %v3544
    %4670 = vmatpush2.bf16.msra.mxu0 %v3543
    %4671 = vmatprep.subr.bf16.mxu0 %v3541
    %4672 = vmatpush2.bf16.msra.mxu0 %v3540
    %4673 = vmatprep.subr.bf16.mxu0 %v3538
    %4674 = vmatpush2.bf16.msra.mxu0 %v3537
    %4675 = vmatprep.mubr.bf16.mxu0 %v989
    %4676 = vmatmul.mubr.bf16.gmra.mxu0 %v975
    %v4677 = vpop.f32.mrf.mxu0
    %v4678 = vadd.f32 %v4637, %v4677
    %v4679 = vpop.f32.mrf.mxu0
    %v4680 = vadd.f32 %v4639, %v4679
    %v4681 = vpop.f32.mrf.mxu0
    %v4682 = vpop.f32.mrf.mxu0
    %4683 = vdwg.mxu0
    %4684 = vmatprep.subr.bf16.mxu0 %v3583
    %4685 = vmatpush1.bf16.msra.mxu0 %v3582
    %4686 = vmatprep.subr.bf16.mxu0 %v3580
    %4687 = vmatpush1.bf16.msra.mxu0 %v3579
    %4688 = vmatprep.subr.bf16.mxu0 %v3577
    %4689 = vmatpush1.bf16.msra.mxu0 %v3576
    %4690 = vmatprep.subr.bf16.mxu0 %v3574
    %4691 = vmatpush1.bf16.msra.mxu0 %v3573
    %4692 = vmatprep.subr.bf16.mxu0 %v3571
    %4693 = vmatpush1.bf16.msra.mxu0 %v3570
    %4694 = vmatprep.subr.bf16.mxu0 %v3568
    %4695 = vmatpush1.bf16.msra.mxu0 %v3567
    %4696 = vmatprep.subr.bf16.mxu0 %v3565
    %4697 = vmatpush1.bf16.msra.mxu0 %v3564
    %4698 = vmatprep.subr.bf16.mxu0 %v3562
    %4699 = vmatpush1.bf16.msra.mxu0 %v3561
    %4700 = vmatprep.subr.bf16.mxu0 %v3607
    %4701 = vmatpush2.bf16.msra.mxu0 %v3606
    %4702 = vmatprep.subr.bf16.mxu0 %v3604
    %4703 = vmatpush2.bf16.msra.mxu0 %v3603
    %4704 = vmatprep.subr.bf16.mxu0 %v3601
    %4705 = vmatpush2.bf16.msra.mxu0 %v3600
    %4706 = vmatprep.subr.bf16.mxu0 %v3598
    %4707 = vmatpush2.bf16.msra.mxu0 %v3597
    %4708 = vmatprep.subr.bf16.mxu0 %v3595
    %4709 = vmatpush2.bf16.msra.mxu0 %v3594
    %4710 = vmatprep.subr.bf16.mxu0 %v3592
    %4711 = vmatpush2.bf16.msra.mxu0 %v3591
    %4712 = vmatprep.subr.bf16.mxu0 %v3589
    %4713 = vmatpush2.bf16.msra.mxu0 %v3588
    %4714 = vmatprep.subr.bf16.mxu0 %v3586
    %4715 = vmatpush2.bf16.msra.mxu0 %v3585
    %4716 = vmatprep.mubr.bf16.mxu0 %v993
    %4717 = vmatmul.mubr.bf16.gmra.mxu0 %v991
    %v4718 = vpop.f32.mrf.mxu0
    %v4719 = vadd.f32 %v4678, %v4718
    %v4720 = vpop.f32.mrf.mxu0
    %v4721 = vadd.f32 %v4680, %v4720
    %v4722 = vpop.f32.mrf.mxu0
    %v4723 = vpop.f32.mrf.mxu0
    %4724 = vdwg.mxu0
    %4725 = vmatprep.subr.bf16.mxu0 %v3631
    %4726 = vmatpush1.bf16.msra.mxu0 %v3630
    %4727 = vmatprep.subr.bf16.mxu0 %v3628
    %4728 = vmatpush1.bf16.msra.mxu0 %v3627
    %4729 = vmatprep.subr.bf16.mxu0 %v3625
    %4730 = vmatpush1.bf16.msra.mxu0 %v3624
    %4731 = vmatprep.subr.bf16.mxu0 %v3622
    %4732 = vmatpush1.bf16.msra.mxu0 %v3621
    %4733 = vmatprep.subr.bf16.mxu0 %v3619
    %4734 = vmatpush1.bf16.msra.mxu0 %v3618
    %4735 = vmatprep.subr.bf16.mxu0 %v3616
    %4736 = vmatpush1.bf16.msra.mxu0 %v3615
    %4737 = vmatprep.subr.bf16.mxu0 %v3613
    %4738 = vmatpush1.bf16.msra.mxu0 %v3612
    %4739 = vmatprep.subr.bf16.mxu0 %v3610
    %4740 = vmatpush1.bf16.msra.mxu0 %v3609
    %4741 = vmatprep.subr.bf16.mxu0 0
    %4742 = vmatpush2.bf16.msra.mxu0 0
    %4743 = vmatprep.subr.bf16.mxu0 0
    %4744 = vmatpush2.bf16.msra.mxu0 0
    %4745 = vmatprep.subr.bf16.mxu0 0
    %4746 = vmatpush2.bf16.msra.mxu0 0
    %4747 = vmatprep.subr.bf16.mxu0 0
    %4748 = vmatpush2.bf16.msra.mxu0 0
    %4749 = vmatprep.subr.bf16.mxu0 0
    %4750 = vmatpush2.bf16.msra.mxu0 0
    %4751 = vmatprep.subr.bf16.mxu0 0
    %4752 = vmatpush2.bf16.msra.mxu0 0
    %4753 = vmatprep.subr.bf16.mxu0 0
    %4754 = vmatpush2.bf16.msra.mxu0 0
    %4755 = vmatprep.subr.bf16.mxu0 0
    %4756 = vmatpush2.bf16.msra.mxu0 0
    %4757 = vmatprep.mubr.bf16.mxu0 0
    %4758 = vmatmul.mubr.bf16.gmra.mxu0 %v1007
    %v4759 = vpop.f32.mrf.mxu0
    %v4760 = vadd.f32 %v4719, %v4759
    %v4761 = vpop.f32.mrf.mxu0
    %v4762 = vadd.f32 %v4721, %v4761
    %v4763 = vpop.f32.mrf.mxu0
    %v4764 = vpop.f32.mrf.mxu0
    %4765 = vdwg.mxu0
    %4766 = vmatprep.subr.bf16.mxu0 0
    %4767 = vmatpush1.bf16.msra.mxu0 %v3056
    %4768 = vmatprep.subr.bf16.mxu0 0
    %4769 = vmatpush1.bf16.msra.mxu0 %v3053
    %4770 = vmatprep.subr.bf16.mxu0 0
    %4771 = vmatpush1.bf16.msra.mxu0 %v3050
    %4772 = vmatprep.subr.bf16.mxu0 0
    %4773 = vmatpush1.bf16.msra.mxu0 %v3047
    %4774 = vmatprep.subr.bf16.mxu0 0
    %4775 = vmatpush1.bf16.msra.mxu0 %v3044
    %4776 = vmatprep.subr.bf16.mxu0 0
    %4777 = vmatpush1.bf16.msra.mxu0 %v3041
    %4778 = vmatprep.subr.bf16.mxu0 0
    %4779 = vmatpush1.bf16.msra.mxu0 %v3038
    %4780 = vmatprep.subr.bf16.mxu0 0
    %4781 = vmatpush1.bf16.msra.mxu0 %v3035
    %4782 = vmatprep.subr.bf16.mxu0 0
    %4783 = vmatpush2.bf16.msra.mxu0 %v3080
    %4784 = vmatprep.subr.bf16.mxu0 0
    %4785 = vmatpush2.bf16.msra.mxu0 %v3077
    %4786 = vmatprep.subr.bf16.mxu0 0
    %4787 = vmatpush2.bf16.msra.mxu0 %v3074
    %4788 = vmatprep.subr.bf16.mxu0 0
    %4789 = vmatpush2.bf16.msra.mxu0 %v3071
    %4790 = vmatprep.subr.bf16.mxu0 0
    %4791 = vmatpush2.bf16.msra.mxu0 %v3068
    %4792 = vmatprep.subr.bf16.mxu0 0
    %4793 = vmatpush2.bf16.msra.mxu0 %v3065
    %4794 = vmatprep.subr.bf16.mxu0 0
    %4795 = vmatpush2.bf16.msra.mxu0 %v3062
    %4796 = vmatprep.subr.bf16.mxu0 0
    %4797 = vmatpush2.bf16.msra.mxu0 %v3059
    %4798 = vmatprep.mubr.bf16.mxu0 %v884
    %4799 = vmatmul.mubr.bf16.gmra.mxu0 %v870
    %v4800 = vpop.f32.mrf.mxu0
    %v4801 = vadd.f32 %v839, %v4800
    %v4802 = vpop.f32.mrf.mxu0
    %v4803 = vpop.f32.mrf.mxu0
    %v4804 = vpop.f32.mrf.mxu0
    %4805 = vdwg.mxu0
    %4806 = vmatprep.subr.bf16.mxu0 0
    %4807 = vmatpush1.bf16.msra.mxu0 %v3104
    %4808 = vmatprep.subr.bf16.mxu0 0
    %4809 = vmatpush1.bf16.msra.mxu0 %v3101
    %4810 = vmatprep.subr.bf16.mxu0 0
    %4811 = vmatpush1.bf16.msra.mxu0 %v3098
    %4812 = vmatprep.subr.bf16.mxu0 0
    %4813 = vmatpush1.bf16.msra.mxu0 %v3095
    %4814 = vmatprep.subr.bf16.mxu0 0
    %4815 = vmatpush1.bf16.msra.mxu0 %v3092
    %4816 = vmatprep.subr.bf16.mxu0 0
    %4817 = vmatpush1.bf16.msra.mxu0 %v3089
    %4818 = vmatprep.subr.bf16.mxu0 0
    %4819 = vmatpush1.bf16.msra.mxu0 %v3086
    %4820 = vmatprep.subr.bf16.mxu0 0
    %4821 = vmatpush1.bf16.msra.mxu0 %v3083
    %4822 = vmatprep.subr.bf16.mxu0 0
    %4823 = vmatpush2.bf16.msra.mxu0 %v3128
    %4824 = vmatprep.subr.bf16.mxu0 0
    %4825 = vmatpush2.bf16.msra.mxu0 %v3125
    %4826 = vmatprep.subr.bf16.mxu0 0
    %4827 = vmatpush2.bf16.msra.mxu0 %v3122
    %4828 = vmatprep.subr.bf16.mxu0 0
    %4829 = vmatpush2.bf16.msra.mxu0 %v3119
    %4830 = vmatprep.subr.bf16.mxu0 0
    %4831 = vmatpush2.bf16.msra.mxu0 %v3116
    %4832 = vmatprep.subr.bf16.mxu0 0
    %4833 = vmatpush2.bf16.msra.mxu0 %v3113
    %4834 = vmatprep.subr.bf16.mxu0 0
    %4835 = vmatpush2.bf16.msra.mxu0 %v3110
    %4836 = vmatprep.subr.bf16.mxu0 0
    %4837 = vmatpush2.bf16.msra.mxu0 %v3107
    %4838 = vmatprep.mubr.bf16.mxu0 %v894
    %4839 = vmatmul.mubr.bf16.gmra.mxu0 %v892
    %v4840 = vpop.f32.mrf.mxu0
    %v4841 = vadd.f32 %v4801, %v4840
    %v4842 = vpop.f32.mrf.mxu0
    %v4843 = vpop.f32.mrf.mxu0
    %v4844 = vpop.f32.mrf.mxu0
    %4845 = vdwg.mxu0
    %4846 = vmatprep.subr.bf16.mxu0 0
    %4847 = vmatpush1.bf16.msra.mxu0 %v3152
    %4848 = vmatprep.subr.bf16.mxu0 0
    %4849 = vmatpush1.bf16.msra.mxu0 %v3149
    %4850 = vmatprep.subr.bf16.mxu0 0
    %4851 = vmatpush1.bf16.msra.mxu0 %v3146
    %4852 = vmatprep.subr.bf16.mxu0 0
    %4853 = vmatpush1.bf16.msra.mxu0 %v3143
    %4854 = vmatprep.subr.bf16.mxu0 0
    %4855 = vmatpush1.bf16.msra.mxu0 %v3140
    %4856 = vmatprep.subr.bf16.mxu0 0
    %4857 = vmatpush1.bf16.msra.mxu0 %v3137
    %4858 = vmatprep.subr.bf16.mxu0 0
    %4859 = vmatpush1.bf16.msra.mxu0 %v3134
    %4860 = vmatprep.subr.bf16.mxu0 0
    %4861 = vmatpush1.bf16.msra.mxu0 %v3131
    %4862 = vmatprep.subr.bf16.mxu0 0
    %4863 = vmatpush2.bf16.msra.mxu0 %v3176
    %4864 = vmatprep.subr.bf16.mxu0 0
    %4865 = vmatpush2.bf16.msra.mxu0 %v3173
    %4866 = vmatprep.subr.bf16.mxu0 0
    %4867 = vmatpush2.bf16.msra.mxu0 %v3170
    %4868 = vmatprep.subr.bf16.mxu0 0
    %4869 = vmatpush2.bf16.msra.mxu0 %v3167
    %4870 = vmatprep.subr.bf16.mxu0 0
    %4871 = vmatpush2.bf16.msra.mxu0 %v3164
    %4872 = vmatprep.subr.bf16.mxu0 0
    %4873 = vmatpush2.bf16.msra.mxu0 %v3161
    %4874 = vmatprep.subr.bf16.mxu0 0
    %4875 = vmatpush2.bf16.msra.mxu0 %v3158
    %4876 = vmatprep.subr.bf16.mxu0 0
    %4877 = vmatpush2.bf16.msra.mxu0 %v3155
    %4878 = vmatprep.mubr.bf16.mxu0 %v891
    %4879 = vmatmul.mubr.bf16.gmra.mxu0 %v877
    %v4880 = vpop.f32.mrf.mxu0
    %v4881 = vadd.f32 %v4841, %v4880
    %v4882 = vpop.f32.mrf.mxu0
    %v4883 = vpop.f32.mrf.mxu0
    %v4884 = vpop.f32.mrf.mxu0
    %4885 = vdwg.mxu0
    %4886 = vmatprep.subr.bf16.mxu0 0
    %4887 = vmatpush1.bf16.msra.mxu0 %v3200
    %4888 = vmatprep.subr.bf16.mxu0 0
    %4889 = vmatpush1.bf16.msra.mxu0 %v3197
    %4890 = vmatprep.subr.bf16.mxu0 0
    %4891 = vmatpush1.bf16.msra.mxu0 %v3194
    %4892 = vmatprep.subr.bf16.mxu0 0
    %4893 = vmatpush1.bf16.msra.mxu0 %v3191
    %4894 = vmatprep.subr.bf16.mxu0 0
    %4895 = vmatpush1.bf16.msra.mxu0 %v3188
    %4896 = vmatprep.subr.bf16.mxu0 0
    %4897 = vmatpush1.bf16.msra.mxu0 %v3185
    %4898 = vmatprep.subr.bf16.mxu0 0
    %4899 = vmatpush1.bf16.msra.mxu0 %v3182
    %4900 = vmatprep.subr.bf16.mxu0 0
    %4901 = vmatpush1.bf16.msra.mxu0 %v3179
    %4902 = vmatprep.subr.bf16.mxu0 0
    %4903 = vmatpush2.bf16.msra.mxu0 %v3224
    %4904 = vmatprep.subr.bf16.mxu0 0
    %4905 = vmatpush2.bf16.msra.mxu0 %v3221
    %4906 = vmatprep.subr.bf16.mxu0 0
    %4907 = vmatpush2.bf16.msra.mxu0 %v3218
    %4908 = vmatprep.subr.bf16.mxu0 0
    %4909 = vmatpush2.bf16.msra.mxu0 %v3215
    %4910 = vmatprep.subr.bf16.mxu0 0
    %4911 = vmatpush2.bf16.msra.mxu0 %v3212
    %4912 = vmatprep.subr.bf16.mxu0 0
    %4913 = vmatpush2.bf16.msra.mxu0 %v3209
    %4914 = vmatprep.subr.bf16.mxu0 0
    %4915 = vmatpush2.bf16.msra.mxu0 %v3206
    %4916 = vmatprep.subr.bf16.mxu0 0
    %4917 = vmatpush2.bf16.msra.mxu0 %v3203
    %4918 = vmatprep.mubr.bf16.mxu0 %v895
    %4919 = vmatmul.mubr.bf16.gmra.mxu0 %v893
    %v4920 = vpop.f32.mrf.mxu0
    %v4921 = vadd.f32 %v4881, %v4920
    %v4922 = vpop.f32.mrf.mxu0
    %v4923 = vpop.f32.mrf.mxu0
    %v4924 = vpop.f32.mrf.mxu0
    %4925 = vdwg.mxu0
    %4926 = vmatprep.subr.bf16.mxu0 0
    %4927 = vmatpush1.bf16.msra.mxu0 %v3248
    %4928 = vmatprep.subr.bf16.mxu0 0
    %4929 = vmatpush1.bf16.msra.mxu0 %v3245
    %4930 = vmatprep.subr.bf16.mxu0 0
    %4931 = vmatpush1.bf16.msra.mxu0 %v3242
    %4932 = vmatprep.subr.bf16.mxu0 0
    %4933 = vmatpush1.bf16.msra.mxu0 %v3239
    %4934 = vmatprep.subr.bf16.mxu0 0
    %4935 = vmatpush1.bf16.msra.mxu0 %v3236
    %4936 = vmatprep.subr.bf16.mxu0 0
    %4937 = vmatpush1.bf16.msra.mxu0 %v3233
    %4938 = vmatprep.subr.bf16.mxu0 0
    %4939 = vmatpush1.bf16.msra.mxu0 %v3230
    %4940 = vmatprep.subr.bf16.mxu0 0
    %4941 = vmatpush1.bf16.msra.mxu0 %v3227
    %4942 = vmatprep.subr.bf16.mxu0 0
    %4943 = vmatpush2.bf16.msra.mxu0 %v3272
    %4944 = vmatprep.subr.bf16.mxu0 0
    %4945 = vmatpush2.bf16.msra.mxu0 %v3269
    %4946 = vmatprep.subr.bf16.mxu0 0
    %4947 = vmatpush2.bf16.msra.mxu0 %v3266
    %4948 = vmatprep.subr.bf16.mxu0 0
    %4949 = vmatpush2.bf16.msra.mxu0 %v3263
    %4950 = vmatprep.subr.bf16.mxu0 0
    %4951 = vmatpush2.bf16.msra.mxu0 %v3260
    %4952 = vmatprep.subr.bf16.mxu0 0
    %4953 = vmatpush2.bf16.msra.mxu0 %v3257
    %4954 = vmatprep.subr.bf16.mxu0 0
    %4955 = vmatpush2.bf16.msra.mxu0 %v3254
    %4956 = vmatprep.subr.bf16.mxu0 0
    %4957 = vmatpush2.bf16.msra.mxu0 %v3251
    %4958 = vmatprep.mubr.bf16.mxu0 %v933
    %4959 = vmatmul.mubr.bf16.gmra.mxu0 %v919
    %v4960 = vpop.f32.mrf.mxu0
    %v4961 = vadd.f32 %v4921, %v4960
    %v4962 = vpop.f32.mrf.mxu0
    %v4963 = vpop.f32.mrf.mxu0
    %v4964 = vpop.f32.mrf.mxu0
    %4965 = vdwg.mxu0
    %4966 = vmatprep.subr.bf16.mxu0 0
    %4967 = vmatpush1.bf16.msra.mxu0 %v3296
    %4968 = vmatprep.subr.bf16.mxu0 0
    %4969 = vmatpush1.bf16.msra.mxu0 %v3293
    %4970 = vmatprep.subr.bf16.mxu0 0
    %4971 = vmatpush1.bf16.msra.mxu0 %v3290
    %4972 = vmatprep.subr.bf16.mxu0 0
    %4973 = vmatpush1.bf16.msra.mxu0 %v3287
    %4974 = vmatprep.subr.bf16.mxu0 0
    %4975 = vmatpush1.bf16.msra.mxu0 %v3284
    %4976 = vmatprep.subr.bf16.mxu0 0
    %4977 = vmatpush1.bf16.msra.mxu0 %v3281
    %4978 = vmatprep.subr.bf16.mxu0 0
    %4979 = vmatpush1.bf16.msra.mxu0 %v3278
    %4980 = vmatprep.subr.bf16.mxu0 0
    %4981 = vmatpush1.bf16.msra.mxu0 %v3275
    %4982 = vmatprep.subr.bf16.mxu0 0
    %4983 = vmatpush2.bf16.msra.mxu0 %v3320
    %4984 = vmatprep.subr.bf16.mxu0 0
    %4985 = vmatpush2.bf16.msra.mxu0 %v3317
    %4986 = vmatprep.subr.bf16.mxu0 0
    %4987 = vmatpush2.bf16.msra.mxu0 %v3314
    %4988 = vmatprep.subr.bf16.mxu0 0
    %4989 = vmatpush2.bf16.msra.mxu0 %v3311
    %4990 = vmatprep.subr.bf16.mxu0 0
    %4991 = vmatpush2.bf16.msra.mxu0 %v3308
    %4992 = vmatprep.subr.bf16.mxu0 0
    %4993 = vmatpush2.bf16.msra.mxu0 %v3305
    %4994 = vmatprep.subr.bf16.mxu0 0
    %4995 = vmatpush2.bf16.msra.mxu0 %v3302
    %4996 = vmatprep.subr.bf16.mxu0 0
    %4997 = vmatpush2.bf16.msra.mxu0 %v3299
    %4998 = vmatprep.mubr.bf16.mxu0 %v943
    %4999 = vmatmul.mubr.bf16.gmra.mxu0 %v941
    %v5000 = vpop.f32.mrf.mxu0
    %v5001 = vadd.f32 %v4961, %v5000
    %v5002 = vpop.f32.mrf.mxu0
    %v5003 = vpop.f32.mrf.mxu0
    %v5004 = vpop.f32.mrf.mxu0
    %5005 = vdwg.mxu0
    %5006 = vmatprep.subr.bf16.mxu0 0
    %5007 = vmatpush1.bf16.msra.mxu0 %v3344
    %5008 = vmatprep.subr.bf16.mxu0 0
    %5009 = vmatpush1.bf16.msra.mxu0 %v3341
    %5010 = vmatprep.subr.bf16.mxu0 0
    %5011 = vmatpush1.bf16.msra.mxu0 %v3338
    %5012 = vmatprep.subr.bf16.mxu0 0
    %5013 = vmatpush1.bf16.msra.mxu0 %v3335
    %5014 = vmatprep.subr.bf16.mxu0 0
    %5015 = vmatpush1.bf16.msra.mxu0 %v3332
    %5016 = vmatprep.subr.bf16.mxu0 0
    %5017 = vmatpush1.bf16.msra.mxu0 %v3329
    %5018 = vmatprep.subr.bf16.mxu0 0
    %5019 = vmatpush1.bf16.msra.mxu0 %v3326
    %5020 = vmatprep.subr.bf16.mxu0 0
    %5021 = vmatpush1.bf16.msra.mxu0 %v3323
    %5022 = vmatprep.subr.bf16.mxu0 0
    %5023 = vmatpush2.bf16.msra.mxu0 %v3368
    %5024 = vmatprep.subr.bf16.mxu0 0
    %5025 = vmatpush2.bf16.msra.mxu0 %v3365
    %5026 = vmatprep.subr.bf16.mxu0 0
    %5027 = vmatpush2.bf16.msra.mxu0 %v3362
    %5028 = vmatprep.subr.bf16.mxu0 0
    %5029 = vmatpush2.bf16.msra.mxu0 %v3359
    %5030 = vmatprep.subr.bf16.mxu0 0
    %5031 = vmatpush2.bf16.msra.mxu0 %v3356
    %5032 = vmatprep.subr.bf16.mxu0 0
    %5033 = vmatpush2.bf16.msra.mxu0 %v3353
    %5034 = vmatprep.subr.bf16.mxu0 0
    %5035 = vmatpush2.bf16.msra.mxu0 %v3350
    %5036 = vmatprep.subr.bf16.mxu0 0
    %5037 = vmatpush2.bf16.msra.mxu0 %v3347
    %5038 = vmatprep.mubr.bf16.mxu0 %v940
    %5039 = vmatmul.mubr.bf16.gmra.mxu0 %v926
    %v5040 = vpop.f32.mrf.mxu0
    %v5041 = vadd.f32 %v5001, %v5040
    %v5042 = vpop.f32.mrf.mxu0
    %v5043 = vpop.f32.mrf.mxu0
    %v5044 = vpop.f32.mrf.mxu0
    %5045 = vdwg.mxu0
    %5046 = vmatprep.subr.bf16.mxu0 0
    %5047 = vmatpush1.bf16.msra.mxu0 %v3392
    %5048 = vmatprep.subr.bf16.mxu0 0
    %5049 = vmatpush1.bf16.msra.mxu0 %v3389
    %5050 = vmatprep.subr.bf16.mxu0 0
    %5051 = vmatpush1.bf16.msra.mxu0 %v3386
    %5052 = vmatprep.subr.bf16.mxu0 0
    %5053 = vmatpush1.bf16.msra.mxu0 %v3383
    %5054 = vmatprep.subr.bf16.mxu0 0
    %5055 = vmatpush1.bf16.msra.mxu0 %v3380
    %5056 = vmatprep.subr.bf16.mxu0 0
    %5057 = vmatpush1.bf16.msra.mxu0 %v3377
    %5058 = vmatprep.subr.bf16.mxu0 0
    %5059 = vmatpush1.bf16.msra.mxu0 %v3374
    %5060 = vmatprep.subr.bf16.mxu0 0
    %5061 = vmatpush1.bf16.msra.mxu0 %v3371
    %5062 = vmatprep.subr.bf16.mxu0 0
    %5063 = vmatpush2.bf16.msra.mxu0 %v3416
    %5064 = vmatprep.subr.bf16.mxu0 0
    %5065 = vmatpush2.bf16.msra.mxu0 %v3413
    %5066 = vmatprep.subr.bf16.mxu0 0
    %5067 = vmatpush2.bf16.msra.mxu0 %v3410
    %5068 = vmatprep.subr.bf16.mxu0 0
    %5069 = vmatpush2.bf16.msra.mxu0 %v3407
    %5070 = vmatprep.subr.bf16.mxu0 0
    %5071 = vmatpush2.bf16.msra.mxu0 %v3404
    %5072 = vmatprep.subr.bf16.mxu0 0
    %5073 = vmatpush2.bf16.msra.mxu0 %v3401
    %5074 = vmatprep.subr.bf16.mxu0 0
    %5075 = vmatpush2.bf16.msra.mxu0 %v3398
    %5076 = vmatprep.subr.bf16.mxu0 0
    %5077 = vmatpush2.bf16.msra.mxu0 %v3395
    %5078 = vmatprep.mubr.bf16.mxu0 %v944
    %5079 = vmatmul.mubr.bf16.gmra.mxu0 %v942
    %v5080 = vpop.f32.mrf.mxu0
    %v5081 = vadd.f32 %v5041, %v5080
    %v5082 = vpop.f32.mrf.mxu0
    %v5083 = vpop.f32.mrf.mxu0
    %v5084 = vpop.f32.mrf.mxu0
    %5085 = vdwg.mxu0
    %5086 = vmatprep.subr.bf16.mxu0 0
    %5087 = vmatpush1.bf16.msra.mxu0 %v3440
    %5088 = vmatprep.subr.bf16.mxu0 0
    %5089 = vmatpush1.bf16.msra.mxu0 %v3437
    %5090 = vmatprep.subr.bf16.mxu0 0
    %5091 = vmatpush1.bf16.msra.mxu0 %v3434
    %5092 = vmatprep.subr.bf16.mxu0 0
    %5093 = vmatpush1.bf16.msra.mxu0 %v3431
    %5094 = vmatprep.subr.bf16.mxu0 0
    %5095 = vmatpush1.bf16.msra.mxu0 %v3428
    %5096 = vmatprep.subr.bf16.mxu0 0
    %5097 = vmatpush1.bf16.msra.mxu0 %v3425
    %5098 = vmatprep.subr.bf16.mxu0 0
    %5099 = vmatpush1.bf16.msra.mxu0 %v3422
    %5100 = vmatprep.subr.bf16.mxu0 0
    %5101 = vmatpush1.bf16.msra.mxu0 %v3419
    %5102 = vmatprep.subr.bf16.mxu0 0
    %5103 = vmatpush2.bf16.msra.mxu0 %v3464
    %5104 = vmatprep.subr.bf16.mxu0 0
    %5105 = vmatpush2.bf16.msra.mxu0 %v3461
    %5106 = vmatprep.subr.bf16.mxu0 0
    %5107 = vmatpush2.bf16.msra.mxu0 %v3458
    %5108 = vmatprep.subr.bf16.mxu0 0
    %5109 = vmatpush2.bf16.msra.mxu0 %v3455
    %5110 = vmatprep.subr.bf16.mxu0 0
    %5111 = vmatpush2.bf16.msra.mxu0 %v3452
    %5112 = vmatprep.subr.bf16.mxu0 0
    %5113 = vmatpush2.bf16.msra.mxu0 %v3449
    %5114 = vmatprep.subr.bf16.mxu0 0
    %5115 = vmatpush2.bf16.msra.mxu0 %v3446
    %5116 = vmatprep.subr.bf16.mxu0 0
    %5117 = vmatpush2.bf16.msra.mxu0 %v3443
    %5118 = vmatprep.mubr.bf16.mxu0 %v982
    %5119 = vmatmul.mubr.bf16.gmra.mxu0 %v968
    %v5120 = vpop.f32.mrf.mxu0
    %v5121 = vadd.f32 %v5081, %v5120
    %v5122 = vpop.f32.mrf.mxu0
    %v5123 = vpop.f32.mrf.mxu0
    %v5124 = vpop.f32.mrf.mxu0
    %5125 = vdwg.mxu0
    %5126 = vmatprep.subr.bf16.mxu0 0
    %5127 = vmatpush1.bf16.msra.mxu0 %v3488
    %5128 = vmatprep.subr.bf16.mxu0 0
    %5129 = vmatpush1.bf16.msra.mxu0 %v3485
    %5130 = vmatprep.subr.bf16.mxu0 0
    %5131 = vmatpush1.bf16.msra.mxu0 %v3482
    %5132 = vmatprep.subr.bf16.mxu0 0
    %5133 = vmatpush1.bf16.msra.mxu0 %v3479
    %5134 = vmatprep.subr.bf16.mxu0 0
    %5135 = vmatpush1.bf16.msra.mxu0 %v3476
    %5136 = vmatprep.subr.bf16.mxu0 0
    %5137 = vmatpush1.bf16.msra.mxu0 %v3473
    %5138 = vmatprep.subr.bf16.mxu0 0
    %5139 = vmatpush1.bf16.msra.mxu0 %v3470
    %5140 = vmatprep.subr.bf16.mxu0 0
    %5141 = vmatpush1.bf16.msra.mxu0 %v3467
    %5142 = vmatprep.subr.bf16.mxu0 0
    %5143 = vmatpush2.bf16.msra.mxu0 %v3512
    %5144 = vmatprep.subr.bf16.mxu0 0
    %5145 = vmatpush2.bf16.msra.mxu0 %v3509
    %5146 = vmatprep.subr.bf16.mxu0 0
    %5147 = vmatpush2.bf16.msra.mxu0 %v3506
    %5148 = vmatprep.subr.bf16.mxu0 0
    %5149 = vmatpush2.bf16.msra.mxu0 %v3503
    %5150 = vmatprep.subr.bf16.mxu0 0
    %5151 = vmatpush2.bf16.msra.mxu0 %v3500
    %5152 = vmatprep.subr.bf16.mxu0 0
    %5153 = vmatpush2.bf16.msra.mxu0 %v3497
    %5154 = vmatprep.subr.bf16.mxu0 0
    %5155 = vmatpush2.bf16.msra.mxu0 %v3494
    %5156 = vmatprep.subr.bf16.mxu0 0
    %5157 = vmatpush2.bf16.msra.mxu0 %v3491
    %5158 = vmatprep.mubr.bf16.mxu0 %v992
    %5159 = vmatmul.mubr.bf16.gmra.mxu0 %v990
    %v5160 = vpop.f32.mrf.mxu0
    %v5161 = vadd.f32 %v5121, %v5160
    %v5162 = vpop.f32.mrf.mxu0
    %v5163 = vpop.f32.mrf.mxu0
    %v5164 = vpop.f32.mrf.mxu0
    %5165 = vdwg.mxu0
    %5166 = vmatprep.subr.bf16.mxu0 0
    %5167 = vmatpush1.bf16.msra.mxu0 %v3536
    %5168 = vmatprep.subr.bf16.mxu0 0
    %5169 = vmatpush1.bf16.msra.mxu0 %v3533
    %5170 = vmatprep.subr.bf16.mxu0 0
    %5171 = vmatpush1.bf16.msra.mxu0 %v3530
    %5172 = vmatprep.subr.bf16.mxu0 0
    %5173 = vmatpush1.bf16.msra.mxu0 %v3527
    %5174 = vmatprep.subr.bf16.mxu0 0
    %5175 = vmatpush1.bf16.msra.mxu0 %v3524
    %5176 = vmatprep.subr.bf16.mxu0 0
    %5177 = vmatpush1.bf16.msra.mxu0 %v3521
    %5178 = vmatprep.subr.bf16.mxu0 0
    %5179 = vmatpush1.bf16.msra.mxu0 %v3518
    %5180 = vmatprep.subr.bf16.mxu0 0
    %5181 = vmatpush1.bf16.msra.mxu0 %v3515
    %5182 = vmatprep.subr.bf16.mxu0 0
    %5183 = vmatpush2.bf16.msra.mxu0 %v3560
    %5184 = vmatprep.subr.bf16.mxu0 0
    %5185 = vmatpush2.bf16.msra.mxu0 %v3557
    %5186 = vmatprep.subr.bf16.mxu0 0
    %5187 = vmatpush2.bf16.msra.mxu0 %v3554
    %5188 = vmatprep.subr.bf16.mxu0 0
    %5189 = vmatpush2.bf16.msra.mxu0 %v3551
    %5190 = vmatprep.subr.bf16.mxu0 0
    %5191 = vmatpush2.bf16.msra.mxu0 %v3548
    %5192 = vmatprep.subr.bf16.mxu0 0
    %5193 = vmatpush2.bf16.msra.mxu0 %v3545
    %5194 = vmatprep.subr.bf16.mxu0 0
    %5195 = vmatpush2.bf16.msra.mxu0 %v3542
    %5196 = vmatprep.subr.bf16.mxu0 0
    %5197 = vmatpush2.bf16.msra.mxu0 %v3539
    %5198 = vmatprep.mubr.bf16.mxu0 %v989
    %5199 = vmatmul.mubr.bf16.gmra.mxu0 %v975
    %v5200 = vpop.f32.mrf.mxu0
    %v5201 = vadd.f32 %v5161, %v5200
    %v5202 = vpop.f32.mrf.mxu0
    %v5203 = vpop.f32.mrf.mxu0
    %v5204 = vpop.f32.mrf.mxu0
    %5205 = vdwg.mxu0
    %5206 = vmatprep.subr.bf16.mxu0 0
    %5207 = vmatpush1.bf16.msra.mxu0 %v3584
    %5208 = vmatprep.subr.bf16.mxu0 0
    %5209 = vmatpush1.bf16.msra.mxu0 %v3581
    %5210 = vmatprep.subr.bf16.mxu0 0
    %5211 = vmatpush1.bf16.msra.mxu0 %v3578
    %5212 = vmatprep.subr.bf16.mxu0 0
    %5213 = vmatpush1.bf16.msra.mxu0 %v3575
    %5214 = vmatprep.subr.bf16.mxu0 0
    %5215 = vmatpush1.bf16.msra.mxu0 %v3572
    %5216 = vmatprep.subr.bf16.mxu0 0
    %5217 = vmatpush1.bf16.msra.mxu0 %v3569
    %5218 = vmatprep.subr.bf16.mxu0 0
    %5219 = vmatpush1.bf16.msra.mxu0 %v3566
    %5220 = vmatprep.subr.bf16.mxu0 0
    %5221 = vmatpush1.bf16.msra.mxu0 %v3563
    %5222 = vmatprep.subr.bf16.mxu0 0
    %5223 = vmatpush2.bf16.msra.mxu0 %v3608
    %5224 = vmatprep.subr.bf16.mxu0 0
    %5225 = vmatpush2.bf16.msra.mxu0 %v3605
    %5226 = vmatprep.subr.bf16.mxu0 0
    %5227 = vmatpush2.bf16.msra.mxu0 %v3602
    %5228 = vmatprep.subr.bf16.mxu0 0
    %5229 = vmatpush2.bf16.msra.mxu0 %v3599
    %5230 = vmatprep.subr.bf16.mxu0 0
    %5231 = vmatpush2.bf16.msra.mxu0 %v3596
    %5232 = vmatprep.subr.bf16.mxu0 0
    %5233 = vmatpush2.bf16.msra.mxu0 %v3593
    %5234 = vmatprep.subr.bf16.mxu0 0
    %5235 = vmatpush2.bf16.msra.mxu0 %v3590
    %5236 = vmatprep.subr.bf16.mxu0 0
    %5237 = vmatpush2.bf16.msra.mxu0 %v3587
    %5238 = vmatprep.mubr.bf16.mxu0 %v993
    %5239 = vmatmul.mubr.bf16.gmra.mxu0 %v991
    %v5240 = vpop.f32.mrf.mxu0
    %v5241 = vadd.f32 %v5201, %v5240
    %v5242 = vpop.f32.mrf.mxu0
    %v5243 = vpop.f32.mrf.mxu0
    %v5244 = vpop.f32.mrf.mxu0
    %5245 = vdwg.mxu0
    %5246 = vmatprep.subr.bf16.mxu0 0
    %5247 = vmatpush1.bf16.msra.mxu0 %v3632
    %5248 = vmatprep.subr.bf16.mxu0 0
    %5249 = vmatpush1.bf16.msra.mxu0 %v3629
    %5250 = vmatprep.subr.bf16.mxu0 0
    %5251 = vmatpush1.bf16.msra.mxu0 %v3626
    %5252 = vmatprep.subr.bf16.mxu0 0
    %5253 = vmatpush1.bf16.msra.mxu0 %v3623
    %5254 = vmatprep.subr.bf16.mxu0 0
    %5255 = vmatpush1.bf16.msra.mxu0 %v3620
    %5256 = vmatprep.subr.bf16.mxu0 0
    %5257 = vmatpush1.bf16.msra.mxu0 %v3617
    %5258 = vmatprep.subr.bf16.mxu0 0
    %5259 = vmatpush1.bf16.msra.mxu0 %v3614
    %5260 = vmatprep.subr.bf16.mxu0 0
    %5261 = vmatpush1.bf16.msra.mxu0 %v3611
    %5262 = vmatprep.subr.bf16.mxu0 0
    %5263 = vmatpush2.bf16.msra.mxu0 0
    %5264 = vmatprep.subr.bf16.mxu0 0
    %5265 = vmatpush2.bf16.msra.mxu0 0
    %5266 = vmatprep.subr.bf16.mxu0 0
    %5267 = vmatpush2.bf16.msra.mxu0 0
    %5268 = vmatprep.subr.bf16.mxu0 0
    %5269 = vmatpush2.bf16.msra.mxu0 0
    %5270 = vmatprep.subr.bf16.mxu0 0
    %5271 = vmatpush2.bf16.msra.mxu0 0
    %5272 = vmatprep.subr.bf16.mxu0 0
    %5273 = vmatpush2.bf16.msra.mxu0 0
    %5274 = vmatprep.subr.bf16.mxu0 0
    %5275 = vmatpush2.bf16.msra.mxu0 0
    %5276 = vmatprep.subr.bf16.mxu0 0
    %5277 = vmatpush2.bf16.msra.mxu0 0
    %5278 = vmatprep.mubr.bf16.mxu0 0
    %5279 = vmatmul.mubr.bf16.gmra.mxu0 %v1007
    %v5280 = vpop.f32.mrf.mxu0
    %v5281 = vadd.f32 %v5241, %v5280
    %v5282 = vpop.f32.mrf.mxu0
    %v5283 = vpop.f32.mrf.mxu0
    %v5284 = vpop.f32.mrf.mxu0
    %5285 = vdwg.mxu0
    %v5286 = vmax.f32 %v4760, 0.0
    %v5287 = vmax.f32 %v4762, 0.0
    %v5288 = vmax.f32 %v5281, 0.0
    %v5289 = vpack.c.bf16 %v5286, %v5286
    %v5290 = vpack.c.bf16 %v5287, %v5287
    %v5291 = vpack.c.bf16 %v5288, %v5288
    %v5292 = vld [vmem:[%s3] sm:$0xf]
    %v5293 = vld [vmem:[%s3 + $0x4] sm:$0xf]
    %v5294 = vld [vmem:[%s3 + $0x8] sm:$0xf]
    %v5295 = vld [vmem:[%s3 + $0xc] sm:$0xf]
    %v5296 = vld [vmem:[%s3 + $0x10] sm:$0xf]
    %v5297 = vld [vmem:[%s3 + $0x14] sm:$0xf]
    %v5298 = vld [vmem:[%s3 + $0x18] sm:$0xf]
    %v5299 = vld [vmem:[%s3 + $0x1c] sm:$0xf]
    %v5300 = vld [vmem:[%s3 + $0x20] sm:$0xf]
    %v5301 = vld [vmem:[%s3 + $0x24] sm:$0xf]
    %v5302 = vld [vmem:[%s3 + $0x28] sm:$0xf]
    %v5303 = vld [vmem:[%s3 + $0x2c] sm:$0xf]
    %v5304 = vld [vmem:[%s3 + $0x30] sm:$0xf]
    %v5305 = vld [vmem:[%s3 + $0x34] sm:$0xf]
    %v5306 = vld [vmem:[%s3 + $0x38] sm:$0xf]
    %v5307 = vld [vmem:[%s3 + $0x3c] sm:$0xf]
    %v5308 = vld [vmem:[%s3 + $0x40] sm:$0xf]
    %v5309 = vld [vmem:[%s3 + $0x44] sm:$0xf]
    %v5310 = vld [vmem:[%s3 + $0x48] sm:$0xf]
    %v5311 = vld [vmem:[%s3 + $0x4c] sm:$0xf]
    %v5312 = vld [vmem:[%s3 + $0x50] sm:$0xf]
    %v5313 = vld [vmem:[%s3 + $0x54] sm:$0xf]
    %v5314 = vld [vmem:[%s3 + $0x58] sm:$0xf]
    %v5315 = vld [vmem:[%s3 + $0x5c] sm:$0xf]
    %v5316 = vld [vmem:[%s3 + $0x60] sm:$0xf]
    %v5317 = vld [vmem:[%s3 + $0x64] sm:$0xf]
    %v5318 = vld [vmem:[%s3 + $0x68] sm:$0xf]
    %v5319 = vld [vmem:[%s3 + $0x6c] sm:$0xf]
    %v5320 = vld [vmem:[%s3 + $0x70] sm:$0xf]
    %v5321 = vld [vmem:[%s3 + $0x74] sm:$0xf]
    %v5322 = vld [vmem:[%s3 + $0x78] sm:$0xf]
    %v5323 = vld [vmem:[%s3 + $0x7c] sm:$0xf]
    %v5324 = vld [vmem:[%s3 + $0x80] sm:$0xf]
    %v5325 = vld [vmem:[%s3 + $0x84] sm:$0xf]
    %v5326 = vld [vmem:[%s3 + $0x88] sm:$0xf]
    %v5327 = vld [vmem:[%s3 + $0x8c] sm:$0xf]
    %v5328 = vld [vmem:[%s3 + $0x90] sm:$0xf]
    %v5329 = vld [vmem:[%s3 + $0x94] sm:$0xf]
    %v5330 = vld [vmem:[%s3 + $0x98] sm:$0xf]
    %v5331 = vld [vmem:[%s3 + $0x9c] sm:$0xf]
    %v5332 = vld [vmem:[%s3 + $0xa0] sm:$0xf]
    %v5333 = vld [vmem:[%s3 + $0xa4] sm:$0xf]
    %v5334 = vld [vmem:[%s3 + $0xa8] sm:$0xf]
    %v5335 = vld [vmem:[%s3 + $0xac] sm:$0xf]
    %v5336 = vld [vmem:[%s3 + $0xb0] sm:$0xf]
    %v5337 = vld [vmem:[%s3 + $0xb4] sm:$0xf]
    %v5338 = vld [vmem:[%s3 + $0xb8] sm:$0xf]
    %v5339 = vld [vmem:[%s3 + $0xbc] sm:$0xf]
    %v5340 = vld [vmem:[%s4] sm:$0x1]
    %v5342 = vlaneseq
    %v5343 = vshrl.u32 %v5342, 7
    %v5344 = vsub.s32 0, %v5343
    %v5345 = vrot.slane %v5340, %v5344
    %v5395 = vunpack.c.l.b16 %v5292
    %v5396 = vunpack.c.l.b16 %v5293
    %v5397 = vunpack.c.l.b16 %v5294
    %v5398 = vunpack.c.l.b16 %v5295
    %v5399 = vunpack.c.l.b16 %v5296
    %v5400 = vunpack.c.l.b16 %v5297
    %v5401 = vunpack.c.l.b16 %v5298
    %v5402 = vunpack.c.l.b16 %v5299
    %v5403 = vunpack.c.l.b16 %v5300
    %v5404 = vunpack.c.l.b16 %v5301
    %v5405 = vunpack.c.l.b16 %v5302
    %v5406 = vunpack.c.l.b16 %v5303
    %v5407 = vunpack.c.l.b16 %v5304
    %v5408 = vunpack.c.l.b16 %v5305
    %v5409 = vunpack.c.l.b16 %v5306
    %v5410 = vunpack.c.l.b16 %v5307
    %v5411 = vunpack.c.l.b16 %v5308
    %v5412 = vunpack.c.l.b16 %v5309
    %v5413 = vunpack.c.l.b16 %v5310
    %v5414 = vunpack.c.l.b16 %v5311
    %v5415 = vunpack.c.l.b16 %v5312
    %v5416 = vunpack.c.l.b16 %v5313
    %v5417 = vunpack.c.l.b16 %v5314
    %v5418 = vunpack.c.l.b16 %v5315
    %v5419 = vunpack.c.l.b16 %v5316
    %v5420 = vunpack.c.l.b16 %v5317
    %v5421 = vunpack.c.l.b16 %v5318
    %v5422 = vunpack.c.l.b16 %v5319
    %v5423 = vunpack.c.l.b16 %v5320
    %v5424 = vunpack.c.l.b16 %v5321
    %v5425 = vunpack.c.l.b16 %v5322
    %v5426 = vunpack.c.l.b16 %v5323
    %v5427 = vunpack.c.l.b16 %v5324
    %v5428 = vunpack.c.l.b16 %v5325
    %v5429 = vunpack.c.l.b16 %v5326
    %v5430 = vunpack.c.l.b16 %v5327
    %v5431 = vunpack.c.l.b16 %v5328
    %v5432 = vunpack.c.l.b16 %v5329
    %v5433 = vunpack.c.l.b16 %v5330
    %v5434 = vunpack.c.l.b16 %v5331
    %v5435 = vunpack.c.l.b16 %v5332
    %v5436 = vunpack.c.l.b16 %v5333
    %v5437 = vunpack.c.l.b16 %v5334
    %v5438 = vunpack.c.l.b16 %v5335
    %v5439 = vunpack.c.l.b16 %v5336
    %v5440 = vunpack.c.l.b16 %v5337
    %v5441 = vunpack.c.l.b16 %v5338
    %v5442 = vunpack.c.l.b16 %v5339
    %v5443 = vpack.c.b16 %v5396, %v5395
    %v5444 = vpack.c.b16 %v5398, %v5397
    %v5445 = vpack.c.b16 %v5400, %v5399
    %v5446 = vpack.c.b16 %v5402, %v5401
    %v5447 = vpack.c.b16 %v5404, %v5403
    %v5448 = vpack.c.b16 %v5406, %v5405
    %v5449 = vpack.c.b16 %v5408, %v5407
    %v5450 = vpack.c.b16 %v5410, %v5409
    %v5451 = vpack.c.b16 %v5412, %v5411
    %v5452 = vpack.c.b16 %v5414, %v5413
    %v5453 = vpack.c.b16 %v5416, %v5415
    %v5454 = vpack.c.b16 %v5418, %v5417
    %v5455 = vpack.c.b16 %v5420, %v5419
    %v5456 = vpack.c.b16 %v5422, %v5421
    %v5457 = vpack.c.b16 %v5424, %v5423
    %v5458 = vpack.c.b16 %v5426, %v5425
    %v5459 = vpack.c.b16 %v5428, %v5427
    %v5460 = vpack.c.b16 %v5430, %v5429
    %v5461 = vpack.c.b16 %v5432, %v5431
    %v5462 = vpack.c.b16 %v5434, %v5433
    %v5463 = vpack.c.b16 %v5436, %v5435
    %v5464 = vpack.c.b16 %v5438, %v5437
    %v5465 = vpack.c.b16 %v5440, %v5439
    %v5466 = vpack.c.b16 %v5442, %v5441
    %5491 = vmatprep.subr.bf16.mxu0 0
    %5492 = vmatpush1.bf16.msra.mxu0 %v5450
    %5493 = vmatprep.subr.bf16.mxu0 0
    %5494 = vmatpush1.bf16.msra.mxu0 %v5449
    %5495 = vmatprep.subr.bf16.mxu0 0
    %5496 = vmatpush1.bf16.msra.mxu0 %v5448
    %5497 = vmatprep.subr.bf16.mxu0 0
    %5498 = vmatpush1.bf16.msra.mxu0 %v5447
    %5499 = vmatprep.subr.bf16.mxu0 0
    %5500 = vmatpush1.bf16.msra.mxu0 %v5446
    %5501 = vmatprep.subr.bf16.mxu0 0
    %5502 = vmatpush1.bf16.msra.mxu0 %v5445
    %5503 = vmatprep.subr.bf16.mxu0 0
    %5504 = vmatpush1.bf16.msra.mxu0 %v5444
    %5505 = vmatprep.subr.bf16.mxu0 0
    %5506 = vmatpush1.bf16.msra.mxu0 %v5443
    %5507 = vmatprep.subr.bf16.mxu0 0
    %5508 = vmatpush2.bf16.msra.mxu0 %v5458
    %5509 = vmatprep.subr.bf16.mxu0 0
    %5510 = vmatpush2.bf16.msra.mxu0 %v5457
    %5511 = vmatprep.subr.bf16.mxu0 0
    %5512 = vmatpush2.bf16.msra.mxu0 %v5456
    %5513 = vmatprep.subr.bf16.mxu0 0
    %5514 = vmatpush2.bf16.msra.mxu0 %v5455
    %5515 = vmatprep.subr.bf16.mxu0 0
    %5516 = vmatpush2.bf16.msra.mxu0 %v5454
    %5517 = vmatprep.subr.bf16.mxu0 0
    %5518 = vmatpush2.bf16.msra.mxu0 %v5453
    %5519 = vmatprep.subr.bf16.mxu0 0
    %5520 = vmatpush2.bf16.msra.mxu0 %v5452
    %5521 = vmatprep.subr.bf16.mxu0 0
    %5522 = vmatpush2.bf16.msra.mxu0 %v5451
    %5523 = vmatprep.mubr.bf16.mxu0 %v5290
    %5524 = vmatmul.mubr.bf16.gmra.mxu0 %v5289
    %v5525 = vpop.f32.mrf.mxu0
    %v5526 = vadd.f32 %v5345, %v5525
    %v5527 = vpop.f32.mrf.mxu0
    %v5528 = vpop.f32.mrf.mxu0
    %v5529 = vpop.f32.mrf.mxu0
    %5530 = vdwg.mxu0
    %5531 = vmatprep.subr.bf16.mxu0 0
    %5532 = vmatpush1.bf16.msra.mxu0 %v5466
    %5533 = vmatprep.subr.bf16.mxu0 0
    %5534 = vmatpush1.bf16.msra.mxu0 %v5465
    %5535 = vmatprep.subr.bf16.mxu0 0
    %5536 = vmatpush1.bf16.msra.mxu0 %v5464
    %5537 = vmatprep.subr.bf16.mxu0 0
    %5538 = vmatpush1.bf16.msra.mxu0 %v5463
    %5539 = vmatprep.subr.bf16.mxu0 0
    %5540 = vmatpush1.bf16.msra.mxu0 %v5462
    %5541 = vmatprep.subr.bf16.mxu0 0
    %5542 = vmatpush1.bf16.msra.mxu0 %v5461
    %5543 = vmatprep.subr.bf16.mxu0 0
    %5544 = vmatpush1.bf16.msra.mxu0 %v5460
    %5545 = vmatprep.subr.bf16.mxu0 0
    %5546 = vmatpush1.bf16.msra.mxu0 %v5459
    %5547 = vmatprep.subr.bf16.mxu0 0
    %5548 = vmatpush2.bf16.msra.mxu0 0
    %5549 = vmatprep.subr.bf16.mxu0 0
    %5550 = vmatpush2.bf16.msra.mxu0 0
    %5551 = vmatprep.subr.bf16.mxu0 0
    %5552 = vmatpush2.bf16.msra.mxu0 0
    %5553 = vmatprep.subr.bf16.mxu0 0
    %5554 = vmatpush2.bf16.msra.mxu0 0
    %5555 = vmatprep.subr.bf16.mxu0 0
    %5556 = vmatpush2.bf16.msra.mxu0 0
    %5557 = vmatprep.subr.bf16.mxu0 0
    %5558 = vmatpush2.bf16.msra.mxu0 0
    %5559 = vmatprep.subr.bf16.mxu0 0
    %5560 = vmatpush2.bf16.msra.mxu0 0
    %5561 = vmatprep.subr.bf16.mxu0 0
    %5562 = vmatpush2.bf16.msra.mxu0 0
    %5563 = vmatprep.mubr.bf16.mxu0 0
    %5564 = vmatmul.mubr.bf16.gmra.mxu0 %v5291
    %v5565 = vpop.f32.mrf.mxu0
    %v5566 = vadd.f32 %v5526, %v5565
    %v5567 = vpop.f32.mrf.mxu0
    %v5568 = vpop.f32.mrf.mxu0
    %v5569 = vpop.f32.mrf.mxu0
    %5570 = vdwg.mxu0
    %5571 = vst [vmem:[#allocation2] sm:$0x3] %v5566
    // Predicated region
    $region22: #{dqn_forward.7} parent=1 // pred_check
      _
    $region23: #{dqn_forward.7} parent=1 // pred_check_branch
      %5573 = sbr.rel (0) target = $region25
    $region24: #{dqn_forward.7} parent=1 // pred_region
      %s5575 = ssub.s32 32, 32
      %5576 = vsyncadd [#allocation3], %s5575
      %s5578 = sshll.u32 [#allocation2], 4
      %s5579 = int_to_ptr.vmem [resolvable:$true] %s5578
      %5581 = dma.vmem_to_hbm [thread:$0]  %s5579, 32, %s5, [#allocation3]
    $region25: #{dqn_forward.7} parent=1 // pred_fallthru
      _
    // Predicated region
    $region26: #{dqn_forward.7} parent=1 // pred_check
      _
    $region27: #{dqn_forward.7} parent=1 // pred_check_branch
      %5583 = sbr.rel (0) target = $region29
    $region28: #{dqn_forward.7} parent=1 // pred_region
      %5584 = dma.done [#allocation3], 32
    $region29: #{dqn_forward.7} parent=1 // pred_fallthru
      _
    %5585 = vsyncpa [#allocation3], 1

</llo_original>
